<compile_context>
chip_gen: v7x
topology: tpu7x:2x2x1
jax: 0.10.0
libtpu: 0.0.40
codegen_flags: <defaults>
</compile_context>

<pallas_src>
from functools import partial

import jax
import jax.numpy as jnp
from jax import lax
from jax.experimental import pallas as pl
from jax.experimental.pallas import tpu as pltpu


# ----------------------------------------------------------------------------
# Fused kernel: 2-layer GRU + cosine similarity + top-K + graph-attention head.
# ----------------------------------------------------------------------------
def _sga_fused_kernel(
    x2d_ref,                                               # (T*N, F) time-major, flattened
    g0_wih_ref, g0_whh_ref, g0_bih_ref, g0_bhh_ref,        # GRU layer 0 (gate order r,z,n)
    g1_wih_ref, g1_whh_ref, g1_bih_ref, g1_bhh_ref,        # GRU layer 1
    head_w_ref, head_b_ref,                                # (5,H,H)/(5,1,H): hc, hs, fore, back, indi
    w_out_ref, b_out_ref,                                  # (H,1)/(1,1)
    o_ref,                                                 # (N, 1)
    *, N, T, K):
    f32 = jnp.float32
    H = g0_whh_ref.shape[-1]

    def mm(a, b):
        return jnp.dot(a, b, preferred_element_type=f32)

    def leaky(v):                                          # LeakyReLU(0.2)
        return jnp.where(v >= 0, v, 0.2 * v)

    # ---------------- GRU: hoist layer-0 input projection out of the loop ----
    x2d = x2d_ref[...]                                     # (T*N, F)
    gi0 = [mm(x2d, g0_wih_ref[g]) + g0_bih_ref[g] for g in range(3)]   # 3 x (T*N, H)

    u0 = [g0_whh_ref[g] for g in range(3)]
    bh0 = [g0_bhh_ref[g] for g in range(3)]
    w1 = [g1_wih_ref[g] for g in range(3)]
    bi1 = [g1_bih_ref[g] for g in range(3)]
    u1 = [g1_whh_ref[g] for g in range(3)]
    bh1 = [g1_bhh_ref[g] for g in range(3)]

    h0 = jnp.zeros((N, H), f32)
    h1 = jnp.zeros((N, H), f32)
    for t in range(T):                                     # fully unrolled (T static, tiny)
        lo = t * N
        r0 = jax.nn.sigmoid(gi0[0][lo:lo + N] + mm(h0, u0[0]) + bh0[0])
        z0 = jax.nn.sigmoid(gi0[1][lo:lo + N] + mm(h0, u0[1]) + bh0[1])
        n0 = jnp.tanh(gi0[2][lo:lo + N] + r0 * (mm(h0, u0[2]) + bh0[2]))
        h0 = (1.0 - z0) * n0 + z0 * h0

        r1 = jax.nn.sigmoid(mm(h0, w1[0]) + bi1[0] + mm(h1, u1[0]) + bh1[0])
        z1 = jax.nn.sigmoid(mm(h0, w1[1]) + bi1[1] + mm(h1, u1[1]) + bh1[1])
        n1 = jnp.tanh(mm(h0, w1[2]) + bi1[2] + r1 * (mm(h1, u1[2]) + bh1[2]))
        h1 = (1.0 - z1) * n1 + z1 * h1

    h = h1                                                 # (N, H) last-step output

    # ---------------- cosine similarity helpers ------------------------------
    def cos_sim(a, b):
        xy = lax.dot_general(a, b, (((1,), (1,)), ((), ())),
                             preferred_element_type=f32)
        an = jnp.sqrt(jnp.sum(a * a, axis=1, keepdims=True))
        bn = jnp.sqrt(jnp.sum(b * b, axis=1, keepdims=True))
        den = lax.dot_general(an, bn, (((1,), (1,)), ((), ())),
                              preferred_element_type=f32)
        s = xy / den
        return jnp.where(s != s, 0.0, s)                   # NaN -> 0

    row_i = lax.broadcasted_iota(jnp.int32, (N, N), 0)
    col_i = lax.broadcasted_iota(jnp.int32, (N, N), 1)
    eye = (row_i == col_i).astype(f32)
    col_f = col_i.astype(f32)

    sim = cos_sim(h, h)                                    # (N, N)
    diag_row = jnp.sum(sim * eye, axis=0, keepdims=True)   # (1, N) diagonal
    sim_off = sim * (1.0 - eye)

    # ---------------- in-kernel top-K per row (no scatter) -------------------
    work = jnp.abs(sim_off)
    mask = jnp.zeros((N, N), f32)
    for _ in range(K):
        m = jnp.max(work, axis=1, keepdims=True)           # (N, 1)
        is_max = work == m
        first = jnp.min(jnp.where(is_max, col_f, f32(N)), axis=1, keepdims=True)
        sel = (col_f == first).astype(f32)                 # first max per row
        mask = jnp.maximum(mask, sel)
        work = jnp.where(sel > 0.0, f32(-1e30), work)

    topk = sim_off * mask
    col_valid = (jnp.sum(topk, axis=0, keepdims=True) != 0.0).astype(f32)   # (1, N)
    topk = topk + eye * (col_valid * diag_row)             # diag_embed

    # ---------------- concept features / graph-attention head ----------------
    w_hc, w_hs, w_fore, w_back, w_indi = (head_w_ref[i] for i in range(5))
    b_hc, b_hs, b_fore, b_back, b_indi = (head_b_ref[i] for i in range(5))

    cf_raw = lax.dot_general(topk, h, (((0,), (0,)), ((), ())),
                             preferred_element_type=f32)   # (N, H) = topk^T @ h
    # reference drops concept rows with sum == 0; zero-mask is exactly equivalent
    keep = (jnp.sum(cf_raw, axis=1, keepdims=True) != 0.0).astype(f32)
    cf = leaky(mm(cf_raw, w_hc) + b_hc)

    csm = cos_sim(h, cf)                                   # (N stocks, N concepts)
    mcol = jnp.max(csm, axis=0, keepdims=True)
    e = jnp.exp(csm - mcol)
    attn = e / jnp.sum(e, axis=0, keepdims=True)           # softmax over stocks (dim 0)

    h_shared = mm(attn, cf * keep)
    h_shared = leaky(mm(h_shared, w_hs) + b_hs)
    back = leaky(mm(h_shared, w_back) + b_back)
    fore = leaky(mm(h_shared, w_fore) + b_fore)
    indi = h - back
    oindi = leaky(mm(indi, w_indi) + b_indi)
    all_info = fore + oindi
    o_ref[...] = mm(all_info, w_out_ref[...]) + b_out_ref[...]   # (N, 1)


# ----------------------------------------------------------------------------
# Wrapper: one pallas_call, everything VMEM-resident (all shapes are tiny).
# ----------------------------------------------------------------------------
@partial(jax.jit, static_argnums=(2,))
def sga_forward(params, x, K):
    # x: (individual_num N, seq_len T, feature_dim F) — torch batch_first layout.
    N, T, F = x.shape
    x2d = jnp.transpose(x.astype(jnp.float32), (1, 0, 2)).reshape(T * N, F)

    pred = pl.pallas_call(
        partial(_sga_fused_kernel, N=N, T=T, K=K),
        out_shape=jax.ShapeDtypeStruct((N, 1), jnp.float32),
        in_specs=[pl.BlockSpec(memory_space=pltpu.MemorySpace.VMEM)] * 13,
        out_specs=pl.BlockSpec(memory_space=pltpu.MemorySpace.VMEM),
    )(x2d,
      params["g0_wih"], params["g0_whh"], params["g0_bih"], params["g0_bhh"],
      params["g1_wih"], params["g1_whh"], params["g1_bih"], params["g1_bhh"],
      params["head_w"], params["head_b"], params["w_out"], params["b_out"])

    return pred[:, 0]                                      # (N,), like .squeeze()


# ----------------------------------------------------------------------------
# Parameter init (shapes match the PyTorch module; gate-separated storage).
# ----------------------------------------------------------------------------
def init_params(key, feature_dim, hidden_dim):
    H, F = hidden_dim, feature_dim
    keys = iter(jax.random.split(key, 16))

    def gru_u(k, shape):
        b = 1.0 / jnp.sqrt(jnp.float32(H))
        return jax.random.uniform(k, shape, jnp.float32, -b, b)

    def xavier(k, fan_in, fan_out):
        std = jnp.sqrt(2.0 / (fan_in + fan_out))
        return std * jax.random.normal(k, (fan_in, fan_out), jnp.float32)

    return {
        # GRU layer 0 (input F) and layer 1 (input H); gate order r, z, n
        "g0_wih": gru_u(next(keys), (3, F, H)),
        "g0_whh": gru_u(next(keys), (3, H, H)),
        "g0_bih": gru_u(next(keys), (3, 1, H)),
        "g0_bhh": gru_u(next(keys), (3, 1, H)),
        "g1_wih": gru_u(next(keys), (3, H, H)),
        "g1_whh": gru_u(next(keys), (3, H, H)),
        "g1_bih": gru_u(next(keys), (3, 1, H)),
        "g1_bhh": gru_u(next(keys), (3, 1, H)),
        # Linear layers (xavier_normal, bias 0.1): hc, hs, fore, back, indi
        "head_w": jnp.stack([xavier(next(keys), H, H) for _ in range(5)]),
        "head_b": jnp.full((5, 1, H), 0.1, jnp.float32),
        "w_out": xavier(next(keys), H, 1),
        "b_out": jnp.full((1, 1), 0.1, jnp.float32),
    }


# ----------------------------------------------------------------------------
# Pure-JAX reference (same math, HIGHEST precision dots) for a self-check.
# ----------------------------------------------------------------------------
def sga_reference(params, x, K):
    N, T, F = x.shape
    H = params["g0_whh"].shape[-1]
    dot = lambda a, b: jnp.dot(a, b, precision=lax.Precision.HIGHEST)
    leaky = lambda v: jnp.where(v >= 0, v, 0.2 * v)

    xt = jnp.transpose(x.astype(jnp.float32), (1, 0, 2))

    def cell(wih, whh, bih, bhh, xin, h):
        r = jax.nn.sigmoid(dot(xin, wih[0]) + bih[0] + dot(h, whh[0]) + bhh[0])
        z = jax.nn.sigmoid(dot(xin, wih[1]) + bih[1] + dot(h, whh[1]) + bhh[1])
        n = jnp.tanh(dot(xin, wih[2]) + bih[2] + r * (dot(h, whh[2]) + bhh[2]))
        return (1.0 - z) * n + z * h

    h0 = jnp.zeros((N, H), jnp.float32)
    h1 = jnp.zeros((N, H), jnp.float32)
    for t in range(T):
        h0 = cell(params["g0_wih"], params["g0_whh"], params["g0_bih"], params["g0_bhh"], xt[t], h0)
        h1 = cell(params["g1_wih"], params["g1_whh"], params["g1_bih"], params["g1_bhh"], h0, h1)
    h = h1

    def cos(a, b):
        s = dot(a, b.T) / dot(jnp.sqrt(jnp.sum(a * a, 1, keepdims=True)),
                              jnp.sqrt(jnp.sum(b * b, 1, keepdims=True)).T)
        return jnp.where(jnp.isnan(s), 0.0, s)

    sim = cos(h, h)
    diag = jnp.diagonal(sim)
    sim_off = sim * (1.0 - jnp.eye(N, dtype=jnp.float32))
    _, idx = lax.top_k(jnp.abs(sim_off), K)
    rows = jnp.repeat(jnp.arange(N), K)
    mask = jnp.zeros((N, N), jnp.float32).at[rows, idx.reshape(-1)].set(1.0)
    topk = sim_off * mask
    col_valid = (jnp.sum(topk, axis=0) != 0.0).astype(jnp.float32)
    topk = topk + jnp.diag(col_valid * diag)

    w_hc, w_hs, w_fore, w_back, w_indi = [params["head_w"][i] for i in range(5)]
    b_hc, b_hs, b_fore, b_back, b_indi = [params["head_b"][i] for i in range(5)]

    cf_raw = dot(topk.T, h)
    keep = (jnp.sum(cf_raw, axis=1, keepdims=True) != 0.0).astype(jnp.float32)
    cf = leaky(dot(cf_raw, w_hc) + b_hc)
    attn = jax.nn.softmax(cos(h, cf), axis=0)
    hs = dot(attn, cf * keep)
    hs = leaky(dot(hs, w_hs) + b_hs)
    back = leaky(dot(hs, w_back) + b_back)
    fore = leaky(dot(hs, w_fore) + b_fore)
    oindi = leaky(dot(h - back, w_indi) + b_indi)
    out = dot(fore + oindi, params["w_out"]) + params["b_out"]
    return out[:, 0]


if __name__ == "__main__":
    individual_num = 8      # stocks (batch)
    seq_len = 8
    feature_dim = 4
    hidden_dim = 32
    K = 3

    key = jax.random.PRNGKey(0)
    k_param, k_x = jax.random.split(key)

    params = init_params(k_param, feature_dim, hidden_dim)
    x = jax.random.normal(k_x, (individual_num, seq_len, feature_dim), jnp.float32)

    pred = sga_forward(params, x, K)
    pred = jax.block_until_ready(pred)
    assert pred.shape == (individual_num,)
    assert bool(jnp.all(jnp.isfinite(pred)))

    ref = sga_reference(params, x, K)
    assert bool(jnp.allclose(pred, ref, rtol=2e-3, atol=2e-3)), (pred, ref)
    print("KERNEL_OK")
</pallas_src>

<mosaic_0001>
module attributes {stable_mosaic.version = 11 : i64} {
  func.func @_sga_fused_kernel(%arg0: memref<64x4xf32, #tpu.memory_space<vmem>>, %arg1: memref<3x4x32xf32, #tpu.memory_space<vmem>>, %arg2: memref<3x32x32xf32, #tpu.memory_space<vmem>>, %arg3: memref<3x1x32xf32, #tpu.memory_space<vmem>>, %arg4: memref<3x1x32xf32, #tpu.memory_space<vmem>>, %arg5: memref<3x32x32xf32, #tpu.memory_space<vmem>>, %arg6: memref<3x32x32xf32, #tpu.memory_space<vmem>>, %arg7: memref<3x1x32xf32, #tpu.memory_space<vmem>>, %arg8: memref<3x1x32xf32, #tpu.memory_space<vmem>>, %arg9: memref<5x32x32xf32, #tpu.memory_space<vmem>>, %arg10: memref<5x1x32xf32, #tpu.memory_space<vmem>>, %arg11: memref<32x1xf32, #tpu.memory_space<vmem>>, %arg12: memref<1x1xf32, #tpu.memory_space<vmem>>, %arg13: memref<8x1xf32, #tpu.memory_space<vmem>>) attributes {dimension_semantics = [], scalar_prefetch = 0 : i64, scratch_operands = 0 : i64, tpu.core_type = #tpu.core_type<tc>} {
    %c0 = arith.constant 0 : index
    %c0_0 = arith.constant 0 : index
    %0 = vector.load %arg0[%c0, %c0_0] : memref<64x4xf32, #tpu.memory_space<vmem>>, vector<64x4xf32>
    %c0_1 = arith.constant 0 : index
    %c0_2 = arith.constant 0 : index
    %c0_3 = arith.constant 0 : index
    %1 = vector.load %arg1[%c0_1, %c0_2, %c0_3] : memref<3x4x32xf32, #tpu.memory_space<vmem>>, vector<1x4x32xf32>
    %2 = vector.shape_cast %1 : vector<1x4x32xf32> to vector<4x32xf32>
    %cst = arith.constant dense<0.000000e+00> : vector<64x32xf32>
    %3 = tpu.matmul %0, %2, %cst {dimension_numbers = #tpu.dot_dimension_numbers<[1], [0], [0], [1], [0, 0, 1, 1], [], []>} : vector<64x4xf32>, vector<4x32xf32>, vector<64x32xf32> -> vector<64x32xf32>
    %c0_4 = arith.constant 0 : index
    %c0_5 = arith.constant 0 : index
    %c0_6 = arith.constant 0 : index
    %4 = vector.load %arg3[%c0_4, %c0_5, %c0_6] : memref<3x1x32xf32, #tpu.memory_space<vmem>>, vector<1x1x32xf32>
    %5 = vector.shape_cast %4 : vector<1x1x32xf32> to vector<1x32xf32>
    %6 = vector.broadcast %5 : vector<1x32xf32> to vector<64x32xf32>
    %7 = arith.addf %3, %6 : vector<64x32xf32>
    %c1 = arith.constant 1 : index
    %c0_7 = arith.constant 0 : index
    %c0_8 = arith.constant 0 : index
    %8 = vector.load %arg1[%c1, %c0_7, %c0_8] : memref<3x4x32xf32, #tpu.memory_space<vmem>>, vector<1x4x32xf32>
    %9 = vector.shape_cast %8 : vector<1x4x32xf32> to vector<4x32xf32>
    %cst_9 = arith.constant dense<0.000000e+00> : vector<64x32xf32>
    %10 = tpu.matmul %0, %9, %cst_9 {dimension_numbers = #tpu.dot_dimension_numbers<[1], [0], [0], [1], [0, 0, 1, 1], [], []>} : vector<64x4xf32>, vector<4x32xf32>, vector<64x32xf32> -> vector<64x32xf32>
    %c1_10 = arith.constant 1 : index
    %c0_11 = arith.constant 0 : index
    %c0_12 = arith.constant 0 : index
    %11 = vector.load %arg3[%c1_10, %c0_11, %c0_12] : memref<3x1x32xf32, #tpu.memory_space<vmem>>, vector<1x1x32xf32>
    %12 = vector.shape_cast %11 : vector<1x1x32xf32> to vector<1x32xf32>
    %13 = vector.broadcast %12 : vector<1x32xf32> to vector<64x32xf32>
    %14 = arith.addf %10, %13 : vector<64x32xf32>
    %c2 = arith.constant 2 : index
    %c0_13 = arith.constant 0 : index
    %c0_14 = arith.constant 0 : index
    %15 = vector.load %arg1[%c2, %c0_13, %c0_14] : memref<3x4x32xf32, #tpu.memory_space<vmem>>, vector<1x4x32xf32>
    %16 = vector.shape_cast %15 : vector<1x4x32xf32> to vector<4x32xf32>
    %cst_15 = arith.constant dense<0.000000e+00> : vector<64x32xf32>
    %17 = tpu.matmul %0, %16, %cst_15 {dimension_numbers = #tpu.dot_dimension_numbers<[1], [0], [0], [1], [0, 0, 1, 1], [], []>} : vector<64x4xf32>, vector<4x32xf32>, vector<64x32xf32> -> vector<64x32xf32>
    %c2_16 = arith.constant 2 : index
    %c0_17 = arith.constant 0 : index
    %c0_18 = arith.constant 0 : index
    %18 = vector.load %arg3[%c2_16, %c0_17, %c0_18] : memref<3x1x32xf32, #tpu.memory_space<vmem>>, vector<1x1x32xf32>
    %19 = vector.shape_cast %18 : vector<1x1x32xf32> to vector<1x32xf32>
    %20 = vector.broadcast %19 : vector<1x32xf32> to vector<64x32xf32>
    %21 = arith.addf %17, %20 : vector<64x32xf32>
    %c0_19 = arith.constant 0 : index
    %c0_20 = arith.constant 0 : index
    %c0_21 = arith.constant 0 : index
    %22 = vector.load %arg2[%c0_19, %c0_20, %c0_21] : memref<3x32x32xf32, #tpu.memory_space<vmem>>, vector<1x32x32xf32>
    %23 = vector.shape_cast %22 : vector<1x32x32xf32> to vector<32x32xf32>
    %c1_22 = arith.constant 1 : index
    %c0_23 = arith.constant 0 : index
    %c0_24 = arith.constant 0 : index
    %24 = vector.load %arg2[%c1_22, %c0_23, %c0_24] : memref<3x32x32xf32, #tpu.memory_space<vmem>>, vector<1x32x32xf32>
    %25 = vector.shape_cast %24 : vector<1x32x32xf32> to vector<32x32xf32>
    %c2_25 = arith.constant 2 : index
    %c0_26 = arith.constant 0 : index
    %c0_27 = arith.constant 0 : index
    %26 = vector.load %arg2[%c2_25, %c0_26, %c0_27] : memref<3x32x32xf32, #tpu.memory_space<vmem>>, vector<1x32x32xf32>
    %27 = vector.shape_cast %26 : vector<1x32x32xf32> to vector<32x32xf32>
    %c0_28 = arith.constant 0 : index
    %c0_29 = arith.constant 0 : index
    %c0_30 = arith.constant 0 : index
    %28 = vector.load %arg4[%c0_28, %c0_29, %c0_30] : memref<3x1x32xf32, #tpu.memory_space<vmem>>, vector<1x1x32xf32>
    %29 = vector.shape_cast %28 : vector<1x1x32xf32> to vector<1x32xf32>
    %c1_31 = arith.constant 1 : index
    %c0_32 = arith.constant 0 : index
    %c0_33 = arith.constant 0 : index
    %30 = vector.load %arg4[%c1_31, %c0_32, %c0_33] : memref<3x1x32xf32, #tpu.memory_space<vmem>>, vector<1x1x32xf32>
    %31 = vector.shape_cast %30 : vector<1x1x32xf32> to vector<1x32xf32>
    %c2_34 = arith.constant 2 : index
    %c0_35 = arith.constant 0 : index
    %c0_36 = arith.constant 0 : index
    %32 = vector.load %arg4[%c2_34, %c0_35, %c0_36] : memref<3x1x32xf32, #tpu.memory_space<vmem>>, vector<1x1x32xf32>
    %33 = vector.shape_cast %32 : vector<1x1x32xf32> to vector<1x32xf32>
    %c0_37 = arith.constant 0 : index
    %c0_38 = arith.constant 0 : index
    %c0_39 = arith.constant 0 : index
    %34 = vector.load %arg5[%c0_37, %c0_38, %c0_39] : memref<3x32x32xf32, #tpu.memory_space<vmem>>, vector<1x32x32xf32>
    %35 = vector.shape_cast %34 : vector<1x32x32xf32> to vector<32x32xf32>
    %c1_40 = arith.constant 1 : index
    %c0_41 = arith.constant 0 : index
    %c0_42 = arith.constant 0 : index
    %36 = vector.load %arg5[%c1_40, %c0_41, %c0_42] : memref<3x32x32xf32, #tpu.memory_space<vmem>>, vector<1x32x32xf32>
    %37 = vector.shape_cast %36 : vector<1x32x32xf32> to vector<32x32xf32>
    %c2_43 = arith.constant 2 : index
    %c0_44 = arith.constant 0 : index
    %c0_45 = arith.constant 0 : index
    %38 = vector.load %arg5[%c2_43, %c0_44, %c0_45] : memref<3x32x32xf32, #tpu.memory_space<vmem>>, vector<1x32x32xf32>
    %39 = vector.shape_cast %38 : vector<1x32x32xf32> to vector<32x32xf32>
    %c0_46 = arith.constant 0 : index
    %c0_47 = arith.constant 0 : index
    %c0_48 = arith.constant 0 : index
    %40 = vector.load %arg7[%c0_46, %c0_47, %c0_48] : memref<3x1x32xf32, #tpu.memory_space<vmem>>, vector<1x1x32xf32>
    %41 = vector.shape_cast %40 : vector<1x1x32xf32> to vector<1x32xf32>
    %c1_49 = arith.constant 1 : index
    %c0_50 = arith.constant 0 : index
    %c0_51 = arith.constant 0 : index
    %42 = vector.load %arg7[%c1_49, %c0_50, %c0_51] : memref<3x1x32xf32, #tpu.memory_space<vmem>>, vector<1x1x32xf32>
    %43 = vector.shape_cast %42 : vector<1x1x32xf32> to vector<1x32xf32>
    %c2_52 = arith.constant 2 : index
    %c0_53 = arith.constant 0 : index
    %c0_54 = arith.constant 0 : index
    %44 = vector.load %arg7[%c2_52, %c0_53, %c0_54] : memref<3x1x32xf32, #tpu.memory_space<vmem>>, vector<1x1x32xf32>
    %45 = vector.shape_cast %44 : vector<1x1x32xf32> to vector<1x32xf32>
    %c0_55 = arith.constant 0 : index
    %c0_56 = arith.constant 0 : index
    %c0_57 = arith.constant 0 : index
    %46 = vector.load %arg6[%c0_55, %c0_56, %c0_57] : memref<3x32x32xf32, #tpu.memory_space<vmem>>, vector<1x32x32xf32>
    %47 = vector.shape_cast %46 : vector<1x32x32xf32> to vector<32x32xf32>
    %c1_58 = arith.constant 1 : index
    %c0_59 = arith.constant 0 : index
    %c0_60 = arith.constant 0 : index
    %48 = vector.load %arg6[%c1_58, %c0_59, %c0_60] : memref<3x32x32xf32, #tpu.memory_space<vmem>>, vector<1x32x32xf32>
    %49 = vector.shape_cast %48 : vector<1x32x32xf32> to vector<32x32xf32>
    %c2_61 = arith.constant 2 : index
    %c0_62 = arith.constant 0 : index
    %c0_63 = arith.constant 0 : index
    %50 = vector.load %arg6[%c2_61, %c0_62, %c0_63] : memref<3x32x32xf32, #tpu.memory_space<vmem>>, vector<1x32x32xf32>
    %51 = vector.shape_cast %50 : vector<1x32x32xf32> to vector<32x32xf32>
    %c0_64 = arith.constant 0 : index
    %c0_65 = arith.constant 0 : index
    %c0_66 = arith.constant 0 : index
    %52 = vector.load %arg8[%c0_64, %c0_65, %c0_66] : memref<3x1x32xf32, #tpu.memory_space<vmem>>, vector<1x1x32xf32>
    %53 = vector.shape_cast %52 : vector<1x1x32xf32> to vector<1x32xf32>
    %c1_67 = arith.constant 1 : index
    %c0_68 = arith.constant 0 : index
    %c0_69 = arith.constant 0 : index
    %54 = vector.load %arg8[%c1_67, %c0_68, %c0_69] : memref<3x1x32xf32, #tpu.memory_space<vmem>>, vector<1x1x32xf32>
    %55 = vector.shape_cast %54 : vector<1x1x32xf32> to vector<1x32xf32>
    %c2_70 = arith.constant 2 : index
    %c0_71 = arith.constant 0 : index
    %c0_72 = arith.constant 0 : index
    %56 = vector.load %arg8[%c2_70, %c0_71, %c0_72] : memref<3x1x32xf32, #tpu.memory_space<vmem>>, vector<1x1x32xf32>
    %57 = vector.shape_cast %56 : vector<1x1x32xf32> to vector<1x32xf32>
    %cst_73 = arith.constant 0.000000e+00 : f32
    %58 = vector.broadcast %cst_73 : f32 to vector<8x32xf32>
    %cst_74 = arith.constant 0.000000e+00 : f32
    %59 = vector.broadcast %cst_74 : f32 to vector<8x32xf32>
    %60 = vector.extract_strided_slice %7 {offsets = [0, 0], sizes = [8, 32], strides = [1, 1]} : vector<64x32xf32> to vector<8x32xf32>
    %cst_75 = arith.constant dense<0.000000e+00> : vector<8x32xf32>
    %61 = tpu.matmul %58, %23, %cst_75 {dimension_numbers = #tpu.dot_dimension_numbers<[1], [0], [0], [1], [0, 0, 1, 1], [], []>} : vector<8x32xf32>, vector<32x32xf32>, vector<8x32xf32> -> vector<8x32xf32>
    %62 = arith.addf %60, %61 : vector<8x32xf32>
    %63 = vector.broadcast %29 : vector<1x32xf32> to vector<8x32xf32>
    %64 = arith.addf %62, %63 : vector<8x32xf32>
    %65 = arith.negf %64 : vector<8x32xf32>
    %66 = math.exp %65 : vector<8x32xf32>
    %cst_76 = arith.constant 1.000000e+00 : f32
    %67 = vector.broadcast %cst_76 : f32 to vector<8x32xf32>
    %68 = arith.addf %67, %66 : vector<8x32xf32>
    %69 = arith.divf %67, %68 : vector<8x32xf32>
    %70 = vector.extract_strided_slice %14 {offsets = [0, 0], sizes = [8, 32], strides = [1, 1]} : vector<64x32xf32> to vector<8x32xf32>
    %cst_77 = arith.constant dense<0.000000e+00> : vector<8x32xf32>
    %71 = tpu.matmul %58, %25, %cst_77 {dimension_numbers = #tpu.dot_dimension_numbers<[1], [0], [0], [1], [0, 0, 1, 1], [], []>} : vector<8x32xf32>, vector<32x32xf32>, vector<8x32xf32> -> vector<8x32xf32>
    %72 = arith.addf %70, %71 : vector<8x32xf32>
    %73 = vector.broadcast %31 : vector<1x32xf32> to vector<8x32xf32>
    %74 = arith.addf %72, %73 : vector<8x32xf32>
    %75 = arith.negf %74 : vector<8x32xf32>
    %76 = math.exp %75 : vector<8x32xf32>
    %cst_78 = arith.constant 1.000000e+00 : f32
    %77 = vector.broadcast %cst_78 : f32 to vector<8x32xf32>
    %78 = arith.addf %77, %76 : vector<8x32xf32>
    %79 = arith.divf %77, %78 : vector<8x32xf32>
    %80 = vector.extract_strided_slice %21 {offsets = [0, 0], sizes = [8, 32], strides = [1, 1]} : vector<64x32xf32> to vector<8x32xf32>
    %cst_79 = arith.constant dense<0.000000e+00> : vector<8x32xf32>
    %81 = tpu.matmul %58, %27, %cst_79 {dimension_numbers = #tpu.dot_dimension_numbers<[1], [0], [0], [1], [0, 0, 1, 1], [], []>} : vector<8x32xf32>, vector<32x32xf32>, vector<8x32xf32> -> vector<8x32xf32>
    %82 = vector.broadcast %33 : vector<1x32xf32> to vector<8x32xf32>
    %83 = arith.addf %81, %82 : vector<8x32xf32>
    %84 = arith.mulf %69, %83 : vector<8x32xf32>
    %85 = arith.addf %80, %84 : vector<8x32xf32>
    %86 = math.tanh %85 : vector<8x32xf32>
    %cst_80 = arith.constant 1.000000e+00 : f32
    %87 = vector.broadcast %cst_80 : f32 to vector<8x32xf32>
    %88 = arith.subf %87, %79 : vector<8x32xf32>
    %89 = arith.mulf %88, %86 : vector<8x32xf32>
    %90 = arith.mulf %79, %58 : vector<8x32xf32>
    %91 = arith.addf %89, %90 : vector<8x32xf32>
    %cst_81 = arith.constant dense<0.000000e+00> : vector<8x32xf32>
    %92 = tpu.matmul %91, %35, %cst_81 {dimension_numbers = #tpu.dot_dimension_numbers<[1], [0], [0], [1], [0, 0, 1, 1], [], []>} : vector<8x32xf32>, vector<32x32xf32>, vector<8x32xf32> -> vector<8x32xf32>
    %93 = vector.broadcast %41 : vector<1x32xf32> to vector<8x32xf32>
    %94 = arith.addf %92, %93 : vector<8x32xf32>
    %cst_82 = arith.constant dense<0.000000e+00> : vector<8x32xf32>
    %95 = tpu.matmul %59, %47, %cst_82 {dimension_numbers = #tpu.dot_dimension_numbers<[1], [0], [0], [1], [0, 0, 1, 1], [], []>} : vector<8x32xf32>, vector<32x32xf32>, vector<8x32xf32> -> vector<8x32xf32>
    %96 = arith.addf %94, %95 : vector<8x32xf32>
    %97 = vector.broadcast %53 : vector<1x32xf32> to vector<8x32xf32>
    %98 = arith.addf %96, %97 : vector<8x32xf32>
    %99 = arith.negf %98 : vector<8x32xf32>
    %100 = math.exp %99 : vector<8x32xf32>
    %cst_83 = arith.constant 1.000000e+00 : f32
    %101 = vector.broadcast %cst_83 : f32 to vector<8x32xf32>
    %102 = arith.addf %101, %100 : vector<8x32xf32>
    %103 = arith.divf %101, %102 : vector<8x32xf32>
    %cst_84 = arith.constant dense<0.000000e+00> : vector<8x32xf32>
    %104 = tpu.matmul %91, %37, %cst_84 {dimension_numbers = #tpu.dot_dimension_numbers<[1], [0], [0], [1], [0, 0, 1, 1], [], []>} : vector<8x32xf32>, vector<32x32xf32>, vector<8x32xf32> -> vector<8x32xf32>
    %105 = vector.broadcast %43 : vector<1x32xf32> to vector<8x32xf32>
    %106 = arith.addf %104, %105 : vector<8x32xf32>
    %cst_85 = arith.constant dense<0.000000e+00> : vector<8x32xf32>
    %107 = tpu.matmul %59, %49, %cst_85 {dimension_numbers = #tpu.dot_dimension_numbers<[1], [0], [0], [1], [0, 0, 1, 1], [], []>} : vector<8x32xf32>, vector<32x32xf32>, vector<8x32xf32> -> vector<8x32xf32>
    %108 = arith.addf %106, %107 : vector<8x32xf32>
    %109 = vector.broadcast %55 : vector<1x32xf32> to vector<8x32xf32>
    %110 = arith.addf %108, %109 : vector<8x32xf32>
    %111 = arith.negf %110 : vector<8x32xf32>
    %112 = math.exp %111 : vector<8x32xf32>
    %cst_86 = arith.constant 1.000000e+00 : f32
    %113 = vector.broadcast %cst_86 : f32 to vector<8x32xf32>
    %114 = arith.addf %113, %112 : vector<8x32xf32>
    %115 = arith.divf %113, %114 : vector<8x32xf32>
    %cst_87 = arith.constant dense<0.000000e+00> : vector<8x32xf32>
    %116 = tpu.matmul %91, %39, %cst_87 {dimension_numbers = #tpu.dot_dimension_numbers<[1], [0], [0], [1], [0, 0, 1, 1], [], []>} : vector<8x32xf32>, vector<32x32xf32>, vector<8x32xf32> -> vector<8x32xf32>
    %117 = vector.broadcast %45 : vector<1x32xf32> to vector<8x32xf32>
    %118 = arith.addf %116, %117 : vector<8x32xf32>
    %cst_88 = arith.constant dense<0.000000e+00> : vector<8x32xf32>
    %119 = tpu.matmul %59, %51, %cst_88 {dimension_numbers = #tpu.dot_dimension_numbers<[1], [0], [0], [1], [0, 0, 1, 1], [], []>} : vector<8x32xf32>, vector<32x32xf32>, vector<8x32xf32> -> vector<8x32xf32>
    %120 = vector.broadcast %57 : vector<1x32xf32> to vector<8x32xf32>
    %121 = arith.addf %119, %120 : vector<8x32xf32>
    %122 = arith.mulf %103, %121 : vector<8x32xf32>
    %123 = arith.addf %118, %122 : vector<8x32xf32>
    %124 = math.tanh %123 : vector<8x32xf32>
    %cst_89 = arith.constant 1.000000e+00 : f32
    %125 = vector.broadcast %cst_89 : f32 to vector<8x32xf32>
    %126 = arith.subf %125, %115 : vector<8x32xf32>
    %127 = arith.mulf %126, %124 : vector<8x32xf32>
    %128 = arith.mulf %115, %59 : vector<8x32xf32>
    %129 = arith.addf %127, %128 : vector<8x32xf32>
    %130 = vector.extract_strided_slice %7 {offsets = [8, 0], sizes = [8, 32], strides = [1, 1]} : vector<64x32xf32> to vector<8x32xf32>
    %cst_90 = arith.constant dense<0.000000e+00> : vector<8x32xf32>
    %131 = tpu.matmul %91, %23, %cst_90 {dimension_numbers = #tpu.dot_dimension_numbers<[1], [0], [0], [1], [0, 0, 1, 1], [], []>} : vector<8x32xf32>, vector<32x32xf32>, vector<8x32xf32> -> vector<8x32xf32>
    %132 = arith.addf %130, %131 : vector<8x32xf32>
    %133 = vector.broadcast %29 : vector<1x32xf32> to vector<8x32xf32>
    %134 = arith.addf %132, %133 : vector<8x32xf32>
    %135 = arith.negf %134 : vector<8x32xf32>
    %136 = math.exp %135 : vector<8x32xf32>
    %cst_91 = arith.constant 1.000000e+00 : f32
    %137 = vector.broadcast %cst_91 : f32 to vector<8x32xf32>
    %138 = arith.addf %137, %136 : vector<8x32xf32>
    %139 = arith.divf %137, %138 : vector<8x32xf32>
    %140 = vector.extract_strided_slice %14 {offsets = [8, 0], sizes = [8, 32], strides = [1, 1]} : vector<64x32xf32> to vector<8x32xf32>
    %cst_92 = arith.constant dense<0.000000e+00> : vector<8x32xf32>
    %141 = tpu.matmul %91, %25, %cst_92 {dimension_numbers = #tpu.dot_dimension_numbers<[1], [0], [0], [1], [0, 0, 1, 1], [], []>} : vector<8x32xf32>, vector<32x32xf32>, vector<8x32xf32> -> vector<8x32xf32>
    %142 = arith.addf %140, %141 : vector<8x32xf32>
    %143 = vector.broadcast %31 : vector<1x32xf32> to vector<8x32xf32>
    %144 = arith.addf %142, %143 : vector<8x32xf32>
    %145 = arith.negf %144 : vector<8x32xf32>
    %146 = math.exp %145 : vector<8x32xf32>
    %cst_93 = arith.constant 1.000000e+00 : f32
    %147 = vector.broadcast %cst_93 : f32 to vector<8x32xf32>
    %148 = arith.addf %147, %146 : vector<8x32xf32>
    %149 = arith.divf %147, %148 : vector<8x32xf32>
    %150 = vector.extract_strided_slice %21 {offsets = [8, 0], sizes = [8, 32], strides = [1, 1]} : vector<64x32xf32> to vector<8x32xf32>
    %cst_94 = arith.constant dense<0.000000e+00> : vector<8x32xf32>
    %151 = tpu.matmul %91, %27, %cst_94 {dimension_numbers = #tpu.dot_dimension_numbers<[1], [0], [0], [1], [0, 0, 1, 1], [], []>} : vector<8x32xf32>, vector<32x32xf32>, vector<8x32xf32> -> vector<8x32xf32>
    %152 = vector.broadcast %33 : vector<1x32xf32> to vector<8x32xf32>
    %153 = arith.addf %151, %152 : vector<8x32xf32>
    %154 = arith.mulf %139, %153 : vector<8x32xf32>
    %155 = arith.addf %150, %154 : vector<8x32xf32>
    %156 = math.tanh %155 : vector<8x32xf32>
    %cst_95 = arith.constant 1.000000e+00 : f32
    %157 = vector.broadcast %cst_95 : f32 to vector<8x32xf32>
    %158 = arith.subf %157, %149 : vector<8x32xf32>
    %159 = arith.mulf %158, %156 : vector<8x32xf32>
    %160 = arith.mulf %149, %91 : vector<8x32xf32>
    %161 = arith.addf %159, %160 : vector<8x32xf32>
    %cst_96 = arith.constant dense<0.000000e+00> : vector<8x32xf32>
    %162 = tpu.matmul %161, %35, %cst_96 {dimension_numbers = #tpu.dot_dimension_numbers<[1], [0], [0], [1], [0, 0, 1, 1], [], []>} : vector<8x32xf32>, vector<32x32xf32>, vector<8x32xf32> -> vector<8x32xf32>
    %163 = vector.broadcast %41 : vector<1x32xf32> to vector<8x32xf32>
    %164 = arith.addf %162, %163 : vector<8x32xf32>
    %cst_97 = arith.constant dense<0.000000e+00> : vector<8x32xf32>
    %165 = tpu.matmul %129, %47, %cst_97 {dimension_numbers = #tpu.dot_dimension_numbers<[1], [0], [0], [1], [0, 0, 1, 1], [], []>} : vector<8x32xf32>, vector<32x32xf32>, vector<8x32xf32> -> vector<8x32xf32>
    %166 = arith.addf %164, %165 : vector<8x32xf32>
    %167 = vector.broadcast %53 : vector<1x32xf32> to vector<8x32xf32>
    %168 = arith.addf %166, %167 : vector<8x32xf32>
    %169 = arith.negf %168 : vector<8x32xf32>
    %170 = math.exp %169 : vector<8x32xf32>
    %cst_98 = arith.constant 1.000000e+00 : f32
    %171 = vector.broadcast %cst_98 : f32 to vector<8x32xf32>
    %172 = arith.addf %171, %170 : vector<8x32xf32>
    %173 = arith.divf %171, %172 : vector<8x32xf32>
    %cst_99 = arith.constant dense<0.000000e+00> : vector<8x32xf32>
    %174 = tpu.matmul %161, %37, %cst_99 {dimension_numbers = #tpu.dot_dimension_numbers<[1], [0], [0], [1], [0, 0, 1, 1], [], []>} : vector<8x32xf32>, vector<32x32xf32>, vector<8x32xf32> -> vector<8x32xf32>
    %175 = vector.broadcast %43 : vector<1x32xf32> to vector<8x32xf32>
    %176 = arith.addf %174, %175 : vector<8x32xf32>
    %cst_100 = arith.constant dense<0.000000e+00> : vector<8x32xf32>
    %177 = tpu.matmul %129, %49, %cst_100 {dimension_numbers = #tpu.dot_dimension_numbers<[1], [0], [0], [1], [0, 0, 1, 1], [], []>} : vector<8x32xf32>, vector<32x32xf32>, vector<8x32xf32> -> vector<8x32xf32>
    %178 = arith.addf %176, %177 : vector<8x32xf32>
    %179 = vector.broadcast %55 : vector<1x32xf32> to vector<8x32xf32>
    %180 = arith.addf %178, %179 : vector<8x32xf32>
    %181 = arith.negf %180 : vector<8x32xf32>
    %182 = math.exp %181 : vector<8x32xf32>
    %cst_101 = arith.constant 1.000000e+00 : f32
    %183 = vector.broadcast %cst_101 : f32 to vector<8x32xf32>
    %184 = arith.addf %183, %182 : vector<8x32xf32>
    %185 = arith.divf %183, %184 : vector<8x32xf32>
    %cst_102 = arith.constant dense<0.000000e+00> : vector<8x32xf32>
    %186 = tpu.matmul %161, %39, %cst_102 {dimension_numbers = #tpu.dot_dimension_numbers<[1], [0], [0], [1], [0, 0, 1, 1], [], []>} : vector<8x32xf32>, vector<32x32xf32>, vector<8x32xf32> -> vector<8x32xf32>
    %187 = vector.broadcast %45 : vector<1x32xf32> to vector<8x32xf32>
    %188 = arith.addf %186, %187 : vector<8x32xf32>
    %cst_103 = arith.constant dense<0.000000e+00> : vector<8x32xf32>
    %189 = tpu.matmul %129, %51, %cst_103 {dimension_numbers = #tpu.dot_dimension_numbers<[1], [0], [0], [1], [0, 0, 1, 1], [], []>} : vector<8x32xf32>, vector<32x32xf32>, vector<8x32xf32> -> vector<8x32xf32>
    %190 = vector.broadcast %57 : vector<1x32xf32> to vector<8x32xf32>
    %191 = arith.addf %189, %190 : vector<8x32xf32>
    %192 = arith.mulf %173, %191 : vector<8x32xf32>
    %193 = arith.addf %188, %192 : vector<8x32xf32>
    %194 = math.tanh %193 : vector<8x32xf32>
    %cst_104 = arith.constant 1.000000e+00 : f32
    %195 = vector.broadcast %cst_104 : f32 to vector<8x32xf32>
    %196 = arith.subf %195, %185 : vector<8x32xf32>
    %197 = arith.mulf %196, %194 : vector<8x32xf32>
    %198 = arith.mulf %185, %129 : vector<8x32xf32>
    %199 = arith.addf %197, %198 : vector<8x32xf32>
    %200 = vector.extract_strided_slice %7 {offsets = [16, 0], sizes = [8, 32], strides = [1, 1]} : vector<64x32xf32> to vector<8x32xf32>
    %cst_105 = arith.constant dense<0.000000e+00> : vector<8x32xf32>
    %201 = tpu.matmul %161, %23, %cst_105 {dimension_numbers = #tpu.dot_dimension_numbers<[1], [0], [0], [1], [0, 0, 1, 1], [], []>} : vector<8x32xf32>, vector<32x32xf32>, vector<8x32xf32> -> vector<8x32xf32>
    %202 = arith.addf %200, %201 : vector<8x32xf32>
    %203 = vector.broadcast %29 : vector<1x32xf32> to vector<8x32xf32>
    %204 = arith.addf %202, %203 : vector<8x32xf32>
    %205 = arith.negf %204 : vector<8x32xf32>
    %206 = math.exp %205 : vector<8x32xf32>
    %cst_106 = arith.constant 1.000000e+00 : f32
    %207 = vector.broadcast %cst_106 : f32 to vector<8x32xf32>
    %208 = arith.addf %207, %206 : vector<8x32xf32>
    %209 = arith.divf %207, %208 : vector<8x32xf32>
    %210 = vector.extract_strided_slice %14 {offsets = [16, 0], sizes = [8, 32], strides = [1, 1]} : vector<64x32xf32> to vector<8x32xf32>
    %cst_107 = arith.constant dense<0.000000e+00> : vector<8x32xf32>
    %211 = tpu.matmul %161, %25, %cst_107 {dimension_numbers = #tpu.dot_dimension_numbers<[1], [0], [0], [1], [0, 0, 1, 1], [], []>} : vector<8x32xf32>, vector<32x32xf32>, vector<8x32xf32> -> vector<8x32xf32>
    %212 = arith.addf %210, %211 : vector<8x32xf32>
    %213 = vector.broadcast %31 : vector<1x32xf32> to vector<8x32xf32>
    %214 = arith.addf %212, %213 : vector<8x32xf32>
    %215 = arith.negf %214 : vector<8x32xf32>
    %216 = math.exp %215 : vector<8x32xf32>
    %cst_108 = arith.constant 1.000000e+00 : f32
    %217 = vector.broadcast %cst_108 : f32 to vector<8x32xf32>
    %218 = arith.addf %217, %216 : vector<8x32xf32>
    %219 = arith.divf %217, %218 : vector<8x32xf32>
    %220 = vector.extract_strided_slice %21 {offsets = [16, 0], sizes = [8, 32], strides = [1, 1]} : vector<64x32xf32> to vector<8x32xf32>
    %cst_109 = arith.constant dense<0.000000e+00> : vector<8x32xf32>
    %221 = tpu.matmul %161, %27, %cst_109 {dimension_numbers = #tpu.dot_dimension_numbers<[1], [0], [0], [1], [0, 0, 1, 1], [], []>} : vector<8x32xf32>, vector<32x32xf32>, vector<8x32xf32> -> vector<8x32xf32>
    %222 = vector.broadcast %33 : vector<1x32xf32> to vector<8x32xf32>
    %223 = arith.addf %221, %222 : vector<8x32xf32>
    %224 = arith.mulf %209, %223 : vector<8x32xf32>
    %225 = arith.addf %220, %224 : vector<8x32xf32>
    %226 = math.tanh %225 : vector<8x32xf32>
    %cst_110 = arith.constant 1.000000e+00 : f32
    %227 = vector.broadcast %cst_110 : f32 to vector<8x32xf32>
    %228 = arith.subf %227, %219 : vector<8x32xf32>
    %229 = arith.mulf %228, %226 : vector<8x32xf32>
    %230 = arith.mulf %219, %161 : vector<8x32xf32>
    %231 = arith.addf %229, %230 : vector<8x32xf32>
    %cst_111 = arith.constant dense<0.000000e+00> : vector<8x32xf32>
    %232 = tpu.matmul %231, %35, %cst_111 {dimension_numbers = #tpu.dot_dimension_numbers<[1], [0], [0], [1], [0, 0, 1, 1], [], []>} : vector<8x32xf32>, vector<32x32xf32>, vector<8x32xf32> -> vector<8x32xf32>
    %233 = vector.broadcast %41 : vector<1x32xf32> to vector<8x32xf32>
    %234 = arith.addf %232, %233 : vector<8x32xf32>
    %cst_112 = arith.constant dense<0.000000e+00> : vector<8x32xf32>
    %235 = tpu.matmul %199, %47, %cst_112 {dimension_numbers = #tpu.dot_dimension_numbers<[1], [0], [0], [1], [0, 0, 1, 1], [], []>} : vector<8x32xf32>, vector<32x32xf32>, vector<8x32xf32> -> vector<8x32xf32>
    %236 = arith.addf %234, %235 : vector<8x32xf32>
    %237 = vector.broadcast %53 : vector<1x32xf32> to vector<8x32xf32>
    %238 = arith.addf %236, %237 : vector<8x32xf32>
    %239 = arith.negf %238 : vector<8x32xf32>
    %240 = math.exp %239 : vector<8x32xf32>
    %cst_113 = arith.constant 1.000000e+00 : f32
    %241 = vector.broadcast %cst_113 : f32 to vector<8x32xf32>
    %242 = arith.addf %241, %240 : vector<8x32xf32>
    %243 = arith.divf %241, %242 : vector<8x32xf32>
    %cst_114 = arith.constant dense<0.000000e+00> : vector<8x32xf32>
    %244 = tpu.matmul %231, %37, %cst_114 {dimension_numbers = #tpu.dot_dimension_numbers<[1], [0], [0], [1], [0, 0, 1, 1], [], []>} : vector<8x32xf32>, vector<32x32xf32>, vector<8x32xf32> -> vector<8x32xf32>
    %245 = vector.broadcast %43 : vector<1x32xf32> to vector<8x32xf32>
    %246 = arith.addf %244, %245 : vector<8x32xf32>
    %cst_115 = arith.constant dense<0.000000e+00> : vector<8x32xf32>
    %247 = tpu.matmul %199, %49, %cst_115 {dimension_numbers = #tpu.dot_dimension_numbers<[1], [0], [0], [1], [0, 0, 1, 1], [], []>} : vector<8x32xf32>, vector<32x32xf32>, vector<8x32xf32> -> vector<8x32xf32>
    %248 = arith.addf %246, %247 : vector<8x32xf32>
    %249 = vector.broadcast %55 : vector<1x32xf32> to vector<8x32xf32>
    %250 = arith.addf %248, %249 : vector<8x32xf32>
    %251 = arith.negf %250 : vector<8x32xf32>
    %252 = math.exp %251 : vector<8x32xf32>
    %cst_116 = arith.constant 1.000000e+00 : f32
    %253 = vector.broadcast %cst_116 : f32 to vector<8x32xf32>
    %254 = arith.addf %253, %252 : vector<8x32xf32>
    %255 = arith.divf %253, %254 : vector<8x32xf32>
    %cst_117 = arith.constant dense<0.000000e+00> : vector<8x32xf32>
    %256 = tpu.matmul %231, %39, %cst_117 {dimension_numbers = #tpu.dot_dimension_numbers<[1], [0], [0], [1], [0, 0, 1, 1], [], []>} : vector<8x32xf32>, vector<32x32xf32>, vector<8x32xf32> -> vector<8x32xf32>
    %257 = vector.broadcast %45 : vector<1x32xf32> to vector<8x32xf32>
    %258 = arith.addf %256, %257 : vector<8x32xf32>
    %cst_118 = arith.constant dense<0.000000e+00> : vector<8x32xf32>
    %259 = tpu.matmul %199, %51, %cst_118 {dimension_numbers = #tpu.dot_dimension_numbers<[1], [0], [0], [1], [0, 0, 1, 1], [], []>} : vector<8x32xf32>, vector<32x32xf32>, vector<8x32xf32> -> vector<8x32xf32>
    %260 = vector.broadcast %57 : vector<1x32xf32> to vector<8x32xf32>
    %261 = arith.addf %259, %260 : vector<8x32xf32>
    %262 = arith.mulf %243, %261 : vector<8x32xf32>
    %263 = arith.addf %258, %262 : vector<8x32xf32>
    %264 = math.tanh %263 : vector<8x32xf32>
    %cst_119 = arith.constant 1.000000e+00 : f32
    %265 = vector.broadcast %cst_119 : f32 to vector<8x32xf32>
    %266 = arith.subf %265, %255 : vector<8x32xf32>
    %267 = arith.mulf %266, %264 : vector<8x32xf32>
    %268 = arith.mulf %255, %199 : vector<8x32xf32>
    %269 = arith.addf %267, %268 : vector<8x32xf32>
    %270 = vector.extract_strided_slice %7 {offsets = [24, 0], sizes = [8, 32], strides = [1, 1]} : vector<64x32xf32> to vector<8x32xf32>
    %cst_120 = arith.constant dense<0.000000e+00> : vector<8x32xf32>
    %271 = tpu.matmul %231, %23, %cst_120 {dimension_numbers = #tpu.dot_dimension_numbers<[1], [0], [0], [1], [0, 0, 1, 1], [], []>} : vector<8x32xf32>, vector<32x32xf32>, vector<8x32xf32> -> vector<8x32xf32>
    %272 = arith.addf %270, %271 : vector<8x32xf32>
    %273 = vector.broadcast %29 : vector<1x32xf32> to vector<8x32xf32>
    %274 = arith.addf %272, %273 : vector<8x32xf32>
    %275 = arith.negf %274 : vector<8x32xf32>
    %276 = math.exp %275 : vector<8x32xf32>
    %cst_121 = arith.constant 1.000000e+00 : f32
    %277 = vector.broadcast %cst_121 : f32 to vector<8x32xf32>
    %278 = arith.addf %277, %276 : vector<8x32xf32>
    %279 = arith.divf %277, %278 : vector<8x32xf32>
    %280 = vector.extract_strided_slice %14 {offsets = [24, 0], sizes = [8, 32], strides = [1, 1]} : vector<64x32xf32> to vector<8x32xf32>
    %cst_122 = arith.constant dense<0.000000e+00> : vector<8x32xf32>
    %281 = tpu.matmul %231, %25, %cst_122 {dimension_numbers = #tpu.dot_dimension_numbers<[1], [0], [0], [1], [0, 0, 1, 1], [], []>} : vector<8x32xf32>, vector<32x32xf32>, vector<8x32xf32> -> vector<8x32xf32>
    %282 = arith.addf %280, %281 : vector<8x32xf32>
    %283 = vector.broadcast %31 : vector<1x32xf32> to vector<8x32xf32>
    %284 = arith.addf %282, %283 : vector<8x32xf32>
    %285 = arith.negf %284 : vector<8x32xf32>
    %286 = math.exp %285 : vector<8x32xf32>
    %cst_123 = arith.constant 1.000000e+00 : f32
    %287 = vector.broadcast %cst_123 : f32 to vector<8x32xf32>
    %288 = arith.addf %287, %286 : vector<8x32xf32>
    %289 = arith.divf %287, %288 : vector<8x32xf32>
    %290 = vector.extract_strided_slice %21 {offsets = [24, 0], sizes = [8, 32], strides = [1, 1]} : vector<64x32xf32> to vector<8x32xf32>
    %cst_124 = arith.constant dense<0.000000e+00> : vector<8x32xf32>
    %291 = tpu.matmul %231, %27, %cst_124 {dimension_numbers = #tpu.dot_dimension_numbers<[1], [0], [0], [1], [0, 0, 1, 1], [], []>} : vector<8x32xf32>, vector<32x32xf32>, vector<8x32xf32> -> vector<8x32xf32>
    %292 = vector.broadcast %33 : vector<1x32xf32> to vector<8x32xf32>
    %293 = arith.addf %291, %292 : vector<8x32xf32>
    %294 = arith.mulf %279, %293 : vector<8x32xf32>
    %295 = arith.addf %290, %294 : vector<8x32xf32>
    %296 = math.tanh %295 : vector<8x32xf32>
    %cst_125 = arith.constant 1.000000e+00 : f32
    %297 = vector.broadcast %cst_125 : f32 to vector<8x32xf32>
    %298 = arith.subf %297, %289 : vector<8x32xf32>
    %299 = arith.mulf %298, %296 : vector<8x32xf32>
    %300 = arith.mulf %289, %231 : vector<8x32xf32>
    %301 = arith.addf %299, %300 : vector<8x32xf32>
    %cst_126 = arith.constant dense<0.000000e+00> : vector<8x32xf32>
    %302 = tpu.matmul %301, %35, %cst_126 {dimension_numbers = #tpu.dot_dimension_numbers<[1], [0], [0], [1], [0, 0, 1, 1], [], []>} : vector<8x32xf32>, vector<32x32xf32>, vector<8x32xf32> -> vector<8x32xf32>
    %303 = vector.broadcast %41 : vector<1x32xf32> to vector<8x32xf32>
    %304 = arith.addf %302, %303 : vector<8x32xf32>
    %cst_127 = arith.constant dense<0.000000e+00> : vector<8x32xf32>
    %305 = tpu.matmul %269, %47, %cst_127 {dimension_numbers = #tpu.dot_dimension_numbers<[1], [0], [0], [1], [0, 0, 1, 1], [], []>} : vector<8x32xf32>, vector<32x32xf32>, vector<8x32xf32> -> vector<8x32xf32>
    %306 = arith.addf %304, %305 : vector<8x32xf32>
    %307 = vector.broadcast %53 : vector<1x32xf32> to vector<8x32xf32>
    %308 = arith.addf %306, %307 : vector<8x32xf32>
    %309 = arith.negf %308 : vector<8x32xf32>
    %310 = math.exp %309 : vector<8x32xf32>
    %cst_128 = arith.constant 1.000000e+00 : f32
    %311 = vector.broadcast %cst_128 : f32 to vector<8x32xf32>
    %312 = arith.addf %311, %310 : vector<8x32xf32>
    %313 = arith.divf %311, %312 : vector<8x32xf32>
    %cst_129 = arith.constant dense<0.000000e+00> : vector<8x32xf32>
    %314 = tpu.matmul %301, %37, %cst_129 {dimension_numbers = #tpu.dot_dimension_numbers<[1], [0], [0], [1], [0, 0, 1, 1], [], []>} : vector<8x32xf32>, vector<32x32xf32>, vector<8x32xf32> -> vector<8x32xf32>
    %315 = vector.broadcast %43 : vector<1x32xf32> to vector<8x32xf32>
    %316 = arith.addf %314, %315 : vector<8x32xf32>
    %cst_130 = arith.constant dense<0.000000e+00> : vector<8x32xf32>
    %317 = tpu.matmul %269, %49, %cst_130 {dimension_numbers = #tpu.dot_dimension_numbers<[1], [0], [0], [1], [0, 0, 1, 1], [], []>} : vector<8x32xf32>, vector<32x32xf32>, vector<8x32xf32> -> vector<8x32xf32>
    %318 = arith.addf %316, %317 : vector<8x32xf32>
    %319 = vector.broadcast %55 : vector<1x32xf32> to vector<8x32xf32>
    %320 = arith.addf %318, %319 : vector<8x32xf32>
    %321 = arith.negf %320 : vector<8x32xf32>
    %322 = math.exp %321 : vector<8x32xf32>
    %cst_131 = arith.constant 1.000000e+00 : f32
    %323 = vector.broadcast %cst_131 : f32 to vector<8x32xf32>
    %324 = arith.addf %323, %322 : vector<8x32xf32>
    %325 = arith.divf %323, %324 : vector<8x32xf32>
    %cst_132 = arith.constant dense<0.000000e+00> : vector<8x32xf32>
    %326 = tpu.matmul %301, %39, %cst_132 {dimension_numbers = #tpu.dot_dimension_numbers<[1], [0], [0], [1], [0, 0, 1, 1], [], []>} : vector<8x32xf32>, vector<32x32xf32>, vector<8x32xf32> -> vector<8x32xf32>
    %327 = vector.broadcast %45 : vector<1x32xf32> to vector<8x32xf32>
    %328 = arith.addf %326, %327 : vector<8x32xf32>
    %cst_133 = arith.constant dense<0.000000e+00> : vector<8x32xf32>
    %329 = tpu.matmul %269, %51, %cst_133 {dimension_numbers = #tpu.dot_dimension_numbers<[1], [0], [0], [1], [0, 0, 1, 1], [], []>} : vector<8x32xf32>, vector<32x32xf32>, vector<8x32xf32> -> vector<8x32xf32>
    %330 = vector.broadcast %57 : vector<1x32xf32> to vector<8x32xf32>
    %331 = arith.addf %329, %330 : vector<8x32xf32>
    %332 = arith.mulf %313, %331 : vector<8x32xf32>
    %333 = arith.addf %328, %332 : vector<8x32xf32>
    %334 = math.tanh %333 : vector<8x32xf32>
    %cst_134 = arith.constant 1.000000e+00 : f32
    %335 = vector.broadcast %cst_134 : f32 to vector<8x32xf32>
    %336 = arith.subf %335, %325 : vector<8x32xf32>
    %337 = arith.mulf %336, %334 : vector<8x32xf32>
    %338 = arith.mulf %325, %269 : vector<8x32xf32>
    %339 = arith.addf %337, %338 : vector<8x32xf32>
    %340 = vector.extract_strided_slice %7 {offsets = [32, 0], sizes = [8, 32], strides = [1, 1]} : vector<64x32xf32> to vector<8x32xf32>
    %cst_135 = arith.constant dense<0.000000e+00> : vector<8x32xf32>
    %341 = tpu.matmul %301, %23, %cst_135 {dimension_numbers = #tpu.dot_dimension_numbers<[1], [0], [0], [1], [0, 0, 1, 1], [], []>} : vector<8x32xf32>, vector<32x32xf32>, vector<8x32xf32> -> vector<8x32xf32>
    %342 = arith.addf %340, %341 : vector<8x32xf32>
    %343 = vector.broadcast %29 : vector<1x32xf32> to vector<8x32xf32>
    %344 = arith.addf %342, %343 : vector<8x32xf32>
    %345 = arith.negf %344 : vector<8x32xf32>
    %346 = math.exp %345 : vector<8x32xf32>
    %cst_136 = arith.constant 1.000000e+00 : f32
    %347 = vector.broadcast %cst_136 : f32 to vector<8x32xf32>
    %348 = arith.addf %347, %346 : vector<8x32xf32>
    %349 = arith.divf %347, %348 : vector<8x32xf32>
    %350 = vector.extract_strided_slice %14 {offsets = [32, 0], sizes = [8, 32], strides = [1, 1]} : vector<64x32xf32> to vector<8x32xf32>
    %cst_137 = arith.constant dense<0.000000e+00> : vector<8x32xf32>
    %351 = tpu.matmul %301, %25, %cst_137 {dimension_numbers = #tpu.dot_dimension_numbers<[1], [0], [0], [1], [0, 0, 1, 1], [], []>} : vector<8x32xf32>, vector<32x32xf32>, vector<8x32xf32> -> vector<8x32xf32>
    %352 = arith.addf %350, %351 : vector<8x32xf32>
    %353 = vector.broadcast %31 : vector<1x32xf32> to vector<8x32xf32>
    %354 = arith.addf %352, %353 : vector<8x32xf32>
    %355 = arith.negf %354 : vector<8x32xf32>
    %356 = math.exp %355 : vector<8x32xf32>
    %cst_138 = arith.constant 1.000000e+00 : f32
    %357 = vector.broadcast %cst_138 : f32 to vector<8x32xf32>
    %358 = arith.addf %357, %356 : vector<8x32xf32>
    %359 = arith.divf %357, %358 : vector<8x32xf32>
    %360 = vector.extract_strided_slice %21 {offsets = [32, 0], sizes = [8, 32], strides = [1, 1]} : vector<64x32xf32> to vector<8x32xf32>
    %cst_139 = arith.constant dense<0.000000e+00> : vector<8x32xf32>
    %361 = tpu.matmul %301, %27, %cst_139 {dimension_numbers = #tpu.dot_dimension_numbers<[1], [0], [0], [1], [0, 0, 1, 1], [], []>} : vector<8x32xf32>, vector<32x32xf32>, vector<8x32xf32> -> vector<8x32xf32>
    %362 = vector.broadcast %33 : vector<1x32xf32> to vector<8x32xf32>
    %363 = arith.addf %361, %362 : vector<8x32xf32>
    %364 = arith.mulf %349, %363 : vector<8x32xf32>
    %365 = arith.addf %360, %364 : vector<8x32xf32>
    %366 = math.tanh %365 : vector<8x32xf32>
    %cst_140 = arith.constant 1.000000e+00 : f32
    %367 = vector.broadcast %cst_140 : f32 to vector<8x32xf32>
    %368 = arith.subf %367, %359 : vector<8x32xf32>
    %369 = arith.mulf %368, %366 : vector<8x32xf32>
    %370 = arith.mulf %359, %301 : vector<8x32xf32>
    %371 = arith.addf %369, %370 : vector<8x32xf32>
    %cst_141 = arith.constant dense<0.000000e+00> : vector<8x32xf32>
    %372 = tpu.matmul %371, %35, %cst_141 {dimension_numbers = #tpu.dot_dimension_numbers<[1], [0], [0], [1], [0, 0, 1, 1], [], []>} : vector<8x32xf32>, vector<32x32xf32>, vector<8x32xf32> -> vector<8x32xf32>
    %373 = vector.broadcast %41 : vector<1x32xf32> to vector<8x32xf32>
    %374 = arith.addf %372, %373 : vector<8x32xf32>
    %cst_142 = arith.constant dense<0.000000e+00> : vector<8x32xf32>
    %375 = tpu.matmul %339, %47, %cst_142 {dimension_numbers = #tpu.dot_dimension_numbers<[1], [0], [0], [1], [0, 0, 1, 1], [], []>} : vector<8x32xf32>, vector<32x32xf32>, vector<8x32xf32> -> vector<8x32xf32>
    %376 = arith.addf %374, %375 : vector<8x32xf32>
    %377 = vector.broadcast %53 : vector<1x32xf32> to vector<8x32xf32>
    %378 = arith.addf %376, %377 : vector<8x32xf32>
    %379 = arith.negf %378 : vector<8x32xf32>
    %380 = math.exp %379 : vector<8x32xf32>
    %cst_143 = arith.constant 1.000000e+00 : f32
    %381 = vector.broadcast %cst_143 : f32 to vector<8x32xf32>
    %382 = arith.addf %381, %380 : vector<8x32xf32>
    %383 = arith.divf %381, %382 : vector<8x32xf32>
    %cst_144 = arith.constant dense<0.000000e+00> : vector<8x32xf32>
    %384 = tpu.matmul %371, %37, %cst_144 {dimension_numbers = #tpu.dot_dimension_numbers<[1], [0], [0], [1], [0, 0, 1, 1], [], []>} : vector<8x32xf32>, vector<32x32xf32>, vector<8x32xf32> -> vector<8x32xf32>
    %385 = vector.broadcast %43 : vector<1x32xf32> to vector<8x32xf32>
    %386 = arith.addf %384, %385 : vector<8x32xf32>
    %cst_145 = arith.constant dense<0.000000e+00> : vector<8x32xf32>
    %387 = tpu.matmul %339, %49, %cst_145 {dimension_numbers = #tpu.dot_dimension_numbers<[1], [0], [0], [1], [0, 0, 1, 1], [], []>} : vector<8x32xf32>, vector<32x32xf32>, vector<8x32xf32> -> vector<8x32xf32>
    %388 = arith.addf %386, %387 : vector<8x32xf32>
    %389 = vector.broadcast %55 : vector<1x32xf32> to vector<8x32xf32>
    %390 = arith.addf %388, %389 : vector<8x32xf32>
    %391 = arith.negf %390 : vector<8x32xf32>
    %392 = math.exp %391 : vector<8x32xf32>
    %cst_146 = arith.constant 1.000000e+00 : f32
    %393 = vector.broadcast %cst_146 : f32 to vector<8x32xf32>
    %394 = arith.addf %393, %392 : vector<8x32xf32>
    %395 = arith.divf %393, %394 : vector<8x32xf32>
    %cst_147 = arith.constant dense<0.000000e+00> : vector<8x32xf32>
    %396 = tpu.matmul %371, %39, %cst_147 {dimension_numbers = #tpu.dot_dimension_numbers<[1], [0], [0], [1], [0, 0, 1, 1], [], []>} : vector<8x32xf32>, vector<32x32xf32>, vector<8x32xf32> -> vector<8x32xf32>
    %397 = vector.broadcast %45 : vector<1x32xf32> to vector<8x32xf32>
    %398 = arith.addf %396, %397 : vector<8x32xf32>
    %cst_148 = arith.constant dense<0.000000e+00> : vector<8x32xf32>
    %399 = tpu.matmul %339, %51, %cst_148 {dimension_numbers = #tpu.dot_dimension_numbers<[1], [0], [0], [1], [0, 0, 1, 1], [], []>} : vector<8x32xf32>, vector<32x32xf32>, vector<8x32xf32> -> vector<8x32xf32>
    %400 = vector.broadcast %57 : vector<1x32xf32> to vector<8x32xf32>
    %401 = arith.addf %399, %400 : vector<8x32xf32>
    %402 = arith.mulf %383, %401 : vector<8x32xf32>
    %403 = arith.addf %398, %402 : vector<8x32xf32>
    %404 = math.tanh %403 : vector<8x32xf32>
    %cst_149 = arith.constant 1.000000e+00 : f32
    %405 = vector.broadcast %cst_149 : f32 to vector<8x32xf32>
    %406 = arith.subf %405, %395 : vector<8x32xf32>
    %407 = arith.mulf %406, %404 : vector<8x32xf32>
    %408 = arith.mulf %395, %339 : vector<8x32xf32>
    %409 = arith.addf %407, %408 : vector<8x32xf32>
    %410 = vector.extract_strided_slice %7 {offsets = [40, 0], sizes = [8, 32], strides = [1, 1]} : vector<64x32xf32> to vector<8x32xf32>
    %cst_150 = arith.constant dense<0.000000e+00> : vector<8x32xf32>
    %411 = tpu.matmul %371, %23, %cst_150 {dimension_numbers = #tpu.dot_dimension_numbers<[1], [0], [0], [1], [0, 0, 1, 1], [], []>} : vector<8x32xf32>, vector<32x32xf32>, vector<8x32xf32> -> vector<8x32xf32>
    %412 = arith.addf %410, %411 : vector<8x32xf32>
    %413 = vector.broadcast %29 : vector<1x32xf32> to vector<8x32xf32>
    %414 = arith.addf %412, %413 : vector<8x32xf32>
    %415 = arith.negf %414 : vector<8x32xf32>
    %416 = math.exp %415 : vector<8x32xf32>
    %cst_151 = arith.constant 1.000000e+00 : f32
    %417 = vector.broadcast %cst_151 : f32 to vector<8x32xf32>
    %418 = arith.addf %417, %416 : vector<8x32xf32>
    %419 = arith.divf %417, %418 : vector<8x32xf32>
    %420 = vector.extract_strided_slice %14 {offsets = [40, 0], sizes = [8, 32], strides = [1, 1]} : vector<64x32xf32> to vector<8x32xf32>
    %cst_152 = arith.constant dense<0.000000e+00> : vector<8x32xf32>
    %421 = tpu.matmul %371, %25, %cst_152 {dimension_numbers = #tpu.dot_dimension_numbers<[1], [0], [0], [1], [0, 0, 1, 1], [], []>} : vector<8x32xf32>, vector<32x32xf32>, vector<8x32xf32> -> vector<8x32xf32>
    %422 = arith.addf %420, %421 : vector<8x32xf32>
    %423 = vector.broadcast %31 : vector<1x32xf32> to vector<8x32xf32>
    %424 = arith.addf %422, %423 : vector<8x32xf32>
    %425 = arith.negf %424 : vector<8x32xf32>
    %426 = math.exp %425 : vector<8x32xf32>
    %cst_153 = arith.constant 1.000000e+00 : f32
    %427 = vector.broadcast %cst_153 : f32 to vector<8x32xf32>
    %428 = arith.addf %427, %426 : vector<8x32xf32>
    %429 = arith.divf %427, %428 : vector<8x32xf32>
    %430 = vector.extract_strided_slice %21 {offsets = [40, 0], sizes = [8, 32], strides = [1, 1]} : vector<64x32xf32> to vector<8x32xf32>
    %cst_154 = arith.constant dense<0.000000e+00> : vector<8x32xf32>
    %431 = tpu.matmul %371, %27, %cst_154 {dimension_numbers = #tpu.dot_dimension_numbers<[1], [0], [0], [1], [0, 0, 1, 1], [], []>} : vector<8x32xf32>, vector<32x32xf32>, vector<8x32xf32> -> vector<8x32xf32>
    %432 = vector.broadcast %33 : vector<1x32xf32> to vector<8x32xf32>
    %433 = arith.addf %431, %432 : vector<8x32xf32>
    %434 = arith.mulf %419, %433 : vector<8x32xf32>
    %435 = arith.addf %430, %434 : vector<8x32xf32>
    %436 = math.tanh %435 : vector<8x32xf32>
    %cst_155 = arith.constant 1.000000e+00 : f32
    %437 = vector.broadcast %cst_155 : f32 to vector<8x32xf32>
    %438 = arith.subf %437, %429 : vector<8x32xf32>
    %439 = arith.mulf %438, %436 : vector<8x32xf32>
    %440 = arith.mulf %429, %371 : vector<8x32xf32>
    %441 = arith.addf %439, %440 : vector<8x32xf32>
    %cst_156 = arith.constant dense<0.000000e+00> : vector<8x32xf32>
    %442 = tpu.matmul %441, %35, %cst_156 {dimension_numbers = #tpu.dot_dimension_numbers<[1], [0], [0], [1], [0, 0, 1, 1], [], []>} : vector<8x32xf32>, vector<32x32xf32>, vector<8x32xf32> -> vector<8x32xf32>
    %443 = vector.broadcast %41 : vector<1x32xf32> to vector<8x32xf32>
    %444 = arith.addf %442, %443 : vector<8x32xf32>
    %cst_157 = arith.constant dense<0.000000e+00> : vector<8x32xf32>
    %445 = tpu.matmul %409, %47, %cst_157 {dimension_numbers = #tpu.dot_dimension_numbers<[1], [0], [0], [1], [0, 0, 1, 1], [], []>} : vector<8x32xf32>, vector<32x32xf32>, vector<8x32xf32> -> vector<8x32xf32>
    %446 = arith.addf %444, %445 : vector<8x32xf32>
    %447 = vector.broadcast %53 : vector<1x32xf32> to vector<8x32xf32>
    %448 = arith.addf %446, %447 : vector<8x32xf32>
    %449 = arith.negf %448 : vector<8x32xf32>
    %450 = math.exp %449 : vector<8x32xf32>
    %cst_158 = arith.constant 1.000000e+00 : f32
    %451 = vector.broadcast %cst_158 : f32 to vector<8x32xf32>
    %452 = arith.addf %451, %450 : vector<8x32xf32>
    %453 = arith.divf %451, %452 : vector<8x32xf32>
    %cst_159 = arith.constant dense<0.000000e+00> : vector<8x32xf32>
    %454 = tpu.matmul %441, %37, %cst_159 {dimension_numbers = #tpu.dot_dimension_numbers<[1], [0], [0], [1], [0, 0, 1, 1], [], []>} : vector<8x32xf32>, vector<32x32xf32>, vector<8x32xf32> -> vector<8x32xf32>
    %455 = vector.broadcast %43 : vector<1x32xf32> to vector<8x32xf32>
    %456 = arith.addf %454, %455 : vector<8x32xf32>
    %cst_160 = arith.constant dense<0.000000e+00> : vector<8x32xf32>
    %457 = tpu.matmul %409, %49, %cst_160 {dimension_numbers = #tpu.dot_dimension_numbers<[1], [0], [0], [1], [0, 0, 1, 1], [], []>} : vector<8x32xf32>, vector<32x32xf32>, vector<8x32xf32> -> vector<8x32xf32>
    %458 = arith.addf %456, %457 : vector<8x32xf32>
    %459 = vector.broadcast %55 : vector<1x32xf32> to vector<8x32xf32>
    %460 = arith.addf %458, %459 : vector<8x32xf32>
    %461 = arith.negf %460 : vector<8x32xf32>
    %462 = math.exp %461 : vector<8x32xf32>
    %cst_161 = arith.constant 1.000000e+00 : f32
    %463 = vector.broadcast %cst_161 : f32 to vector<8x32xf32>
    %464 = arith.addf %463, %462 : vector<8x32xf32>
    %465 = arith.divf %463, %464 : vector<8x32xf32>
    %cst_162 = arith.constant dense<0.000000e+00> : vector<8x32xf32>
    %466 = tpu.matmul %441, %39, %cst_162 {dimension_numbers = #tpu.dot_dimension_numbers<[1], [0], [0], [1], [0, 0, 1, 1], [], []>} : vector<8x32xf32>, vector<32x32xf32>, vector<8x32xf32> -> vector<8x32xf32>
    %467 = vector.broadcast %45 : vector<1x32xf32> to vector<8x32xf32>
    %468 = arith.addf %466, %467 : vector<8x32xf32>
    %cst_163 = arith.constant dense<0.000000e+00> : vector<8x32xf32>
    %469 = tpu.matmul %409, %51, %cst_163 {dimension_numbers = #tpu.dot_dimension_numbers<[1], [0], [0], [1], [0, 0, 1, 1], [], []>} : vector<8x32xf32>, vector<32x32xf32>, vector<8x32xf32> -> vector<8x32xf32>
    %470 = vector.broadcast %57 : vector<1x32xf32> to vector<8x32xf32>
    %471 = arith.addf %469, %470 : vector<8x32xf32>
    %472 = arith.mulf %453, %471 : vector<8x32xf32>
    %473 = arith.addf %468, %472 : vector<8x32xf32>
    %474 = math.tanh %473 : vector<8x32xf32>
    %cst_164 = arith.constant 1.000000e+00 : f32
    %475 = vector.broadcast %cst_164 : f32 to vector<8x32xf32>
    %476 = arith.subf %475, %465 : vector<8x32xf32>
    %477 = arith.mulf %476, %474 : vector<8x32xf32>
    %478 = arith.mulf %465, %409 : vector<8x32xf32>
    %479 = arith.addf %477, %478 : vector<8x32xf32>
    %480 = vector.extract_strided_slice %7 {offsets = [48, 0], sizes = [8, 32], strides = [1, 1]} : vector<64x32xf32> to vector<8x32xf32>
    %cst_165 = arith.constant dense<0.000000e+00> : vector<8x32xf32>
    %481 = tpu.matmul %441, %23, %cst_165 {dimension_numbers = #tpu.dot_dimension_numbers<[1], [0], [0], [1], [0, 0, 1, 1], [], []>} : vector<8x32xf32>, vector<32x32xf32>, vector<8x32xf32> -> vector<8x32xf32>
    %482 = arith.addf %480, %481 : vector<8x32xf32>
    %483 = vector.broadcast %29 : vector<1x32xf32> to vector<8x32xf32>
    %484 = arith.addf %482, %483 : vector<8x32xf32>
    %485 = arith.negf %484 : vector<8x32xf32>
    %486 = math.exp %485 : vector<8x32xf32>
    %cst_166 = arith.constant 1.000000e+00 : f32
    %487 = vector.broadcast %cst_166 : f32 to vector<8x32xf32>
    %488 = arith.addf %487, %486 : vector<8x32xf32>
    %489 = arith.divf %487, %488 : vector<8x32xf32>
    %490 = vector.extract_strided_slice %14 {offsets = [48, 0], sizes = [8, 32], strides = [1, 1]} : vector<64x32xf32> to vector<8x32xf32>
    %cst_167 = arith.constant dense<0.000000e+00> : vector<8x32xf32>
    %491 = tpu.matmul %441, %25, %cst_167 {dimension_numbers = #tpu.dot_dimension_numbers<[1], [0], [0], [1], [0, 0, 1, 1], [], []>} : vector<8x32xf32>, vector<32x32xf32>, vector<8x32xf32> -> vector<8x32xf32>
    %492 = arith.addf %490, %491 : vector<8x32xf32>
    %493 = vector.broadcast %31 : vector<1x32xf32> to vector<8x32xf32>
    %494 = arith.addf %492, %493 : vector<8x32xf32>
    %495 = arith.negf %494 : vector<8x32xf32>
    %496 = math.exp %495 : vector<8x32xf32>
    %cst_168 = arith.constant 1.000000e+00 : f32
    %497 = vector.broadcast %cst_168 : f32 to vector<8x32xf32>
    %498 = arith.addf %497, %496 : vector<8x32xf32>
    %499 = arith.divf %497, %498 : vector<8x32xf32>
    %500 = vector.extract_strided_slice %21 {offsets = [48, 0], sizes = [8, 32], strides = [1, 1]} : vector<64x32xf32> to vector<8x32xf32>
    %cst_169 = arith.constant dense<0.000000e+00> : vector<8x32xf32>
    %501 = tpu.matmul %441, %27, %cst_169 {dimension_numbers = #tpu.dot_dimension_numbers<[1], [0], [0], [1], [0, 0, 1, 1], [], []>} : vector<8x32xf32>, vector<32x32xf32>, vector<8x32xf32> -> vector<8x32xf32>
    %502 = vector.broadcast %33 : vector<1x32xf32> to vector<8x32xf32>
    %503 = arith.addf %501, %502 : vector<8x32xf32>
    %504 = arith.mulf %489, %503 : vector<8x32xf32>
    %505 = arith.addf %500, %504 : vector<8x32xf32>
    %506 = math.tanh %505 : vector<8x32xf32>
    %cst_170 = arith.constant 1.000000e+00 : f32
    %507 = vector.broadcast %cst_170 : f32 to vector<8x32xf32>
    %508 = arith.subf %507, %499 : vector<8x32xf32>
    %509 = arith.mulf %508, %506 : vector<8x32xf32>
    %510 = arith.mulf %499, %441 : vector<8x32xf32>
    %511 = arith.addf %509, %510 : vector<8x32xf32>
    %cst_171 = arith.constant dense<0.000000e+00> : vector<8x32xf32>
    %512 = tpu.matmul %511, %35, %cst_171 {dimension_numbers = #tpu.dot_dimension_numbers<[1], [0], [0], [1], [0, 0, 1, 1], [], []>} : vector<8x32xf32>, vector<32x32xf32>, vector<8x32xf32> -> vector<8x32xf32>
    %513 = vector.broadcast %41 : vector<1x32xf32> to vector<8x32xf32>
    %514 = arith.addf %512, %513 : vector<8x32xf32>
    %cst_172 = arith.constant dense<0.000000e+00> : vector<8x32xf32>
    %515 = tpu.matmul %479, %47, %cst_172 {dimension_numbers = #tpu.dot_dimension_numbers<[1], [0], [0], [1], [0, 0, 1, 1], [], []>} : vector<8x32xf32>, vector<32x32xf32>, vector<8x32xf32> -> vector<8x32xf32>
    %516 = arith.addf %514, %515 : vector<8x32xf32>
    %517 = vector.broadcast %53 : vector<1x32xf32> to vector<8x32xf32>
    %518 = arith.addf %516, %517 : vector<8x32xf32>
    %519 = arith.negf %518 : vector<8x32xf32>
    %520 = math.exp %519 : vector<8x32xf32>
    %cst_173 = arith.constant 1.000000e+00 : f32
    %521 = vector.broadcast %cst_173 : f32 to vector<8x32xf32>
    %522 = arith.addf %521, %520 : vector<8x32xf32>
    %523 = arith.divf %521, %522 : vector<8x32xf32>
    %cst_174 = arith.constant dense<0.000000e+00> : vector<8x32xf32>
    %524 = tpu.matmul %511, %37, %cst_174 {dimension_numbers = #tpu.dot_dimension_numbers<[1], [0], [0], [1], [0, 0, 1, 1], [], []>} : vector<8x32xf32>, vector<32x32xf32>, vector<8x32xf32> -> vector<8x32xf32>
    %525 = vector.broadcast %43 : vector<1x32xf32> to vector<8x32xf32>
    %526 = arith.addf %524, %525 : vector<8x32xf32>
    %cst_175 = arith.constant dense<0.000000e+00> : vector<8x32xf32>
    %527 = tpu.matmul %479, %49, %cst_175 {dimension_numbers = #tpu.dot_dimension_numbers<[1], [0], [0], [1], [0, 0, 1, 1], [], []>} : vector<8x32xf32>, vector<32x32xf32>, vector<8x32xf32> -> vector<8x32xf32>
    %528 = arith.addf %526, %527 : vector<8x32xf32>
    %529 = vector.broadcast %55 : vector<1x32xf32> to vector<8x32xf32>
    %530 = arith.addf %528, %529 : vector<8x32xf32>
    %531 = arith.negf %530 : vector<8x32xf32>
    %532 = math.exp %531 : vector<8x32xf32>
    %cst_176 = arith.constant 1.000000e+00 : f32
    %533 = vector.broadcast %cst_176 : f32 to vector<8x32xf32>
    %534 = arith.addf %533, %532 : vector<8x32xf32>
    %535 = arith.divf %533, %534 : vector<8x32xf32>
    %cst_177 = arith.constant dense<0.000000e+00> : vector<8x32xf32>
    %536 = tpu.matmul %511, %39, %cst_177 {dimension_numbers = #tpu.dot_dimension_numbers<[1], [0], [0], [1], [0, 0, 1, 1], [], []>} : vector<8x32xf32>, vector<32x32xf32>, vector<8x32xf32> -> vector<8x32xf32>
    %537 = vector.broadcast %45 : vector<1x32xf32> to vector<8x32xf32>
    %538 = arith.addf %536, %537 : vector<8x32xf32>
    %cst_178 = arith.constant dense<0.000000e+00> : vector<8x32xf32>
    %539 = tpu.matmul %479, %51, %cst_178 {dimension_numbers = #tpu.dot_dimension_numbers<[1], [0], [0], [1], [0, 0, 1, 1], [], []>} : vector<8x32xf32>, vector<32x32xf32>, vector<8x32xf32> -> vector<8x32xf32>
    %540 = vector.broadcast %57 : vector<1x32xf32> to vector<8x32xf32>
    %541 = arith.addf %539, %540 : vector<8x32xf32>
    %542 = arith.mulf %523, %541 : vector<8x32xf32>
    %543 = arith.addf %538, %542 : vector<8x32xf32>
    %544 = math.tanh %543 : vector<8x32xf32>
    %cst_179 = arith.constant 1.000000e+00 : f32
    %545 = vector.broadcast %cst_179 : f32 to vector<8x32xf32>
    %546 = arith.subf %545, %535 : vector<8x32xf32>
    %547 = arith.mulf %546, %544 : vector<8x32xf32>
    %548 = arith.mulf %535, %479 : vector<8x32xf32>
    %549 = arith.addf %547, %548 : vector<8x32xf32>
    %550 = vector.extract_strided_slice %7 {offsets = [56, 0], sizes = [8, 32], strides = [1, 1]} : vector<64x32xf32> to vector<8x32xf32>
    %cst_180 = arith.constant dense<0.000000e+00> : vector<8x32xf32>
    %551 = tpu.matmul %511, %23, %cst_180 {dimension_numbers = #tpu.dot_dimension_numbers<[1], [0], [0], [1], [0, 0, 1, 1], [], []>} : vector<8x32xf32>, vector<32x32xf32>, vector<8x32xf32> -> vector<8x32xf32>
    %552 = arith.addf %550, %551 : vector<8x32xf32>
    %553 = vector.broadcast %29 : vector<1x32xf32> to vector<8x32xf32>
    %554 = arith.addf %552, %553 : vector<8x32xf32>
    %555 = arith.negf %554 : vector<8x32xf32>
    %556 = math.exp %555 : vector<8x32xf32>
    %cst_181 = arith.constant 1.000000e+00 : f32
    %557 = vector.broadcast %cst_181 : f32 to vector<8x32xf32>
    %558 = arith.addf %557, %556 : vector<8x32xf32>
    %559 = arith.divf %557, %558 : vector<8x32xf32>
    %560 = vector.extract_strided_slice %14 {offsets = [56, 0], sizes = [8, 32], strides = [1, 1]} : vector<64x32xf32> to vector<8x32xf32>
    %cst_182 = arith.constant dense<0.000000e+00> : vector<8x32xf32>
    %561 = tpu.matmul %511, %25, %cst_182 {dimension_numbers = #tpu.dot_dimension_numbers<[1], [0], [0], [1], [0, 0, 1, 1], [], []>} : vector<8x32xf32>, vector<32x32xf32>, vector<8x32xf32> -> vector<8x32xf32>
    %562 = arith.addf %560, %561 : vector<8x32xf32>
    %563 = vector.broadcast %31 : vector<1x32xf32> to vector<8x32xf32>
    %564 = arith.addf %562, %563 : vector<8x32xf32>
    %565 = arith.negf %564 : vector<8x32xf32>
    %566 = math.exp %565 : vector<8x32xf32>
    %cst_183 = arith.constant 1.000000e+00 : f32
    %567 = vector.broadcast %cst_183 : f32 to vector<8x32xf32>
    %568 = arith.addf %567, %566 : vector<8x32xf32>
    %569 = arith.divf %567, %568 : vector<8x32xf32>
    %570 = vector.extract_strided_slice %21 {offsets = [56, 0], sizes = [8, 32], strides = [1, 1]} : vector<64x32xf32> to vector<8x32xf32>
    %cst_184 = arith.constant dense<0.000000e+00> : vector<8x32xf32>
    %571 = tpu.matmul %511, %27, %cst_184 {dimension_numbers = #tpu.dot_dimension_numbers<[1], [0], [0], [1], [0, 0, 1, 1], [], []>} : vector<8x32xf32>, vector<32x32xf32>, vector<8x32xf32> -> vector<8x32xf32>
    %572 = vector.broadcast %33 : vector<1x32xf32> to vector<8x32xf32>
    %573 = arith.addf %571, %572 : vector<8x32xf32>
    %574 = arith.mulf %559, %573 : vector<8x32xf32>
    %575 = arith.addf %570, %574 : vector<8x32xf32>
    %576 = math.tanh %575 : vector<8x32xf32>
    %cst_185 = arith.constant 1.000000e+00 : f32
    %577 = vector.broadcast %cst_185 : f32 to vector<8x32xf32>
    %578 = arith.subf %577, %569 : vector<8x32xf32>
    %579 = arith.mulf %578, %576 : vector<8x32xf32>
    %580 = arith.mulf %569, %511 : vector<8x32xf32>
    %581 = arith.addf %579, %580 : vector<8x32xf32>
    %cst_186 = arith.constant dense<0.000000e+00> : vector<8x32xf32>
    %582 = tpu.matmul %581, %35, %cst_186 {dimension_numbers = #tpu.dot_dimension_numbers<[1], [0], [0], [1], [0, 0, 1, 1], [], []>} : vector<8x32xf32>, vector<32x32xf32>, vector<8x32xf32> -> vector<8x32xf32>
    %583 = vector.broadcast %41 : vector<1x32xf32> to vector<8x32xf32>
    %584 = arith.addf %582, %583 : vector<8x32xf32>
    %cst_187 = arith.constant dense<0.000000e+00> : vector<8x32xf32>
    %585 = tpu.matmul %549, %47, %cst_187 {dimension_numbers = #tpu.dot_dimension_numbers<[1], [0], [0], [1], [0, 0, 1, 1], [], []>} : vector<8x32xf32>, vector<32x32xf32>, vector<8x32xf32> -> vector<8x32xf32>
    %586 = arith.addf %584, %585 : vector<8x32xf32>
    %587 = vector.broadcast %53 : vector<1x32xf32> to vector<8x32xf32>
    %588 = arith.addf %586, %587 : vector<8x32xf32>
    %589 = arith.negf %588 : vector<8x32xf32>
    %590 = math.exp %589 : vector<8x32xf32>
    %cst_188 = arith.constant 1.000000e+00 : f32
    %591 = vector.broadcast %cst_188 : f32 to vector<8x32xf32>
    %592 = arith.addf %591, %590 : vector<8x32xf32>
    %593 = arith.divf %591, %592 : vector<8x32xf32>
    %cst_189 = arith.constant dense<0.000000e+00> : vector<8x32xf32>
    %594 = tpu.matmul %581, %37, %cst_189 {dimension_numbers = #tpu.dot_dimension_numbers<[1], [0], [0], [1], [0, 0, 1, 1], [], []>} : vector<8x32xf32>, vector<32x32xf32>, vector<8x32xf32> -> vector<8x32xf32>
    %595 = vector.broadcast %43 : vector<1x32xf32> to vector<8x32xf32>
    %596 = arith.addf %594, %595 : vector<8x32xf32>
    %cst_190 = arith.constant dense<0.000000e+00> : vector<8x32xf32>
    %597 = tpu.matmul %549, %49, %cst_190 {dimension_numbers = #tpu.dot_dimension_numbers<[1], [0], [0], [1], [0, 0, 1, 1], [], []>} : vector<8x32xf32>, vector<32x32xf32>, vector<8x32xf32> -> vector<8x32xf32>
    %598 = arith.addf %596, %597 : vector<8x32xf32>
    %599 = vector.broadcast %55 : vector<1x32xf32> to vector<8x32xf32>
    %600 = arith.addf %598, %599 : vector<8x32xf32>
    %601 = arith.negf %600 : vector<8x32xf32>
    %602 = math.exp %601 : vector<8x32xf32>
    %cst_191 = arith.constant 1.000000e+00 : f32
    %603 = vector.broadcast %cst_191 : f32 to vector<8x32xf32>
    %604 = arith.addf %603, %602 : vector<8x32xf32>
    %605 = arith.divf %603, %604 : vector<8x32xf32>
    %cst_192 = arith.constant dense<0.000000e+00> : vector<8x32xf32>
    %606 = tpu.matmul %581, %39, %cst_192 {dimension_numbers = #tpu.dot_dimension_numbers<[1], [0], [0], [1], [0, 0, 1, 1], [], []>} : vector<8x32xf32>, vector<32x32xf32>, vector<8x32xf32> -> vector<8x32xf32>
    %607 = vector.broadcast %45 : vector<1x32xf32> to vector<8x32xf32>
    %608 = arith.addf %606, %607 : vector<8x32xf32>
    %cst_193 = arith.constant dense<0.000000e+00> : vector<8x32xf32>
    %609 = tpu.matmul %549, %51, %cst_193 {dimension_numbers = #tpu.dot_dimension_numbers<[1], [0], [0], [1], [0, 0, 1, 1], [], []>} : vector<8x32xf32>, vector<32x32xf32>, vector<8x32xf32> -> vector<8x32xf32>
    %610 = vector.broadcast %57 : vector<1x32xf32> to vector<8x32xf32>
    %611 = arith.addf %609, %610 : vector<8x32xf32>
    %612 = arith.mulf %593, %611 : vector<8x32xf32>
    %613 = arith.addf %608, %612 : vector<8x32xf32>
    %614 = math.tanh %613 : vector<8x32xf32>
    %cst_194 = arith.constant 1.000000e+00 : f32
    %615 = vector.broadcast %cst_194 : f32 to vector<8x32xf32>
    %616 = arith.subf %615, %605 : vector<8x32xf32>
    %617 = arith.mulf %616, %614 : vector<8x32xf32>
    %618 = arith.mulf %605, %549 : vector<8x32xf32>
    %619 = arith.addf %617, %618 : vector<8x32xf32>
    %620 = tpu.iota {dimensions = array<i32: 0>} : vector<8x8xi32>
    %621 = tpu.iota {dimensions = array<i32: 1>} : vector<8x8xi32>
    %622 = arith.cmpi eq, %620, %621 : vector<8x8xi32>
    %623 = arith.extui %622 : vector<8x8xi1> to vector<8x8xi32>
    %624 = arith.sitofp %623 : vector<8x8xi32> to vector<8x8xf32>
    %625 = arith.sitofp %621 : vector<8x8xi32> to vector<8x8xf32>
    %cst_195 = arith.constant dense<0.000000e+00> : vector<8x8xf32>
    %626 = tpu.matmul %619, %619, %cst_195 {dimension_numbers = #tpu.dot_dimension_numbers<[1], [1], [0], [0], [0, 0, 1, 0], [], []>} : vector<8x32xf32>, vector<8x32xf32>, vector<8x8xf32> -> vector<8x8xf32>
    %627 = arith.mulf %619, %619 : vector<8x32xf32>
    %cst_196 = arith.constant dense<0.000000e+00> : vector<8xf32>
    %628 = vector.multi_reduction <add>, %627, %cst_196 [1] : vector<8x32xf32> to vector<8xf32>
    %629 = vector.shape_cast %628 : vector<8xf32> to vector<8x1xf32>
    %630 = math.sqrt %629 : vector<8x1xf32>
    %631 = arith.mulf %619, %619 : vector<8x32xf32>
    %cst_197 = arith.constant dense<0.000000e+00> : vector<8xf32>
    %632 = vector.multi_reduction <add>, %631, %cst_197 [1] : vector<8x32xf32> to vector<8xf32>
    %633 = vector.shape_cast %632 : vector<8xf32> to vector<8x1xf32>
    %634 = math.sqrt %633 : vector<8x1xf32>
    %cst_198 = arith.constant dense<0.000000e+00> : vector<8x8xf32>
    %635 = tpu.matmul %630, %634, %cst_198 {dimension_numbers = #tpu.dot_dimension_numbers<[1], [1], [0], [0], [0, 0, 1, 0], [], []>} : vector<8x1xf32>, vector<8x1xf32>, vector<8x8xf32> -> vector<8x8xf32>
    %636 = arith.divf %626, %635 : vector<8x8xf32>
    %637 = arith.cmpf one, %636, %636 : vector<8x8xf32>
    %cst_199 = arith.constant 0.000000e+00 : f32
    %638 = vector.broadcast %cst_199 : f32 to vector<8x8xf32>
    %639 = arith.select %637, %638, %636 : vector<8x8xi1>, vector<8x8xf32>
    %640 = arith.mulf %639, %624 : vector<8x8xf32>
    %cst_200 = arith.constant dense<0.000000e+00> : vector<8xf32>
    %641 = vector.multi_reduction <add>, %640, %cst_200 [0] : vector<8x8xf32> to vector<8xf32>
    %642 = vector.shape_cast %641 : vector<8xf32> to vector<1x8xf32>
    %cst_201 = arith.constant 1.000000e+00 : f32
    %643 = vector.broadcast %cst_201 : f32 to vector<8x8xf32>
    %644 = arith.subf %643, %624 : vector<8x8xf32>
    %645 = arith.mulf %639, %644 : vector<8x8xf32>
    %646 = math.absf %645 : vector<8x8xf32>
    %cst_202 = arith.constant 0.000000e+00 : f32
    %647 = vector.broadcast %cst_202 : f32 to vector<8x8xf32>
    %cst_203 = arith.constant dense<0xFF800000> : vector<8xf32>
    %648 = vector.multi_reduction <maximumf>, %646, %cst_203 [1] : vector<8x8xf32> to vector<8xf32>
    %649 = vector.shape_cast %648 : vector<8xf32> to vector<8x1xf32>
    %650 = vector.broadcast %649 : vector<8x1xf32> to vector<8x8xf32>
    %651 = arith.cmpf oeq, %646, %650 : vector<8x8xf32>
    %cst_204 = arith.constant 8.000000e+00 : f32
    %652 = vector.broadcast %cst_204 : f32 to vector<8x8xf32>
    %653 = arith.select %651, %625, %652 : vector<8x8xi1>, vector<8x8xf32>
    %cst_205 = arith.constant dense<0x7F800000> : vector<8xf32>
    %654 = vector.multi_reduction <minimumf>, %653, %cst_205 [1] : vector<8x8xf32> to vector<8xf32>
    %655 = vector.shape_cast %654 : vector<8xf32> to vector<8x1xf32>
    %656 = vector.broadcast %655 : vector<8x1xf32> to vector<8x8xf32>
    %657 = arith.cmpf oeq, %625, %656 : vector<8x8xf32>
    %658 = arith.extui %657 : vector<8x8xi1> to vector<8x8xi32>
    %659 = arith.sitofp %658 : vector<8x8xi32> to vector<8x8xf32>
    %660 = arith.maximumf %647, %659 : vector<8x8xf32>
    %cst_206 = arith.constant 0.000000e+00 : f32
    %661 = vector.broadcast %cst_206 : f32 to vector<8x8xf32>
    %662 = arith.cmpf ogt, %659, %661 : vector<8x8xf32>
    %cst_207 = arith.constant -1.000000e+30 : f32
    %663 = vector.broadcast %cst_207 : f32 to vector<8x8xf32>
    %664 = arith.select %662, %663, %646 : vector<8x8xi1>, vector<8x8xf32>
    %cst_208 = arith.constant dense<0xFF800000> : vector<8xf32>
    %665 = vector.multi_reduction <maximumf>, %664, %cst_208 [1] : vector<8x8xf32> to vector<8xf32>
    %666 = vector.shape_cast %665 : vector<8xf32> to vector<8x1xf32>
    %667 = vector.broadcast %666 : vector<8x1xf32> to vector<8x8xf32>
    %668 = arith.cmpf oeq, %664, %667 : vector<8x8xf32>
    %cst_209 = arith.constant 8.000000e+00 : f32
    %669 = vector.broadcast %cst_209 : f32 to vector<8x8xf32>
    %670 = arith.select %668, %625, %669 : vector<8x8xi1>, vector<8x8xf32>
    %cst_210 = arith.constant dense<0x7F800000> : vector<8xf32>
    %671 = vector.multi_reduction <minimumf>, %670, %cst_210 [1] : vector<8x8xf32> to vector<8xf32>
    %672 = vector.shape_cast %671 : vector<8xf32> to vector<8x1xf32>
    %673 = vector.broadcast %672 : vector<8x1xf32> to vector<8x8xf32>
    %674 = arith.cmpf oeq, %625, %673 : vector<8x8xf32>
    %675 = arith.extui %674 : vector<8x8xi1> to vector<8x8xi32>
    %676 = arith.sitofp %675 : vector<8x8xi32> to vector<8x8xf32>
    %677 = arith.maximumf %660, %676 : vector<8x8xf32>
    %cst_211 = arith.constant 0.000000e+00 : f32
    %678 = vector.broadcast %cst_211 : f32 to vector<8x8xf32>
    %679 = arith.cmpf ogt, %676, %678 : vector<8x8xf32>
    %cst_212 = arith.constant -1.000000e+30 : f32
    %680 = vector.broadcast %cst_212 : f32 to vector<8x8xf32>
    %681 = arith.select %679, %680, %664 : vector<8x8xi1>, vector<8x8xf32>
    %cst_213 = arith.constant dense<0xFF800000> : vector<8xf32>
    %682 = vector.multi_reduction <maximumf>, %681, %cst_213 [1] : vector<8x8xf32> to vector<8xf32>
    %683 = vector.shape_cast %682 : vector<8xf32> to vector<8x1xf32>
    %684 = vector.broadcast %683 : vector<8x1xf32> to vector<8x8xf32>
    %685 = arith.cmpf oeq, %681, %684 : vector<8x8xf32>
    %cst_214 = arith.constant 8.000000e+00 : f32
    %686 = vector.broadcast %cst_214 : f32 to vector<8x8xf32>
    %687 = arith.select %685, %625, %686 : vector<8x8xi1>, vector<8x8xf32>
    %cst_215 = arith.constant dense<0x7F800000> : vector<8xf32>
    %688 = vector.multi_reduction <minimumf>, %687, %cst_215 [1] : vector<8x8xf32> to vector<8xf32>
    %689 = vector.shape_cast %688 : vector<8xf32> to vector<8x1xf32>
    %690 = vector.broadcast %689 : vector<8x1xf32> to vector<8x8xf32>
    %691 = arith.cmpf oeq, %625, %690 : vector<8x8xf32>
    %692 = arith.extui %691 : vector<8x8xi1> to vector<8x8xi32>
    %693 = arith.sitofp %692 : vector<8x8xi32> to vector<8x8xf32>
    %694 = arith.maximumf %677, %693 : vector<8x8xf32>
    %695 = arith.mulf %645, %694 : vector<8x8xf32>
    %cst_216 = arith.constant dense<0.000000e+00> : vector<8xf32>
    %696 = vector.multi_reduction <add>, %695, %cst_216 [0] : vector<8x8xf32> to vector<8xf32>
    %697 = vector.shape_cast %696 : vector<8xf32> to vector<1x8xf32>
    %cst_217 = arith.constant 0.000000e+00 : f32
    %698 = vector.broadcast %cst_217 : f32 to vector<1x8xf32>
    %699 = arith.cmpf one, %697, %698 : vector<1x8xf32>
    %700 = arith.extui %699 : vector<1x8xi1> to vector<1x8xi32>
    %701 = arith.sitofp %700 : vector<1x8xi32> to vector<1x8xf32>
    %702 = arith.mulf %701, %642 : vector<1x8xf32>
    %703 = vector.broadcast %702 : vector<1x8xf32> to vector<8x8xf32>
    %704 = arith.mulf %624, %703 : vector<8x8xf32>
    %705 = arith.addf %695, %704 : vector<8x8xf32>
    %c0_218 = arith.constant 0 : index
    %c0_219 = arith.constant 0 : index
    %c0_220 = arith.constant 0 : index
    %706 = vector.load %arg9[%c0_218, %c0_219, %c0_220] : memref<5x32x32xf32, #tpu.memory_space<vmem>>, vector<1x32x32xf32>
    %707 = vector.shape_cast %706 : vector<1x32x32xf32> to vector<32x32xf32>
    %c1_221 = arith.constant 1 : index
    %c0_222 = arith.constant 0 : index
    %c0_223 = arith.constant 0 : index
    %708 = vector.load %arg9[%c1_221, %c0_222, %c0_223] : memref<5x32x32xf32, #tpu.memory_space<vmem>>, vector<1x32x32xf32>
    %709 = vector.shape_cast %708 : vector<1x32x32xf32> to vector<32x32xf32>
    %c2_224 = arith.constant 2 : index
    %c0_225 = arith.constant 0 : index
    %c0_226 = arith.constant 0 : index
    %710 = vector.load %arg9[%c2_224, %c0_225, %c0_226] : memref<5x32x32xf32, #tpu.memory_space<vmem>>, vector<1x32x32xf32>
    %711 = vector.shape_cast %710 : vector<1x32x32xf32> to vector<32x32xf32>
    %c3 = arith.constant 3 : index
    %c0_227 = arith.constant 0 : index
    %c0_228 = arith.constant 0 : index
    %712 = vector.load %arg9[%c3, %c0_227, %c0_228] : memref<5x32x32xf32, #tpu.memory_space<vmem>>, vector<1x32x32xf32>
    %713 = vector.shape_cast %712 : vector<1x32x32xf32> to vector<32x32xf32>
    %c4 = arith.constant 4 : index
    %c0_229 = arith.constant 0 : index
    %c0_230 = arith.constant 0 : index
    %714 = vector.load %arg9[%c4, %c0_229, %c0_230] : memref<5x32x32xf32, #tpu.memory_space<vmem>>, vector<1x32x32xf32>
    %715 = vector.shape_cast %714 : vector<1x32x32xf32> to vector<32x32xf32>
    %c0_231 = arith.constant 0 : index
    %c0_232 = arith.constant 0 : index
    %c0_233 = arith.constant 0 : index
    %716 = vector.load %arg10[%c0_231, %c0_232, %c0_233] : memref<5x1x32xf32, #tpu.memory_space<vmem>>, vector<1x1x32xf32>
    %717 = vector.shape_cast %716 : vector<1x1x32xf32> to vector<1x32xf32>
    %c1_234 = arith.constant 1 : index
    %c0_235 = arith.constant 0 : index
    %c0_236 = arith.constant 0 : index
    %718 = vector.load %arg10[%c1_234, %c0_235, %c0_236] : memref<5x1x32xf32, #tpu.memory_space<vmem>>, vector<1x1x32xf32>
    %719 = vector.shape_cast %718 : vector<1x1x32xf32> to vector<1x32xf32>
    %c2_237 = arith.constant 2 : index
    %c0_238 = arith.constant 0 : index
    %c0_239 = arith.constant 0 : index
    %720 = vector.load %arg10[%c2_237, %c0_238, %c0_239] : memref<5x1x32xf32, #tpu.memory_space<vmem>>, vector<1x1x32xf32>
    %721 = vector.shape_cast %720 : vector<1x1x32xf32> to vector<1x32xf32>
    %c3_240 = arith.constant 3 : index
    %c0_241 = arith.constant 0 : index
    %c0_242 = arith.constant 0 : index
    %722 = vector.load %arg10[%c3_240, %c0_241, %c0_242] : memref<5x1x32xf32, #tpu.memory_space<vmem>>, vector<1x1x32xf32>
    %723 = vector.shape_cast %722 : vector<1x1x32xf32> to vector<1x32xf32>
    %c4_243 = arith.constant 4 : index
    %c0_244 = arith.constant 0 : index
    %c0_245 = arith.constant 0 : index
    %724 = vector.load %arg10[%c4_243, %c0_244, %c0_245] : memref<5x1x32xf32, #tpu.memory_space<vmem>>, vector<1x1x32xf32>
    %725 = vector.shape_cast %724 : vector<1x1x32xf32> to vector<1x32xf32>
    %cst_246 = arith.constant dense<0.000000e+00> : vector<8x32xf32>
    %726 = tpu.matmul %705, %619, %cst_246 {dimension_numbers = #tpu.dot_dimension_numbers<[0], [0], [1], [1], [0, 1, 1, 1], [], []>} : vector<8x8xf32>, vector<8x32xf32>, vector<8x32xf32> -> vector<8x32xf32>
    %cst_247 = arith.constant dense<0.000000e+00> : vector<8xf32>
    %727 = vector.multi_reduction <add>, %726, %cst_247 [1] : vector<8x32xf32> to vector<8xf32>
    %728 = vector.shape_cast %727 : vector<8xf32> to vector<8x1xf32>
    %cst_248 = arith.constant 0.000000e+00 : f32
    %729 = vector.broadcast %cst_248 : f32 to vector<8x1xf32>
    %730 = arith.cmpf one, %728, %729 : vector<8x1xf32>
    %731 = arith.extui %730 : vector<8x1xi1> to vector<8x1xi32>
    %732 = arith.sitofp %731 : vector<8x1xi32> to vector<8x1xf32>
    %cst_249 = arith.constant dense<0.000000e+00> : vector<8x32xf32>
    %733 = tpu.matmul %726, %707, %cst_249 {dimension_numbers = #tpu.dot_dimension_numbers<[1], [0], [0], [1], [0, 0, 1, 1], [], []>} : vector<8x32xf32>, vector<32x32xf32>, vector<8x32xf32> -> vector<8x32xf32>
    %734 = vector.broadcast %717 : vector<1x32xf32> to vector<8x32xf32>
    %735 = arith.addf %733, %734 : vector<8x32xf32>
    %cst_250 = arith.constant 0.000000e+00 : f32
    %736 = vector.broadcast %cst_250 : f32 to vector<8x32xf32>
    %737 = arith.cmpf oge, %735, %736 : vector<8x32xf32>
    %cst_251 = arith.constant 2.000000e-01 : f32
    %738 = vector.broadcast %cst_251 : f32 to vector<8x32xf32>
    %739 = arith.mulf %738, %735 : vector<8x32xf32>
    %740 = arith.select %737, %735, %739 : vector<8x32xi1>, vector<8x32xf32>
    %cst_252 = arith.constant dense<0.000000e+00> : vector<8x8xf32>
    %741 = tpu.matmul %619, %740, %cst_252 {dimension_numbers = #tpu.dot_dimension_numbers<[1], [1], [0], [0], [0, 0, 1, 0], [], []>} : vector<8x32xf32>, vector<8x32xf32>, vector<8x8xf32> -> vector<8x8xf32>
    %742 = arith.mulf %619, %619 : vector<8x32xf32>
    %cst_253 = arith.constant dense<0.000000e+00> : vector<8xf32>
    %743 = vector.multi_reduction <add>, %742, %cst_253 [1] : vector<8x32xf32> to vector<8xf32>
    %744 = vector.shape_cast %743 : vector<8xf32> to vector<8x1xf32>
    %745 = math.sqrt %744 : vector<8x1xf32>
    %746 = arith.mulf %740, %740 : vector<8x32xf32>
    %cst_254 = arith.constant dense<0.000000e+00> : vector<8xf32>
    %747 = vector.multi_reduction <add>, %746, %cst_254 [1] : vector<8x32xf32> to vector<8xf32>
    %748 = vector.shape_cast %747 : vector<8xf32> to vector<8x1xf32>
    %749 = math.sqrt %748 : vector<8x1xf32>
    %cst_255 = arith.constant dense<0.000000e+00> : vector<8x8xf32>
    %750 = tpu.matmul %745, %749, %cst_255 {dimension_numbers = #tpu.dot_dimension_numbers<[1], [1], [0], [0], [0, 0, 1, 0], [], []>} : vector<8x1xf32>, vector<8x1xf32>, vector<8x8xf32> -> vector<8x8xf32>
    %751 = arith.divf %741, %750 : vector<8x8xf32>
    %752 = arith.cmpf one, %751, %751 : vector<8x8xf32>
    %cst_256 = arith.constant 0.000000e+00 : f32
    %753 = vector.broadcast %cst_256 : f32 to vector<8x8xf32>
    %754 = arith.select %752, %753, %751 : vector<8x8xi1>, vector<8x8xf32>
    %cst_257 = arith.constant dense<0xFF800000> : vector<8xf32>
    %755 = vector.multi_reduction <maximumf>, %754, %cst_257 [0] : vector<8x8xf32> to vector<8xf32>
    %756 = vector.shape_cast %755 : vector<8xf32> to vector<1x8xf32>
    %757 = vector.broadcast %756 : vector<1x8xf32> to vector<8x8xf32>
    %758 = arith.subf %754, %757 : vector<8x8xf32>
    %759 = math.exp %758 : vector<8x8xf32>
    %cst_258 = arith.constant dense<0.000000e+00> : vector<8xf32>
    %760 = vector.multi_reduction <add>, %759, %cst_258 [0] : vector<8x8xf32> to vector<8xf32>
    %761 = vector.shape_cast %760 : vector<8xf32> to vector<1x8xf32>
    %762 = vector.broadcast %761 : vector<1x8xf32> to vector<8x8xf32>
    %763 = arith.divf %759, %762 : vector<8x8xf32>
    %764 = vector.broadcast %732 : vector<8x1xf32> to vector<8x32xf32>
    %765 = arith.mulf %740, %764 : vector<8x32xf32>
    %cst_259 = arith.constant dense<0.000000e+00> : vector<8x32xf32>
    %766 = tpu.matmul %763, %765, %cst_259 {dimension_numbers = #tpu.dot_dimension_numbers<[1], [0], [0], [1], [0, 0, 1, 1], [], []>} : vector<8x8xf32>, vector<8x32xf32>, vector<8x32xf32> -> vector<8x32xf32>
    %cst_260 = arith.constant dense<0.000000e+00> : vector<8x32xf32>
    %767 = tpu.matmul %766, %709, %cst_260 {dimension_numbers = #tpu.dot_dimension_numbers<[1], [0], [0], [1], [0, 0, 1, 1], [], []>} : vector<8x32xf32>, vector<32x32xf32>, vector<8x32xf32> -> vector<8x32xf32>
    %768 = vector.broadcast %719 : vector<1x32xf32> to vector<8x32xf32>
    %769 = arith.addf %767, %768 : vector<8x32xf32>
    %cst_261 = arith.constant 0.000000e+00 : f32
    %770 = vector.broadcast %cst_261 : f32 to vector<8x32xf32>
    %771 = arith.cmpf oge, %769, %770 : vector<8x32xf32>
    %cst_262 = arith.constant 2.000000e-01 : f32
    %772 = vector.broadcast %cst_262 : f32 to vector<8x32xf32>
    %773 = arith.mulf %772, %769 : vector<8x32xf32>
    %774 = arith.select %771, %769, %773 : vector<8x32xi1>, vector<8x32xf32>
    %cst_263 = arith.constant dense<0.000000e+00> : vector<8x32xf32>
    %775 = tpu.matmul %774, %713, %cst_263 {dimension_numbers = #tpu.dot_dimension_numbers<[1], [0], [0], [1], [0, 0, 1, 1], [], []>} : vector<8x32xf32>, vector<32x32xf32>, vector<8x32xf32> -> vector<8x32xf32>
    %776 = vector.broadcast %723 : vector<1x32xf32> to vector<8x32xf32>
    %777 = arith.addf %775, %776 : vector<8x32xf32>
    %cst_264 = arith.constant 0.000000e+00 : f32
    %778 = vector.broadcast %cst_264 : f32 to vector<8x32xf32>
    %779 = arith.cmpf oge, %777, %778 : vector<8x32xf32>
    %cst_265 = arith.constant 2.000000e-01 : f32
    %780 = vector.broadcast %cst_265 : f32 to vector<8x32xf32>
    %781 = arith.mulf %780, %777 : vector<8x32xf32>
    %782 = arith.select %779, %777, %781 : vector<8x32xi1>, vector<8x32xf32>
    %cst_266 = arith.constant dense<0.000000e+00> : vector<8x32xf32>
    %783 = tpu.matmul %774, %711, %cst_266 {dimension_numbers = #tpu.dot_dimension_numbers<[1], [0], [0], [1], [0, 0, 1, 1], [], []>} : vector<8x32xf32>, vector<32x32xf32>, vector<8x32xf32> -> vector<8x32xf32>
    %784 = vector.broadcast %721 : vector<1x32xf32> to vector<8x32xf32>
    %785 = arith.addf %783, %784 : vector<8x32xf32>
    %cst_267 = arith.constant 0.000000e+00 : f32
    %786 = vector.broadcast %cst_267 : f32 to vector<8x32xf32>
    %787 = arith.cmpf oge, %785, %786 : vector<8x32xf32>
    %cst_268 = arith.constant 2.000000e-01 : f32
    %788 = vector.broadcast %cst_268 : f32 to vector<8x32xf32>
    %789 = arith.mulf %788, %785 : vector<8x32xf32>
    %790 = arith.select %787, %785, %789 : vector<8x32xi1>, vector<8x32xf32>
    %791 = arith.subf %619, %782 : vector<8x32xf32>
    %cst_269 = arith.constant dense<0.000000e+00> : vector<8x32xf32>
    %792 = tpu.matmul %791, %715, %cst_269 {dimension_numbers = #tpu.dot_dimension_numbers<[1], [0], [0], [1], [0, 0, 1, 1], [], []>} : vector<8x32xf32>, vector<32x32xf32>, vector<8x32xf32> -> vector<8x32xf32>
    %793 = vector.broadcast %725 : vector<1x32xf32> to vector<8x32xf32>
    %794 = arith.addf %792, %793 : vector<8x32xf32>
    %cst_270 = arith.constant 0.000000e+00 : f32
    %795 = vector.broadcast %cst_270 : f32 to vector<8x32xf32>
    %796 = arith.cmpf oge, %794, %795 : vector<8x32xf32>
    %cst_271 = arith.constant 2.000000e-01 : f32
    %797 = vector.broadcast %cst_271 : f32 to vector<8x32xf32>
    %798 = arith.mulf %797, %794 : vector<8x32xf32>
    %799 = arith.select %796, %794, %798 : vector<8x32xi1>, vector<8x32xf32>
    %800 = arith.addf %790, %799 : vector<8x32xf32>
    %c0_272 = arith.constant 0 : index
    %c0_273 = arith.constant 0 : index
    %801 = vector.load %arg11[%c0_272, %c0_273] : memref<32x1xf32, #tpu.memory_space<vmem>>, vector<32x1xf32>
    %cst_274 = arith.constant dense<0.000000e+00> : vector<8x1xf32>
    %802 = tpu.matmul %800, %801, %cst_274 {dimension_numbers = #tpu.dot_dimension_numbers<[1], [0], [0], [1], [0, 0, 1, 1], [], []>} : vector<8x32xf32>, vector<32x1xf32>, vector<8x1xf32> -> vector<8x1xf32>
    %c0_275 = arith.constant 0 : index
    %c0_276 = arith.constant 0 : index
    %803 = vector.load %arg12[%c0_275, %c0_276] : memref<1x1xf32, #tpu.memory_space<vmem>>, vector<1x1xf32>
    %804 = vector.broadcast %803 : vector<1x1xf32> to vector<8x1xf32>
    %805 = arith.addf %802, %804 : vector<8x1xf32>
    %c0_277 = arith.constant 0 : index
    %c0_278 = arith.constant 0 : index
    %806 = vector.load %arg13[%c0_277, %c0_278] : memref<8x1xf32, #tpu.memory_space<vmem>>, vector<8x1xf32>
    tpu.vector_store %arg13[%c0_277, %c0_278], %805 {strides = array<i32>} : memref<8x1xf32, #tpu.memory_space<vmem>>, vector<8x1xf32>,
    return
  }
}

</mosaic_0001>

<llo_original>
// kernel: sga_forward.1
$region0: #{sga_forward.1}
  #allocation0 [shape = 'u32[]', space=smem, size = 0x4, offset = 0x4, fixed_abs, tag = 'smem constant byte address 0x4 - core index']
  #allocation1 [shape = 'u32[144,128]{1,0:T(1,128)}', space=vmem, size = 0x12000, scoped, tag = 'internal scratch']
  #allocation2 [shape = 'f32[1,1]{1,0:T(1,128)S(1)}', space=vmem, size = 0x200, scoped, tag = 'scoped memory for sga_forward.1']
  %s0 = inlined_call_operand.vmem [shape: f32[64,4], index: 0, kind: input, shape index: {}]
  %s1 = inlined_call_operand.vmem [shape: f32[3,4,32], index: 1, kind: input, shape index: {}]
  %s2 = inlined_call_operand.hbm [shape: f32[3,32,32], index: 2, kind: input, shape index: {}]
  %s3 = inlined_call_operand.hbm [shape: f32[3,1,32], index: 3, kind: input, shape index: {}]
  %s4 = inlined_call_operand.hbm [shape: f32[3,1,32], index: 4, kind: input, shape index: {}]
  %s5 = inlined_call_operand.hbm [shape: f32[3,32,32], index: 5, kind: input, shape index: {}]
  %s6 = inlined_call_operand.hbm [shape: f32[3,32,32], index: 6, kind: input, shape index: {}]
  %s7 = inlined_call_operand.hbm [shape: f32[3,1,32], index: 7, kind: input, shape index: {}]
  %s8 = inlined_call_operand.hbm [shape: f32[3,1,32], index: 8, kind: input, shape index: {}]
  %s9 = inlined_call_operand.vmem [shape: f32[5,32,32], index: 9, kind: input, shape index: {}]
  %s10 = inlined_call_operand.hbm [shape: f32[5,1,32], index: 10, kind: input, shape index: {}]
  %s11 = inlined_call_operand.vmem [shape: f32[32,1], index: 11, kind: input, shape index: {}]
  %s12 = inlined_call_operand.<no memory space> [shape: f32[1,1], index: 12, kind: input, shape index: {}]
  %s13 = inlined_call_operand.vmem [shape: f32[8,1], index: 13, kind: output, shape index: {}]
  %s14 = sld [smem:[#allocation0]]
  $region94: #{sga_forward.1} parent=0
    _
  %s16 = ssub.s32 1, %s14
  %s17 = scalar_select 0, %s16, %s14
  %v18 = vstv %s12
  %19 = vst [vmem:[#allocation2] sm:$0x1] %v18
  $region1: #{sga_forward.1} parent=0
    #allocation3 [shape = 'u8[49152]{0}', space=vmem, size = 0xc000, scoped, tag = 'input window, operand 2, single buffered']
    #allocation4 [shape = 's32[1]{0}', space=sflag, size = 0x4, scoped, tag = 'scoped memory for sga_forward.1']
    #allocation5 [shape = 'u8[1536]{0}', space=vmem, size = 0x800, scoped, tag = 'input window, operand 3, single buffered']
    #allocation6 [shape = 's32[1]{0}', space=sflag, size = 0x4, scoped, tag = 'scoped memory for sga_forward.1']
    #allocation7 [shape = 'u8[1536]{0}', space=vmem, size = 0x800, scoped, tag = 'input window, operand 4, single buffered']
    #allocation8 [shape = 'u8[49152]{0}', space=vmem, size = 0xc000, scoped, tag = 'input window, operand 5, single buffered']
    #allocation9 [shape = 's32[1]{0}', space=sflag, size = 0x4, scoped, tag = 'scoped memory for sga_forward.1']
    #allocation10 [shape = 'u8[49152]{0}', space=vmem, size = 0xc000, scoped, tag = 'input window, operand 6, single buffered']
    #allocation11 [shape = 'u8[1536]{0}', space=vmem, size = 0x800, scoped, tag = 'input window, operand 7, single buffered']
    #allocation12 [shape = 's32[1]{0}', space=sflag, size = 0x4, scoped, tag = 'scoped memory for sga_forward.1']
    #allocation13 [shape = 'u8[1536]{0}', space=vmem, size = 0x800, scoped, tag = 'input window, operand 8, single buffered']
    #allocation14 [shape = 'u8[2560]{0}', space=vmem, size = 0xc00, scoped, tag = 'input window, operand 10, single buffered']
    #allocation15 [shape = 's32[1]{0}', space=sflag, size = 0x4, scoped, tag = 'scoped memory for sga_forward.1']
    %20 = vsyncpa [#allocation4], 0
    %21 = vsyncpa [#allocation6], 0
    %22 = vsyncpa [#allocation9], 0
    %23 = vsyncpa [#allocation12], 0
    %24 = vsyncpa [#allocation15], 0
    // Predicated region
    $region2: #{sga_forward.1} parent=1 // pred_check
      _
    $region3: #{sga_forward.1} parent=1 // pred_check_branch
      %26 = sbr.rel (0) target = $region5
    $region4: #{sga_forward.1} parent=1 // pred_region
      _
    $region5: #{sga_forward.1} parent=1 // pred_fallthru
      _
    // Predicated region
    $region6: #{sga_forward.1} parent=1 // pred_check
      _
    $region7: #{sga_forward.1} parent=1 // pred_check_branch
      %28 = sbr.rel (0) target = $region9
    $region8: #{sga_forward.1} parent=1 // pred_region
      _
    $region9: #{sga_forward.1} parent=1 // pred_fallthru
      _
    // Predicated region
    $region10: #{sga_forward.1} parent=1 // pred_check
      _
    $region11: #{sga_forward.1} parent=1 // pred_check_branch
      %30 = sbr.rel (0) target = $region13
    $region12: #{sga_forward.1} parent=1 // pred_region
      %s32 = ssub.s32 1536, 1536
      %33 = vsyncadd [#allocation4], %s32
      %s34 = sshll.u32 [#allocation3], 4
      %s35 = int_to_ptr.vmem [resolvable:$true] %s34
      %40 = dma.hbm_to_vmem [thread:$0]  %s2, 1536, %s35, [#allocation4], 128, 128, 8
    $region13: #{sga_forward.1} parent=1 // pred_fallthru
      _
    // Predicated region
    $region14: #{sga_forward.1} parent=1 // pred_check
      _
    $region15: #{sga_forward.1} parent=1 // pred_check_branch
      %42 = sbr.rel (0) target = $region17
    $region16: #{sga_forward.1} parent=1 // pred_region
      %s44 = ssub.s32 48, 48
      %45 = vsyncadd [#allocation6], %s44
      %s46 = sshll.u32 [#allocation5], 4
      %s47 = int_to_ptr.vmem [resolvable:$true] %s46
      %52 = dma.hbm_to_vmem [thread:$0]  %s3, 48, %s47, [#allocation6], 16, 16, 1
    $region17: #{sga_forward.1} parent=1 // pred_fallthru
      _
    // Predicated region
    $region18: #{sga_forward.1} parent=1 // pred_check
      _
    $region19: #{sga_forward.1} parent=1 // pred_check_branch
      %54 = sbr.rel (0) target = $region21
    $region20: #{sga_forward.1} parent=1 // pred_region
      %s56 = ssub.s32 48, 48
      %57 = vsyncadd [#allocation6], %s56
      %s58 = sshll.u32 [#allocation7], 4
      %s59 = int_to_ptr.vmem [resolvable:$true] %s58
      %64 = dma.hbm_to_vmem [thread:$0]  %s4, 48, %s59, [#allocation6], 16, 16, 1
    $region21: #{sga_forward.1} parent=1 // pred_fallthru
      _
    // Predicated region
    $region22: #{sga_forward.1} parent=1 // pred_check
      _
    $region23: #{sga_forward.1} parent=1 // pred_check_branch
      %66 = sbr.rel (0) target = $region25
    $region24: #{sga_forward.1} parent=1 // pred_region
      %s68 = ssub.s32 1536, 1536
      %69 = vsyncadd [#allocation9], %s68
      %s70 = sshll.u32 [#allocation8], 4
      %s71 = int_to_ptr.vmem [resolvable:$true] %s70
      %76 = dma.hbm_to_vmem [thread:$0]  %s5, 1536, %s71, [#allocation9], 128, 128, 8
    $region25: #{sga_forward.1} parent=1 // pred_fallthru
      _
    // Predicated region
    $region26: #{sga_forward.1} parent=1 // pred_check
      _
    $region27: #{sga_forward.1} parent=1 // pred_check_branch
      %78 = sbr.rel (0) target = $region29
    $region28: #{sga_forward.1} parent=1 // pred_region
      %s80 = ssub.s32 1536, 1536
      %81 = vsyncadd [#allocation9], %s80
      %s82 = sshll.u32 [#allocation10], 4
      %s83 = int_to_ptr.vmem [resolvable:$true] %s82
      %88 = dma.hbm_to_vmem [thread:$0]  %s6, 1536, %s83, [#allocation9], 128, 128, 8
    $region29: #{sga_forward.1} parent=1 // pred_fallthru
      _
    // Predicated region
    $region30: #{sga_forward.1} parent=1 // pred_check
      _
    $region31: #{sga_forward.1} parent=1 // pred_check_branch
      %90 = sbr.rel (0) target = $region33
    $region32: #{sga_forward.1} parent=1 // pred_region
      %s92 = ssub.s32 48, 48
      %93 = vsyncadd [#allocation12], %s92
      %s94 = sshll.u32 [#allocation11], 4
      %s95 = int_to_ptr.vmem [resolvable:$true] %s94
      %100 = dma.hbm_to_vmem [thread:$0]  %s7, 48, %s95, [#allocation12], 16, 16, 1
    $region33: #{sga_forward.1} parent=1 // pred_fallthru
      _
    // Predicated region
    $region34: #{sga_forward.1} parent=1 // pred_check
      _
    $region35: #{sga_forward.1} parent=1 // pred_check_branch
      %102 = sbr.rel (0) target = $region37
    $region36: #{sga_forward.1} parent=1 // pred_region
      %s104 = ssub.s32 48, 48
      %105 = vsyncadd [#allocation12], %s104
      %s106 = sshll.u32 [#allocation13], 4
      %s107 = int_to_ptr.vmem [resolvable:$true] %s106
      %112 = dma.hbm_to_vmem [thread:$0]  %s8, 48, %s107, [#allocation12], 16, 16, 1
    $region37: #{sga_forward.1} parent=1 // pred_fallthru
      _
    // Predicated region
    $region38: #{sga_forward.1} parent=1 // pred_check
      _
    $region39: #{sga_forward.1} parent=1 // pred_check_branch
      %114 = sbr.rel (0) target = $region41
    $region40: #{sga_forward.1} parent=1 // pred_region
      _
    $region41: #{sga_forward.1} parent=1 // pred_fallthru
      _
    // Predicated region
    $region42: #{sga_forward.1} parent=1 // pred_check
      _
    $region43: #{sga_forward.1} parent=1 // pred_check_branch
      %116 = sbr.rel (0) target = $region45
    $region44: #{sga_forward.1} parent=1 // pred_region
      %s118 = ssub.s32 80, 80
      %119 = vsyncadd [#allocation15], %s118
      %s120 = sshll.u32 [#allocation14], 4
      %s121 = int_to_ptr.vmem [resolvable:$true] %s120
      %126 = dma.hbm_to_vmem [thread:$0]  %s10, 80, %s121, [#allocation15], 16, 16, 1
    $region45: #{sga_forward.1} parent=1 // pred_fallthru
      _
    // Predicated region
    $region46: #{sga_forward.1} parent=1 // pred_check
      _
    $region47: #{sga_forward.1} parent=1 // pred_check_branch
      %128 = sbr.rel (0) target = $region49
    $region48: #{sga_forward.1} parent=1 // pred_region
      _
    $region49: #{sga_forward.1} parent=1 // pred_fallthru
      _
    // Predicated region
    $region50: #{sga_forward.1} parent=1 // pred_check
      _
    $region51: #{sga_forward.1} parent=1 // pred_check_branch
      %130 = sbr.rel (0) target = $region53
    $region52: #{sga_forward.1} parent=1 // pred_region
      _
    $region53: #{sga_forward.1} parent=1 // pred_fallthru
      _
    // Predicated region
    $region54: #{sga_forward.1} parent=1 // pred_check
      _
    $region55: #{sga_forward.1} parent=1 // pred_check_branch
      %132 = sbr.rel (0) target = $region57
    $region56: #{sga_forward.1} parent=1 // pred_region
      %133 = dma.done [#allocation4], 1536
    $region57: #{sga_forward.1} parent=1 // pred_fallthru
      _
    // Predicated region
    $region58: #{sga_forward.1} parent=1 // pred_check
      _
    $region59: #{sga_forward.1} parent=1 // pred_check_branch
      %135 = sbr.rel (0) target = $region61
    $region60: #{sga_forward.1} parent=1 // pred_region
      %136 = dma.done [#allocation6], 48
    $region61: #{sga_forward.1} parent=1 // pred_fallthru
      _
    // Predicated region
    $region62: #{sga_forward.1} parent=1 // pred_check
      _
    $region63: #{sga_forward.1} parent=1 // pred_check_branch
      %138 = sbr.rel (0) target = $region65
    $region64: #{sga_forward.1} parent=1 // pred_region
      %139 = dma.done [#allocation6], 48
    $region65: #{sga_forward.1} parent=1 // pred_fallthru
      _
    // Predicated region
    $region66: #{sga_forward.1} parent=1 // pred_check
      _
    $region67: #{sga_forward.1} parent=1 // pred_check_branch
      %141 = sbr.rel (0) target = $region69
    $region68: #{sga_forward.1} parent=1 // pred_region
      %142 = dma.done [#allocation9], 1536
    $region69: #{sga_forward.1} parent=1 // pred_fallthru
      _
    // Predicated region
    $region70: #{sga_forward.1} parent=1 // pred_check
      _
    $region71: #{sga_forward.1} parent=1 // pred_check_branch
      %144 = sbr.rel (0) target = $region73
    $region72: #{sga_forward.1} parent=1 // pred_region
      %145 = dma.done [#allocation9], 1536
    $region73: #{sga_forward.1} parent=1 // pred_fallthru
      _
    // Predicated region
    $region74: #{sga_forward.1} parent=1 // pred_check
      _
    $region75: #{sga_forward.1} parent=1 // pred_check_branch
      %147 = sbr.rel (0) target = $region77
    $region76: #{sga_forward.1} parent=1 // pred_region
      %148 = dma.done [#allocation12], 48
    $region77: #{sga_forward.1} parent=1 // pred_fallthru
      _
    // Predicated region
    $region78: #{sga_forward.1} parent=1 // pred_check
      _
    $region79: #{sga_forward.1} parent=1 // pred_check_branch
      %150 = sbr.rel (0) target = $region81
    $region80: #{sga_forward.1} parent=1 // pred_region
      %151 = dma.done [#allocation12], 48
    $region81: #{sga_forward.1} parent=1 // pred_fallthru
      _
    // Predicated region
    $region82: #{sga_forward.1} parent=1 // pred_check
      _
    $region83: #{sga_forward.1} parent=1 // pred_check_branch
      %153 = sbr.rel (0) target = $region85
    $region84: #{sga_forward.1} parent=1 // pred_region
      %154 = dma.done [#allocation15], 80
    $region85: #{sga_forward.1} parent=1 // pred_fallthru
      _
    %v155 = vld [vmem:[%s0] sm:$0xff]
    %v156 = vld [vmem:[%s0 + $0x8] sm:$0xff]
    %v157 = vld [vmem:[%s0 + $0x10] sm:$0xff]
    %v158 = vld [vmem:[%s0 + $0x18] sm:$0xff]
    %v159 = vld [vmem:[%s0 + $0x20] sm:$0xff]
    %v160 = vld [vmem:[%s0 + $0x28] sm:$0xff]
    %v161 = vld [vmem:[%s0 + $0x30] sm:$0xff]
    %v162 = vld [vmem:[%s0 + $0x38] sm:$0xff]
    %v163 = vld [vmem:[%s1] sm:$0xf]
    %v164 = vld [vmem:[#allocation5] sm:$0x1]
    %v166 = vlaneseq
    %v167 = vshrl.u32 %v166, 7
    %v168 = vsub.s32 0, %v167
    %v169 = vrot.slane %v164, %v168
    %vm171 = vcmask 31744
    %v173 = vsel %vm171, %v155, 0
    %v176 = vsel %vm171, %v156, 0
    %v179 = vsel %vm171, %v157, 0
    %v182 = vsel %vm171, %v158, 0
    %v185 = vsel %vm171, %v159, 0
    %v188 = vsel %vm171, %v160, 0
    %v191 = vsel %vm171, %v161, 0
    %v194 = vsel %vm171, %v162, 0
    %vm196 = vcmask 1043456
    %v198 = vsel %vm196, %v163, 0
    %200 = vmatprep.subr.mxu0 0.0
    %201 = vmatpush1.msra.mxu0 %v198
    %202 = vmatprep.subr.mxu0 0.0
    %203 = vmatpush1.msra.mxu0 0.0
    %204 = vmatprep.subr.mxu0 0.0
    %205 = vmatpush1.msra.mxu0 0.0
    %206 = vmatprep.subr.mxu0 0.0
    %207 = vmatpush1.msra.mxu0 0.0
    %208 = vmatprep.subr.mxu0 0.0
    %209 = vmatpush1.msra.mxu0 0.0
    %210 = vmatprep.subr.mxu0 0.0
    %211 = vmatpush1.msra.mxu0 0.0
    %212 = vmatprep.subr.mxu0 0.0
    %213 = vmatpush1.msra.mxu0 0.0
    %214 = vmatprep.subr.mxu0 0.0
    %215 = vmatpush1.msra.mxu0 0.0
    %216 = vmatprep.subr.mxu0 0.0
    %217 = vmatpush1.msra.mxu0 0.0
    %218 = vmatprep.subr.mxu0 0.0
    %219 = vmatpush1.msra.mxu0 0.0
    %220 = vmatprep.subr.mxu0 0.0
    %221 = vmatpush1.msra.mxu0 0.0
    %222 = vmatprep.subr.mxu0 0.0
    %223 = vmatpush1.msra.mxu0 0.0
    %224 = vmatprep.subr.mxu0 0.0
    %225 = vmatpush1.msra.mxu0 0.0
    %226 = vmatprep.subr.mxu0 0.0
    %227 = vmatpush1.msra.mxu0 0.0
    %228 = vmatprep.subr.mxu0 0.0
    %229 = vmatpush1.msra.mxu0 0.0
    %230 = vmatprep.subr.mxu0 0.0
    %231 = vmatpush1.msra.mxu0 0.0
    %232 = vmatprep.subr.mxu0 0.0
    %233 = vmatpush1.msra.mxu0 0.0
    %234 = vmatprep.subr.mxu0 0.0
    %235 = vmatpush1.msra.mxu0 0.0
    %236 = vmatprep.subr.mxu0 0.0
    %237 = vmatpush1.msra.mxu0 0.0
    %238 = vmatprep.subr.mxu0 0.0
    %239 = vmatpush1.msra.mxu0 0.0
    %240 = vmatprep.subr.mxu0 0.0
    %241 = vmatpush1.msra.mxu0 0.0
    %242 = vmatprep.subr.mxu0 0.0
    %243 = vmatpush1.msra.mxu0 0.0
    %244 = vmatprep.subr.mxu0 0.0
    %245 = vmatpush1.msra.mxu0 0.0
    %246 = vmatprep.subr.mxu0 0.0
    %247 = vmatpush1.msra.mxu0 0.0
    %248 = vmatprep.subr.mxu0 0.0
    %249 = vmatpush1.msra.mxu0 0.0
    %250 = vmatprep.subr.mxu0 0.0
    %251 = vmatpush1.msra.mxu0 0.0
    %252 = vmatprep.subr.mxu0 0.0
    %253 = vmatpush1.msra.mxu0 0.0
    %254 = vmatprep.subr.mxu0 0.0
    %255 = vmatpush1.msra.mxu0 0.0
    %256 = vmatprep.subr.mxu0 0.0
    %257 = vmatpush1.msra.mxu0 0.0
    %258 = vmatprep.subr.mxu0 0.0
    %259 = vmatpush1.msra.mxu0 0.0
    %260 = vmatprep.subr.mxu0 0.0
    %261 = vmatpush1.msra.mxu0 0.0
    %262 = vmatprep.subr.mxu0 0.0
    %263 = vmatpush1.msra.mxu0 0.0
    %264 = vmatprep.mubr.f32.mxu0 0.0
    %265 = vmatmul.mubr.f32.gmra.mrb[0].mxu0 %v173
    %v266 = vpop.f32.mrb[0].mxu0
    %v267 = vadd.f32 %v169, %v266
    %v268 = vpop.f32.mrb[0].mxu0
    %269 = vmatprep.mubr.f32.mxu0 0.0
    %270 = vmatmul.mubr.f32.gmra.mrb[0].mxu0 %v176
    %v271 = vpop.f32.mrb[0].mxu0
    %v272 = vadd.f32 %v169, %v271
    %v273 = vpop.f32.mrb[0].mxu0
    %274 = vmatprep.mubr.f32.mxu0 0.0
    %275 = vmatmul.mubr.f32.gmra.mrb[0].mxu0 %v179
    %v276 = vpop.f32.mrb[0].mxu0
    %v277 = vadd.f32 %v169, %v276
    %v278 = vpop.f32.mrb[0].mxu0
    %279 = vmatprep.mubr.f32.mxu0 0.0
    %280 = vmatmul.mubr.f32.gmra.mrb[0].mxu0 %v182
    %v281 = vpop.f32.mrb[0].mxu0
    %v282 = vadd.f32 %v169, %v281
    %v283 = vpop.f32.mrb[0].mxu0
    %284 = vmatprep.mubr.f32.mxu0 0.0
    %285 = vmatmul.mubr.f32.gmra.mrb[0].mxu0 %v185
    %v286 = vpop.f32.mrb[0].mxu0
    %v287 = vadd.f32 %v169, %v286
    %v288 = vpop.f32.mrb[0].mxu0
    %289 = vmatprep.mubr.f32.mxu0 0.0
    %290 = vmatmul.mubr.f32.gmra.mrb[0].mxu0 %v188
    %v291 = vpop.f32.mrb[0].mxu0
    %v292 = vadd.f32 %v169, %v291
    %v293 = vpop.f32.mrb[0].mxu0
    %294 = vmatprep.mubr.f32.mxu0 0.0
    %295 = vmatmul.mubr.f32.gmra.mrb[0].mxu0 %v191
    %v296 = vpop.f32.mrb[0].mxu0
    %v297 = vadd.f32 %v169, %v296
    %v298 = vpop.f32.mrb[0].mxu0
    %299 = vmatprep.mubr.f32.mxu0 0.0
    %300 = vmatmul.mubr.f32.gmra.mrb[0].mxu0 %v194
    %v301 = vpop.f32.mrb[0].mxu0
    %v302 = vadd.f32 %v169, %v301
    %v303 = vpop.f32.mrb[0].mxu0
    %304 = vdwg.mxu0
    %s305 = scalar_lea.vmem %s1, 4
    %v306 = vld [vmem:[%s305] sm:$0xf]
    %s307 = scalar_lea.vmem [#allocation5], 1
    %v308 = vld [vmem:[%s307] sm:$0x1]
    %v310 = vlaneseq
    %v311 = vshrl.u32 %v310, 7
    %v312 = vsub.s32 0, %v311
    %v313 = vrot.slane %v308, %v312
    %v316 = vsel %vm196, %v306, 0
    %318 = vmatprep.subr.mxu0 0.0
    %319 = vmatpush1.msra.mxu0 %v316
    %320 = vmatprep.subr.mxu0 0.0
    %321 = vmatpush1.msra.mxu0 0.0
    %322 = vmatprep.subr.mxu0 0.0
    %323 = vmatpush1.msra.mxu0 0.0
    %324 = vmatprep.subr.mxu0 0.0
    %325 = vmatpush1.msra.mxu0 0.0
    %326 = vmatprep.subr.mxu0 0.0
    %327 = vmatpush1.msra.mxu0 0.0
    %328 = vmatprep.subr.mxu0 0.0
    %329 = vmatpush1.msra.mxu0 0.0
    %330 = vmatprep.subr.mxu0 0.0
    %331 = vmatpush1.msra.mxu0 0.0
    %332 = vmatprep.subr.mxu0 0.0
    %333 = vmatpush1.msra.mxu0 0.0
    %334 = vmatprep.subr.mxu0 0.0
    %335 = vmatpush1.msra.mxu0 0.0
    %336 = vmatprep.subr.mxu0 0.0
    %337 = vmatpush1.msra.mxu0 0.0
    %338 = vmatprep.subr.mxu0 0.0
    %339 = vmatpush1.msra.mxu0 0.0
    %340 = vmatprep.subr.mxu0 0.0
    %341 = vmatpush1.msra.mxu0 0.0
    %342 = vmatprep.subr.mxu0 0.0
    %343 = vmatpush1.msra.mxu0 0.0
    %344 = vmatprep.subr.mxu0 0.0
    %345 = vmatpush1.msra.mxu0 0.0
    %346 = vmatprep.subr.mxu0 0.0
    %347 = vmatpush1.msra.mxu0 0.0
    %348 = vmatprep.subr.mxu0 0.0
    %349 = vmatpush1.msra.mxu0 0.0
    %350 = vmatprep.subr.mxu0 0.0
    %351 = vmatpush1.msra.mxu0 0.0
    %352 = vmatprep.subr.mxu0 0.0
    %353 = vmatpush1.msra.mxu0 0.0
    %354 = vmatprep.subr.mxu0 0.0
    %355 = vmatpush1.msra.mxu0 0.0
    %356 = vmatprep.subr.mxu0 0.0
    %357 = vmatpush1.msra.mxu0 0.0
    %358 = vmatprep.subr.mxu0 0.0
    %359 = vmatpush1.msra.mxu0 0.0
    %360 = vmatprep.subr.mxu0 0.0
    %361 = vmatpush1.msra.mxu0 0.0
    %362 = vmatprep.subr.mxu0 0.0
    %363 = vmatpush1.msra.mxu0 0.0
    %364 = vmatprep.subr.mxu0 0.0
    %365 = vmatpush1.msra.mxu0 0.0
    %366 = vmatprep.subr.mxu0 0.0
    %367 = vmatpush1.msra.mxu0 0.0
    %368 = vmatprep.subr.mxu0 0.0
    %369 = vmatpush1.msra.mxu0 0.0
    %370 = vmatprep.subr.mxu0 0.0
    %371 = vmatpush1.msra.mxu0 0.0
    %372 = vmatprep.subr.mxu0 0.0
    %373 = vmatpush1.msra.mxu0 0.0
    %374 = vmatprep.subr.mxu0 0.0
    %375 = vmatpush1.msra.mxu0 0.0
    %376 = vmatprep.subr.mxu0 0.0
    %377 = vmatpush1.msra.mxu0 0.0
    %378 = vmatprep.subr.mxu0 0.0
    %379 = vmatpush1.msra.mxu0 0.0
    %380 = vmatprep.subr.mxu0 0.0
    %381 = vmatpush1.msra.mxu0 0.0
    %382 = vmatprep.mubr.f32.mxu0 0.0
    %383 = vmatmul.mubr.f32.gmra.mrb[0].mxu0 %v173
    %v384 = vpop.f32.mrb[0].mxu0
    %v385 = vadd.f32 %v313, %v384
    %v386 = vpop.f32.mrb[0].mxu0
    %387 = vmatprep.mubr.f32.mxu0 0.0
    %388 = vmatmul.mubr.f32.gmra.mrb[0].mxu0 %v176
    %v389 = vpop.f32.mrb[0].mxu0
    %v390 = vadd.f32 %v313, %v389
    %v391 = vpop.f32.mrb[0].mxu0
    %392 = vmatprep.mubr.f32.mxu0 0.0
    %393 = vmatmul.mubr.f32.gmra.mrb[0].mxu0 %v179
    %v394 = vpop.f32.mrb[0].mxu0
    %v395 = vadd.f32 %v313, %v394
    %v396 = vpop.f32.mrb[0].mxu0
    %397 = vmatprep.mubr.f32.mxu0 0.0
    %398 = vmatmul.mubr.f32.gmra.mrb[0].mxu0 %v182
    %v399 = vpop.f32.mrb[0].mxu0
    %v400 = vadd.f32 %v313, %v399
    %v401 = vpop.f32.mrb[0].mxu0
    %402 = vmatprep.mubr.f32.mxu0 0.0
    %403 = vmatmul.mubr.f32.gmra.mrb[0].mxu0 %v185
    %v404 = vpop.f32.mrb[0].mxu0
    %v405 = vadd.f32 %v313, %v404
    %v406 = vpop.f32.mrb[0].mxu0
    %407 = vmatprep.mubr.f32.mxu0 0.0
    %408 = vmatmul.mubr.f32.gmra.mrb[0].mxu0 %v188
    %v409 = vpop.f32.mrb[0].mxu0
    %v410 = vadd.f32 %v313, %v409
    %v411 = vpop.f32.mrb[0].mxu0
    %412 = vmatprep.mubr.f32.mxu0 0.0
    %413 = vmatmul.mubr.f32.gmra.mrb[0].mxu0 %v191
    %v414 = vpop.f32.mrb[0].mxu0
    %v415 = vadd.f32 %v313, %v414
    %v416 = vpop.f32.mrb[0].mxu0
    %417 = vmatprep.mubr.f32.mxu0 0.0
    %418 = vmatmul.mubr.f32.gmra.mrb[0].mxu0 %v194
    %v419 = vpop.f32.mrb[0].mxu0
    %v420 = vadd.f32 %v313, %v419
    %v421 = vpop.f32.mrb[0].mxu0
    %422 = vdwg.mxu0
    %s423 = scalar_lea.vmem %s1, 8
    %v424 = vld [vmem:[%s423] sm:$0xf]
    %s425 = scalar_lea.vmem [#allocation5], 2
    %v426 = vld [vmem:[%s425] sm:$0x1]
    %v428 = vlaneseq
    %v429 = vshrl.u32 %v428, 7
    %v430 = vsub.s32 0, %v429
    %v431 = vrot.slane %v426, %v430
    %v434 = vsel %vm196, %v424, 0
    %436 = vmatprep.subr.mxu0 0.0
    %437 = vmatpush1.msra.mxu0 %v434
    %438 = vmatprep.subr.mxu0 0.0
    %439 = vmatpush1.msra.mxu0 0.0
    %440 = vmatprep.subr.mxu0 0.0
    %441 = vmatpush1.msra.mxu0 0.0
    %442 = vmatprep.subr.mxu0 0.0
    %443 = vmatpush1.msra.mxu0 0.0
    %444 = vmatprep.subr.mxu0 0.0
    %445 = vmatpush1.msra.mxu0 0.0
    %446 = vmatprep.subr.mxu0 0.0
    %447 = vmatpush1.msra.mxu0 0.0
    %448 = vmatprep.subr.mxu0 0.0
    %449 = vmatpush1.msra.mxu0 0.0
    %450 = vmatprep.subr.mxu0 0.0
    %451 = vmatpush1.msra.mxu0 0.0
    %452 = vmatprep.subr.mxu0 0.0
    %453 = vmatpush1.msra.mxu0 0.0
    %454 = vmatprep.subr.mxu0 0.0
    %455 = vmatpush1.msra.mxu0 0.0
    %456 = vmatprep.subr.mxu0 0.0
    %457 = vmatpush1.msra.mxu0 0.0
    %458 = vmatprep.subr.mxu0 0.0
    %459 = vmatpush1.msra.mxu0 0.0
    %460 = vmatprep.subr.mxu0 0.0
    %461 = vmatpush1.msra.mxu0 0.0
    %462 = vmatprep.subr.mxu0 0.0
    %463 = vmatpush1.msra.mxu0 0.0
    %464 = vmatprep.subr.mxu0 0.0
    %465 = vmatpush1.msra.mxu0 0.0
    %466 = vmatprep.subr.mxu0 0.0
    %467 = vmatpush1.msra.mxu0 0.0
    %468 = vmatprep.subr.mxu0 0.0
    %469 = vmatpush1.msra.mxu0 0.0
    %470 = vmatprep.subr.mxu0 0.0
    %471 = vmatpush1.msra.mxu0 0.0
    %472 = vmatprep.subr.mxu0 0.0
    %473 = vmatpush1.msra.mxu0 0.0
    %474 = vmatprep.subr.mxu0 0.0
    %475 = vmatpush1.msra.mxu0 0.0
    %476 = vmatprep.subr.mxu0 0.0
    %477 = vmatpush1.msra.mxu0 0.0
    %478 = vmatprep.subr.mxu0 0.0
    %479 = vmatpush1.msra.mxu0 0.0
    %480 = vmatprep.subr.mxu0 0.0
    %481 = vmatpush1.msra.mxu0 0.0
    %482 = vmatprep.subr.mxu0 0.0
    %483 = vmatpush1.msra.mxu0 0.0
    %484 = vmatprep.subr.mxu0 0.0
    %485 = vmatpush1.msra.mxu0 0.0
    %486 = vmatprep.subr.mxu0 0.0
    %487 = vmatpush1.msra.mxu0 0.0
    %488 = vmatprep.subr.mxu0 0.0
    %489 = vmatpush1.msra.mxu0 0.0
    %490 = vmatprep.subr.mxu0 0.0
    %491 = vmatpush1.msra.mxu0 0.0
    %492 = vmatprep.subr.mxu0 0.0
    %493 = vmatpush1.msra.mxu0 0.0
    %494 = vmatprep.subr.mxu0 0.0
    %495 = vmatpush1.msra.mxu0 0.0
    %496 = vmatprep.subr.mxu0 0.0
    %497 = vmatpush1.msra.mxu0 0.0
    %498 = vmatprep.subr.mxu0 0.0
    %499 = vmatpush1.msra.mxu0 0.0
    %500 = vmatprep.mubr.f32.mxu0 0.0
    %501 = vmatmul.mubr.f32.gmra.mrb[0].mxu0 %v173
    %v502 = vpop.f32.mrb[0].mxu0
    %v503 = vadd.f32 %v431, %v502
    %v504 = vpop.f32.mrb[0].mxu0
    %505 = vmatprep.mubr.f32.mxu0 0.0
    %506 = vmatmul.mubr.f32.gmra.mrb[0].mxu0 %v176
    %v507 = vpop.f32.mrb[0].mxu0
    %v508 = vadd.f32 %v431, %v507
    %v509 = vpop.f32.mrb[0].mxu0
    %510 = vmatprep.mubr.f32.mxu0 0.0
    %511 = vmatmul.mubr.f32.gmra.mrb[0].mxu0 %v179
    %v512 = vpop.f32.mrb[0].mxu0
    %v513 = vadd.f32 %v431, %v512
    %v514 = vpop.f32.mrb[0].mxu0
    %515 = vmatprep.mubr.f32.mxu0 0.0
    %516 = vmatmul.mubr.f32.gmra.mrb[0].mxu0 %v182
    %v517 = vpop.f32.mrb[0].mxu0
    %v518 = vadd.f32 %v431, %v517
    %v519 = vpop.f32.mrb[0].mxu0
    %520 = vmatprep.mubr.f32.mxu0 0.0
    %521 = vmatmul.mubr.f32.gmra.mrb[0].mxu0 %v185
    %v522 = vpop.f32.mrb[0].mxu0
    %v523 = vadd.f32 %v431, %v522
    %v524 = vpop.f32.mrb[0].mxu0
    %525 = vmatprep.mubr.f32.mxu0 0.0
    %526 = vmatmul.mubr.f32.gmra.mrb[0].mxu0 %v188
    %v527 = vpop.f32.mrb[0].mxu0
    %v528 = vadd.f32 %v431, %v527
    %v529 = vpop.f32.mrb[0].mxu0
    %530 = vmatprep.mubr.f32.mxu0 0.0
    %531 = vmatmul.mubr.f32.gmra.mrb[0].mxu0 %v191
    %v532 = vpop.f32.mrb[0].mxu0
    %v533 = vadd.f32 %v431, %v532
    %v534 = vpop.f32.mrb[0].mxu0
    %535 = vmatprep.mubr.f32.mxu0 0.0
    %536 = vmatmul.mubr.f32.gmra.mrb[0].mxu0 %v194
    %v537 = vpop.f32.mrb[0].mxu0
    %v538 = vadd.f32 %v431, %v537
    %v539 = vpop.f32.mrb[0].mxu0
    %540 = vdwg.mxu0
    %v541 = vld [vmem:[#allocation3] sm:$0xff]
    %v542 = vld [vmem:[#allocation3 + $0x8] sm:$0xff]
    %v543 = vld [vmem:[#allocation3 + $0x10] sm:$0xff]
    %v544 = vld [vmem:[#allocation3 + $0x18] sm:$0xff]
    %s545 = scalar_lea.vmem [#allocation3], 32
    %v546 = vld [vmem:[%s545] sm:$0xff]
    %v547 = vld [vmem:[%s545 + $0x8] sm:$0xff]
    %v548 = vld [vmem:[%s545 + $0x10] sm:$0xff]
    %v549 = vld [vmem:[%s545 + $0x18] sm:$0xff]
    %s550 = scalar_lea.vmem [#allocation3], 64
    %v551 = vld [vmem:[%s550] sm:$0xff]
    %v552 = vld [vmem:[%s550 + $0x8] sm:$0xff]
    %v553 = vld [vmem:[%s550 + $0x10] sm:$0xff]
    %v554 = vld [vmem:[%s550 + $0x18] sm:$0xff]
    %v555 = vld [vmem:[#allocation7] sm:$0x1]
    %s556 = scalar_lea.vmem [#allocation7], 1
    %v557 = vld [vmem:[%s556] sm:$0x1]
    %s558 = scalar_lea.vmem [#allocation7], 2
    %v559 = vld [vmem:[%s558] sm:$0x1]
    %v560 = vld [vmem:[#allocation8] sm:$0xff]
    %v561 = vld [vmem:[#allocation8 + $0x8] sm:$0xff]
    %v562 = vld [vmem:[#allocation8 + $0x10] sm:$0xff]
    %v563 = vld [vmem:[#allocation8 + $0x18] sm:$0xff]
    %s564 = scalar_lea.vmem [#allocation8], 32
    %v565 = vld [vmem:[%s564] sm:$0xff]
    %v566 = vld [vmem:[%s564 + $0x8] sm:$0xff]
    %v567 = vld [vmem:[%s564 + $0x10] sm:$0xff]
    %v568 = vld [vmem:[%s564 + $0x18] sm:$0xff]
    %s569 = scalar_lea.vmem [#allocation8], 64
    %v570 = vld [vmem:[%s569] sm:$0xff]
    %v571 = vld [vmem:[%s569 + $0x8] sm:$0xff]
    %v572 = vld [vmem:[%s569 + $0x10] sm:$0xff]
    %v573 = vld [vmem:[%s569 + $0x18] sm:$0xff]
    %v574 = vld [vmem:[#allocation11] sm:$0x1]
    %s575 = scalar_lea.vmem [#allocation11], 1
    %v576 = vld [vmem:[%s575] sm:$0x1]
    %s577 = scalar_lea.vmem [#allocation11], 2
    %v578 = vld [vmem:[%s577] sm:$0x1]
    %v579 = vld [vmem:[#allocation10] sm:$0xff]
    %v580 = vld [vmem:[#allocation10 + $0x8] sm:$0xff]
    %v581 = vld [vmem:[#allocation10 + $0x10] sm:$0xff]
    %v582 = vld [vmem:[#allocation10 + $0x18] sm:$0xff]
    %s583 = scalar_lea.vmem [#allocation10], 32
    %v584 = vld [vmem:[%s583] sm:$0xff]
    %v585 = vld [vmem:[%s583 + $0x8] sm:$0xff]
    %v586 = vld [vmem:[%s583 + $0x10] sm:$0xff]
    %v587 = vld [vmem:[%s583 + $0x18] sm:$0xff]
    %s588 = scalar_lea.vmem [#allocation10], 64
    %v589 = vld [vmem:[%s588] sm:$0xff]
    %v590 = vld [vmem:[%s588 + $0x8] sm:$0xff]
    %v591 = vld [vmem:[%s588 + $0x10] sm:$0xff]
    %v592 = vld [vmem:[%s588 + $0x18] sm:$0xff]
    %v593 = vld [vmem:[#allocation13] sm:$0x1]
    %s594 = scalar_lea.vmem [#allocation13], 1
    %v595 = vld [vmem:[%s594] sm:$0x1]
    %s596 = scalar_lea.vmem [#allocation13], 2
    %v597 = vld [vmem:[%s596] sm:$0x1]
    %vm598 = vcmask 261120
    %v600 = vsel %vm598, 0.0, 0
    %602 = vmatprep.subr.mxu0 0.0
    %603 = vmatpush1.msra.mxu0 %v541
    %604 = vmatprep.subr.mxu0 0.0
    %605 = vmatpush1.msra.mxu0 %v542
    %606 = vmatprep.subr.mxu0 0.0
    %607 = vmatpush1.msra.mxu0 %v543
    %608 = vmatprep.subr.mxu0 0.0
    %609 = vmatpush1.msra.mxu0 %v544
    %610 = vmatprep.subr.mxu0 0.0
    %611 = vmatpush1.msra.mxu0 0.0
    %612 = vmatprep.subr.mxu0 0.0
    %613 = vmatpush1.msra.mxu0 0.0
    %614 = vmatprep.subr.mxu0 0.0
    %615 = vmatpush1.msra.mxu0 0.0
    %616 = vmatprep.subr.mxu0 0.0
    %617 = vmatpush1.msra.mxu0 0.0
    %618 = vmatprep.subr.mxu0 0.0
    %619 = vmatpush1.msra.mxu0 0.0
    %620 = vmatprep.subr.mxu0 0.0
    %621 = vmatpush1.msra.mxu0 0.0
    %622 = vmatprep.subr.mxu0 0.0
    %623 = vmatpush1.msra.mxu0 0.0
    %624 = vmatprep.subr.mxu0 0.0
    %625 = vmatpush1.msra.mxu0 0.0
    %626 = vmatprep.subr.mxu0 0.0
    %627 = vmatpush1.msra.mxu0 0.0
    %628 = vmatprep.subr.mxu0 0.0
    %629 = vmatpush1.msra.mxu0 0.0
    %630 = vmatprep.subr.mxu0 0.0
    %631 = vmatpush1.msra.mxu0 0.0
    %632 = vmatprep.subr.mxu0 0.0
    %633 = vmatpush1.msra.mxu0 0.0
    %634 = vmatprep.subr.mxu0 0.0
    %635 = vmatpush1.msra.mxu0 0.0
    %636 = vmatprep.subr.mxu0 0.0
    %637 = vmatpush1.msra.mxu0 0.0
    %638 = vmatprep.subr.mxu0 0.0
    %639 = vmatpush1.msra.mxu0 0.0
    %640 = vmatprep.subr.mxu0 0.0
    %641 = vmatpush1.msra.mxu0 0.0
    %642 = vmatprep.subr.mxu0 0.0
    %643 = vmatpush1.msra.mxu0 0.0
    %644 = vmatprep.subr.mxu0 0.0
    %645 = vmatpush1.msra.mxu0 0.0
    %646 = vmatprep.subr.mxu0 0.0
    %647 = vmatpush1.msra.mxu0 0.0
    %648 = vmatprep.subr.mxu0 0.0
    %649 = vmatpush1.msra.mxu0 0.0
    %650 = vmatprep.subr.mxu0 0.0
    %651 = vmatpush1.msra.mxu0 0.0
    %652 = vmatprep.subr.mxu0 0.0
    %653 = vmatpush1.msra.mxu0 0.0
    %654 = vmatprep.subr.mxu0 0.0
    %655 = vmatpush1.msra.mxu0 0.0
    %656 = vmatprep.subr.mxu0 0.0
    %657 = vmatpush1.msra.mxu0 0.0
    %658 = vmatprep.subr.mxu0 0.0
    %659 = vmatpush1.msra.mxu0 0.0
    %660 = vmatprep.subr.mxu0 0.0
    %661 = vmatpush1.msra.mxu0 0.0
    %662 = vmatprep.subr.mxu0 0.0
    %663 = vmatpush1.msra.mxu0 0.0
    %664 = vmatprep.subr.mxu0 0.0
    %665 = vmatpush1.msra.mxu0 0.0
    %666 = vmatprep.mubr.f32.mxu0 0.0
    %667 = vmatmul.mubr.f32.gmra.mrb[0].mxu0 %v600
    %v668 = vpop.f32.mrb[0].mxu0
    %v669 = vadd.f32 0.0, %v668
    %v670 = vpop.f32.mrb[0].mxu0
    %671 = vdwg.mxu0
    %v672 = vadd.f32 %v267, %v669
    %v674 = vlaneseq
    %v675 = vshrl.u32 %v674, 7
    %v676 = vsub.s32 0, %v675
    %v677 = vrot.slane %v555, %v676
    %v679 = vadd.f32 %v672, %v677
    %v680 = vxor.u32 %v679, 2147483648
    %v681 = vmul.f32 %v680, 1.442695
    %v682 = vpow.pop %v681
    %v683 = vadd.f32 %v682, 1.0
    %v684 = vrcp.pop %v683
    %v685 = vmul.f32 1.0, %v684
    %686 = vmatprep.subr.mxu0 0.0
    %687 = vmatpush1.msra.mxu0 %v546
    %688 = vmatprep.subr.mxu0 0.0
    %689 = vmatpush1.msra.mxu0 %v547
    %690 = vmatprep.subr.mxu0 0.0
    %691 = vmatpush1.msra.mxu0 %v548
    %692 = vmatprep.subr.mxu0 0.0
    %693 = vmatpush1.msra.mxu0 %v549
    %694 = vmatprep.subr.mxu0 0.0
    %695 = vmatpush1.msra.mxu0 0.0
    %696 = vmatprep.subr.mxu0 0.0
    %697 = vmatpush1.msra.mxu0 0.0
    %698 = vmatprep.subr.mxu0 0.0
    %699 = vmatpush1.msra.mxu0 0.0
    %700 = vmatprep.subr.mxu0 0.0
    %701 = vmatpush1.msra.mxu0 0.0
    %702 = vmatprep.subr.mxu0 0.0
    %703 = vmatpush1.msra.mxu0 0.0
    %704 = vmatprep.subr.mxu0 0.0
    %705 = vmatpush1.msra.mxu0 0.0
    %706 = vmatprep.subr.mxu0 0.0
    %707 = vmatpush1.msra.mxu0 0.0
    %708 = vmatprep.subr.mxu0 0.0
    %709 = vmatpush1.msra.mxu0 0.0
    %710 = vmatprep.subr.mxu0 0.0
    %711 = vmatpush1.msra.mxu0 0.0
    %712 = vmatprep.subr.mxu0 0.0
    %713 = vmatpush1.msra.mxu0 0.0
    %714 = vmatprep.subr.mxu0 0.0
    %715 = vmatpush1.msra.mxu0 0.0
    %716 = vmatprep.subr.mxu0 0.0
    %717 = vmatpush1.msra.mxu0 0.0
    %718 = vmatprep.subr.mxu0 0.0
    %719 = vmatpush1.msra.mxu0 0.0
    %720 = vmatprep.subr.mxu0 0.0
    %721 = vmatpush1.msra.mxu0 0.0
    %722 = vmatprep.subr.mxu0 0.0
    %723 = vmatpush1.msra.mxu0 0.0
    %724 = vmatprep.subr.mxu0 0.0
    %725 = vmatpush1.msra.mxu0 0.0
    %726 = vmatprep.subr.mxu0 0.0
    %727 = vmatpush1.msra.mxu0 0.0
    %728 = vmatprep.subr.mxu0 0.0
    %729 = vmatpush1.msra.mxu0 0.0
    %730 = vmatprep.subr.mxu0 0.0
    %731 = vmatpush1.msra.mxu0 0.0
    %732 = vmatprep.subr.mxu0 0.0
    %733 = vmatpush1.msra.mxu0 0.0
    %734 = vmatprep.subr.mxu0 0.0
    %735 = vmatpush1.msra.mxu0 0.0
    %736 = vmatprep.subr.mxu0 0.0
    %737 = vmatpush1.msra.mxu0 0.0
    %738 = vmatprep.subr.mxu0 0.0
    %739 = vmatpush1.msra.mxu0 0.0
    %740 = vmatprep.subr.mxu0 0.0
    %741 = vmatpush1.msra.mxu0 0.0
    %742 = vmatprep.subr.mxu0 0.0
    %743 = vmatpush1.msra.mxu0 0.0
    %744 = vmatprep.subr.mxu0 0.0
    %745 = vmatpush1.msra.mxu0 0.0
    %746 = vmatprep.subr.mxu0 0.0
    %747 = vmatpush1.msra.mxu0 0.0
    %748 = vmatprep.subr.mxu0 0.0
    %749 = vmatpush1.msra.mxu0 0.0
    %750 = vmatprep.mubr.f32.mxu0 0.0
    %751 = vmatmul.mubr.f32.gmra.mrb[0].mxu0 %v600
    %v752 = vpop.f32.mrb[0].mxu0
    %v753 = vadd.f32 0.0, %v752
    %v754 = vpop.f32.mrb[0].mxu0
    %755 = vdwg.mxu0
    %v756 = vadd.f32 %v385, %v753
    %v758 = vlaneseq
    %v759 = vshrl.u32 %v758, 7
    %v760 = vsub.s32 0, %v759
    %v761 = vrot.slane %v557, %v760
    %v763 = vadd.f32 %v756, %v761
    %v764 = vxor.u32 %v763, 2147483648
    %v765 = vmul.f32 %v764, 1.442695
    %v766 = vpow.pop %v765
    %v767 = vadd.f32 %v766, 1.0
    %v768 = vrcp.pop %v767
    %v769 = vmul.f32 1.0, %v768
    %v771 = vlaneseq
    %v772 = vshrl.u32 %v771, 7
    %v773 = vsub.s32 0, %v772
    %v774 = vrot.slane %v559, %v773
    %776 = vmatprep.subr.mxu0 0.0
    %777 = vmatpush1.msra.mxu0 %v551
    %778 = vmatprep.subr.mxu0 0.0
    %779 = vmatpush1.msra.mxu0 %v552
    %780 = vmatprep.subr.mxu0 0.0
    %781 = vmatpush1.msra.mxu0 %v553
    %782 = vmatprep.subr.mxu0 0.0
    %783 = vmatpush1.msra.mxu0 %v554
    %784 = vmatprep.subr.mxu0 0.0
    %785 = vmatpush1.msra.mxu0 0.0
    %786 = vmatprep.subr.mxu0 0.0
    %787 = vmatpush1.msra.mxu0 0.0
    %788 = vmatprep.subr.mxu0 0.0
    %789 = vmatpush1.msra.mxu0 0.0
    %790 = vmatprep.subr.mxu0 0.0
    %791 = vmatpush1.msra.mxu0 0.0
    %792 = vmatprep.subr.mxu0 0.0
    %793 = vmatpush1.msra.mxu0 0.0
    %794 = vmatprep.subr.mxu0 0.0
    %795 = vmatpush1.msra.mxu0 0.0
    %796 = vmatprep.subr.mxu0 0.0
    %797 = vmatpush1.msra.mxu0 0.0
    %798 = vmatprep.subr.mxu0 0.0
    %799 = vmatpush1.msra.mxu0 0.0
    %800 = vmatprep.subr.mxu0 0.0
    %801 = vmatpush1.msra.mxu0 0.0
    %802 = vmatprep.subr.mxu0 0.0
    %803 = vmatpush1.msra.mxu0 0.0
    %804 = vmatprep.subr.mxu0 0.0
    %805 = vmatpush1.msra.mxu0 0.0
    %806 = vmatprep.subr.mxu0 0.0
    %807 = vmatpush1.msra.mxu0 0.0
    %808 = vmatprep.subr.mxu0 0.0
    %809 = vmatpush1.msra.mxu0 0.0
    %810 = vmatprep.subr.mxu0 0.0
    %811 = vmatpush1.msra.mxu0 0.0
    %812 = vmatprep.subr.mxu0 0.0
    %813 = vmatpush1.msra.mxu0 0.0
    %814 = vmatprep.subr.mxu0 0.0
    %815 = vmatpush1.msra.mxu0 0.0
    %816 = vmatprep.subr.mxu0 0.0
    %817 = vmatpush1.msra.mxu0 0.0
    %818 = vmatprep.subr.mxu0 0.0
    %819 = vmatpush1.msra.mxu0 0.0
    %820 = vmatprep.subr.mxu0 0.0
    %821 = vmatpush1.msra.mxu0 0.0
    %822 = vmatprep.subr.mxu0 0.0
    %823 = vmatpush1.msra.mxu0 0.0
    %824 = vmatprep.subr.mxu0 0.0
    %825 = vmatpush1.msra.mxu0 0.0
    %826 = vmatprep.subr.mxu0 0.0
    %827 = vmatpush1.msra.mxu0 0.0
    %828 = vmatprep.subr.mxu0 0.0
    %829 = vmatpush1.msra.mxu0 0.0
    %830 = vmatprep.subr.mxu0 0.0
    %831 = vmatpush1.msra.mxu0 0.0
    %832 = vmatprep.subr.mxu0 0.0
    %833 = vmatpush1.msra.mxu0 0.0
    %834 = vmatprep.subr.mxu0 0.0
    %835 = vmatpush1.msra.mxu0 0.0
    %836 = vmatprep.subr.mxu0 0.0
    %837 = vmatpush1.msra.mxu0 0.0
    %838 = vmatprep.subr.mxu0 0.0
    %839 = vmatpush1.msra.mxu0 0.0
    %840 = vmatprep.mubr.f32.mxu0 0.0
    %841 = vmatmul.mubr.f32.gmra.mrb[0].mxu0 %v600
    %v842 = vpop.f32.mrb[0].mxu0
    %v843 = vadd.f32 %v774, %v842
    %v844 = vpop.f32.mrb[0].mxu0
    %845 = vdwg.mxu0
    %v846 = vmul.f32 %v685, %v843
    %v847 = vadd.f32 %v503, %v846
    %v848 = vtanh.pop %v847
    %v849 = vsub.f32 1.0, %v769
    %v850 = vmul.f32 %v849, %v848
    %v851 = vmul.f32 %v769, 0.0
    %v852 = vadd.f32 %v850, %v851
    %v854 = vlaneseq
    %v855 = vshrl.u32 %v854, 7
    %v856 = vsub.s32 0, %v855
    %v857 = vrot.slane %v574, %v856
    %v860 = vsel %vm598, %v852, 0
    %862 = vmatprep.subr.mxu0 0.0
    %863 = vmatpush1.msra.mxu0 %v560
    %864 = vmatprep.subr.mxu0 0.0
    %865 = vmatpush1.msra.mxu0 %v561
    %866 = vmatprep.subr.mxu0 0.0
    %867 = vmatpush1.msra.mxu0 %v562
    %868 = vmatprep.subr.mxu0 0.0
    %869 = vmatpush1.msra.mxu0 %v563
    %870 = vmatprep.subr.mxu0 0.0
    %871 = vmatpush1.msra.mxu0 0.0
    %872 = vmatprep.subr.mxu0 0.0
    %873 = vmatpush1.msra.mxu0 0.0
    %874 = vmatprep.subr.mxu0 0.0
    %875 = vmatpush1.msra.mxu0 0.0
    %876 = vmatprep.subr.mxu0 0.0
    %877 = vmatpush1.msra.mxu0 0.0
    %878 = vmatprep.subr.mxu0 0.0
    %879 = vmatpush1.msra.mxu0 0.0
    %880 = vmatprep.subr.mxu0 0.0
    %881 = vmatpush1.msra.mxu0 0.0
    %882 = vmatprep.subr.mxu0 0.0
    %883 = vmatpush1.msra.mxu0 0.0
    %884 = vmatprep.subr.mxu0 0.0
    %885 = vmatpush1.msra.mxu0 0.0
    %886 = vmatprep.subr.mxu0 0.0
    %887 = vmatpush1.msra.mxu0 0.0
    %888 = vmatprep.subr.mxu0 0.0
    %889 = vmatpush1.msra.mxu0 0.0
    %890 = vmatprep.subr.mxu0 0.0
    %891 = vmatpush1.msra.mxu0 0.0
    %892 = vmatprep.subr.mxu0 0.0
    %893 = vmatpush1.msra.mxu0 0.0
    %894 = vmatprep.subr.mxu0 0.0
    %895 = vmatpush1.msra.mxu0 0.0
    %896 = vmatprep.subr.mxu0 0.0
    %897 = vmatpush1.msra.mxu0 0.0
    %898 = vmatprep.subr.mxu0 0.0
    %899 = vmatpush1.msra.mxu0 0.0
    %900 = vmatprep.subr.mxu0 0.0
    %901 = vmatpush1.msra.mxu0 0.0
    %902 = vmatprep.subr.mxu0 0.0
    %903 = vmatpush1.msra.mxu0 0.0
    %904 = vmatprep.subr.mxu0 0.0
    %905 = vmatpush1.msra.mxu0 0.0
    %906 = vmatprep.subr.mxu0 0.0
    %907 = vmatpush1.msra.mxu0 0.0
    %908 = vmatprep.subr.mxu0 0.0
    %909 = vmatpush1.msra.mxu0 0.0
    %910 = vmatprep.subr.mxu0 0.0
    %911 = vmatpush1.msra.mxu0 0.0
    %912 = vmatprep.subr.mxu0 0.0
    %913 = vmatpush1.msra.mxu0 0.0
    %914 = vmatprep.subr.mxu0 0.0
    %915 = vmatpush1.msra.mxu0 0.0
    %916 = vmatprep.subr.mxu0 0.0
    %917 = vmatpush1.msra.mxu0 0.0
    %918 = vmatprep.subr.mxu0 0.0
    %919 = vmatpush1.msra.mxu0 0.0
    %920 = vmatprep.subr.mxu0 0.0
    %921 = vmatpush1.msra.mxu0 0.0
    %922 = vmatprep.subr.mxu0 0.0
    %923 = vmatpush1.msra.mxu0 0.0
    %924 = vmatprep.subr.mxu0 0.0
    %925 = vmatpush1.msra.mxu0 0.0
    %926 = vmatprep.mubr.f32.mxu0 0.0
    %927 = vmatmul.mubr.f32.gmra.mrb[0].mxu0 %v860
    %v928 = vpop.f32.mrb[0].mxu0
    %v929 = vadd.f32 %v857, %v928
    %v930 = vpop.f32.mrb[0].mxu0
    %931 = vdwg.mxu0
    %932 = vmatprep.subr.mxu0 0.0
    %933 = vmatpush1.msra.mxu0 %v579
    %934 = vmatprep.subr.mxu0 0.0
    %935 = vmatpush1.msra.mxu0 %v580
    %936 = vmatprep.subr.mxu0 0.0
    %937 = vmatpush1.msra.mxu0 %v581
    %938 = vmatprep.subr.mxu0 0.0
    %939 = vmatpush1.msra.mxu0 %v582
    %940 = vmatprep.subr.mxu0 0.0
    %941 = vmatpush1.msra.mxu0 0.0
    %942 = vmatprep.subr.mxu0 0.0
    %943 = vmatpush1.msra.mxu0 0.0
    %944 = vmatprep.subr.mxu0 0.0
    %945 = vmatpush1.msra.mxu0 0.0
    %946 = vmatprep.subr.mxu0 0.0
    %947 = vmatpush1.msra.mxu0 0.0
    %948 = vmatprep.subr.mxu0 0.0
    %949 = vmatpush1.msra.mxu0 0.0
    %950 = vmatprep.subr.mxu0 0.0
    %951 = vmatpush1.msra.mxu0 0.0
    %952 = vmatprep.subr.mxu0 0.0
    %953 = vmatpush1.msra.mxu0 0.0
    %954 = vmatprep.subr.mxu0 0.0
    %955 = vmatpush1.msra.mxu0 0.0
    %956 = vmatprep.subr.mxu0 0.0
    %957 = vmatpush1.msra.mxu0 0.0
    %958 = vmatprep.subr.mxu0 0.0
    %959 = vmatpush1.msra.mxu0 0.0
    %960 = vmatprep.subr.mxu0 0.0
    %961 = vmatpush1.msra.mxu0 0.0
    %962 = vmatprep.subr.mxu0 0.0
    %963 = vmatpush1.msra.mxu0 0.0
    %964 = vmatprep.subr.mxu0 0.0
    %965 = vmatpush1.msra.mxu0 0.0
    %966 = vmatprep.subr.mxu0 0.0
    %967 = vmatpush1.msra.mxu0 0.0
    %968 = vmatprep.subr.mxu0 0.0
    %969 = vmatpush1.msra.mxu0 0.0
    %970 = vmatprep.subr.mxu0 0.0
    %971 = vmatpush1.msra.mxu0 0.0
    %972 = vmatprep.subr.mxu0 0.0
    %973 = vmatpush1.msra.mxu0 0.0
    %974 = vmatprep.subr.mxu0 0.0
    %975 = vmatpush1.msra.mxu0 0.0
    %976 = vmatprep.subr.mxu0 0.0
    %977 = vmatpush1.msra.mxu0 0.0
    %978 = vmatprep.subr.mxu0 0.0
    %979 = vmatpush1.msra.mxu0 0.0
    %980 = vmatprep.subr.mxu0 0.0
    %981 = vmatpush1.msra.mxu0 0.0
    %982 = vmatprep.subr.mxu0 0.0
    %983 = vmatpush1.msra.mxu0 0.0
    %984 = vmatprep.subr.mxu0 0.0
    %985 = vmatpush1.msra.mxu0 0.0
    %986 = vmatprep.subr.mxu0 0.0
    %987 = vmatpush1.msra.mxu0 0.0
    %988 = vmatprep.subr.mxu0 0.0
    %989 = vmatpush1.msra.mxu0 0.0
    %990 = vmatprep.subr.mxu0 0.0
    %991 = vmatpush1.msra.mxu0 0.0
    %992 = vmatprep.subr.mxu0 0.0
    %993 = vmatpush1.msra.mxu0 0.0
    %994 = vmatprep.subr.mxu0 0.0
    %995 = vmatpush1.msra.mxu0 0.0
    %996 = vmatprep.mubr.f32.mxu0 0.0
    %997 = vmatmul.mubr.f32.gmra.mrb[0].mxu0 %v600
    %v998 = vpop.f32.mrb[0].mxu0
    %v999 = vadd.f32 0.0, %v998
    %v1000 = vpop.f32.mrb[0].mxu0
    %1001 = vdwg.mxu0
    %v1002 = vadd.f32 %v929, %v999
    %v1004 = vlaneseq
    %v1005 = vshrl.u32 %v1004, 7
    %v1006 = vsub.s32 0, %v1005
    %v1007 = vrot.slane %v593, %v1006
    %v1009 = vadd.f32 %v1002, %v1007
    %v1010 = vxor.u32 %v1009, 2147483648
    %v1011 = vmul.f32 %v1010, 1.442695
    %v1012 = vpow.pop %v1011
    %v1013 = vadd.f32 %v1012, 1.0
    %v1014 = vrcp.pop %v1013
    %v1015 = vmul.f32 1.0, %v1014
    %v1017 = vlaneseq
    %v1018 = vshrl.u32 %v1017, 7
    %v1019 = vsub.s32 0, %v1018
    %v1020 = vrot.slane %v576, %v1019
    %1022 = vmatprep.subr.mxu0 0.0
    %1023 = vmatpush1.msra.mxu0 %v565
    %1024 = vmatprep.subr.mxu0 0.0
    %1025 = vmatpush1.msra.mxu0 %v566
    %1026 = vmatprep.subr.mxu0 0.0
    %1027 = vmatpush1.msra.mxu0 %v567
    %1028 = vmatprep.subr.mxu0 0.0
    %1029 = vmatpush1.msra.mxu0 %v568
    %1030 = vmatprep.subr.mxu0 0.0
    %1031 = vmatpush1.msra.mxu0 0.0
    %1032 = vmatprep.subr.mxu0 0.0
    %1033 = vmatpush1.msra.mxu0 0.0
    %1034 = vmatprep.subr.mxu0 0.0
    %1035 = vmatpush1.msra.mxu0 0.0
    %1036 = vmatprep.subr.mxu0 0.0
    %1037 = vmatpush1.msra.mxu0 0.0
    %1038 = vmatprep.subr.mxu0 0.0
    %1039 = vmatpush1.msra.mxu0 0.0
    %1040 = vmatprep.subr.mxu0 0.0
    %1041 = vmatpush1.msra.mxu0 0.0
    %1042 = vmatprep.subr.mxu0 0.0
    %1043 = vmatpush1.msra.mxu0 0.0
    %1044 = vmatprep.subr.mxu0 0.0
    %1045 = vmatpush1.msra.mxu0 0.0
    %1046 = vmatprep.subr.mxu0 0.0
    %1047 = vmatpush1.msra.mxu0 0.0
    %1048 = vmatprep.subr.mxu0 0.0
    %1049 = vmatpush1.msra.mxu0 0.0
    %1050 = vmatprep.subr.mxu0 0.0
    %1051 = vmatpush1.msra.mxu0 0.0
    %1052 = vmatprep.subr.mxu0 0.0
    %1053 = vmatpush1.msra.mxu0 0.0
    %1054 = vmatprep.subr.mxu0 0.0
    %1055 = vmatpush1.msra.mxu0 0.0
    %1056 = vmatprep.subr.mxu0 0.0
    %1057 = vmatpush1.msra.mxu0 0.0
    %1058 = vmatprep.subr.mxu0 0.0
    %1059 = vmatpush1.msra.mxu0 0.0
    %1060 = vmatprep.subr.mxu0 0.0
    %1061 = vmatpush1.msra.mxu0 0.0
    %1062 = vmatprep.subr.mxu0 0.0
    %1063 = vmatpush1.msra.mxu0 0.0
    %1064 = vmatprep.subr.mxu0 0.0
    %1065 = vmatpush1.msra.mxu0 0.0
    %1066 = vmatprep.subr.mxu0 0.0
    %1067 = vmatpush1.msra.mxu0 0.0
    %1068 = vmatprep.subr.mxu0 0.0
    %1069 = vmatpush1.msra.mxu0 0.0
    %1070 = vmatprep.subr.mxu0 0.0
    %1071 = vmatpush1.msra.mxu0 0.0
    %1072 = vmatprep.subr.mxu0 0.0
    %1073 = vmatpush1.msra.mxu0 0.0
    %1074 = vmatprep.subr.mxu0 0.0
    %1075 = vmatpush1.msra.mxu0 0.0
    %1076 = vmatprep.subr.mxu0 0.0
    %1077 = vmatpush1.msra.mxu0 0.0
    %1078 = vmatprep.subr.mxu0 0.0
    %1079 = vmatpush1.msra.mxu0 0.0
    %1080 = vmatprep.subr.mxu0 0.0
    %1081 = vmatpush1.msra.mxu0 0.0
    %1082 = vmatprep.subr.mxu0 0.0
    %1083 = vmatpush1.msra.mxu0 0.0
    %1084 = vmatprep.subr.mxu0 0.0
    %1085 = vmatpush1.msra.mxu0 0.0
    %1086 = vmatprep.mubr.f32.mxu0 0.0
    %1087 = vmatmul.mubr.f32.gmra.mrb[0].mxu0 %v860
    %v1088 = vpop.f32.mrb[0].mxu0
    %v1089 = vadd.f32 %v1020, %v1088
    %v1090 = vpop.f32.mrb[0].mxu0
    %1091 = vdwg.mxu0
    %1092 = vmatprep.subr.mxu0 0.0
    %1093 = vmatpush1.msra.mxu0 %v584
    %1094 = vmatprep.subr.mxu0 0.0
    %1095 = vmatpush1.msra.mxu0 %v585
    %1096 = vmatprep.subr.mxu0 0.0
    %1097 = vmatpush1.msra.mxu0 %v586
    %1098 = vmatprep.subr.mxu0 0.0
    %1099 = vmatpush1.msra.mxu0 %v587
    %1100 = vmatprep.subr.mxu0 0.0
    %1101 = vmatpush1.msra.mxu0 0.0
    %1102 = vmatprep.subr.mxu0 0.0
    %1103 = vmatpush1.msra.mxu0 0.0
    %1104 = vmatprep.subr.mxu0 0.0
    %1105 = vmatpush1.msra.mxu0 0.0
    %1106 = vmatprep.subr.mxu0 0.0
    %1107 = vmatpush1.msra.mxu0 0.0
    %1108 = vmatprep.subr.mxu0 0.0
    %1109 = vmatpush1.msra.mxu0 0.0
    %1110 = vmatprep.subr.mxu0 0.0
    %1111 = vmatpush1.msra.mxu0 0.0
    %1112 = vmatprep.subr.mxu0 0.0
    %1113 = vmatpush1.msra.mxu0 0.0
    %1114 = vmatprep.subr.mxu0 0.0
    %1115 = vmatpush1.msra.mxu0 0.0
    %1116 = vmatprep.subr.mxu0 0.0
    %1117 = vmatpush1.msra.mxu0 0.0
    %1118 = vmatprep.subr.mxu0 0.0
    %1119 = vmatpush1.msra.mxu0 0.0
    %1120 = vmatprep.subr.mxu0 0.0
    %1121 = vmatpush1.msra.mxu0 0.0
    %1122 = vmatprep.subr.mxu0 0.0
    %1123 = vmatpush1.msra.mxu0 0.0
    %1124 = vmatprep.subr.mxu0 0.0
    %1125 = vmatpush1.msra.mxu0 0.0
    %1126 = vmatprep.subr.mxu0 0.0
    %1127 = vmatpush1.msra.mxu0 0.0
    %1128 = vmatprep.subr.mxu0 0.0
    %1129 = vmatpush1.msra.mxu0 0.0
    %1130 = vmatprep.subr.mxu0 0.0
    %1131 = vmatpush1.msra.mxu0 0.0
    %1132 = vmatprep.subr.mxu0 0.0
    %1133 = vmatpush1.msra.mxu0 0.0
    %1134 = vmatprep.subr.mxu0 0.0
    %1135 = vmatpush1.msra.mxu0 0.0
    %1136 = vmatprep.subr.mxu0 0.0
    %1137 = vmatpush1.msra.mxu0 0.0
    %1138 = vmatprep.subr.mxu0 0.0
    %1139 = vmatpush1.msra.mxu0 0.0
    %1140 = vmatprep.subr.mxu0 0.0
    %1141 = vmatpush1.msra.mxu0 0.0
    %1142 = vmatprep.subr.mxu0 0.0
    %1143 = vmatpush1.msra.mxu0 0.0
    %1144 = vmatprep.subr.mxu0 0.0
    %1145 = vmatpush1.msra.mxu0 0.0
    %1146 = vmatprep.subr.mxu0 0.0
    %1147 = vmatpush1.msra.mxu0 0.0
    %1148 = vmatprep.subr.mxu0 0.0
    %1149 = vmatpush1.msra.mxu0 0.0
    %1150 = vmatprep.subr.mxu0 0.0
    %1151 = vmatpush1.msra.mxu0 0.0
    %1152 = vmatprep.subr.mxu0 0.0
    %1153 = vmatpush1.msra.mxu0 0.0
    %1154 = vmatprep.subr.mxu0 0.0
    %1155 = vmatpush1.msra.mxu0 0.0
    %1156 = vmatprep.mubr.f32.mxu0 0.0
    %1157 = vmatmul.mubr.f32.gmra.mrb[0].mxu0 %v600
    %v1158 = vpop.f32.mrb[0].mxu0
    %v1159 = vadd.f32 0.0, %v1158
    %v1160 = vpop.f32.mrb[0].mxu0
    %1161 = vdwg.mxu0
    %v1162 = vadd.f32 %v1089, %v1159
    %v1164 = vlaneseq
    %v1165 = vshrl.u32 %v1164, 7
    %v1166 = vsub.s32 0, %v1165
    %v1167 = vrot.slane %v595, %v1166
    %v1169 = vadd.f32 %v1162, %v1167
    %v1170 = vxor.u32 %v1169, 2147483648
    %v1171 = vmul.f32 %v1170, 1.442695
    %v1172 = vpow.pop %v1171
    %v1173 = vadd.f32 %v1172, 1.0
    %v1174 = vrcp.pop %v1173
    %v1175 = vmul.f32 1.0, %v1174
    %v1177 = vlaneseq
    %v1178 = vshrl.u32 %v1177, 7
    %v1179 = vsub.s32 0, %v1178
    %v1180 = vrot.slane %v578, %v1179
    %1182 = vmatprep.subr.mxu0 0.0
    %1183 = vmatpush1.msra.mxu0 %v570
    %1184 = vmatprep.subr.mxu0 0.0
    %1185 = vmatpush1.msra.mxu0 %v571
    %1186 = vmatprep.subr.mxu0 0.0
    %1187 = vmatpush1.msra.mxu0 %v572
    %1188 = vmatprep.subr.mxu0 0.0
    %1189 = vmatpush1.msra.mxu0 %v573
    %1190 = vmatprep.subr.mxu0 0.0
    %1191 = vmatpush1.msra.mxu0 0.0
    %1192 = vmatprep.subr.mxu0 0.0
    %1193 = vmatpush1.msra.mxu0 0.0
    %1194 = vmatprep.subr.mxu0 0.0
    %1195 = vmatpush1.msra.mxu0 0.0
    %1196 = vmatprep.subr.mxu0 0.0
    %1197 = vmatpush1.msra.mxu0 0.0
    %1198 = vmatprep.subr.mxu0 0.0
    %1199 = vmatpush1.msra.mxu0 0.0
    %1200 = vmatprep.subr.mxu0 0.0
    %1201 = vmatpush1.msra.mxu0 0.0
    %1202 = vmatprep.subr.mxu0 0.0
    %1203 = vmatpush1.msra.mxu0 0.0
    %1204 = vmatprep.subr.mxu0 0.0
    %1205 = vmatpush1.msra.mxu0 0.0
    %1206 = vmatprep.subr.mxu0 0.0
    %1207 = vmatpush1.msra.mxu0 0.0
    %1208 = vmatprep.subr.mxu0 0.0
    %1209 = vmatpush1.msra.mxu0 0.0
    %1210 = vmatprep.subr.mxu0 0.0
    %1211 = vmatpush1.msra.mxu0 0.0
    %1212 = vmatprep.subr.mxu0 0.0
    %1213 = vmatpush1.msra.mxu0 0.0
    %1214 = vmatprep.subr.mxu0 0.0
    %1215 = vmatpush1.msra.mxu0 0.0
    %1216 = vmatprep.subr.mxu0 0.0
    %1217 = vmatpush1.msra.mxu0 0.0
    %1218 = vmatprep.subr.mxu0 0.0
    %1219 = vmatpush1.msra.mxu0 0.0
    %1220 = vmatprep.subr.mxu0 0.0
    %1221 = vmatpush1.msra.mxu0 0.0
    %1222 = vmatprep.subr.mxu0 0.0
    %1223 = vmatpush1.msra.mxu0 0.0
    %1224 = vmatprep.subr.mxu0 0.0
    %1225 = vmatpush1.msra.mxu0 0.0
    %1226 = vmatprep.subr.mxu0 0.0
    %1227 = vmatpush1.msra.mxu0 0.0
    %1228 = vmatprep.subr.mxu0 0.0
    %1229 = vmatpush1.msra.mxu0 0.0
    %1230 = vmatprep.subr.mxu0 0.0
    %1231 = vmatpush1.msra.mxu0 0.0
    %1232 = vmatprep.subr.mxu0 0.0
    %1233 = vmatpush1.msra.mxu0 0.0
    %1234 = vmatprep.subr.mxu0 0.0
    %1235 = vmatpush1.msra.mxu0 0.0
    %1236 = vmatprep.subr.mxu0 0.0
    %1237 = vmatpush1.msra.mxu0 0.0
    %1238 = vmatprep.subr.mxu0 0.0
    %1239 = vmatpush1.msra.mxu0 0.0
    %1240 = vmatprep.subr.mxu0 0.0
    %1241 = vmatpush1.msra.mxu0 0.0
    %1242 = vmatprep.subr.mxu0 0.0
    %1243 = vmatpush1.msra.mxu0 0.0
    %1244 = vmatprep.subr.mxu0 0.0
    %1245 = vmatpush1.msra.mxu0 0.0
    %1246 = vmatprep.mubr.f32.mxu0 0.0
    %1247 = vmatmul.mubr.f32.gmra.mrb[0].mxu0 %v860
    %v1248 = vpop.f32.mrb[0].mxu0
    %v1249 = vadd.f32 %v1180, %v1248
    %v1250 = vpop.f32.mrb[0].mxu0
    %1251 = vdwg.mxu0
    %v1253 = vlaneseq
    %v1254 = vshrl.u32 %v1253, 7
    %v1255 = vsub.s32 0, %v1254
    %v1256 = vrot.slane %v597, %v1255
    %1258 = vmatprep.subr.mxu0 0.0
    %1259 = vmatpush1.msra.mxu0 %v589
    %1260 = vmatprep.subr.mxu0 0.0
    %1261 = vmatpush1.msra.mxu0 %v590
    %1262 = vmatprep.subr.mxu0 0.0
    %1263 = vmatpush1.msra.mxu0 %v591
    %1264 = vmatprep.subr.mxu0 0.0
    %1265 = vmatpush1.msra.mxu0 %v592
    %1266 = vmatprep.subr.mxu0 0.0
    %1267 = vmatpush1.msra.mxu0 0.0
    %1268 = vmatprep.subr.mxu0 0.0
    %1269 = vmatpush1.msra.mxu0 0.0
    %1270 = vmatprep.subr.mxu0 0.0
    %1271 = vmatpush1.msra.mxu0 0.0
    %1272 = vmatprep.subr.mxu0 0.0
    %1273 = vmatpush1.msra.mxu0 0.0
    %1274 = vmatprep.subr.mxu0 0.0
    %1275 = vmatpush1.msra.mxu0 0.0
    %1276 = vmatprep.subr.mxu0 0.0
    %1277 = vmatpush1.msra.mxu0 0.0
    %1278 = vmatprep.subr.mxu0 0.0
    %1279 = vmatpush1.msra.mxu0 0.0
    %1280 = vmatprep.subr.mxu0 0.0
    %1281 = vmatpush1.msra.mxu0 0.0
    %1282 = vmatprep.subr.mxu0 0.0
    %1283 = vmatpush1.msra.mxu0 0.0
    %1284 = vmatprep.subr.mxu0 0.0
    %1285 = vmatpush1.msra.mxu0 0.0
    %1286 = vmatprep.subr.mxu0 0.0
    %1287 = vmatpush1.msra.mxu0 0.0
    %1288 = vmatprep.subr.mxu0 0.0
    %1289 = vmatpush1.msra.mxu0 0.0
    %1290 = vmatprep.subr.mxu0 0.0
    %1291 = vmatpush1.msra.mxu0 0.0
    %1292 = vmatprep.subr.mxu0 0.0
    %1293 = vmatpush1.msra.mxu0 0.0
    %1294 = vmatprep.subr.mxu0 0.0
    %1295 = vmatpush1.msra.mxu0 0.0
    %1296 = vmatprep.subr.mxu0 0.0
    %1297 = vmatpush1.msra.mxu0 0.0
    %1298 = vmatprep.subr.mxu0 0.0
    %1299 = vmatpush1.msra.mxu0 0.0
    %1300 = vmatprep.subr.mxu0 0.0
    %1301 = vmatpush1.msra.mxu0 0.0
    %1302 = vmatprep.subr.mxu0 0.0
    %1303 = vmatpush1.msra.mxu0 0.0
    %1304 = vmatprep.subr.mxu0 0.0
    %1305 = vmatpush1.msra.mxu0 0.0
    %1306 = vmatprep.subr.mxu0 0.0
    %1307 = vmatpush1.msra.mxu0 0.0
    %1308 = vmatprep.subr.mxu0 0.0
    %1309 = vmatpush1.msra.mxu0 0.0
    %1310 = vmatprep.subr.mxu0 0.0
    %1311 = vmatpush1.msra.mxu0 0.0
    %1312 = vmatprep.subr.mxu0 0.0
    %1313 = vmatpush1.msra.mxu0 0.0
    %1314 = vmatprep.subr.mxu0 0.0
    %1315 = vmatpush1.msra.mxu0 0.0
    %1316 = vmatprep.subr.mxu0 0.0
    %1317 = vmatpush1.msra.mxu0 0.0
    %1318 = vmatprep.subr.mxu0 0.0
    %1319 = vmatpush1.msra.mxu0 0.0
    %1320 = vmatprep.subr.mxu0 0.0
    %1321 = vmatpush1.msra.mxu0 0.0
    %1322 = vmatprep.mubr.f32.mxu0 0.0
    %1323 = vmatmul.mubr.f32.gmra.mrb[0].mxu0 %v600
    %v1324 = vpop.f32.mrb[0].mxu0
    %v1325 = vadd.f32 %v1256, %v1324
    %v1326 = vpop.f32.mrb[0].mxu0
    %1327 = vdwg.mxu0
    %v1328 = vmul.f32 %v1015, %v1325
    %v1329 = vadd.f32 %v1249, %v1328
    %v1330 = vtanh.pop %v1329
    %v1331 = vsub.f32 1.0, %v1175
    %v1332 = vmul.f32 %v1331, %v1330
    %v1333 = vmul.f32 %v1175, 0.0
    %v1334 = vadd.f32 %v1332, %v1333
    %1335 = vmatprep.subr.mxu0 0.0
    %1336 = vmatpush1.msra.mxu0 %v541
    %1337 = vmatprep.subr.mxu0 0.0
    %1338 = vmatpush1.msra.mxu0 %v542
    %1339 = vmatprep.subr.mxu0 0.0
    %1340 = vmatpush1.msra.mxu0 %v543
    %1341 = vmatprep.subr.mxu0 0.0
    %1342 = vmatpush1.msra.mxu0 %v544
    %1343 = vmatprep.subr.mxu0 0.0
    %1344 = vmatpush1.msra.mxu0 0.0
    %1345 = vmatprep.subr.mxu0 0.0
    %1346 = vmatpush1.msra.mxu0 0.0
    %1347 = vmatprep.subr.mxu0 0.0
    %1348 = vmatpush1.msra.mxu0 0.0
    %1349 = vmatprep.subr.mxu0 0.0
    %1350 = vmatpush1.msra.mxu0 0.0
    %1351 = vmatprep.subr.mxu0 0.0
    %1352 = vmatpush1.msra.mxu0 0.0
    %1353 = vmatprep.subr.mxu0 0.0
    %1354 = vmatpush1.msra.mxu0 0.0
    %1355 = vmatprep.subr.mxu0 0.0
    %1356 = vmatpush1.msra.mxu0 0.0
    %1357 = vmatprep.subr.mxu0 0.0
    %1358 = vmatpush1.msra.mxu0 0.0
    %1359 = vmatprep.subr.mxu0 0.0
    %1360 = vmatpush1.msra.mxu0 0.0
    %1361 = vmatprep.subr.mxu0 0.0
    %1362 = vmatpush1.msra.mxu0 0.0
    %1363 = vmatprep.subr.mxu0 0.0
    %1364 = vmatpush1.msra.mxu0 0.0
    %1365 = vmatprep.subr.mxu0 0.0
    %1366 = vmatpush1.msra.mxu0 0.0
    %1367 = vmatprep.subr.mxu0 0.0
    %1368 = vmatpush1.msra.mxu0 0.0
    %1369 = vmatprep.subr.mxu0 0.0
    %1370 = vmatpush1.msra.mxu0 0.0
    %1371 = vmatprep.subr.mxu0 0.0
    %1372 = vmatpush1.msra.mxu0 0.0
    %1373 = vmatprep.subr.mxu0 0.0
    %1374 = vmatpush1.msra.mxu0 0.0
    %1375 = vmatprep.subr.mxu0 0.0
    %1376 = vmatpush1.msra.mxu0 0.0
    %1377 = vmatprep.subr.mxu0 0.0
    %1378 = vmatpush1.msra.mxu0 0.0
    %1379 = vmatprep.subr.mxu0 0.0
    %1380 = vmatpush1.msra.mxu0 0.0
    %1381 = vmatprep.subr.mxu0 0.0
    %1382 = vmatpush1.msra.mxu0 0.0
    %1383 = vmatprep.subr.mxu0 0.0
    %1384 = vmatpush1.msra.mxu0 0.0
    %1385 = vmatprep.subr.mxu0 0.0
    %1386 = vmatpush1.msra.mxu0 0.0
    %1387 = vmatprep.subr.mxu0 0.0
    %1388 = vmatpush1.msra.mxu0 0.0
    %1389 = vmatprep.subr.mxu0 0.0
    %1390 = vmatpush1.msra.mxu0 0.0
    %1391 = vmatprep.subr.mxu0 0.0
    %1392 = vmatpush1.msra.mxu0 0.0
    %1393 = vmatprep.subr.mxu0 0.0
    %1394 = vmatpush1.msra.mxu0 0.0
    %1395 = vmatprep.subr.mxu0 0.0
    %1396 = vmatpush1.msra.mxu0 0.0
    %1397 = vmatprep.subr.mxu0 0.0
    %1398 = vmatpush1.msra.mxu0 0.0
    %1399 = vmatprep.mubr.f32.mxu0 0.0
    %1400 = vmatmul.mubr.f32.gmra.mrb[0].mxu0 %v860
    %v1401 = vpop.f32.mrb[0].mxu0
    %v1402 = vadd.f32 0.0, %v1401
    %v1403 = vpop.f32.mrb[0].mxu0
    %1404 = vdwg.mxu0
    %v1405 = vadd.f32 %v272, %v1402
    %v1406 = vadd.f32 %v1405, %v677
    %v1407 = vxor.u32 %v1406, 2147483648
    %v1408 = vmul.f32 %v1407, 1.442695
    %v1409 = vpow.pop %v1408
    %v1410 = vadd.f32 %v1409, 1.0
    %v1411 = vrcp.pop %v1410
    %v1412 = vmul.f32 1.0, %v1411
    %1413 = vmatprep.subr.mxu0 0.0
    %1414 = vmatpush1.msra.mxu0 %v546
    %1415 = vmatprep.subr.mxu0 0.0
    %1416 = vmatpush1.msra.mxu0 %v547
    %1417 = vmatprep.subr.mxu0 0.0
    %1418 = vmatpush1.msra.mxu0 %v548
    %1419 = vmatprep.subr.mxu0 0.0
    %1420 = vmatpush1.msra.mxu0 %v549
    %1421 = vmatprep.subr.mxu0 0.0
    %1422 = vmatpush1.msra.mxu0 0.0
    %1423 = vmatprep.subr.mxu0 0.0
    %1424 = vmatpush1.msra.mxu0 0.0
    %1425 = vmatprep.subr.mxu0 0.0
    %1426 = vmatpush1.msra.mxu0 0.0
    %1427 = vmatprep.subr.mxu0 0.0
    %1428 = vmatpush1.msra.mxu0 0.0
    %1429 = vmatprep.subr.mxu0 0.0
    %1430 = vmatpush1.msra.mxu0 0.0
    %1431 = vmatprep.subr.mxu0 0.0
    %1432 = vmatpush1.msra.mxu0 0.0
    %1433 = vmatprep.subr.mxu0 0.0
    %1434 = vmatpush1.msra.mxu0 0.0
    %1435 = vmatprep.subr.mxu0 0.0
    %1436 = vmatpush1.msra.mxu0 0.0
    %1437 = vmatprep.subr.mxu0 0.0
    %1438 = vmatpush1.msra.mxu0 0.0
    %1439 = vmatprep.subr.mxu0 0.0
    %1440 = vmatpush1.msra.mxu0 0.0
    %1441 = vmatprep.subr.mxu0 0.0
    %1442 = vmatpush1.msra.mxu0 0.0
    %1443 = vmatprep.subr.mxu0 0.0
    %1444 = vmatpush1.msra.mxu0 0.0
    %1445 = vmatprep.subr.mxu0 0.0
    %1446 = vmatpush1.msra.mxu0 0.0
    %1447 = vmatprep.subr.mxu0 0.0
    %1448 = vmatpush1.msra.mxu0 0.0
    %1449 = vmatprep.subr.mxu0 0.0
    %1450 = vmatpush1.msra.mxu0 0.0
    %1451 = vmatprep.subr.mxu0 0.0
    %1452 = vmatpush1.msra.mxu0 0.0
    %1453 = vmatprep.subr.mxu0 0.0
    %1454 = vmatpush1.msra.mxu0 0.0
    %1455 = vmatprep.subr.mxu0 0.0
    %1456 = vmatpush1.msra.mxu0 0.0
    %1457 = vmatprep.subr.mxu0 0.0
    %1458 = vmatpush1.msra.mxu0 0.0
    %1459 = vmatprep.subr.mxu0 0.0
    %1460 = vmatpush1.msra.mxu0 0.0
    %1461 = vmatprep.subr.mxu0 0.0
    %1462 = vmatpush1.msra.mxu0 0.0
    %1463 = vmatprep.subr.mxu0 0.0
    %1464 = vmatpush1.msra.mxu0 0.0
    %1465 = vmatprep.subr.mxu0 0.0
    %1466 = vmatpush1.msra.mxu0 0.0
    %1467 = vmatprep.subr.mxu0 0.0
    %1468 = vmatpush1.msra.mxu0 0.0
    %1469 = vmatprep.subr.mxu0 0.0
    %1470 = vmatpush1.msra.mxu0 0.0
    %1471 = vmatprep.subr.mxu0 0.0
    %1472 = vmatpush1.msra.mxu0 0.0
    %1473 = vmatprep.subr.mxu0 0.0
    %1474 = vmatpush1.msra.mxu0 0.0
    %1475 = vmatprep.subr.mxu0 0.0
    %1476 = vmatpush1.msra.mxu0 0.0
    %1477 = vmatprep.mubr.f32.mxu0 0.0
    %1478 = vmatmul.mubr.f32.gmra.mrb[0].mxu0 %v860
    %v1479 = vpop.f32.mrb[0].mxu0
    %v1480 = vadd.f32 0.0, %v1479
    %v1481 = vpop.f32.mrb[0].mxu0
    %1482 = vdwg.mxu0
    %v1483 = vadd.f32 %v390, %v1480
    %v1484 = vadd.f32 %v1483, %v761
    %v1485 = vxor.u32 %v1484, 2147483648
    %v1486 = vmul.f32 %v1485, 1.442695
    %v1487 = vpow.pop %v1486
    %v1488 = vadd.f32 %v1487, 1.0
    %v1489 = vrcp.pop %v1488
    %v1490 = vmul.f32 1.0, %v1489
    %1491 = vmatprep.subr.mxu0 0.0
    %1492 = vmatpush1.msra.mxu0 %v551
    %1493 = vmatprep.subr.mxu0 0.0
    %1494 = vmatpush1.msra.mxu0 %v552
    %1495 = vmatprep.subr.mxu0 0.0
    %1496 = vmatpush1.msra.mxu0 %v553
    %1497 = vmatprep.subr.mxu0 0.0
    %1498 = vmatpush1.msra.mxu0 %v554
    %1499 = vmatprep.subr.mxu0 0.0
    %1500 = vmatpush1.msra.mxu0 0.0
    %1501 = vmatprep.subr.mxu0 0.0
    %1502 = vmatpush1.msra.mxu0 0.0
    %1503 = vmatprep.subr.mxu0 0.0
    %1504 = vmatpush1.msra.mxu0 0.0
    %1505 = vmatprep.subr.mxu0 0.0
    %1506 = vmatpush1.msra.mxu0 0.0
    %1507 = vmatprep.subr.mxu0 0.0
    %1508 = vmatpush1.msra.mxu0 0.0
    %1509 = vmatprep.subr.mxu0 0.0
    %1510 = vmatpush1.msra.mxu0 0.0
    %1511 = vmatprep.subr.mxu0 0.0
    %1512 = vmatpush1.msra.mxu0 0.0
    %1513 = vmatprep.subr.mxu0 0.0
    %1514 = vmatpush1.msra.mxu0 0.0
    %1515 = vmatprep.subr.mxu0 0.0
    %1516 = vmatpush1.msra.mxu0 0.0
    %1517 = vmatprep.subr.mxu0 0.0
    %1518 = vmatpush1.msra.mxu0 0.0
    %1519 = vmatprep.subr.mxu0 0.0
    %1520 = vmatpush1.msra.mxu0 0.0
    %1521 = vmatprep.subr.mxu0 0.0
    %1522 = vmatpush1.msra.mxu0 0.0
    %1523 = vmatprep.subr.mxu0 0.0
    %1524 = vmatpush1.msra.mxu0 0.0
    %1525 = vmatprep.subr.mxu0 0.0
    %1526 = vmatpush1.msra.mxu0 0.0
    %1527 = vmatprep.subr.mxu0 0.0
    %1528 = vmatpush1.msra.mxu0 0.0
    %1529 = vmatprep.subr.mxu0 0.0
    %1530 = vmatpush1.msra.mxu0 0.0
    %1531 = vmatprep.subr.mxu0 0.0
    %1532 = vmatpush1.msra.mxu0 0.0
    %1533 = vmatprep.subr.mxu0 0.0
    %1534 = vmatpush1.msra.mxu0 0.0
    %1535 = vmatprep.subr.mxu0 0.0
    %1536 = vmatpush1.msra.mxu0 0.0
    %1537 = vmatprep.subr.mxu0 0.0
    %1538 = vmatpush1.msra.mxu0 0.0
    %1539 = vmatprep.subr.mxu0 0.0
    %1540 = vmatpush1.msra.mxu0 0.0
    %1541 = vmatprep.subr.mxu0 0.0
    %1542 = vmatpush1.msra.mxu0 0.0
    %1543 = vmatprep.subr.mxu0 0.0
    %1544 = vmatpush1.msra.mxu0 0.0
    %1545 = vmatprep.subr.mxu0 0.0
    %1546 = vmatpush1.msra.mxu0 0.0
    %1547 = vmatprep.subr.mxu0 0.0
    %1548 = vmatpush1.msra.mxu0 0.0
    %1549 = vmatprep.subr.mxu0 0.0
    %1550 = vmatpush1.msra.mxu0 0.0
    %1551 = vmatprep.subr.mxu0 0.0
    %1552 = vmatpush1.msra.mxu0 0.0
    %1553 = vmatprep.subr.mxu0 0.0
    %1554 = vmatpush1.msra.mxu0 0.0
    %1555 = vmatprep.mubr.f32.mxu0 0.0
    %1556 = vmatmul.mubr.f32.gmra.mrb[0].mxu0 %v860
    %v1557 = vpop.f32.mrb[0].mxu0
    %v1558 = vadd.f32 %v774, %v1557
    %v1559 = vpop.f32.mrb[0].mxu0
    %1560 = vdwg.mxu0
    %v1561 = vmul.f32 %v1412, %v1558
    %v1562 = vadd.f32 %v508, %v1561
    %v1563 = vtanh.pop %v1562
    %v1564 = vsub.f32 1.0, %v1490
    %v1565 = vmul.f32 %v1564, %v1563
    %v1566 = vmul.f32 %v1490, %v852
    %v1567 = vadd.f32 %v1565, %v1566
    %v1569 = vsel %vm598, %v1567, 0
    %1571 = vmatprep.subr.mxu0 0.0
    %1572 = vmatpush1.msra.mxu0 %v560
    %1573 = vmatprep.subr.mxu0 0.0
    %1574 = vmatpush1.msra.mxu0 %v561
    %1575 = vmatprep.subr.mxu0 0.0
    %1576 = vmatpush1.msra.mxu0 %v562
    %1577 = vmatprep.subr.mxu0 0.0
    %1578 = vmatpush1.msra.mxu0 %v563
    %1579 = vmatprep.subr.mxu0 0.0
    %1580 = vmatpush1.msra.mxu0 0.0
    %1581 = vmatprep.subr.mxu0 0.0
    %1582 = vmatpush1.msra.mxu0 0.0
    %1583 = vmatprep.subr.mxu0 0.0
    %1584 = vmatpush1.msra.mxu0 0.0
    %1585 = vmatprep.subr.mxu0 0.0
    %1586 = vmatpush1.msra.mxu0 0.0
    %1587 = vmatprep.subr.mxu0 0.0
    %1588 = vmatpush1.msra.mxu0 0.0
    %1589 = vmatprep.subr.mxu0 0.0
    %1590 = vmatpush1.msra.mxu0 0.0
    %1591 = vmatprep.subr.mxu0 0.0
    %1592 = vmatpush1.msra.mxu0 0.0
    %1593 = vmatprep.subr.mxu0 0.0
    %1594 = vmatpush1.msra.mxu0 0.0
    %1595 = vmatprep.subr.mxu0 0.0
    %1596 = vmatpush1.msra.mxu0 0.0
    %1597 = vmatprep.subr.mxu0 0.0
    %1598 = vmatpush1.msra.mxu0 0.0
    %1599 = vmatprep.subr.mxu0 0.0
    %1600 = vmatpush1.msra.mxu0 0.0
    %1601 = vmatprep.subr.mxu0 0.0
    %1602 = vmatpush1.msra.mxu0 0.0
    %1603 = vmatprep.subr.mxu0 0.0
    %1604 = vmatpush1.msra.mxu0 0.0
    %1605 = vmatprep.subr.mxu0 0.0
    %1606 = vmatpush1.msra.mxu0 0.0
    %1607 = vmatprep.subr.mxu0 0.0
    %1608 = vmatpush1.msra.mxu0 0.0
    %1609 = vmatprep.subr.mxu0 0.0
    %1610 = vmatpush1.msra.mxu0 0.0
    %1611 = vmatprep.subr.mxu0 0.0
    %1612 = vmatpush1.msra.mxu0 0.0
    %1613 = vmatprep.subr.mxu0 0.0
    %1614 = vmatpush1.msra.mxu0 0.0
    %1615 = vmatprep.subr.mxu0 0.0
    %1616 = vmatpush1.msra.mxu0 0.0
    %1617 = vmatprep.subr.mxu0 0.0
    %1618 = vmatpush1.msra.mxu0 0.0
    %1619 = vmatprep.subr.mxu0 0.0
    %1620 = vmatpush1.msra.mxu0 0.0
    %1621 = vmatprep.subr.mxu0 0.0
    %1622 = vmatpush1.msra.mxu0 0.0
    %1623 = vmatprep.subr.mxu0 0.0
    %1624 = vmatpush1.msra.mxu0 0.0
    %1625 = vmatprep.subr.mxu0 0.0
    %1626 = vmatpush1.msra.mxu0 0.0
    %1627 = vmatprep.subr.mxu0 0.0
    %1628 = vmatpush1.msra.mxu0 0.0
    %1629 = vmatprep.subr.mxu0 0.0
    %1630 = vmatpush1.msra.mxu0 0.0
    %1631 = vmatprep.subr.mxu0 0.0
    %1632 = vmatpush1.msra.mxu0 0.0
    %1633 = vmatprep.subr.mxu0 0.0
    %1634 = vmatpush1.msra.mxu0 0.0
    %1635 = vmatprep.mubr.f32.mxu0 0.0
    %1636 = vmatmul.mubr.f32.gmra.mrb[0].mxu0 %v1569
    %v1637 = vpop.f32.mrb[0].mxu0
    %v1638 = vadd.f32 %v857, %v1637
    %v1639 = vpop.f32.mrb[0].mxu0
    %1640 = vdwg.mxu0
    %v1642 = vsel %vm598, %v1334, 0
    %1644 = vmatprep.subr.mxu0 0.0
    %1645 = vmatpush1.msra.mxu0 %v579
    %1646 = vmatprep.subr.mxu0 0.0
    %1647 = vmatpush1.msra.mxu0 %v580
    %1648 = vmatprep.subr.mxu0 0.0
    %1649 = vmatpush1.msra.mxu0 %v581
    %1650 = vmatprep.subr.mxu0 0.0
    %1651 = vmatpush1.msra.mxu0 %v582
    %1652 = vmatprep.subr.mxu0 0.0
    %1653 = vmatpush1.msra.mxu0 0.0
    %1654 = vmatprep.subr.mxu0 0.0
    %1655 = vmatpush1.msra.mxu0 0.0
    %1656 = vmatprep.subr.mxu0 0.0
    %1657 = vmatpush1.msra.mxu0 0.0
    %1658 = vmatprep.subr.mxu0 0.0
    %1659 = vmatpush1.msra.mxu0 0.0
    %1660 = vmatprep.subr.mxu0 0.0
    %1661 = vmatpush1.msra.mxu0 0.0
    %1662 = vmatprep.subr.mxu0 0.0
    %1663 = vmatpush1.msra.mxu0 0.0
    %1664 = vmatprep.subr.mxu0 0.0
    %1665 = vmatpush1.msra.mxu0 0.0
    %1666 = vmatprep.subr.mxu0 0.0
    %1667 = vmatpush1.msra.mxu0 0.0
    %1668 = vmatprep.subr.mxu0 0.0
    %1669 = vmatpush1.msra.mxu0 0.0
    %1670 = vmatprep.subr.mxu0 0.0
    %1671 = vmatpush1.msra.mxu0 0.0
    %1672 = vmatprep.subr.mxu0 0.0
    %1673 = vmatpush1.msra.mxu0 0.0
    %1674 = vmatprep.subr.mxu0 0.0
    %1675 = vmatpush1.msra.mxu0 0.0
    %1676 = vmatprep.subr.mxu0 0.0
    %1677 = vmatpush1.msra.mxu0 0.0
    %1678 = vmatprep.subr.mxu0 0.0
    %1679 = vmatpush1.msra.mxu0 0.0
    %1680 = vmatprep.subr.mxu0 0.0
    %1681 = vmatpush1.msra.mxu0 0.0
    %1682 = vmatprep.subr.mxu0 0.0
    %1683 = vmatpush1.msra.mxu0 0.0
    %1684 = vmatprep.subr.mxu0 0.0
    %1685 = vmatpush1.msra.mxu0 0.0
    %1686 = vmatprep.subr.mxu0 0.0
    %1687 = vmatpush1.msra.mxu0 0.0
    %1688 = vmatprep.subr.mxu0 0.0
    %1689 = vmatpush1.msra.mxu0 0.0
    %1690 = vmatprep.subr.mxu0 0.0
    %1691 = vmatpush1.msra.mxu0 0.0
    %1692 = vmatprep.subr.mxu0 0.0
    %1693 = vmatpush1.msra.mxu0 0.0
    %1694 = vmatprep.subr.mxu0 0.0
    %1695 = vmatpush1.msra.mxu0 0.0
    %1696 = vmatprep.subr.mxu0 0.0
    %1697 = vmatpush1.msra.mxu0 0.0
    %1698 = vmatprep.subr.mxu0 0.0
    %1699 = vmatpush1.msra.mxu0 0.0
    %1700 = vmatprep.subr.mxu0 0.0
    %1701 = vmatpush1.msra.mxu0 0.0
    %1702 = vmatprep.subr.mxu0 0.0
    %1703 = vmatpush1.msra.mxu0 0.0
    %1704 = vmatprep.subr.mxu0 0.0
    %1705 = vmatpush1.msra.mxu0 0.0
    %1706 = vmatprep.subr.mxu0 0.0
    %1707 = vmatpush1.msra.mxu0 0.0
    %1708 = vmatprep.mubr.f32.mxu0 0.0
    %1709 = vmatmul.mubr.f32.gmra.mrb[0].mxu0 %v1642
    %v1710 = vpop.f32.mrb[0].mxu0
    %v1711 = vadd.f32 0.0, %v1710
    %v1712 = vpop.f32.mrb[0].mxu0
    %1713 = vdwg.mxu0
    %v1714 = vadd.f32 %v1638, %v1711
    %v1715 = vadd.f32 %v1714, %v1007
    %v1716 = vxor.u32 %v1715, 2147483648
    %v1717 = vmul.f32 %v1716, 1.442695
    %v1718 = vpow.pop %v1717
    %v1719 = vadd.f32 %v1718, 1.0
    %v1720 = vrcp.pop %v1719
    %v1721 = vmul.f32 1.0, %v1720
    %1722 = vmatprep.subr.mxu0 0.0
    %1723 = vmatpush1.msra.mxu0 %v565
    %1724 = vmatprep.subr.mxu0 0.0
    %1725 = vmatpush1.msra.mxu0 %v566
    %1726 = vmatprep.subr.mxu0 0.0
    %1727 = vmatpush1.msra.mxu0 %v567
    %1728 = vmatprep.subr.mxu0 0.0
    %1729 = vmatpush1.msra.mxu0 %v568
    %1730 = vmatprep.subr.mxu0 0.0
    %1731 = vmatpush1.msra.mxu0 0.0
    %1732 = vmatprep.subr.mxu0 0.0
    %1733 = vmatpush1.msra.mxu0 0.0
    %1734 = vmatprep.subr.mxu0 0.0
    %1735 = vmatpush1.msra.mxu0 0.0
    %1736 = vmatprep.subr.mxu0 0.0
    %1737 = vmatpush1.msra.mxu0 0.0
    %1738 = vmatprep.subr.mxu0 0.0
    %1739 = vmatpush1.msra.mxu0 0.0
    %1740 = vmatprep.subr.mxu0 0.0
    %1741 = vmatpush1.msra.mxu0 0.0
    %1742 = vmatprep.subr.mxu0 0.0
    %1743 = vmatpush1.msra.mxu0 0.0
    %1744 = vmatprep.subr.mxu0 0.0
    %1745 = vmatpush1.msra.mxu0 0.0
    %1746 = vmatprep.subr.mxu0 0.0
    %1747 = vmatpush1.msra.mxu0 0.0
    %1748 = vmatprep.subr.mxu0 0.0
    %1749 = vmatpush1.msra.mxu0 0.0
    %1750 = vmatprep.subr.mxu0 0.0
    %1751 = vmatpush1.msra.mxu0 0.0
    %1752 = vmatprep.subr.mxu0 0.0
    %1753 = vmatpush1.msra.mxu0 0.0
    %1754 = vmatprep.subr.mxu0 0.0
    %1755 = vmatpush1.msra.mxu0 0.0
    %1756 = vmatprep.subr.mxu0 0.0
    %1757 = vmatpush1.msra.mxu0 0.0
    %1758 = vmatprep.subr.mxu0 0.0
    %1759 = vmatpush1.msra.mxu0 0.0
    %1760 = vmatprep.subr.mxu0 0.0
    %1761 = vmatpush1.msra.mxu0 0.0
    %1762 = vmatprep.subr.mxu0 0.0
    %1763 = vmatpush1.msra.mxu0 0.0
    %1764 = vmatprep.subr.mxu0 0.0
    %1765 = vmatpush1.msra.mxu0 0.0
    %1766 = vmatprep.subr.mxu0 0.0
    %1767 = vmatpush1.msra.mxu0 0.0
    %1768 = vmatprep.subr.mxu0 0.0
    %1769 = vmatpush1.msra.mxu0 0.0
    %1770 = vmatprep.subr.mxu0 0.0
    %1771 = vmatpush1.msra.mxu0 0.0
    %1772 = vmatprep.subr.mxu0 0.0
    %1773 = vmatpush1.msra.mxu0 0.0
    %1774 = vmatprep.subr.mxu0 0.0
    %1775 = vmatpush1.msra.mxu0 0.0
    %1776 = vmatprep.subr.mxu0 0.0
    %1777 = vmatpush1.msra.mxu0 0.0
    %1778 = vmatprep.subr.mxu0 0.0
    %1779 = vmatpush1.msra.mxu0 0.0
    %1780 = vmatprep.subr.mxu0 0.0
    %1781 = vmatpush1.msra.mxu0 0.0
    %1782 = vmatprep.subr.mxu0 0.0
    %1783 = vmatpush1.msra.mxu0 0.0
    %1784 = vmatprep.subr.mxu0 0.0
    %1785 = vmatpush1.msra.mxu0 0.0
    %1786 = vmatprep.mubr.f32.mxu0 0.0
    %1787 = vmatmul.mubr.f32.gmra.mrb[0].mxu0 %v1569
    %v1788 = vpop.f32.mrb[0].mxu0
    %v1789 = vadd.f32 %v1020, %v1788
    %v1790 = vpop.f32.mrb[0].mxu0
    %1791 = vdwg.mxu0
    %1792 = vmatprep.subr.mxu0 0.0
    %1793 = vmatpush1.msra.mxu0 %v584
    %1794 = vmatprep.subr.mxu0 0.0
    %1795 = vmatpush1.msra.mxu0 %v585
    %1796 = vmatprep.subr.mxu0 0.0
    %1797 = vmatpush1.msra.mxu0 %v586
    %1798 = vmatprep.subr.mxu0 0.0
    %1799 = vmatpush1.msra.mxu0 %v587
    %1800 = vmatprep.subr.mxu0 0.0
    %1801 = vmatpush1.msra.mxu0 0.0
    %1802 = vmatprep.subr.mxu0 0.0
    %1803 = vmatpush1.msra.mxu0 0.0
    %1804 = vmatprep.subr.mxu0 0.0
    %1805 = vmatpush1.msra.mxu0 0.0
    %1806 = vmatprep.subr.mxu0 0.0
    %1807 = vmatpush1.msra.mxu0 0.0
    %1808 = vmatprep.subr.mxu0 0.0
    %1809 = vmatpush1.msra.mxu0 0.0
    %1810 = vmatprep.subr.mxu0 0.0
    %1811 = vmatpush1.msra.mxu0 0.0
    %1812 = vmatprep.subr.mxu0 0.0
    %1813 = vmatpush1.msra.mxu0 0.0
    %1814 = vmatprep.subr.mxu0 0.0
    %1815 = vmatpush1.msra.mxu0 0.0
    %1816 = vmatprep.subr.mxu0 0.0
    %1817 = vmatpush1.msra.mxu0 0.0
    %1818 = vmatprep.subr.mxu0 0.0
    %1819 = vmatpush1.msra.mxu0 0.0
    %1820 = vmatprep.subr.mxu0 0.0
    %1821 = vmatpush1.msra.mxu0 0.0
    %1822 = vmatprep.subr.mxu0 0.0
    %1823 = vmatpush1.msra.mxu0 0.0
    %1824 = vmatprep.subr.mxu0 0.0
    %1825 = vmatpush1.msra.mxu0 0.0
    %1826 = vmatprep.subr.mxu0 0.0
    %1827 = vmatpush1.msra.mxu0 0.0
    %1828 = vmatprep.subr.mxu0 0.0
    %1829 = vmatpush1.msra.mxu0 0.0
    %1830 = vmatprep.subr.mxu0 0.0
    %1831 = vmatpush1.msra.mxu0 0.0
    %1832 = vmatprep.subr.mxu0 0.0
    %1833 = vmatpush1.msra.mxu0 0.0
    %1834 = vmatprep.subr.mxu0 0.0
    %1835 = vmatpush1.msra.mxu0 0.0
    %1836 = vmatprep.subr.mxu0 0.0
    %1837 = vmatpush1.msra.mxu0 0.0
    %1838 = vmatprep.subr.mxu0 0.0
    %1839 = vmatpush1.msra.mxu0 0.0
    %1840 = vmatprep.subr.mxu0 0.0
    %1841 = vmatpush1.msra.mxu0 0.0
    %1842 = vmatprep.subr.mxu0 0.0
    %1843 = vmatpush1.msra.mxu0 0.0
    %1844 = vmatprep.subr.mxu0 0.0
    %1845 = vmatpush1.msra.mxu0 0.0
    %1846 = vmatprep.subr.mxu0 0.0
    %1847 = vmatpush1.msra.mxu0 0.0
    %1848 = vmatprep.subr.mxu0 0.0
    %1849 = vmatpush1.msra.mxu0 0.0
    %1850 = vmatprep.subr.mxu0 0.0
    %1851 = vmatpush1.msra.mxu0 0.0
    %1852 = vmatprep.subr.mxu0 0.0
    %1853 = vmatpush1.msra.mxu0 0.0
    %1854 = vmatprep.subr.mxu0 0.0
    %1855 = vmatpush1.msra.mxu0 0.0
    %1856 = vmatprep.mubr.f32.mxu0 0.0
    %1857 = vmatmul.mubr.f32.gmra.mrb[0].mxu0 %v1642
    %v1858 = vpop.f32.mrb[0].mxu0
    %v1859 = vadd.f32 0.0, %v1858
    %v1860 = vpop.f32.mrb[0].mxu0
    %1861 = vdwg.mxu0
    %v1862 = vadd.f32 %v1789, %v1859
    %v1863 = vadd.f32 %v1862, %v1167
    %v1864 = vxor.u32 %v1863, 2147483648
    %v1865 = vmul.f32 %v1864, 1.442695
    %v1866 = vpow.pop %v1865
    %v1867 = vadd.f32 %v1866, 1.0
    %v1868 = vrcp.pop %v1867
    %v1869 = vmul.f32 1.0, %v1868
    %1870 = vmatprep.subr.mxu0 0.0
    %1871 = vmatpush1.msra.mxu0 %v570
    %1872 = vmatprep.subr.mxu0 0.0
    %1873 = vmatpush1.msra.mxu0 %v571
    %1874 = vmatprep.subr.mxu0 0.0
    %1875 = vmatpush1.msra.mxu0 %v572
    %1876 = vmatprep.subr.mxu0 0.0
    %1877 = vmatpush1.msra.mxu0 %v573
    %1878 = vmatprep.subr.mxu0 0.0
    %1879 = vmatpush1.msra.mxu0 0.0
    %1880 = vmatprep.subr.mxu0 0.0
    %1881 = vmatpush1.msra.mxu0 0.0
    %1882 = vmatprep.subr.mxu0 0.0
    %1883 = vmatpush1.msra.mxu0 0.0
    %1884 = vmatprep.subr.mxu0 0.0
    %1885 = vmatpush1.msra.mxu0 0.0
    %1886 = vmatprep.subr.mxu0 0.0
    %1887 = vmatpush1.msra.mxu0 0.0
    %1888 = vmatprep.subr.mxu0 0.0
    %1889 = vmatpush1.msra.mxu0 0.0
    %1890 = vmatprep.subr.mxu0 0.0
    %1891 = vmatpush1.msra.mxu0 0.0
    %1892 = vmatprep.subr.mxu0 0.0
    %1893 = vmatpush1.msra.mxu0 0.0
    %1894 = vmatprep.subr.mxu0 0.0
    %1895 = vmatpush1.msra.mxu0 0.0
    %1896 = vmatprep.subr.mxu0 0.0
    %1897 = vmatpush1.msra.mxu0 0.0
    %1898 = vmatprep.subr.mxu0 0.0
    %1899 = vmatpush1.msra.mxu0 0.0
    %1900 = vmatprep.subr.mxu0 0.0
    %1901 = vmatpush1.msra.mxu0 0.0
    %1902 = vmatprep.subr.mxu0 0.0
    %1903 = vmatpush1.msra.mxu0 0.0
    %1904 = vmatprep.subr.mxu0 0.0
    %1905 = vmatpush1.msra.mxu0 0.0
    %1906 = vmatprep.subr.mxu0 0.0
    %1907 = vmatpush1.msra.mxu0 0.0
    %1908 = vmatprep.subr.mxu0 0.0
    %1909 = vmatpush1.msra.mxu0 0.0
    %1910 = vmatprep.subr.mxu0 0.0
    %1911 = vmatpush1.msra.mxu0 0.0
    %1912 = vmatprep.subr.mxu0 0.0
    %1913 = vmatpush1.msra.mxu0 0.0
    %1914 = vmatprep.subr.mxu0 0.0
    %1915 = vmatpush1.msra.mxu0 0.0
    %1916 = vmatprep.subr.mxu0 0.0
    %1917 = vmatpush1.msra.mxu0 0.0
    %1918 = vmatprep.subr.mxu0 0.0
    %1919 = vmatpush1.msra.mxu0 0.0
    %1920 = vmatprep.subr.mxu0 0.0
    %1921 = vmatpush1.msra.mxu0 0.0
    %1922 = vmatprep.subr.mxu0 0.0
    %1923 = vmatpush1.msra.mxu0 0.0
    %1924 = vmatprep.subr.mxu0 0.0
    %1925 = vmatpush1.msra.mxu0 0.0
    %1926 = vmatprep.subr.mxu0 0.0
    %1927 = vmatpush1.msra.mxu0 0.0
    %1928 = vmatprep.subr.mxu0 0.0
    %1929 = vmatpush1.msra.mxu0 0.0
    %1930 = vmatprep.subr.mxu0 0.0
    %1931 = vmatpush1.msra.mxu0 0.0
    %1932 = vmatprep.subr.mxu0 0.0
    %1933 = vmatpush1.msra.mxu0 0.0
    %1934 = vmatprep.mubr.f32.mxu0 0.0
    %1935 = vmatmul.mubr.f32.gmra.mrb[0].mxu0 %v1569
    %v1936 = vpop.f32.mrb[0].mxu0
    %v1937 = vadd.f32 %v1180, %v1936
    %v1938 = vpop.f32.mrb[0].mxu0
    %1939 = vdwg.mxu0
    %1940 = vmatprep.subr.mxu0 0.0
    %1941 = vmatpush1.msra.mxu0 %v589
    %1942 = vmatprep.subr.mxu0 0.0
    %1943 = vmatpush1.msra.mxu0 %v590
    %1944 = vmatprep.subr.mxu0 0.0
    %1945 = vmatpush1.msra.mxu0 %v591
    %1946 = vmatprep.subr.mxu0 0.0
    %1947 = vmatpush1.msra.mxu0 %v592
    %1948 = vmatprep.subr.mxu0 0.0
    %1949 = vmatpush1.msra.mxu0 0.0
    %1950 = vmatprep.subr.mxu0 0.0
    %1951 = vmatpush1.msra.mxu0 0.0
    %1952 = vmatprep.subr.mxu0 0.0
    %1953 = vmatpush1.msra.mxu0 0.0
    %1954 = vmatprep.subr.mxu0 0.0
    %1955 = vmatpush1.msra.mxu0 0.0
    %1956 = vmatprep.subr.mxu0 0.0
    %1957 = vmatpush1.msra.mxu0 0.0
    %1958 = vmatprep.subr.mxu0 0.0
    %1959 = vmatpush1.msra.mxu0 0.0
    %1960 = vmatprep.subr.mxu0 0.0
    %1961 = vmatpush1.msra.mxu0 0.0
    %1962 = vmatprep.subr.mxu0 0.0
    %1963 = vmatpush1.msra.mxu0 0.0
    %1964 = vmatprep.subr.mxu0 0.0
    %1965 = vmatpush1.msra.mxu0 0.0
    %1966 = vmatprep.subr.mxu0 0.0
    %1967 = vmatpush1.msra.mxu0 0.0
    %1968 = vmatprep.subr.mxu0 0.0
    %1969 = vmatpush1.msra.mxu0 0.0
    %1970 = vmatprep.subr.mxu0 0.0
    %1971 = vmatpush1.msra.mxu0 0.0
    %1972 = vmatprep.subr.mxu0 0.0
    %1973 = vmatpush1.msra.mxu0 0.0
    %1974 = vmatprep.subr.mxu0 0.0
    %1975 = vmatpush1.msra.mxu0 0.0
    %1976 = vmatprep.subr.mxu0 0.0
    %1977 = vmatpush1.msra.mxu0 0.0
    %1978 = vmatprep.subr.mxu0 0.0
    %1979 = vmatpush1.msra.mxu0 0.0
    %1980 = vmatprep.subr.mxu0 0.0
    %1981 = vmatpush1.msra.mxu0 0.0
    %1982 = vmatprep.subr.mxu0 0.0
    %1983 = vmatpush1.msra.mxu0 0.0
    %1984 = vmatprep.subr.mxu0 0.0
    %1985 = vmatpush1.msra.mxu0 0.0
    %1986 = vmatprep.subr.mxu0 0.0
    %1987 = vmatpush1.msra.mxu0 0.0
    %1988 = vmatprep.subr.mxu0 0.0
    %1989 = vmatpush1.msra.mxu0 0.0
    %1990 = vmatprep.subr.mxu0 0.0
    %1991 = vmatpush1.msra.mxu0 0.0
    %1992 = vmatprep.subr.mxu0 0.0
    %1993 = vmatpush1.msra.mxu0 0.0
    %1994 = vmatprep.subr.mxu0 0.0
    %1995 = vmatpush1.msra.mxu0 0.0
    %1996 = vmatprep.subr.mxu0 0.0
    %1997 = vmatpush1.msra.mxu0 0.0
    %1998 = vmatprep.subr.mxu0 0.0
    %1999 = vmatpush1.msra.mxu0 0.0
    %2000 = vmatprep.subr.mxu0 0.0
    %2001 = vmatpush1.msra.mxu0 0.0
    %2002 = vmatprep.subr.mxu0 0.0
    %2003 = vmatpush1.msra.mxu0 0.0
    %2004 = vmatprep.mubr.f32.mxu0 0.0
    %2005 = vmatmul.mubr.f32.gmra.mrb[0].mxu0 %v1642
    %v2006 = vpop.f32.mrb[0].mxu0
    %v2007 = vadd.f32 %v1256, %v2006
    %v2008 = vpop.f32.mrb[0].mxu0
    %2009 = vdwg.mxu0
    %v2010 = vmul.f32 %v1721, %v2007
    %v2011 = vadd.f32 %v1937, %v2010
    %v2012 = vtanh.pop %v2011
    %v2013 = vsub.f32 1.0, %v1869
    %v2014 = vmul.f32 %v2013, %v2012
    %v2015 = vmul.f32 %v1869, %v1334
    %v2016 = vadd.f32 %v2014, %v2015
    %2017 = vmatprep.subr.mxu0 0.0
    %2018 = vmatpush1.msra.mxu0 %v541
    %2019 = vmatprep.subr.mxu0 0.0
    %2020 = vmatpush1.msra.mxu0 %v542
    %2021 = vmatprep.subr.mxu0 0.0
    %2022 = vmatpush1.msra.mxu0 %v543
    %2023 = vmatprep.subr.mxu0 0.0
    %2024 = vmatpush1.msra.mxu0 %v544
    %2025 = vmatprep.subr.mxu0 0.0
    %2026 = vmatpush1.msra.mxu0 0.0
    %2027 = vmatprep.subr.mxu0 0.0
    %2028 = vmatpush1.msra.mxu0 0.0
    %2029 = vmatprep.subr.mxu0 0.0
    %2030 = vmatpush1.msra.mxu0 0.0
    %2031 = vmatprep.subr.mxu0 0.0
    %2032 = vmatpush1.msra.mxu0 0.0
    %2033 = vmatprep.subr.mxu0 0.0
    %2034 = vmatpush1.msra.mxu0 0.0
    %2035 = vmatprep.subr.mxu0 0.0
    %2036 = vmatpush1.msra.mxu0 0.0
    %2037 = vmatprep.subr.mxu0 0.0
    %2038 = vmatpush1.msra.mxu0 0.0
    %2039 = vmatprep.subr.mxu0 0.0
    %2040 = vmatpush1.msra.mxu0 0.0
    %2041 = vmatprep.subr.mxu0 0.0
    %2042 = vmatpush1.msra.mxu0 0.0
    %2043 = vmatprep.subr.mxu0 0.0
    %2044 = vmatpush1.msra.mxu0 0.0
    %2045 = vmatprep.subr.mxu0 0.0
    %2046 = vmatpush1.msra.mxu0 0.0
    %2047 = vmatprep.subr.mxu0 0.0
    %2048 = vmatpush1.msra.mxu0 0.0
    %2049 = vmatprep.subr.mxu0 0.0
    %2050 = vmatpush1.msra.mxu0 0.0
    %2051 = vmatprep.subr.mxu0 0.0
    %2052 = vmatpush1.msra.mxu0 0.0
    %2053 = vmatprep.subr.mxu0 0.0
    %2054 = vmatpush1.msra.mxu0 0.0
    %2055 = vmatprep.subr.mxu0 0.0
    %2056 = vmatpush1.msra.mxu0 0.0
    %2057 = vmatprep.subr.mxu0 0.0
    %2058 = vmatpush1.msra.mxu0 0.0
    %2059 = vmatprep.subr.mxu0 0.0
    %2060 = vmatpush1.msra.mxu0 0.0
    %2061 = vmatprep.subr.mxu0 0.0
    %2062 = vmatpush1.msra.mxu0 0.0
    %2063 = vmatprep.subr.mxu0 0.0
    %2064 = vmatpush1.msra.mxu0 0.0
    %2065 = vmatprep.subr.mxu0 0.0
    %2066 = vmatpush1.msra.mxu0 0.0
    %2067 = vmatprep.subr.mxu0 0.0
    %2068 = vmatpush1.msra.mxu0 0.0
    %2069 = vmatprep.subr.mxu0 0.0
    %2070 = vmatpush1.msra.mxu0 0.0
    %2071 = vmatprep.subr.mxu0 0.0
    %2072 = vmatpush1.msra.mxu0 0.0
    %2073 = vmatprep.subr.mxu0 0.0
    %2074 = vmatpush1.msra.mxu0 0.0
    %2075 = vmatprep.subr.mxu0 0.0
    %2076 = vmatpush1.msra.mxu0 0.0
    %2077 = vmatprep.subr.mxu0 0.0
    %2078 = vmatpush1.msra.mxu0 0.0
    %2079 = vmatprep.subr.mxu0 0.0
    %2080 = vmatpush1.msra.mxu0 0.0
    %2081 = vmatprep.mubr.f32.mxu0 0.0
    %2082 = vmatmul.mubr.f32.gmra.mrb[0].mxu0 %v1569
    %v2083 = vpop.f32.mrb[0].mxu0
    %v2084 = vadd.f32 0.0, %v2083
    %v2085 = vpop.f32.mrb[0].mxu0
    %2086 = vdwg.mxu0
    %v2087 = vadd.f32 %v277, %v2084
    %v2088 = vadd.f32 %v2087, %v677
    %v2089 = vxor.u32 %v2088, 2147483648
    %v2090 = vmul.f32 %v2089, 1.442695
    %v2091 = vpow.pop %v2090
    %v2092 = vadd.f32 %v2091, 1.0
    %v2093 = vrcp.pop %v2092
    %v2094 = vmul.f32 1.0, %v2093
    %2095 = vmatprep.subr.mxu0 0.0
    %2096 = vmatpush1.msra.mxu0 %v546
    %2097 = vmatprep.subr.mxu0 0.0
    %2098 = vmatpush1.msra.mxu0 %v547
    %2099 = vmatprep.subr.mxu0 0.0
    %2100 = vmatpush1.msra.mxu0 %v548
    %2101 = vmatprep.subr.mxu0 0.0
    %2102 = vmatpush1.msra.mxu0 %v549
    %2103 = vmatprep.subr.mxu0 0.0
    %2104 = vmatpush1.msra.mxu0 0.0
    %2105 = vmatprep.subr.mxu0 0.0
    %2106 = vmatpush1.msra.mxu0 0.0
    %2107 = vmatprep.subr.mxu0 0.0
    %2108 = vmatpush1.msra.mxu0 0.0
    %2109 = vmatprep.subr.mxu0 0.0
    %2110 = vmatpush1.msra.mxu0 0.0
    %2111 = vmatprep.subr.mxu0 0.0
    %2112 = vmatpush1.msra.mxu0 0.0
    %2113 = vmatprep.subr.mxu0 0.0
    %2114 = vmatpush1.msra.mxu0 0.0
    %2115 = vmatprep.subr.mxu0 0.0
    %2116 = vmatpush1.msra.mxu0 0.0
    %2117 = vmatprep.subr.mxu0 0.0
    %2118 = vmatpush1.msra.mxu0 0.0
    %2119 = vmatprep.subr.mxu0 0.0
    %2120 = vmatpush1.msra.mxu0 0.0
    %2121 = vmatprep.subr.mxu0 0.0
    %2122 = vmatpush1.msra.mxu0 0.0
    %2123 = vmatprep.subr.mxu0 0.0
    %2124 = vmatpush1.msra.mxu0 0.0
    %2125 = vmatprep.subr.mxu0 0.0
    %2126 = vmatpush1.msra.mxu0 0.0
    %2127 = vmatprep.subr.mxu0 0.0
    %2128 = vmatpush1.msra.mxu0 0.0
    %2129 = vmatprep.subr.mxu0 0.0
    %2130 = vmatpush1.msra.mxu0 0.0
    %2131 = vmatprep.subr.mxu0 0.0
    %2132 = vmatpush1.msra.mxu0 0.0
    %2133 = vmatprep.subr.mxu0 0.0
    %2134 = vmatpush1.msra.mxu0 0.0
    %2135 = vmatprep.subr.mxu0 0.0
    %2136 = vmatpush1.msra.mxu0 0.0
    %2137 = vmatprep.subr.mxu0 0.0
    %2138 = vmatpush1.msra.mxu0 0.0
    %2139 = vmatprep.subr.mxu0 0.0
    %2140 = vmatpush1.msra.mxu0 0.0
    %2141 = vmatprep.subr.mxu0 0.0
    %2142 = vmatpush1.msra.mxu0 0.0
    %2143 = vmatprep.subr.mxu0 0.0
    %2144 = vmatpush1.msra.mxu0 0.0
    %2145 = vmatprep.subr.mxu0 0.0
    %2146 = vmatpush1.msra.mxu0 0.0
    %2147 = vmatprep.subr.mxu0 0.0
    %2148 = vmatpush1.msra.mxu0 0.0
    %2149 = vmatprep.subr.mxu0 0.0
    %2150 = vmatpush1.msra.mxu0 0.0
    %2151 = vmatprep.subr.mxu0 0.0
    %2152 = vmatpush1.msra.mxu0 0.0
    %2153 = vmatprep.subr.mxu0 0.0
    %2154 = vmatpush1.msra.mxu0 0.0
    %2155 = vmatprep.subr.mxu0 0.0
    %2156 = vmatpush1.msra.mxu0 0.0
    %2157 = vmatprep.subr.mxu0 0.0
    %2158 = vmatpush1.msra.mxu0 0.0
    %2159 = vmatprep.mubr.f32.mxu0 0.0
    %2160 = vmatmul.mubr.f32.gmra.mrb[0].mxu0 %v1569
    %v2161 = vpop.f32.mrb[0].mxu0
    %v2162 = vadd.f32 0.0, %v2161
    %v2163 = vpop.f32.mrb[0].mxu0
    %2164 = vdwg.mxu0
    %v2165 = vadd.f32 %v395, %v2162
    %v2166 = vadd.f32 %v2165, %v761
    %v2167 = vxor.u32 %v2166, 2147483648
    %v2168 = vmul.f32 %v2167, 1.442695
    %v2169 = vpow.pop %v2168
    %v2170 = vadd.f32 %v2169, 1.0
    %v2171 = vrcp.pop %v2170
    %v2172 = vmul.f32 1.0, %v2171
    %2173 = vmatprep.subr.mxu0 0.0
    %2174 = vmatpush1.msra.mxu0 %v551
    %2175 = vmatprep.subr.mxu0 0.0
    %2176 = vmatpush1.msra.mxu0 %v552
    %2177 = vmatprep.subr.mxu0 0.0
    %2178 = vmatpush1.msra.mxu0 %v553
    %2179 = vmatprep.subr.mxu0 0.0
    %2180 = vmatpush1.msra.mxu0 %v554
    %2181 = vmatprep.subr.mxu0 0.0
    %2182 = vmatpush1.msra.mxu0 0.0
    %2183 = vmatprep.subr.mxu0 0.0
    %2184 = vmatpush1.msra.mxu0 0.0
    %2185 = vmatprep.subr.mxu0 0.0
    %2186 = vmatpush1.msra.mxu0 0.0
    %2187 = vmatprep.subr.mxu0 0.0
    %2188 = vmatpush1.msra.mxu0 0.0
    %2189 = vmatprep.subr.mxu0 0.0
    %2190 = vmatpush1.msra.mxu0 0.0
    %2191 = vmatprep.subr.mxu0 0.0
    %2192 = vmatpush1.msra.mxu0 0.0
    %2193 = vmatprep.subr.mxu0 0.0
    %2194 = vmatpush1.msra.mxu0 0.0
    %2195 = vmatprep.subr.mxu0 0.0
    %2196 = vmatpush1.msra.mxu0 0.0
    %2197 = vmatprep.subr.mxu0 0.0
    %2198 = vmatpush1.msra.mxu0 0.0
    %2199 = vmatprep.subr.mxu0 0.0
    %2200 = vmatpush1.msra.mxu0 0.0
    %2201 = vmatprep.subr.mxu0 0.0
    %2202 = vmatpush1.msra.mxu0 0.0
    %2203 = vmatprep.subr.mxu0 0.0
    %2204 = vmatpush1.msra.mxu0 0.0
    %2205 = vmatprep.subr.mxu0 0.0
    %2206 = vmatpush1.msra.mxu0 0.0
    %2207 = vmatprep.subr.mxu0 0.0
    %2208 = vmatpush1.msra.mxu0 0.0
    %2209 = vmatprep.subr.mxu0 0.0
    %2210 = vmatpush1.msra.mxu0 0.0
    %2211 = vmatprep.subr.mxu0 0.0
    %2212 = vmatpush1.msra.mxu0 0.0
    %2213 = vmatprep.subr.mxu0 0.0
    %2214 = vmatpush1.msra.mxu0 0.0
    %2215 = vmatprep.subr.mxu0 0.0
    %2216 = vmatpush1.msra.mxu0 0.0
    %2217 = vmatprep.subr.mxu0 0.0
    %2218 = vmatpush1.msra.mxu0 0.0
    %2219 = vmatprep.subr.mxu0 0.0
    %2220 = vmatpush1.msra.mxu0 0.0
    %2221 = vmatprep.subr.mxu0 0.0
    %2222 = vmatpush1.msra.mxu0 0.0
    %2223 = vmatprep.subr.mxu0 0.0
    %2224 = vmatpush1.msra.mxu0 0.0
    %2225 = vmatprep.subr.mxu0 0.0
    %2226 = vmatpush1.msra.mxu0 0.0
    %2227 = vmatprep.subr.mxu0 0.0
    %2228 = vmatpush1.msra.mxu0 0.0
    %2229 = vmatprep.subr.mxu0 0.0
    %2230 = vmatpush1.msra.mxu0 0.0
    %2231 = vmatprep.subr.mxu0 0.0
    %2232 = vmatpush1.msra.mxu0 0.0
    %2233 = vmatprep.subr.mxu0 0.0
    %2234 = vmatpush1.msra.mxu0 0.0
    %2235 = vmatprep.subr.mxu0 0.0
    %2236 = vmatpush1.msra.mxu0 0.0
    %2237 = vmatprep.mubr.f32.mxu0 0.0
    %2238 = vmatmul.mubr.f32.gmra.mrb[0].mxu0 %v1569
    %v2239 = vpop.f32.mrb[0].mxu0
    %v2240 = vadd.f32 %v774, %v2239
    %v2241 = vpop.f32.mrb[0].mxu0
    %2242 = vdwg.mxu0
    %v2243 = vmul.f32 %v2094, %v2240
    %v2244 = vadd.f32 %v513, %v2243
    %v2245 = vtanh.pop %v2244
    %v2246 = vsub.f32 1.0, %v2172
    %v2247 = vmul.f32 %v2246, %v2245
    %v2248 = vmul.f32 %v2172, %v1567
    %v2249 = vadd.f32 %v2247, %v2248
    %v2251 = vsel %vm598, %v2249, 0
    %2253 = vmatprep.subr.mxu0 0.0
    %2254 = vmatpush1.msra.mxu0 %v560
    %2255 = vmatprep.subr.mxu0 0.0
    %2256 = vmatpush1.msra.mxu0 %v561
    %2257 = vmatprep.subr.mxu0 0.0
    %2258 = vmatpush1.msra.mxu0 %v562
    %2259 = vmatprep.subr.mxu0 0.0
    %2260 = vmatpush1.msra.mxu0 %v563
    %2261 = vmatprep.subr.mxu0 0.0
    %2262 = vmatpush1.msra.mxu0 0.0
    %2263 = vmatprep.subr.mxu0 0.0
    %2264 = vmatpush1.msra.mxu0 0.0
    %2265 = vmatprep.subr.mxu0 0.0
    %2266 = vmatpush1.msra.mxu0 0.0
    %2267 = vmatprep.subr.mxu0 0.0
    %2268 = vmatpush1.msra.mxu0 0.0
    %2269 = vmatprep.subr.mxu0 0.0
    %2270 = vmatpush1.msra.mxu0 0.0
    %2271 = vmatprep.subr.mxu0 0.0
    %2272 = vmatpush1.msra.mxu0 0.0
    %2273 = vmatprep.subr.mxu0 0.0
    %2274 = vmatpush1.msra.mxu0 0.0
    %2275 = vmatprep.subr.mxu0 0.0
    %2276 = vmatpush1.msra.mxu0 0.0
    %2277 = vmatprep.subr.mxu0 0.0
    %2278 = vmatpush1.msra.mxu0 0.0
    %2279 = vmatprep.subr.mxu0 0.0
    %2280 = vmatpush1.msra.mxu0 0.0
    %2281 = vmatprep.subr.mxu0 0.0
    %2282 = vmatpush1.msra.mxu0 0.0
    %2283 = vmatprep.subr.mxu0 0.0
    %2284 = vmatpush1.msra.mxu0 0.0
    %2285 = vmatprep.subr.mxu0 0.0
    %2286 = vmatpush1.msra.mxu0 0.0
    %2287 = vmatprep.subr.mxu0 0.0
    %2288 = vmatpush1.msra.mxu0 0.0
    %2289 = vmatprep.subr.mxu0 0.0
    %2290 = vmatpush1.msra.mxu0 0.0
    %2291 = vmatprep.subr.mxu0 0.0
    %2292 = vmatpush1.msra.mxu0 0.0
    %2293 = vmatprep.subr.mxu0 0.0
    %2294 = vmatpush1.msra.mxu0 0.0
    %2295 = vmatprep.subr.mxu0 0.0
    %2296 = vmatpush1.msra.mxu0 0.0
    %2297 = vmatprep.subr.mxu0 0.0
    %2298 = vmatpush1.msra.mxu0 0.0
    %2299 = vmatprep.subr.mxu0 0.0
    %2300 = vmatpush1.msra.mxu0 0.0
    %2301 = vmatprep.subr.mxu0 0.0
    %2302 = vmatpush1.msra.mxu0 0.0
    %2303 = vmatprep.subr.mxu0 0.0
    %2304 = vmatpush1.msra.mxu0 0.0
    %2305 = vmatprep.subr.mxu0 0.0
    %2306 = vmatpush1.msra.mxu0 0.0
    %2307 = vmatprep.subr.mxu0 0.0
    %2308 = vmatpush1.msra.mxu0 0.0
    %2309 = vmatprep.subr.mxu0 0.0
    %2310 = vmatpush1.msra.mxu0 0.0
    %2311 = vmatprep.subr.mxu0 0.0
    %2312 = vmatpush1.msra.mxu0 0.0
    %2313 = vmatprep.subr.mxu0 0.0
    %2314 = vmatpush1.msra.mxu0 0.0
    %2315 = vmatprep.subr.mxu0 0.0
    %2316 = vmatpush1.msra.mxu0 0.0
    %2317 = vmatprep.mubr.f32.mxu0 0.0
    %2318 = vmatmul.mubr.f32.gmra.mrb[0].mxu0 %v2251
    %v2319 = vpop.f32.mrb[0].mxu0
    %v2320 = vadd.f32 %v857, %v2319
    %v2321 = vpop.f32.mrb[0].mxu0
    %2322 = vdwg.mxu0
    %v2324 = vsel %vm598, %v2016, 0
    %2326 = vmatprep.subr.mxu0 0.0
    %2327 = vmatpush1.msra.mxu0 %v579
    %2328 = vmatprep.subr.mxu0 0.0
    %2329 = vmatpush1.msra.mxu0 %v580
    %2330 = vmatprep.subr.mxu0 0.0
    %2331 = vmatpush1.msra.mxu0 %v581
    %2332 = vmatprep.subr.mxu0 0.0
    %2333 = vmatpush1.msra.mxu0 %v582
    %2334 = vmatprep.subr.mxu0 0.0
    %2335 = vmatpush1.msra.mxu0 0.0
    %2336 = vmatprep.subr.mxu0 0.0
    %2337 = vmatpush1.msra.mxu0 0.0
    %2338 = vmatprep.subr.mxu0 0.0
    %2339 = vmatpush1.msra.mxu0 0.0
    %2340 = vmatprep.subr.mxu0 0.0
    %2341 = vmatpush1.msra.mxu0 0.0
    %2342 = vmatprep.subr.mxu0 0.0
    %2343 = vmatpush1.msra.mxu0 0.0
    %2344 = vmatprep.subr.mxu0 0.0
    %2345 = vmatpush1.msra.mxu0 0.0
    %2346 = vmatprep.subr.mxu0 0.0
    %2347 = vmatpush1.msra.mxu0 0.0
    %2348 = vmatprep.subr.mxu0 0.0
    %2349 = vmatpush1.msra.mxu0 0.0
    %2350 = vmatprep.subr.mxu0 0.0
    %2351 = vmatpush1.msra.mxu0 0.0
    %2352 = vmatprep.subr.mxu0 0.0
    %2353 = vmatpush1.msra.mxu0 0.0
    %2354 = vmatprep.subr.mxu0 0.0
    %2355 = vmatpush1.msra.mxu0 0.0
    %2356 = vmatprep.subr.mxu0 0.0
    %2357 = vmatpush1.msra.mxu0 0.0
    %2358 = vmatprep.subr.mxu0 0.0
    %2359 = vmatpush1.msra.mxu0 0.0
    %2360 = vmatprep.subr.mxu0 0.0
    %2361 = vmatpush1.msra.mxu0 0.0
    %2362 = vmatprep.subr.mxu0 0.0
    %2363 = vmatpush1.msra.mxu0 0.0
    %2364 = vmatprep.subr.mxu0 0.0
    %2365 = vmatpush1.msra.mxu0 0.0
    %2366 = vmatprep.subr.mxu0 0.0
    %2367 = vmatpush1.msra.mxu0 0.0
    %2368 = vmatprep.subr.mxu0 0.0
    %2369 = vmatpush1.msra.mxu0 0.0
    %2370 = vmatprep.subr.mxu0 0.0
    %2371 = vmatpush1.msra.mxu0 0.0
    %2372 = vmatprep.subr.mxu0 0.0
    %2373 = vmatpush1.msra.mxu0 0.0
    %2374 = vmatprep.subr.mxu0 0.0
    %2375 = vmatpush1.msra.mxu0 0.0
    %2376 = vmatprep.subr.mxu0 0.0
    %2377 = vmatpush1.msra.mxu0 0.0
    %2378 = vmatprep.subr.mxu0 0.0
    %2379 = vmatpush1.msra.mxu0 0.0
    %2380 = vmatprep.subr.mxu0 0.0
    %2381 = vmatpush1.msra.mxu0 0.0
    %2382 = vmatprep.subr.mxu0 0.0
    %2383 = vmatpush1.msra.mxu0 0.0
    %2384 = vmatprep.subr.mxu0 0.0
    %2385 = vmatpush1.msra.mxu0 0.0
    %2386 = vmatprep.subr.mxu0 0.0
    %2387 = vmatpush1.msra.mxu0 0.0
    %2388 = vmatprep.subr.mxu0 0.0
    %2389 = vmatpush1.msra.mxu0 0.0
    %2390 = vmatprep.mubr.f32.mxu0 0.0
    %2391 = vmatmul.mubr.f32.gmra.mrb[0].mxu0 %v2324
    %v2392 = vpop.f32.mrb[0].mxu0
    %v2393 = vadd.f32 0.0, %v2392
    %v2394 = vpop.f32.mrb[0].mxu0
    %2395 = vdwg.mxu0
    %v2396 = vadd.f32 %v2320, %v2393
    %v2397 = vadd.f32 %v2396, %v1007
    %v2398 = vxor.u32 %v2397, 2147483648
    %v2399 = vmul.f32 %v2398, 1.442695
    %v2400 = vpow.pop %v2399
    %v2401 = vadd.f32 %v2400, 1.0
    %v2402 = vrcp.pop %v2401
    %v2403 = vmul.f32 1.0, %v2402
    %2404 = vmatprep.subr.mxu0 0.0
    %2405 = vmatpush1.msra.mxu0 %v565
    %2406 = vmatprep.subr.mxu0 0.0
    %2407 = vmatpush1.msra.mxu0 %v566
    %2408 = vmatprep.subr.mxu0 0.0
    %2409 = vmatpush1.msra.mxu0 %v567
    %2410 = vmatprep.subr.mxu0 0.0
    %2411 = vmatpush1.msra.mxu0 %v568
    %2412 = vmatprep.subr.mxu0 0.0
    %2413 = vmatpush1.msra.mxu0 0.0
    %2414 = vmatprep.subr.mxu0 0.0
    %2415 = vmatpush1.msra.mxu0 0.0
    %2416 = vmatprep.subr.mxu0 0.0
    %2417 = vmatpush1.msra.mxu0 0.0
    %2418 = vmatprep.subr.mxu0 0.0
    %2419 = vmatpush1.msra.mxu0 0.0
    %2420 = vmatprep.subr.mxu0 0.0
    %2421 = vmatpush1.msra.mxu0 0.0
    %2422 = vmatprep.subr.mxu0 0.0
    %2423 = vmatpush1.msra.mxu0 0.0
    %2424 = vmatprep.subr.mxu0 0.0
    %2425 = vmatpush1.msra.mxu0 0.0
    %2426 = vmatprep.subr.mxu0 0.0
    %2427 = vmatpush1.msra.mxu0 0.0
    %2428 = vmatprep.subr.mxu0 0.0
    %2429 = vmatpush1.msra.mxu0 0.0
    %2430 = vmatprep.subr.mxu0 0.0
    %2431 = vmatpush1.msra.mxu0 0.0
    %2432 = vmatprep.subr.mxu0 0.0
    %2433 = vmatpush1.msra.mxu0 0.0
    %2434 = vmatprep.subr.mxu0 0.0
    %2435 = vmatpush1.msra.mxu0 0.0
    %2436 = vmatprep.subr.mxu0 0.0
    %2437 = vmatpush1.msra.mxu0 0.0
    %2438 = vmatprep.subr.mxu0 0.0
    %2439 = vmatpush1.msra.mxu0 0.0
    %2440 = vmatprep.subr.mxu0 0.0
    %2441 = vmatpush1.msra.mxu0 0.0
    %2442 = vmatprep.subr.mxu0 0.0
    %2443 = vmatpush1.msra.mxu0 0.0
    %2444 = vmatprep.subr.mxu0 0.0
    %2445 = vmatpush1.msra.mxu0 0.0
    %2446 = vmatprep.subr.mxu0 0.0
    %2447 = vmatpush1.msra.mxu0 0.0
    %2448 = vmatprep.subr.mxu0 0.0
    %2449 = vmatpush1.msra.mxu0 0.0
    %2450 = vmatprep.subr.mxu0 0.0
    %2451 = vmatpush1.msra.mxu0 0.0
    %2452 = vmatprep.subr.mxu0 0.0
    %2453 = vmatpush1.msra.mxu0 0.0
    %2454 = vmatprep.subr.mxu0 0.0
    %2455 = vmatpush1.msra.mxu0 0.0
    %2456 = vmatprep.subr.mxu0 0.0
    %2457 = vmatpush1.msra.mxu0 0.0
    %2458 = vmatprep.subr.mxu0 0.0
    %2459 = vmatpush1.msra.mxu0 0.0
    %2460 = vmatprep.subr.mxu0 0.0
    %2461 = vmatpush1.msra.mxu0 0.0
    %2462 = vmatprep.subr.mxu0 0.0
    %2463 = vmatpush1.msra.mxu0 0.0
    %2464 = vmatprep.subr.mxu0 0.0
    %2465 = vmatpush1.msra.mxu0 0.0
    %2466 = vmatprep.subr.mxu0 0.0
    %2467 = vmatpush1.msra.mxu0 0.0
    %2468 = vmatprep.mubr.f32.mxu0 0.0
    %2469 = vmatmul.mubr.f32.gmra.mrb[0].mxu0 %v2251
    %v2470 = vpop.f32.mrb[0].mxu0
    %v2471 = vadd.f32 %v1020, %v2470
    %v2472 = vpop.f32.mrb[0].mxu0
    %2473 = vdwg.mxu0
    %2474 = vmatprep.subr.mxu0 0.0
    %2475 = vmatpush1.msra.mxu0 %v584
    %2476 = vmatprep.subr.mxu0 0.0
    %2477 = vmatpush1.msra.mxu0 %v585
    %2478 = vmatprep.subr.mxu0 0.0
    %2479 = vmatpush1.msra.mxu0 %v586
    %2480 = vmatprep.subr.mxu0 0.0
    %2481 = vmatpush1.msra.mxu0 %v587
    %2482 = vmatprep.subr.mxu0 0.0
    %2483 = vmatpush1.msra.mxu0 0.0
    %2484 = vmatprep.subr.mxu0 0.0
    %2485 = vmatpush1.msra.mxu0 0.0
    %2486 = vmatprep.subr.mxu0 0.0
    %2487 = vmatpush1.msra.mxu0 0.0
    %2488 = vmatprep.subr.mxu0 0.0
    %2489 = vmatpush1.msra.mxu0 0.0
    %2490 = vmatprep.subr.mxu0 0.0
    %2491 = vmatpush1.msra.mxu0 0.0
    %2492 = vmatprep.subr.mxu0 0.0
    %2493 = vmatpush1.msra.mxu0 0.0
    %2494 = vmatprep.subr.mxu0 0.0
    %2495 = vmatpush1.msra.mxu0 0.0
    %2496 = vmatprep.subr.mxu0 0.0
    %2497 = vmatpush1.msra.mxu0 0.0
    %2498 = vmatprep.subr.mxu0 0.0
    %2499 = vmatpush1.msra.mxu0 0.0
    %2500 = vmatprep.subr.mxu0 0.0
    %2501 = vmatpush1.msra.mxu0 0.0
    %2502 = vmatprep.subr.mxu0 0.0
    %2503 = vmatpush1.msra.mxu0 0.0
    %2504 = vmatprep.subr.mxu0 0.0
    %2505 = vmatpush1.msra.mxu0 0.0
    %2506 = vmatprep.subr.mxu0 0.0
    %2507 = vmatpush1.msra.mxu0 0.0
    %2508 = vmatprep.subr.mxu0 0.0
    %2509 = vmatpush1.msra.mxu0 0.0
    %2510 = vmatprep.subr.mxu0 0.0
    %2511 = vmatpush1.msra.mxu0 0.0
    %2512 = vmatprep.subr.mxu0 0.0
    %2513 = vmatpush1.msra.mxu0 0.0
    %2514 = vmatprep.subr.mxu0 0.0
    %2515 = vmatpush1.msra.mxu0 0.0
    %2516 = vmatprep.subr.mxu0 0.0
    %2517 = vmatpush1.msra.mxu0 0.0
    %2518 = vmatprep.subr.mxu0 0.0
    %2519 = vmatpush1.msra.mxu0 0.0
    %2520 = vmatprep.subr.mxu0 0.0
    %2521 = vmatpush1.msra.mxu0 0.0
    %2522 = vmatprep.subr.mxu0 0.0
    %2523 = vmatpush1.msra.mxu0 0.0
    %2524 = vmatprep.subr.mxu0 0.0
    %2525 = vmatpush1.msra.mxu0 0.0
    %2526 = vmatprep.subr.mxu0 0.0
    %2527 = vmatpush1.msra.mxu0 0.0
    %2528 = vmatprep.subr.mxu0 0.0
    %2529 = vmatpush1.msra.mxu0 0.0
    %2530 = vmatprep.subr.mxu0 0.0
    %2531 = vmatpush1.msra.mxu0 0.0
    %2532 = vmatprep.subr.mxu0 0.0
    %2533 = vmatpush1.msra.mxu0 0.0
    %2534 = vmatprep.subr.mxu0 0.0
    %2535 = vmatpush1.msra.mxu0 0.0
    %2536 = vmatprep.subr.mxu0 0.0
    %2537 = vmatpush1.msra.mxu0 0.0
    %2538 = vmatprep.mubr.f32.mxu0 0.0
    %2539 = vmatmul.mubr.f32.gmra.mrb[0].mxu0 %v2324
    %v2540 = vpop.f32.mrb[0].mxu0
    %v2541 = vadd.f32 0.0, %v2540
    %v2542 = vpop.f32.mrb[0].mxu0
    %2543 = vdwg.mxu0
    %v2544 = vadd.f32 %v2471, %v2541
    %v2545 = vadd.f32 %v2544, %v1167
    %v2546 = vxor.u32 %v2545, 2147483648
    %v2547 = vmul.f32 %v2546, 1.442695
    %v2548 = vpow.pop %v2547
    %v2549 = vadd.f32 %v2548, 1.0
    %v2550 = vrcp.pop %v2549
    %v2551 = vmul.f32 1.0, %v2550
    %2552 = vmatprep.subr.mxu0 0.0
    %2553 = vmatpush1.msra.mxu0 %v570
    %2554 = vmatprep.subr.mxu0 0.0
    %2555 = vmatpush1.msra.mxu0 %v571
    %2556 = vmatprep.subr.mxu0 0.0
    %2557 = vmatpush1.msra.mxu0 %v572
    %2558 = vmatprep.subr.mxu0 0.0
    %2559 = vmatpush1.msra.mxu0 %v573
    %2560 = vmatprep.subr.mxu0 0.0
    %2561 = vmatpush1.msra.mxu0 0.0
    %2562 = vmatprep.subr.mxu0 0.0
    %2563 = vmatpush1.msra.mxu0 0.0
    %2564 = vmatprep.subr.mxu0 0.0
    %2565 = vmatpush1.msra.mxu0 0.0
    %2566 = vmatprep.subr.mxu0 0.0
    %2567 = vmatpush1.msra.mxu0 0.0
    %2568 = vmatprep.subr.mxu0 0.0
    %2569 = vmatpush1.msra.mxu0 0.0
    %2570 = vmatprep.subr.mxu0 0.0
    %2571 = vmatpush1.msra.mxu0 0.0
    %2572 = vmatprep.subr.mxu0 0.0
    %2573 = vmatpush1.msra.mxu0 0.0
    %2574 = vmatprep.subr.mxu0 0.0
    %2575 = vmatpush1.msra.mxu0 0.0
    %2576 = vmatprep.subr.mxu0 0.0
    %2577 = vmatpush1.msra.mxu0 0.0
    %2578 = vmatprep.subr.mxu0 0.0
    %2579 = vmatpush1.msra.mxu0 0.0
    %2580 = vmatprep.subr.mxu0 0.0
    %2581 = vmatpush1.msra.mxu0 0.0
    %2582 = vmatprep.subr.mxu0 0.0
    %2583 = vmatpush1.msra.mxu0 0.0
    %2584 = vmatprep.subr.mxu0 0.0
    %2585 = vmatpush1.msra.mxu0 0.0
    %2586 = vmatprep.subr.mxu0 0.0
    %2587 = vmatpush1.msra.mxu0 0.0
    %2588 = vmatprep.subr.mxu0 0.0
    %2589 = vmatpush1.msra.mxu0 0.0
    %2590 = vmatprep.subr.mxu0 0.0
    %2591 = vmatpush1.msra.mxu0 0.0
    %2592 = vmatprep.subr.mxu0 0.0
    %2593 = vmatpush1.msra.mxu0 0.0
    %2594 = vmatprep.subr.mxu0 0.0
    %2595 = vmatpush1.msra.mxu0 0.0
    %2596 = vmatprep.subr.mxu0 0.0
    %2597 = vmatpush1.msra.mxu0 0.0
    %2598 = vmatprep.subr.mxu0 0.0
    %2599 = vmatpush1.msra.mxu0 0.0
    %2600 = vmatprep.subr.mxu0 0.0
    %2601 = vmatpush1.msra.mxu0 0.0
    %2602 = vmatprep.subr.mxu0 0.0
    %2603 = vmatpush1.msra.mxu0 0.0
    %2604 = vmatprep.subr.mxu0 0.0
    %2605 = vmatpush1.msra.mxu0 0.0
    %2606 = vmatprep.subr.mxu0 0.0
    %2607 = vmatpush1.msra.mxu0 0.0
    %2608 = vmatprep.subr.mxu0 0.0
    %2609 = vmatpush1.msra.mxu0 0.0
    %2610 = vmatprep.subr.mxu0 0.0
    %2611 = vmatpush1.msra.mxu0 0.0
    %2612 = vmatprep.subr.mxu0 0.0
    %2613 = vmatpush1.msra.mxu0 0.0
    %2614 = vmatprep.subr.mxu0 0.0
    %2615 = vmatpush1.msra.mxu0 0.0
    %2616 = vmatprep.mubr.f32.mxu0 0.0
    %2617 = vmatmul.mubr.f32.gmra.mrb[0].mxu0 %v2251
    %v2618 = vpop.f32.mrb[0].mxu0
    %v2619 = vadd.f32 %v1180, %v2618
    %v2620 = vpop.f32.mrb[0].mxu0
    %2621 = vdwg.mxu0
    %2622 = vmatprep.subr.mxu0 0.0
    %2623 = vmatpush1.msra.mxu0 %v589
    %2624 = vmatprep.subr.mxu0 0.0
    %2625 = vmatpush1.msra.mxu0 %v590
    %2626 = vmatprep.subr.mxu0 0.0
    %2627 = vmatpush1.msra.mxu0 %v591
    %2628 = vmatprep.subr.mxu0 0.0
    %2629 = vmatpush1.msra.mxu0 %v592
    %2630 = vmatprep.subr.mxu0 0.0
    %2631 = vmatpush1.msra.mxu0 0.0
    %2632 = vmatprep.subr.mxu0 0.0
    %2633 = vmatpush1.msra.mxu0 0.0
    %2634 = vmatprep.subr.mxu0 0.0
    %2635 = vmatpush1.msra.mxu0 0.0
    %2636 = vmatprep.subr.mxu0 0.0
    %2637 = vmatpush1.msra.mxu0 0.0
    %2638 = vmatprep.subr.mxu0 0.0
    %2639 = vmatpush1.msra.mxu0 0.0
    %2640 = vmatprep.subr.mxu0 0.0
    %2641 = vmatpush1.msra.mxu0 0.0
    %2642 = vmatprep.subr.mxu0 0.0
    %2643 = vmatpush1.msra.mxu0 0.0
    %2644 = vmatprep.subr.mxu0 0.0
    %2645 = vmatpush1.msra.mxu0 0.0
    %2646 = vmatprep.subr.mxu0 0.0
    %2647 = vmatpush1.msra.mxu0 0.0
    %2648 = vmatprep.subr.mxu0 0.0
    %2649 = vmatpush1.msra.mxu0 0.0
    %2650 = vmatprep.subr.mxu0 0.0
    %2651 = vmatpush1.msra.mxu0 0.0
    %2652 = vmatprep.subr.mxu0 0.0
    %2653 = vmatpush1.msra.mxu0 0.0
    %2654 = vmatprep.subr.mxu0 0.0
    %2655 = vmatpush1.msra.mxu0 0.0
    %2656 = vmatprep.subr.mxu0 0.0
    %2657 = vmatpush1.msra.mxu0 0.0
    %2658 = vmatprep.subr.mxu0 0.0
    %2659 = vmatpush1.msra.mxu0 0.0
    %2660 = vmatprep.subr.mxu0 0.0
    %2661 = vmatpush1.msra.mxu0 0.0
    %2662 = vmatprep.subr.mxu0 0.0
    %2663 = vmatpush1.msra.mxu0 0.0
    %2664 = vmatprep.subr.mxu0 0.0
    %2665 = vmatpush1.msra.mxu0 0.0
    %2666 = vmatprep.subr.mxu0 0.0
    %2667 = vmatpush1.msra.mxu0 0.0
    %2668 = vmatprep.subr.mxu0 0.0
    %2669 = vmatpush1.msra.mxu0 0.0
    %2670 = vmatprep.subr.mxu0 0.0
    %2671 = vmatpush1.msra.mxu0 0.0
    %2672 = vmatprep.subr.mxu0 0.0
    %2673 = vmatpush1.msra.mxu0 0.0
    %2674 = vmatprep.subr.mxu0 0.0
    %2675 = vmatpush1.msra.mxu0 0.0
    %2676 = vmatprep.subr.mxu0 0.0
    %2677 = vmatpush1.msra.mxu0 0.0
    %2678 = vmatprep.subr.mxu0 0.0
    %2679 = vmatpush1.msra.mxu0 0.0
    %2680 = vmatprep.subr.mxu0 0.0
    %2681 = vmatpush1.msra.mxu0 0.0
    %2682 = vmatprep.subr.mxu0 0.0
    %2683 = vmatpush1.msra.mxu0 0.0
    %2684 = vmatprep.subr.mxu0 0.0
    %2685 = vmatpush1.msra.mxu0 0.0
    %2686 = vmatprep.mubr.f32.mxu0 0.0
    %2687 = vmatmul.mubr.f32.gmra.mrb[0].mxu0 %v2324
    %v2688 = vpop.f32.mrb[0].mxu0
    %v2689 = vadd.f32 %v1256, %v2688
    %v2690 = vpop.f32.mrb[0].mxu0
    %2691 = vdwg.mxu0
    %v2692 = vmul.f32 %v2403, %v2689
    %v2693 = vadd.f32 %v2619, %v2692
    %v2694 = vtanh.pop %v2693
    %v2695 = vsub.f32 1.0, %v2551
    %v2696 = vmul.f32 %v2695, %v2694
    %v2697 = vmul.f32 %v2551, %v2016
    %v2698 = vadd.f32 %v2696, %v2697
    %2699 = vmatprep.subr.mxu0 0.0
    %2700 = vmatpush1.msra.mxu0 %v541
    %2701 = vmatprep.subr.mxu0 0.0
    %2702 = vmatpush1.msra.mxu0 %v542
    %2703 = vmatprep.subr.mxu0 0.0
    %2704 = vmatpush1.msra.mxu0 %v543
    %2705 = vmatprep.subr.mxu0 0.0
    %2706 = vmatpush1.msra.mxu0 %v544
    %2707 = vmatprep.subr.mxu0 0.0
    %2708 = vmatpush1.msra.mxu0 0.0
    %2709 = vmatprep.subr.mxu0 0.0
    %2710 = vmatpush1.msra.mxu0 0.0
    %2711 = vmatprep.subr.mxu0 0.0
    %2712 = vmatpush1.msra.mxu0 0.0
    %2713 = vmatprep.subr.mxu0 0.0
    %2714 = vmatpush1.msra.mxu0 0.0
    %2715 = vmatprep.subr.mxu0 0.0
    %2716 = vmatpush1.msra.mxu0 0.0
    %2717 = vmatprep.subr.mxu0 0.0
    %2718 = vmatpush1.msra.mxu0 0.0
    %2719 = vmatprep.subr.mxu0 0.0
    %2720 = vmatpush1.msra.mxu0 0.0
    %2721 = vmatprep.subr.mxu0 0.0
    %2722 = vmatpush1.msra.mxu0 0.0
    %2723 = vmatprep.subr.mxu0 0.0
    %2724 = vmatpush1.msra.mxu0 0.0
    %2725 = vmatprep.subr.mxu0 0.0
    %2726 = vmatpush1.msra.mxu0 0.0
    %2727 = vmatprep.subr.mxu0 0.0
    %2728 = vmatpush1.msra.mxu0 0.0
    %2729 = vmatprep.subr.mxu0 0.0
    %2730 = vmatpush1.msra.mxu0 0.0
    %2731 = vmatprep.subr.mxu0 0.0
    %2732 = vmatpush1.msra.mxu0 0.0
    %2733 = vmatprep.subr.mxu0 0.0
    %2734 = vmatpush1.msra.mxu0 0.0
    %2735 = vmatprep.subr.mxu0 0.0
    %2736 = vmatpush1.msra.mxu0 0.0
    %2737 = vmatprep.subr.mxu0 0.0
    %2738 = vmatpush1.msra.mxu0 0.0
    %2739 = vmatprep.subr.mxu0 0.0
    %2740 = vmatpush1.msra.mxu0 0.0
    %2741 = vmatprep.subr.mxu0 0.0
    %2742 = vmatpush1.msra.mxu0 0.0
    %2743 = vmatprep.subr.mxu0 0.0
    %2744 = vmatpush1.msra.mxu0 0.0
    %2745 = vmatprep.subr.mxu0 0.0
    %2746 = vmatpush1.msra.mxu0 0.0
    %2747 = vmatprep.subr.mxu0 0.0
    %2748 = vmatpush1.msra.mxu0 0.0
    %2749 = vmatprep.subr.mxu0 0.0
    %2750 = vmatpush1.msra.mxu0 0.0
    %2751 = vmatprep.subr.mxu0 0.0
    %2752 = vmatpush1.msra.mxu0 0.0
    %2753 = vmatprep.subr.mxu0 0.0
    %2754 = vmatpush1.msra.mxu0 0.0
    %2755 = vmatprep.subr.mxu0 0.0
    %2756 = vmatpush1.msra.mxu0 0.0
    %2757 = vmatprep.subr.mxu0 0.0
    %2758 = vmatpush1.msra.mxu0 0.0
    %2759 = vmatprep.subr.mxu0 0.0
    %2760 = vmatpush1.msra.mxu0 0.0
    %2761 = vmatprep.subr.mxu0 0.0
    %2762 = vmatpush1.msra.mxu0 0.0
    %2763 = vmatprep.mubr.f32.mxu0 0.0
    %2764 = vmatmul.mubr.f32.gmra.mrb[0].mxu0 %v2251
    %v2765 = vpop.f32.mrb[0].mxu0
    %v2766 = vadd.f32 0.0, %v2765
    %v2767 = vpop.f32.mrb[0].mxu0
    %2768 = vdwg.mxu0
    %v2769 = vadd.f32 %v282, %v2766
    %v2770 = vadd.f32 %v2769, %v677
    %v2771 = vxor.u32 %v2770, 2147483648
    %v2772 = vmul.f32 %v2771, 1.442695
    %v2773 = vpow.pop %v2772
    %v2774 = vadd.f32 %v2773, 1.0
    %v2775 = vrcp.pop %v2774
    %v2776 = vmul.f32 1.0, %v2775
    %2777 = vmatprep.subr.mxu0 0.0
    %2778 = vmatpush1.msra.mxu0 %v546
    %2779 = vmatprep.subr.mxu0 0.0
    %2780 = vmatpush1.msra.mxu0 %v547
    %2781 = vmatprep.subr.mxu0 0.0
    %2782 = vmatpush1.msra.mxu0 %v548
    %2783 = vmatprep.subr.mxu0 0.0
    %2784 = vmatpush1.msra.mxu0 %v549
    %2785 = vmatprep.subr.mxu0 0.0
    %2786 = vmatpush1.msra.mxu0 0.0
    %2787 = vmatprep.subr.mxu0 0.0
    %2788 = vmatpush1.msra.mxu0 0.0
    %2789 = vmatprep.subr.mxu0 0.0
    %2790 = vmatpush1.msra.mxu0 0.0
    %2791 = vmatprep.subr.mxu0 0.0
    %2792 = vmatpush1.msra.mxu0 0.0
    %2793 = vmatprep.subr.mxu0 0.0
    %2794 = vmatpush1.msra.mxu0 0.0
    %2795 = vmatprep.subr.mxu0 0.0
    %2796 = vmatpush1.msra.mxu0 0.0
    %2797 = vmatprep.subr.mxu0 0.0
    %2798 = vmatpush1.msra.mxu0 0.0
    %2799 = vmatprep.subr.mxu0 0.0
    %2800 = vmatpush1.msra.mxu0 0.0
    %2801 = vmatprep.subr.mxu0 0.0
    %2802 = vmatpush1.msra.mxu0 0.0
    %2803 = vmatprep.subr.mxu0 0.0
    %2804 = vmatpush1.msra.mxu0 0.0
    %2805 = vmatprep.subr.mxu0 0.0
    %2806 = vmatpush1.msra.mxu0 0.0
    %2807 = vmatprep.subr.mxu0 0.0
    %2808 = vmatpush1.msra.mxu0 0.0
    %2809 = vmatprep.subr.mxu0 0.0
    %2810 = vmatpush1.msra.mxu0 0.0
    %2811 = vmatprep.subr.mxu0 0.0
    %2812 = vmatpush1.msra.mxu0 0.0
    %2813 = vmatprep.subr.mxu0 0.0
    %2814 = vmatpush1.msra.mxu0 0.0
    %2815 = vmatprep.subr.mxu0 0.0
    %2816 = vmatpush1.msra.mxu0 0.0
    %2817 = vmatprep.subr.mxu0 0.0
    %2818 = vmatpush1.msra.mxu0 0.0
    %2819 = vmatprep.subr.mxu0 0.0
    %2820 = vmatpush1.msra.mxu0 0.0
    %2821 = vmatprep.subr.mxu0 0.0
    %2822 = vmatpush1.msra.mxu0 0.0
    %2823 = vmatprep.subr.mxu0 0.0
    %2824 = vmatpush1.msra.mxu0 0.0
    %2825 = vmatprep.subr.mxu0 0.0
    %2826 = vmatpush1.msra.mxu0 0.0
    %2827 = vmatprep.subr.mxu0 0.0
    %2828 = vmatpush1.msra.mxu0 0.0
    %2829 = vmatprep.subr.mxu0 0.0
    %2830 = vmatpush1.msra.mxu0 0.0
    %2831 = vmatprep.subr.mxu0 0.0
    %2832 = vmatpush1.msra.mxu0 0.0
    %2833 = vmatprep.subr.mxu0 0.0
    %2834 = vmatpush1.msra.mxu0 0.0
    %2835 = vmatprep.subr.mxu0 0.0
    %2836 = vmatpush1.msra.mxu0 0.0
    %2837 = vmatprep.subr.mxu0 0.0
    %2838 = vmatpush1.msra.mxu0 0.0
    %2839 = vmatprep.subr.mxu0 0.0
    %2840 = vmatpush1.msra.mxu0 0.0
    %2841 = vmatprep.mubr.f32.mxu0 0.0
    %2842 = vmatmul.mubr.f32.gmra.mrb[0].mxu0 %v2251
    %v2843 = vpop.f32.mrb[0].mxu0
    %v2844 = vadd.f32 0.0, %v2843
    %v2845 = vpop.f32.mrb[0].mxu0
    %2846 = vdwg.mxu0
    %v2847 = vadd.f32 %v400, %v2844
    %v2848 = vadd.f32 %v2847, %v761
    %v2849 = vxor.u32 %v2848, 2147483648
    %v2850 = vmul.f32 %v2849, 1.442695
    %v2851 = vpow.pop %v2850
    %v2852 = vadd.f32 %v2851, 1.0
    %v2853 = vrcp.pop %v2852
    %v2854 = vmul.f32 1.0, %v2853
    %2855 = vmatprep.subr.mxu0 0.0
    %2856 = vmatpush1.msra.mxu0 %v551
    %2857 = vmatprep.subr.mxu0 0.0
    %2858 = vmatpush1.msra.mxu0 %v552
    %2859 = vmatprep.subr.mxu0 0.0
    %2860 = vmatpush1.msra.mxu0 %v553
    %2861 = vmatprep.subr.mxu0 0.0
    %2862 = vmatpush1.msra.mxu0 %v554
    %2863 = vmatprep.subr.mxu0 0.0
    %2864 = vmatpush1.msra.mxu0 0.0
    %2865 = vmatprep.subr.mxu0 0.0
    %2866 = vmatpush1.msra.mxu0 0.0
    %2867 = vmatprep.subr.mxu0 0.0
    %2868 = vmatpush1.msra.mxu0 0.0
    %2869 = vmatprep.subr.mxu0 0.0
    %2870 = vmatpush1.msra.mxu0 0.0
    %2871 = vmatprep.subr.mxu0 0.0
    %2872 = vmatpush1.msra.mxu0 0.0
    %2873 = vmatprep.subr.mxu0 0.0
    %2874 = vmatpush1.msra.mxu0 0.0
    %2875 = vmatprep.subr.mxu0 0.0
    %2876 = vmatpush1.msra.mxu0 0.0
    %2877 = vmatprep.subr.mxu0 0.0
    %2878 = vmatpush1.msra.mxu0 0.0
    %2879 = vmatprep.subr.mxu0 0.0
    %2880 = vmatpush1.msra.mxu0 0.0
    %2881 = vmatprep.subr.mxu0 0.0
    %2882 = vmatpush1.msra.mxu0 0.0
    %2883 = vmatprep.subr.mxu0 0.0
    %2884 = vmatpush1.msra.mxu0 0.0
    %2885 = vmatprep.subr.mxu0 0.0
    %2886 = vmatpush1.msra.mxu0 0.0
    %2887 = vmatprep.subr.mxu0 0.0
    %2888 = vmatpush1.msra.mxu0 0.0
    %2889 = vmatprep.subr.mxu0 0.0
    %2890 = vmatpush1.msra.mxu0 0.0
    %2891 = vmatprep.subr.mxu0 0.0
    %2892 = vmatpush1.msra.mxu0 0.0
    %2893 = vmatprep.subr.mxu0 0.0
    %2894 = vmatpush1.msra.mxu0 0.0
    %2895 = vmatprep.subr.mxu0 0.0
    %2896 = vmatpush1.msra.mxu0 0.0
    %2897 = vmatprep.subr.mxu0 0.0
    %2898 = vmatpush1.msra.mxu0 0.0
    %2899 = vmatprep.subr.mxu0 0.0
    %2900 = vmatpush1.msra.mxu0 0.0
    %2901 = vmatprep.subr.mxu0 0.0
    %2902 = vmatpush1.msra.mxu0 0.0
    %2903 = vmatprep.subr.mxu0 0.0
    %2904 = vmatpush1.msra.mxu0 0.0
    %2905 = vmatprep.subr.mxu0 0.0
    %2906 = vmatpush1.msra.mxu0 0.0
    %2907 = vmatprep.subr.mxu0 0.0
    %2908 = vmatpush1.msra.mxu0 0.0
    %2909 = vmatprep.subr.mxu0 0.0
    %2910 = vmatpush1.msra.mxu0 0.0
    %2911 = vmatprep.subr.mxu0 0.0
    %2912 = vmatpush1.msra.mxu0 0.0
    %2913 = vmatprep.subr.mxu0 0.0
    %2914 = vmatpush1.msra.mxu0 0.0
    %2915 = vmatprep.subr.mxu0 0.0
    %2916 = vmatpush1.msra.mxu0 0.0
    %2917 = vmatprep.subr.mxu0 0.0
    %2918 = vmatpush1.msra.mxu0 0.0
    %2919 = vmatprep.mubr.f32.mxu0 0.0
    %2920 = vmatmul.mubr.f32.gmra.mrb[0].mxu0 %v2251
    %v2921 = vpop.f32.mrb[0].mxu0
    %v2922 = vadd.f32 %v774, %v2921
    %v2923 = vpop.f32.mrb[0].mxu0
    %2924 = vdwg.mxu0
    %v2925 = vmul.f32 %v2776, %v2922
    %v2926 = vadd.f32 %v518, %v2925
    %v2927 = vtanh.pop %v2926
    %v2928 = vsub.f32 1.0, %v2854
    %v2929 = vmul.f32 %v2928, %v2927
    %v2930 = vmul.f32 %v2854, %v2249
    %v2931 = vadd.f32 %v2929, %v2930
    %v2933 = vsel %vm598, %v2931, 0
    %2935 = vmatprep.subr.mxu0 0.0
    %2936 = vmatpush1.msra.mxu0 %v560
    %2937 = vmatprep.subr.mxu0 0.0
    %2938 = vmatpush1.msra.mxu0 %v561
    %2939 = vmatprep.subr.mxu0 0.0
    %2940 = vmatpush1.msra.mxu0 %v562
    %2941 = vmatprep.subr.mxu0 0.0
    %2942 = vmatpush1.msra.mxu0 %v563
    %2943 = vmatprep.subr.mxu0 0.0
    %2944 = vmatpush1.msra.mxu0 0.0
    %2945 = vmatprep.subr.mxu0 0.0
    %2946 = vmatpush1.msra.mxu0 0.0
    %2947 = vmatprep.subr.mxu0 0.0
    %2948 = vmatpush1.msra.mxu0 0.0
    %2949 = vmatprep.subr.mxu0 0.0
    %2950 = vmatpush1.msra.mxu0 0.0
    %2951 = vmatprep.subr.mxu0 0.0
    %2952 = vmatpush1.msra.mxu0 0.0
    %2953 = vmatprep.subr.mxu0 0.0
    %2954 = vmatpush1.msra.mxu0 0.0
    %2955 = vmatprep.subr.mxu0 0.0
    %2956 = vmatpush1.msra.mxu0 0.0
    %2957 = vmatprep.subr.mxu0 0.0
    %2958 = vmatpush1.msra.mxu0 0.0
    %2959 = vmatprep.subr.mxu0 0.0
    %2960 = vmatpush1.msra.mxu0 0.0
    %2961 = vmatprep.subr.mxu0 0.0
    %2962 = vmatpush1.msra.mxu0 0.0
    %2963 = vmatprep.subr.mxu0 0.0
    %2964 = vmatpush1.msra.mxu0 0.0
    %2965 = vmatprep.subr.mxu0 0.0
    %2966 = vmatpush1.msra.mxu0 0.0
    %2967 = vmatprep.subr.mxu0 0.0
    %2968 = vmatpush1.msra.mxu0 0.0
    %2969 = vmatprep.subr.mxu0 0.0
    %2970 = vmatpush1.msra.mxu0 0.0
    %2971 = vmatprep.subr.mxu0 0.0
    %2972 = vmatpush1.msra.mxu0 0.0
    %2973 = vmatprep.subr.mxu0 0.0
    %2974 = vmatpush1.msra.mxu0 0.0
    %2975 = vmatprep.subr.mxu0 0.0
    %2976 = vmatpush1.msra.mxu0 0.0
    %2977 = vmatprep.subr.mxu0 0.0
    %2978 = vmatpush1.msra.mxu0 0.0
    %2979 = vmatprep.subr.mxu0 0.0
    %2980 = vmatpush1.msra.mxu0 0.0
    %2981 = vmatprep.subr.mxu0 0.0
    %2982 = vmatpush1.msra.mxu0 0.0
    %2983 = vmatprep.subr.mxu0 0.0
    %2984 = vmatpush1.msra.mxu0 0.0
    %2985 = vmatprep.subr.mxu0 0.0
    %2986 = vmatpush1.msra.mxu0 0.0
    %2987 = vmatprep.subr.mxu0 0.0
    %2988 = vmatpush1.msra.mxu0 0.0
    %2989 = vmatprep.subr.mxu0 0.0
    %2990 = vmatpush1.msra.mxu0 0.0
    %2991 = vmatprep.subr.mxu0 0.0
    %2992 = vmatpush1.msra.mxu0 0.0
    %2993 = vmatprep.subr.mxu0 0.0
    %2994 = vmatpush1.msra.mxu0 0.0
    %2995 = vmatprep.subr.mxu0 0.0
    %2996 = vmatpush1.msra.mxu0 0.0
    %2997 = vmatprep.subr.mxu0 0.0
    %2998 = vmatpush1.msra.mxu0 0.0
    %2999 = vmatprep.mubr.f32.mxu0 0.0
    %3000 = vmatmul.mubr.f32.gmra.mrb[0].mxu0 %v2933
    %v3001 = vpop.f32.mrb[0].mxu0
    %v3002 = vadd.f32 %v857, %v3001
    %v3003 = vpop.f32.mrb[0].mxu0
    %3004 = vdwg.mxu0
    %v3006 = vsel %vm598, %v2698, 0
    %3008 = vmatprep.subr.mxu0 0.0
    %3009 = vmatpush1.msra.mxu0 %v579
    %3010 = vmatprep.subr.mxu0 0.0
    %3011 = vmatpush1.msra.mxu0 %v580
    %3012 = vmatprep.subr.mxu0 0.0
    %3013 = vmatpush1.msra.mxu0 %v581
    %3014 = vmatprep.subr.mxu0 0.0
    %3015 = vmatpush1.msra.mxu0 %v582
    %3016 = vmatprep.subr.mxu0 0.0
    %3017 = vmatpush1.msra.mxu0 0.0
    %3018 = vmatprep.subr.mxu0 0.0
    %3019 = vmatpush1.msra.mxu0 0.0
    %3020 = vmatprep.subr.mxu0 0.0
    %3021 = vmatpush1.msra.mxu0 0.0
    %3022 = vmatprep.subr.mxu0 0.0
    %3023 = vmatpush1.msra.mxu0 0.0
    %3024 = vmatprep.subr.mxu0 0.0
    %3025 = vmatpush1.msra.mxu0 0.0
    %3026 = vmatprep.subr.mxu0 0.0
    %3027 = vmatpush1.msra.mxu0 0.0
    %3028 = vmatprep.subr.mxu0 0.0
    %3029 = vmatpush1.msra.mxu0 0.0
    %3030 = vmatprep.subr.mxu0 0.0
    %3031 = vmatpush1.msra.mxu0 0.0
    %3032 = vmatprep.subr.mxu0 0.0
    %3033 = vmatpush1.msra.mxu0 0.0
    %3034 = vmatprep.subr.mxu0 0.0
    %3035 = vmatpush1.msra.mxu0 0.0
    %3036 = vmatprep.subr.mxu0 0.0
    %3037 = vmatpush1.msra.mxu0 0.0
    %3038 = vmatprep.subr.mxu0 0.0
    %3039 = vmatpush1.msra.mxu0 0.0
    %3040 = vmatprep.subr.mxu0 0.0
    %3041 = vmatpush1.msra.mxu0 0.0
    %3042 = vmatprep.subr.mxu0 0.0
    %3043 = vmatpush1.msra.mxu0 0.0
    %3044 = vmatprep.subr.mxu0 0.0
    %3045 = vmatpush1.msra.mxu0 0.0
    %3046 = vmatprep.subr.mxu0 0.0
    %3047 = vmatpush1.msra.mxu0 0.0
    %3048 = vmatprep.subr.mxu0 0.0
    %3049 = vmatpush1.msra.mxu0 0.0
    %3050 = vmatprep.subr.mxu0 0.0
    %3051 = vmatpush1.msra.mxu0 0.0
    %3052 = vmatprep.subr.mxu0 0.0
    %3053 = vmatpush1.msra.mxu0 0.0
    %3054 = vmatprep.subr.mxu0 0.0
    %3055 = vmatpush1.msra.mxu0 0.0
    %3056 = vmatprep.subr.mxu0 0.0
    %3057 = vmatpush1.msra.mxu0 0.0
    %3058 = vmatprep.subr.mxu0 0.0
    %3059 = vmatpush1.msra.mxu0 0.0
    %3060 = vmatprep.subr.mxu0 0.0
    %3061 = vmatpush1.msra.mxu0 0.0
    %3062 = vmatprep.subr.mxu0 0.0
    %3063 = vmatpush1.msra.mxu0 0.0
    %3064 = vmatprep.subr.mxu0 0.0
    %3065 = vmatpush1.msra.mxu0 0.0
    %3066 = vmatprep.subr.mxu0 0.0
    %3067 = vmatpush1.msra.mxu0 0.0
    %3068 = vmatprep.subr.mxu0 0.0
    %3069 = vmatpush1.msra.mxu0 0.0
    %3070 = vmatprep.subr.mxu0 0.0
    %3071 = vmatpush1.msra.mxu0 0.0
    %3072 = vmatprep.mubr.f32.mxu0 0.0
    %3073 = vmatmul.mubr.f32.gmra.mrb[0].mxu0 %v3006
    %v3074 = vpop.f32.mrb[0].mxu0
    %v3075 = vadd.f32 0.0, %v3074
    %v3076 = vpop.f32.mrb[0].mxu0
    %3077 = vdwg.mxu0
    %v3078 = vadd.f32 %v3002, %v3075
    %v3079 = vadd.f32 %v3078, %v1007
    %v3080 = vxor.u32 %v3079, 2147483648
    %v3081 = vmul.f32 %v3080, 1.442695
    %v3082 = vpow.pop %v3081
    %v3083 = vadd.f32 %v3082, 1.0
    %v3084 = vrcp.pop %v3083
    %v3085 = vmul.f32 1.0, %v3084
    %3086 = vmatprep.subr.mxu0 0.0
    %3087 = vmatpush1.msra.mxu0 %v565
    %3088 = vmatprep.subr.mxu0 0.0
    %3089 = vmatpush1.msra.mxu0 %v566
    %3090 = vmatprep.subr.mxu0 0.0
    %3091 = vmatpush1.msra.mxu0 %v567
    %3092 = vmatprep.subr.mxu0 0.0
    %3093 = vmatpush1.msra.mxu0 %v568
    %3094 = vmatprep.subr.mxu0 0.0
    %3095 = vmatpush1.msra.mxu0 0.0
    %3096 = vmatprep.subr.mxu0 0.0
    %3097 = vmatpush1.msra.mxu0 0.0
    %3098 = vmatprep.subr.mxu0 0.0
    %3099 = vmatpush1.msra.mxu0 0.0
    %3100 = vmatprep.subr.mxu0 0.0
    %3101 = vmatpush1.msra.mxu0 0.0
    %3102 = vmatprep.subr.mxu0 0.0
    %3103 = vmatpush1.msra.mxu0 0.0
    %3104 = vmatprep.subr.mxu0 0.0
    %3105 = vmatpush1.msra.mxu0 0.0
    %3106 = vmatprep.subr.mxu0 0.0
    %3107 = vmatpush1.msra.mxu0 0.0
    %3108 = vmatprep.subr.mxu0 0.0
    %3109 = vmatpush1.msra.mxu0 0.0
    %3110 = vmatprep.subr.mxu0 0.0
    %3111 = vmatpush1.msra.mxu0 0.0
    %3112 = vmatprep.subr.mxu0 0.0
    %3113 = vmatpush1.msra.mxu0 0.0
    %3114 = vmatprep.subr.mxu0 0.0
    %3115 = vmatpush1.msra.mxu0 0.0
    %3116 = vmatprep.subr.mxu0 0.0
    %3117 = vmatpush1.msra.mxu0 0.0
    %3118 = vmatprep.subr.mxu0 0.0
    %3119 = vmatpush1.msra.mxu0 0.0
    %3120 = vmatprep.subr.mxu0 0.0
    %3121 = vmatpush1.msra.mxu0 0.0
    %3122 = vmatprep.subr.mxu0 0.0
    %3123 = vmatpush1.msra.mxu0 0.0
    %3124 = vmatprep.subr.mxu0 0.0
    %3125 = vmatpush1.msra.mxu0 0.0
    %3126 = vmatprep.subr.mxu0 0.0
    %3127 = vmatpush1.msra.mxu0 0.0
    %3128 = vmatprep.subr.mxu0 0.0
    %3129 = vmatpush1.msra.mxu0 0.0
    %3130 = vmatprep.subr.mxu0 0.0
    %3131 = vmatpush1.msra.mxu0 0.0
    %3132 = vmatprep.subr.mxu0 0.0
    %3133 = vmatpush1.msra.mxu0 0.0
    %3134 = vmatprep.subr.mxu0 0.0
    %3135 = vmatpush1.msra.mxu0 0.0
    %3136 = vmatprep.subr.mxu0 0.0
    %3137 = vmatpush1.msra.mxu0 0.0
    %3138 = vmatprep.subr.mxu0 0.0
    %3139 = vmatpush1.msra.mxu0 0.0
    %3140 = vmatprep.subr.mxu0 0.0
    %3141 = vmatpush1.msra.mxu0 0.0
    %3142 = vmatprep.subr.mxu0 0.0
    %3143 = vmatpush1.msra.mxu0 0.0
    %3144 = vmatprep.subr.mxu0 0.0
    %3145 = vmatpush1.msra.mxu0 0.0
    %3146 = vmatprep.subr.mxu0 0.0
    %3147 = vmatpush1.msra.mxu0 0.0
    %3148 = vmatprep.subr.mxu0 0.0
    %3149 = vmatpush1.msra.mxu0 0.0
    %3150 = vmatprep.mubr.f32.mxu0 0.0
    %3151 = vmatmul.mubr.f32.gmra.mrb[0].mxu0 %v2933
    %v3152 = vpop.f32.mrb[0].mxu0
    %v3153 = vadd.f32 %v1020, %v3152
    %v3154 = vpop.f32.mrb[0].mxu0
    %3155 = vdwg.mxu0
    %3156 = vmatprep.subr.mxu0 0.0
    %3157 = vmatpush1.msra.mxu0 %v584
    %3158 = vmatprep.subr.mxu0 0.0
    %3159 = vmatpush1.msra.mxu0 %v585
    %3160 = vmatprep.subr.mxu0 0.0
    %3161 = vmatpush1.msra.mxu0 %v586
    %3162 = vmatprep.subr.mxu0 0.0
    %3163 = vmatpush1.msra.mxu0 %v587
    %3164 = vmatprep.subr.mxu0 0.0
    %3165 = vmatpush1.msra.mxu0 0.0
    %3166 = vmatprep.subr.mxu0 0.0
    %3167 = vmatpush1.msra.mxu0 0.0
    %3168 = vmatprep.subr.mxu0 0.0
    %3169 = vmatpush1.msra.mxu0 0.0
    %3170 = vmatprep.subr.mxu0 0.0
    %3171 = vmatpush1.msra.mxu0 0.0
    %3172 = vmatprep.subr.mxu0 0.0
    %3173 = vmatpush1.msra.mxu0 0.0
    %3174 = vmatprep.subr.mxu0 0.0
    %3175 = vmatpush1.msra.mxu0 0.0
    %3176 = vmatprep.subr.mxu0 0.0
    %3177 = vmatpush1.msra.mxu0 0.0
    %3178 = vmatprep.subr.mxu0 0.0
    %3179 = vmatpush1.msra.mxu0 0.0
    %3180 = vmatprep.subr.mxu0 0.0
    %3181 = vmatpush1.msra.mxu0 0.0
    %3182 = vmatprep.subr.mxu0 0.0
    %3183 = vmatpush1.msra.mxu0 0.0
    %3184 = vmatprep.subr.mxu0 0.0
    %3185 = vmatpush1.msra.mxu0 0.0
    %3186 = vmatprep.subr.mxu0 0.0
    %3187 = vmatpush1.msra.mxu0 0.0
    %3188 = vmatprep.subr.mxu0 0.0
    %3189 = vmatpush1.msra.mxu0 0.0
    %3190 = vmatprep.subr.mxu0 0.0
    %3191 = vmatpush1.msra.mxu0 0.0
    %3192 = vmatprep.subr.mxu0 0.0
    %3193 = vmatpush1.msra.mxu0 0.0
    %3194 = vmatprep.subr.mxu0 0.0
    %3195 = vmatpush1.msra.mxu0 0.0
    %3196 = vmatprep.subr.mxu0 0.0
    %3197 = vmatpush1.msra.mxu0 0.0
    %3198 = vmatprep.subr.mxu0 0.0
    %3199 = vmatpush1.msra.mxu0 0.0
    %3200 = vmatprep.subr.mxu0 0.0
    %3201 = vmatpush1.msra.mxu0 0.0
    %3202 = vmatprep.subr.mxu0 0.0
    %3203 = vmatpush1.msra.mxu0 0.0
    %3204 = vmatprep.subr.mxu0 0.0
    %3205 = vmatpush1.msra.mxu0 0.0
    %3206 = vmatprep.subr.mxu0 0.0
    %3207 = vmatpush1.msra.mxu0 0.0
    %3208 = vmatprep.subr.mxu0 0.0
    %3209 = vmatpush1.msra.mxu0 0.0
    %3210 = vmatprep.subr.mxu0 0.0
    %3211 = vmatpush1.msra.mxu0 0.0
    %3212 = vmatprep.subr.mxu0 0.0
    %3213 = vmatpush1.msra.mxu0 0.0
    %3214 = vmatprep.subr.mxu0 0.0
    %3215 = vmatpush1.msra.mxu0 0.0
    %3216 = vmatprep.subr.mxu0 0.0
    %3217 = vmatpush1.msra.mxu0 0.0
    %3218 = vmatprep.subr.mxu0 0.0
    %3219 = vmatpush1.msra.mxu0 0.0
    %3220 = vmatprep.mubr.f32.mxu0 0.0
    %3221 = vmatmul.mubr.f32.gmra.mrb[0].mxu0 %v3006
    %v3222 = vpop.f32.mrb[0].mxu0
    %v3223 = vadd.f32 0.0, %v3222
    %v3224 = vpop.f32.mrb[0].mxu0
    %3225 = vdwg.mxu0
    %v3226 = vadd.f32 %v3153, %v3223
    %v3227 = vadd.f32 %v3226, %v1167
    %v3228 = vxor.u32 %v3227, 2147483648
    %v3229 = vmul.f32 %v3228, 1.442695
    %v3230 = vpow.pop %v3229
    %v3231 = vadd.f32 %v3230, 1.0
    %v3232 = vrcp.pop %v3231
    %v3233 = vmul.f32 1.0, %v3232
    %3234 = vmatprep.subr.mxu0 0.0
    %3235 = vmatpush1.msra.mxu0 %v570
    %3236 = vmatprep.subr.mxu0 0.0
    %3237 = vmatpush1.msra.mxu0 %v571
    %3238 = vmatprep.subr.mxu0 0.0
    %3239 = vmatpush1.msra.mxu0 %v572
    %3240 = vmatprep.subr.mxu0 0.0
    %3241 = vmatpush1.msra.mxu0 %v573
    %3242 = vmatprep.subr.mxu0 0.0
    %3243 = vmatpush1.msra.mxu0 0.0
    %3244 = vmatprep.subr.mxu0 0.0
    %3245 = vmatpush1.msra.mxu0 0.0
    %3246 = vmatprep.subr.mxu0 0.0
    %3247 = vmatpush1.msra.mxu0 0.0
    %3248 = vmatprep.subr.mxu0 0.0
    %3249 = vmatpush1.msra.mxu0 0.0
    %3250 = vmatprep.subr.mxu0 0.0
    %3251 = vmatpush1.msra.mxu0 0.0
    %3252 = vmatprep.subr.mxu0 0.0
    %3253 = vmatpush1.msra.mxu0 0.0
    %3254 = vmatprep.subr.mxu0 0.0
    %3255 = vmatpush1.msra.mxu0 0.0
    %3256 = vmatprep.subr.mxu0 0.0
    %3257 = vmatpush1.msra.mxu0 0.0
    %3258 = vmatprep.subr.mxu0 0.0
    %3259 = vmatpush1.msra.mxu0 0.0
    %3260 = vmatprep.subr.mxu0 0.0
    %3261 = vmatpush1.msra.mxu0 0.0
    %3262 = vmatprep.subr.mxu0 0.0
    %3263 = vmatpush1.msra.mxu0 0.0
    %3264 = vmatprep.subr.mxu0 0.0
    %3265 = vmatpush1.msra.mxu0 0.0
    %3266 = vmatprep.subr.mxu0 0.0
    %3267 = vmatpush1.msra.mxu0 0.0
    %3268 = vmatprep.subr.mxu0 0.0
    %3269 = vmatpush1.msra.mxu0 0.0
    %3270 = vmatprep.subr.mxu0 0.0
    %3271 = vmatpush1.msra.mxu0 0.0
    %3272 = vmatprep.subr.mxu0 0.0
    %3273 = vmatpush1.msra.mxu0 0.0
    %3274 = vmatprep.subr.mxu0 0.0
    %3275 = vmatpush1.msra.mxu0 0.0
    %3276 = vmatprep.subr.mxu0 0.0
    %3277 = vmatpush1.msra.mxu0 0.0
    %3278 = vmatprep.subr.mxu0 0.0
    %3279 = vmatpush1.msra.mxu0 0.0
    %3280 = vmatprep.subr.mxu0 0.0
    %3281 = vmatpush1.msra.mxu0 0.0
    %3282 = vmatprep.subr.mxu0 0.0
    %3283 = vmatpush1.msra.mxu0 0.0
    %3284 = vmatprep.subr.mxu0 0.0
    %3285 = vmatpush1.msra.mxu0 0.0
    %3286 = vmatprep.subr.mxu0 0.0
    %3287 = vmatpush1.msra.mxu0 0.0
    %3288 = vmatprep.subr.mxu0 0.0
    %3289 = vmatpush1.msra.mxu0 0.0
    %3290 = vmatprep.subr.mxu0 0.0
    %3291 = vmatpush1.msra.mxu0 0.0
    %3292 = vmatprep.subr.mxu0 0.0
    %3293 = vmatpush1.msra.mxu0 0.0
    %3294 = vmatprep.subr.mxu0 0.0
    %3295 = vmatpush1.msra.mxu0 0.0
    %3296 = vmatprep.subr.mxu0 0.0
    %3297 = vmatpush1.msra.mxu0 0.0
    %3298 = vmatprep.mubr.f32.mxu0 0.0
    %3299 = vmatmul.mubr.f32.gmra.mrb[0].mxu0 %v2933
    %v3300 = vpop.f32.mrb[0].mxu0
    %v3301 = vadd.f32 %v1180, %v3300
    %v3302 = vpop.f32.mrb[0].mxu0
    %3303 = vdwg.mxu0
    %3304 = vmatprep.subr.mxu0 0.0
    %3305 = vmatpush1.msra.mxu0 %v589
    %3306 = vmatprep.subr.mxu0 0.0
    %3307 = vmatpush1.msra.mxu0 %v590
    %3308 = vmatprep.subr.mxu0 0.0
    %3309 = vmatpush1.msra.mxu0 %v591
    %3310 = vmatprep.subr.mxu0 0.0
    %3311 = vmatpush1.msra.mxu0 %v592
    %3312 = vmatprep.subr.mxu0 0.0
    %3313 = vmatpush1.msra.mxu0 0.0
    %3314 = vmatprep.subr.mxu0 0.0
    %3315 = vmatpush1.msra.mxu0 0.0
    %3316 = vmatprep.subr.mxu0 0.0
    %3317 = vmatpush1.msra.mxu0 0.0
    %3318 = vmatprep.subr.mxu0 0.0
    %3319 = vmatpush1.msra.mxu0 0.0
    %3320 = vmatprep.subr.mxu0 0.0
    %3321 = vmatpush1.msra.mxu0 0.0
    %3322 = vmatprep.subr.mxu0 0.0
    %3323 = vmatpush1.msra.mxu0 0.0
    %3324 = vmatprep.subr.mxu0 0.0
    %3325 = vmatpush1.msra.mxu0 0.0
    %3326 = vmatprep.subr.mxu0 0.0
    %3327 = vmatpush1.msra.mxu0 0.0
    %3328 = vmatprep.subr.mxu0 0.0
    %3329 = vmatpush1.msra.mxu0 0.0
    %3330 = vmatprep.subr.mxu0 0.0
    %3331 = vmatpush1.msra.mxu0 0.0
    %3332 = vmatprep.subr.mxu0 0.0
    %3333 = vmatpush1.msra.mxu0 0.0
    %3334 = vmatprep.subr.mxu0 0.0
    %3335 = vmatpush1.msra.mxu0 0.0
    %3336 = vmatprep.subr.mxu0 0.0
    %3337 = vmatpush1.msra.mxu0 0.0
    %3338 = vmatprep.subr.mxu0 0.0
    %3339 = vmatpush1.msra.mxu0 0.0
    %3340 = vmatprep.subr.mxu0 0.0
    %3341 = vmatpush1.msra.mxu0 0.0
    %3342 = vmatprep.subr.mxu0 0.0
    %3343 = vmatpush1.msra.mxu0 0.0
    %3344 = vmatprep.subr.mxu0 0.0
    %3345 = vmatpush1.msra.mxu0 0.0
    %3346 = vmatprep.subr.mxu0 0.0
    %3347 = vmatpush1.msra.mxu0 0.0
    %3348 = vmatprep.subr.mxu0 0.0
    %3349 = vmatpush1.msra.mxu0 0.0
    %3350 = vmatprep.subr.mxu0 0.0
    %3351 = vmatpush1.msra.mxu0 0.0
    %3352 = vmatprep.subr.mxu0 0.0
    %3353 = vmatpush1.msra.mxu0 0.0
    %3354 = vmatprep.subr.mxu0 0.0
    %3355 = vmatpush1.msra.mxu0 0.0
    %3356 = vmatprep.subr.mxu0 0.0
    %3357 = vmatpush1.msra.mxu0 0.0
    %3358 = vmatprep.subr.mxu0 0.0
    %3359 = vmatpush1.msra.mxu0 0.0
    %3360 = vmatprep.subr.mxu0 0.0
    %3361 = vmatpush1.msra.mxu0 0.0
    %3362 = vmatprep.subr.mxu0 0.0
    %3363 = vmatpush1.msra.mxu0 0.0
    %3364 = vmatprep.subr.mxu0 0.0
    %3365 = vmatpush1.msra.mxu0 0.0
    %3366 = vmatprep.subr.mxu0 0.0
    %3367 = vmatpush1.msra.mxu0 0.0
    %3368 = vmatprep.mubr.f32.mxu0 0.0
    %3369 = vmatmul.mubr.f32.gmra.mrb[0].mxu0 %v3006
    %v3370 = vpop.f32.mrb[0].mxu0
    %v3371 = vadd.f32 %v1256, %v3370
    %v3372 = vpop.f32.mrb[0].mxu0
    %3373 = vdwg.mxu0
    %v3374 = vmul.f32 %v3085, %v3371
    %v3375 = vadd.f32 %v3301, %v3374
    %v3376 = vtanh.pop %v3375
    %v3377 = vsub.f32 1.0, %v3233
    %v3378 = vmul.f32 %v3377, %v3376
    %v3379 = vmul.f32 %v3233, %v2698
    %v3380 = vadd.f32 %v3378, %v3379
    %3381 = vmatprep.subr.mxu0 0.0
    %3382 = vmatpush1.msra.mxu0 %v541
    %3383 = vmatprep.subr.mxu0 0.0
    %3384 = vmatpush1.msra.mxu0 %v542
    %3385 = vmatprep.subr.mxu0 0.0
    %3386 = vmatpush1.msra.mxu0 %v543
    %3387 = vmatprep.subr.mxu0 0.0
    %3388 = vmatpush1.msra.mxu0 %v544
    %3389 = vmatprep.subr.mxu0 0.0
    %3390 = vmatpush1.msra.mxu0 0.0
    %3391 = vmatprep.subr.mxu0 0.0
    %3392 = vmatpush1.msra.mxu0 0.0
    %3393 = vmatprep.subr.mxu0 0.0
    %3394 = vmatpush1.msra.mxu0 0.0
    %3395 = vmatprep.subr.mxu0 0.0
    %3396 = vmatpush1.msra.mxu0 0.0
    %3397 = vmatprep.subr.mxu0 0.0
    %3398 = vmatpush1.msra.mxu0 0.0
    %3399 = vmatprep.subr.mxu0 0.0
    %3400 = vmatpush1.msra.mxu0 0.0
    %3401 = vmatprep.subr.mxu0 0.0
    %3402 = vmatpush1.msra.mxu0 0.0
    %3403 = vmatprep.subr.mxu0 0.0
    %3404 = vmatpush1.msra.mxu0 0.0
    %3405 = vmatprep.subr.mxu0 0.0
    %3406 = vmatpush1.msra.mxu0 0.0
    %3407 = vmatprep.subr.mxu0 0.0
    %3408 = vmatpush1.msra.mxu0 0.0
    %3409 = vmatprep.subr.mxu0 0.0
    %3410 = vmatpush1.msra.mxu0 0.0
    %3411 = vmatprep.subr.mxu0 0.0
    %3412 = vmatpush1.msra.mxu0 0.0
    %3413 = vmatprep.subr.mxu0 0.0
    %3414 = vmatpush1.msra.mxu0 0.0
    %3415 = vmatprep.subr.mxu0 0.0
    %3416 = vmatpush1.msra.mxu0 0.0
    %3417 = vmatprep.subr.mxu0 0.0
    %3418 = vmatpush1.msra.mxu0 0.0
    %3419 = vmatprep.subr.mxu0 0.0
    %3420 = vmatpush1.msra.mxu0 0.0
    %3421 = vmatprep.subr.mxu0 0.0
    %3422 = vmatpush1.msra.mxu0 0.0
    %3423 = vmatprep.subr.mxu0 0.0
    %3424 = vmatpush1.msra.mxu0 0.0
    %3425 = vmatprep.subr.mxu0 0.0
    %3426 = vmatpush1.msra.mxu0 0.0
    %3427 = vmatprep.subr.mxu0 0.0
    %3428 = vmatpush1.msra.mxu0 0.0
    %3429 = vmatprep.subr.mxu0 0.0
    %3430 = vmatpush1.msra.mxu0 0.0
    %3431 = vmatprep.subr.mxu0 0.0
    %3432 = vmatpush1.msra.mxu0 0.0
    %3433 = vmatprep.subr.mxu0 0.0
    %3434 = vmatpush1.msra.mxu0 0.0
    %3435 = vmatprep.subr.mxu0 0.0
    %3436 = vmatpush1.msra.mxu0 0.0
    %3437 = vmatprep.subr.mxu0 0.0
    %3438 = vmatpush1.msra.mxu0 0.0
    %3439 = vmatprep.subr.mxu0 0.0
    %3440 = vmatpush1.msra.mxu0 0.0
    %3441 = vmatprep.subr.mxu0 0.0
    %3442 = vmatpush1.msra.mxu0 0.0
    %3443 = vmatprep.subr.mxu0 0.0
    %3444 = vmatpush1.msra.mxu0 0.0
    %3445 = vmatprep.mubr.f32.mxu0 0.0
    %3446 = vmatmul.mubr.f32.gmra.mrb[0].mxu0 %v2933
    %v3447 = vpop.f32.mrb[0].mxu0
    %v3448 = vadd.f32 0.0, %v3447
    %v3449 = vpop.f32.mrb[0].mxu0
    %3450 = vdwg.mxu0
    %v3451 = vadd.f32 %v287, %v3448
    %v3452 = vadd.f32 %v3451, %v677
    %v3453 = vxor.u32 %v3452, 2147483648
    %v3454 = vmul.f32 %v3453, 1.442695
    %v3455 = vpow.pop %v3454
    %v3456 = vadd.f32 %v3455, 1.0
    %v3457 = vrcp.pop %v3456
    %v3458 = vmul.f32 1.0, %v3457
    %3459 = vmatprep.subr.mxu0 0.0
    %3460 = vmatpush1.msra.mxu0 %v546
    %3461 = vmatprep.subr.mxu0 0.0
    %3462 = vmatpush1.msra.mxu0 %v547
    %3463 = vmatprep.subr.mxu0 0.0
    %3464 = vmatpush1.msra.mxu0 %v548
    %3465 = vmatprep.subr.mxu0 0.0
    %3466 = vmatpush1.msra.mxu0 %v549
    %3467 = vmatprep.subr.mxu0 0.0
    %3468 = vmatpush1.msra.mxu0 0.0
    %3469 = vmatprep.subr.mxu0 0.0
    %3470 = vmatpush1.msra.mxu0 0.0
    %3471 = vmatprep.subr.mxu0 0.0
    %3472 = vmatpush1.msra.mxu0 0.0
    %3473 = vmatprep.subr.mxu0 0.0
    %3474 = vmatpush1.msra.mxu0 0.0
    %3475 = vmatprep.subr.mxu0 0.0
    %3476 = vmatpush1.msra.mxu0 0.0
    %3477 = vmatprep.subr.mxu0 0.0
    %3478 = vmatpush1.msra.mxu0 0.0
    %3479 = vmatprep.subr.mxu0 0.0
    %3480 = vmatpush1.msra.mxu0 0.0
    %3481 = vmatprep.subr.mxu0 0.0
    %3482 = vmatpush1.msra.mxu0 0.0
    %3483 = vmatprep.subr.mxu0 0.0
    %3484 = vmatpush1.msra.mxu0 0.0
    %3485 = vmatprep.subr.mxu0 0.0
    %3486 = vmatpush1.msra.mxu0 0.0
    %3487 = vmatprep.subr.mxu0 0.0
    %3488 = vmatpush1.msra.mxu0 0.0
    %3489 = vmatprep.subr.mxu0 0.0
    %3490 = vmatpush1.msra.mxu0 0.0
    %3491 = vmatprep.subr.mxu0 0.0
    %3492 = vmatpush1.msra.mxu0 0.0
    %3493 = vmatprep.subr.mxu0 0.0
    %3494 = vmatpush1.msra.mxu0 0.0
    %3495 = vmatprep.subr.mxu0 0.0
    %3496 = vmatpush1.msra.mxu0 0.0
    %3497 = vmatprep.subr.mxu0 0.0
    %3498 = vmatpush1.msra.mxu0 0.0
    %3499 = vmatprep.subr.mxu0 0.0
    %3500 = vmatpush1.msra.mxu0 0.0
    %3501 = vmatprep.subr.mxu0 0.0
    %3502 = vmatpush1.msra.mxu0 0.0
    %3503 = vmatprep.subr.mxu0 0.0
    %3504 = vmatpush1.msra.mxu0 0.0
    %3505 = vmatprep.subr.mxu0 0.0
    %3506 = vmatpush1.msra.mxu0 0.0
    %3507 = vmatprep.subr.mxu0 0.0
    %3508 = vmatpush1.msra.mxu0 0.0
    %3509 = vmatprep.subr.mxu0 0.0
    %3510 = vmatpush1.msra.mxu0 0.0
    %3511 = vmatprep.subr.mxu0 0.0
    %3512 = vmatpush1.msra.mxu0 0.0
    %3513 = vmatprep.subr.mxu0 0.0
    %3514 = vmatpush1.msra.mxu0 0.0
    %3515 = vmatprep.subr.mxu0 0.0
    %3516 = vmatpush1.msra.mxu0 0.0
    %3517 = vmatprep.subr.mxu0 0.0
    %3518 = vmatpush1.msra.mxu0 0.0
    %3519 = vmatprep.subr.mxu0 0.0
    %3520 = vmatpush1.msra.mxu0 0.0
    %3521 = vmatprep.subr.mxu0 0.0
    %3522 = vmatpush1.msra.mxu0 0.0
    %3523 = vmatprep.mubr.f32.mxu0 0.0
    %3524 = vmatmul.mubr.f32.gmra.mrb[0].mxu0 %v2933
    %v3525 = vpop.f32.mrb[0].mxu0
    %v3526 = vadd.f32 0.0, %v3525
    %v3527 = vpop.f32.mrb[0].mxu0
    %3528 = vdwg.mxu0
    %v3529 = vadd.f32 %v405, %v3526
    %v3530 = vadd.f32 %v3529, %v761
    %v3531 = vxor.u32 %v3530, 2147483648
    %v3532 = vmul.f32 %v3531, 1.442695
    %v3533 = vpow.pop %v3532
    %v3534 = vadd.f32 %v3533, 1.0
    %v3535 = vrcp.pop %v3534
    %v3536 = vmul.f32 1.0, %v3535
    %3537 = vmatprep.subr.mxu0 0.0
    %3538 = vmatpush1.msra.mxu0 %v551
    %3539 = vmatprep.subr.mxu0 0.0
    %3540 = vmatpush1.msra.mxu0 %v552
    %3541 = vmatprep.subr.mxu0 0.0
    %3542 = vmatpush1.msra.mxu0 %v553
    %3543 = vmatprep.subr.mxu0 0.0
    %3544 = vmatpush1.msra.mxu0 %v554
    %3545 = vmatprep.subr.mxu0 0.0
    %3546 = vmatpush1.msra.mxu0 0.0
    %3547 = vmatprep.subr.mxu0 0.0
    %3548 = vmatpush1.msra.mxu0 0.0
    %3549 = vmatprep.subr.mxu0 0.0
    %3550 = vmatpush1.msra.mxu0 0.0
    %3551 = vmatprep.subr.mxu0 0.0
    %3552 = vmatpush1.msra.mxu0 0.0
    %3553 = vmatprep.subr.mxu0 0.0
    %3554 = vmatpush1.msra.mxu0 0.0
    %3555 = vmatprep.subr.mxu0 0.0
    %3556 = vmatpush1.msra.mxu0 0.0
    %3557 = vmatprep.subr.mxu0 0.0
    %3558 = vmatpush1.msra.mxu0 0.0
    %3559 = vmatprep.subr.mxu0 0.0
    %3560 = vmatpush1.msra.mxu0 0.0
    %3561 = vmatprep.subr.mxu0 0.0
    %3562 = vmatpush1.msra.mxu0 0.0
    %3563 = vmatprep.subr.mxu0 0.0
    %3564 = vmatpush1.msra.mxu0 0.0
    %3565 = vmatprep.subr.mxu0 0.0
    %3566 = vmatpush1.msra.mxu0 0.0
    %3567 = vmatprep.subr.mxu0 0.0
    %3568 = vmatpush1.msra.mxu0 0.0
    %3569 = vmatprep.subr.mxu0 0.0
    %3570 = vmatpush1.msra.mxu0 0.0
    %3571 = vmatprep.subr.mxu0 0.0
    %3572 = vmatpush1.msra.mxu0 0.0
    %3573 = vmatprep.subr.mxu0 0.0
    %3574 = vmatpush1.msra.mxu0 0.0
    %3575 = vmatprep.subr.mxu0 0.0
    %3576 = vmatpush1.msra.mxu0 0.0
    %3577 = vmatprep.subr.mxu0 0.0
    %3578 = vmatpush1.msra.mxu0 0.0
    %3579 = vmatprep.subr.mxu0 0.0
    %3580 = vmatpush1.msra.mxu0 0.0
    %3581 = vmatprep.subr.mxu0 0.0
    %3582 = vmatpush1.msra.mxu0 0.0
    %3583 = vmatprep.subr.mxu0 0.0
    %3584 = vmatpush1.msra.mxu0 0.0
    %3585 = vmatprep.subr.mxu0 0.0
    %3586 = vmatpush1.msra.mxu0 0.0
    %3587 = vmatprep.subr.mxu0 0.0
    %3588 = vmatpush1.msra.mxu0 0.0
    %3589 = vmatprep.subr.mxu0 0.0
    %3590 = vmatpush1.msra.mxu0 0.0
    %3591 = vmatprep.subr.mxu0 0.0
    %3592 = vmatpush1.msra.mxu0 0.0
    %3593 = vmatprep.subr.mxu0 0.0
    %3594 = vmatpush1.msra.mxu0 0.0
    %3595 = vmatprep.subr.mxu0 0.0
    %3596 = vmatpush1.msra.mxu0 0.0
    %3597 = vmatprep.subr.mxu0 0.0
    %3598 = vmatpush1.msra.mxu0 0.0
    %3599 = vmatprep.subr.mxu0 0.0
    %3600 = vmatpush1.msra.mxu0 0.0
    %3601 = vmatprep.mubr.f32.mxu0 0.0
    %3602 = vmatmul.mubr.f32.gmra.mrb[0].mxu0 %v2933
    %v3603 = vpop.f32.mrb[0].mxu0
    %v3604 = vadd.f32 %v774, %v3603
    %v3605 = vpop.f32.mrb[0].mxu0
    %3606 = vdwg.mxu0
    %v3607 = vmul.f32 %v3458, %v3604
    %v3608 = vadd.f32 %v523, %v3607
    %v3609 = vtanh.pop %v3608
    %v3610 = vsub.f32 1.0, %v3536
    %v3611 = vmul.f32 %v3610, %v3609
    %v3612 = vmul.f32 %v3536, %v2931
    %v3613 = vadd.f32 %v3611, %v3612
    %v3615 = vsel %vm598, %v3613, 0
    %3617 = vmatprep.subr.mxu0 0.0
    %3618 = vmatpush1.msra.mxu0 %v560
    %3619 = vmatprep.subr.mxu0 0.0
    %3620 = vmatpush1.msra.mxu0 %v561
    %3621 = vmatprep.subr.mxu0 0.0
    %3622 = vmatpush1.msra.mxu0 %v562
    %3623 = vmatprep.subr.mxu0 0.0
    %3624 = vmatpush1.msra.mxu0 %v563
    %3625 = vmatprep.subr.mxu0 0.0
    %3626 = vmatpush1.msra.mxu0 0.0
    %3627 = vmatprep.subr.mxu0 0.0
    %3628 = vmatpush1.msra.mxu0 0.0
    %3629 = vmatprep.subr.mxu0 0.0
    %3630 = vmatpush1.msra.mxu0 0.0
    %3631 = vmatprep.subr.mxu0 0.0
    %3632 = vmatpush1.msra.mxu0 0.0
    %3633 = vmatprep.subr.mxu0 0.0
    %3634 = vmatpush1.msra.mxu0 0.0
    %3635 = vmatprep.subr.mxu0 0.0
    %3636 = vmatpush1.msra.mxu0 0.0
    %3637 = vmatprep.subr.mxu0 0.0
    %3638 = vmatpush1.msra.mxu0 0.0
    %3639 = vmatprep.subr.mxu0 0.0
    %3640 = vmatpush1.msra.mxu0 0.0
    %3641 = vmatprep.subr.mxu0 0.0
    %3642 = vmatpush1.msra.mxu0 0.0
    %3643 = vmatprep.subr.mxu0 0.0
    %3644 = vmatpush1.msra.mxu0 0.0
    %3645 = vmatprep.subr.mxu0 0.0
    %3646 = vmatpush1.msra.mxu0 0.0
    %3647 = vmatprep.subr.mxu0 0.0
    %3648 = vmatpush1.msra.mxu0 0.0
    %3649 = vmatprep.subr.mxu0 0.0
    %3650 = vmatpush1.msra.mxu0 0.0
    %3651 = vmatprep.subr.mxu0 0.0
    %3652 = vmatpush1.msra.mxu0 0.0
    %3653 = vmatprep.subr.mxu0 0.0
    %3654 = vmatpush1.msra.mxu0 0.0
    %3655 = vmatprep.subr.mxu0 0.0
    %3656 = vmatpush1.msra.mxu0 0.0
    %3657 = vmatprep.subr.mxu0 0.0
    %3658 = vmatpush1.msra.mxu0 0.0
    %3659 = vmatprep.subr.mxu0 0.0
    %3660 = vmatpush1.msra.mxu0 0.0
    %3661 = vmatprep.subr.mxu0 0.0
    %3662 = vmatpush1.msra.mxu0 0.0
    %3663 = vmatprep.subr.mxu0 0.0
    %3664 = vmatpush1.msra.mxu0 0.0
    %3665 = vmatprep.subr.mxu0 0.0
    %3666 = vmatpush1.msra.mxu0 0.0
    %3667 = vmatprep.subr.mxu0 0.0
    %3668 = vmatpush1.msra.mxu0 0.0
    %3669 = vmatprep.subr.mxu0 0.0
    %3670 = vmatpush1.msra.mxu0 0.0
    %3671 = vmatprep.subr.mxu0 0.0
    %3672 = vmatpush1.msra.mxu0 0.0
    %3673 = vmatprep.subr.mxu0 0.0
    %3674 = vmatpush1.msra.mxu0 0.0
    %3675 = vmatprep.subr.mxu0 0.0
    %3676 = vmatpush1.msra.mxu0 0.0
    %3677 = vmatprep.subr.mxu0 0.0
    %3678 = vmatpush1.msra.mxu0 0.0
    %3679 = vmatprep.subr.mxu0 0.0
    %3680 = vmatpush1.msra.mxu0 0.0
    %3681 = vmatprep.mubr.f32.mxu0 0.0
    %3682 = vmatmul.mubr.f32.gmra.mrb[0].mxu0 %v3615
    %v3683 = vpop.f32.mrb[0].mxu0
    %v3684 = vadd.f32 %v857, %v3683
    %v3685 = vpop.f32.mrb[0].mxu0
    %3686 = vdwg.mxu0
    %v3688 = vsel %vm598, %v3380, 0
    %3690 = vmatprep.subr.mxu0 0.0
    %3691 = vmatpush1.msra.mxu0 %v579
    %3692 = vmatprep.subr.mxu0 0.0
    %3693 = vmatpush1.msra.mxu0 %v580
    %3694 = vmatprep.subr.mxu0 0.0
    %3695 = vmatpush1.msra.mxu0 %v581
    %3696 = vmatprep.subr.mxu0 0.0
    %3697 = vmatpush1.msra.mxu0 %v582
    %3698 = vmatprep.subr.mxu0 0.0
    %3699 = vmatpush1.msra.mxu0 0.0
    %3700 = vmatprep.subr.mxu0 0.0
    %3701 = vmatpush1.msra.mxu0 0.0
    %3702 = vmatprep.subr.mxu0 0.0
    %3703 = vmatpush1.msra.mxu0 0.0
    %3704 = vmatprep.subr.mxu0 0.0
    %3705 = vmatpush1.msra.mxu0 0.0
    %3706 = vmatprep.subr.mxu0 0.0
    %3707 = vmatpush1.msra.mxu0 0.0
    %3708 = vmatprep.subr.mxu0 0.0
    %3709 = vmatpush1.msra.mxu0 0.0
    %3710 = vmatprep.subr.mxu0 0.0
    %3711 = vmatpush1.msra.mxu0 0.0
    %3712 = vmatprep.subr.mxu0 0.0
    %3713 = vmatpush1.msra.mxu0 0.0
    %3714 = vmatprep.subr.mxu0 0.0
    %3715 = vmatpush1.msra.mxu0 0.0
    %3716 = vmatprep.subr.mxu0 0.0
    %3717 = vmatpush1.msra.mxu0 0.0
    %3718 = vmatprep.subr.mxu0 0.0
    %3719 = vmatpush1.msra.mxu0 0.0
    %3720 = vmatprep.subr.mxu0 0.0
    %3721 = vmatpush1.msra.mxu0 0.0
    %3722 = vmatprep.subr.mxu0 0.0
    %3723 = vmatpush1.msra.mxu0 0.0
    %3724 = vmatprep.subr.mxu0 0.0
    %3725 = vmatpush1.msra.mxu0 0.0
    %3726 = vmatprep.subr.mxu0 0.0
    %3727 = vmatpush1.msra.mxu0 0.0
    %3728 = vmatprep.subr.mxu0 0.0
    %3729 = vmatpush1.msra.mxu0 0.0
    %3730 = vmatprep.subr.mxu0 0.0
    %3731 = vmatpush1.msra.mxu0 0.0
    %3732 = vmatprep.subr.mxu0 0.0
    %3733 = vmatpush1.msra.mxu0 0.0
    %3734 = vmatprep.subr.mxu0 0.0
    %3735 = vmatpush1.msra.mxu0 0.0
    %3736 = vmatprep.subr.mxu0 0.0
    %3737 = vmatpush1.msra.mxu0 0.0
    %3738 = vmatprep.subr.mxu0 0.0
    %3739 = vmatpush1.msra.mxu0 0.0
    %3740 = vmatprep.subr.mxu0 0.0
    %3741 = vmatpush1.msra.mxu0 0.0
    %3742 = vmatprep.subr.mxu0 0.0
    %3743 = vmatpush1.msra.mxu0 0.0
    %3744 = vmatprep.subr.mxu0 0.0
    %3745 = vmatpush1.msra.mxu0 0.0
    %3746 = vmatprep.subr.mxu0 0.0
    %3747 = vmatpush1.msra.mxu0 0.0
    %3748 = vmatprep.subr.mxu0 0.0
    %3749 = vmatpush1.msra.mxu0 0.0
    %3750 = vmatprep.subr.mxu0 0.0
    %3751 = vmatpush1.msra.mxu0 0.0
    %3752 = vmatprep.subr.mxu0 0.0
    %3753 = vmatpush1.msra.mxu0 0.0
    %3754 = vmatprep.mubr.f32.mxu0 0.0
    %3755 = vmatmul.mubr.f32.gmra.mrb[0].mxu0 %v3688
    %v3756 = vpop.f32.mrb[0].mxu0
    %v3757 = vadd.f32 0.0, %v3756
    %v3758 = vpop.f32.mrb[0].mxu0
    %3759 = vdwg.mxu0
    %v3760 = vadd.f32 %v3684, %v3757
    %v3761 = vadd.f32 %v3760, %v1007
    %v3762 = vxor.u32 %v3761, 2147483648
    %v3763 = vmul.f32 %v3762, 1.442695
    %v3764 = vpow.pop %v3763
    %v3765 = vadd.f32 %v3764, 1.0
    %v3766 = vrcp.pop %v3765
    %v3767 = vmul.f32 1.0, %v3766
    %3768 = vmatprep.subr.mxu0 0.0
    %3769 = vmatpush1.msra.mxu0 %v565
    %3770 = vmatprep.subr.mxu0 0.0
    %3771 = vmatpush1.msra.mxu0 %v566
    %3772 = vmatprep.subr.mxu0 0.0
    %3773 = vmatpush1.msra.mxu0 %v567
    %3774 = vmatprep.subr.mxu0 0.0
    %3775 = vmatpush1.msra.mxu0 %v568
    %3776 = vmatprep.subr.mxu0 0.0
    %3777 = vmatpush1.msra.mxu0 0.0
    %3778 = vmatprep.subr.mxu0 0.0
    %3779 = vmatpush1.msra.mxu0 0.0
    %3780 = vmatprep.subr.mxu0 0.0
    %3781 = vmatpush1.msra.mxu0 0.0
    %3782 = vmatprep.subr.mxu0 0.0
    %3783 = vmatpush1.msra.mxu0 0.0
    %3784 = vmatprep.subr.mxu0 0.0
    %3785 = vmatpush1.msra.mxu0 0.0
    %3786 = vmatprep.subr.mxu0 0.0
    %3787 = vmatpush1.msra.mxu0 0.0
    %3788 = vmatprep.subr.mxu0 0.0
    %3789 = vmatpush1.msra.mxu0 0.0
    %3790 = vmatprep.subr.mxu0 0.0
    %3791 = vmatpush1.msra.mxu0 0.0
    %3792 = vmatprep.subr.mxu0 0.0
    %3793 = vmatpush1.msra.mxu0 0.0
    %3794 = vmatprep.subr.mxu0 0.0
    %3795 = vmatpush1.msra.mxu0 0.0
    %3796 = vmatprep.subr.mxu0 0.0
    %3797 = vmatpush1.msra.mxu0 0.0
    %3798 = vmatprep.subr.mxu0 0.0
    %3799 = vmatpush1.msra.mxu0 0.0
    %3800 = vmatprep.subr.mxu0 0.0
    %3801 = vmatpush1.msra.mxu0 0.0
    %3802 = vmatprep.subr.mxu0 0.0
    %3803 = vmatpush1.msra.mxu0 0.0
    %3804 = vmatprep.subr.mxu0 0.0
    %3805 = vmatpush1.msra.mxu0 0.0
    %3806 = vmatprep.subr.mxu0 0.0
    %3807 = vmatpush1.msra.mxu0 0.0
    %3808 = vmatprep.subr.mxu0 0.0
    %3809 = vmatpush1.msra.mxu0 0.0
    %3810 = vmatprep.subr.mxu0 0.0
    %3811 = vmatpush1.msra.mxu0 0.0
    %3812 = vmatprep.subr.mxu0 0.0
    %3813 = vmatpush1.msra.mxu0 0.0
    %3814 = vmatprep.subr.mxu0 0.0
    %3815 = vmatpush1.msra.mxu0 0.0
    %3816 = vmatprep.subr.mxu0 0.0
    %3817 = vmatpush1.msra.mxu0 0.0
    %3818 = vmatprep.subr.mxu0 0.0
    %3819 = vmatpush1.msra.mxu0 0.0
    %3820 = vmatprep.subr.mxu0 0.0
    %3821 = vmatpush1.msra.mxu0 0.0
    %3822 = vmatprep.subr.mxu0 0.0
    %3823 = vmatpush1.msra.mxu0 0.0
    %3824 = vmatprep.subr.mxu0 0.0
    %3825 = vmatpush1.msra.mxu0 0.0
    %3826 = vmatprep.subr.mxu0 0.0
    %3827 = vmatpush1.msra.mxu0 0.0
    %3828 = vmatprep.subr.mxu0 0.0
    %3829 = vmatpush1.msra.mxu0 0.0
    %3830 = vmatprep.subr.mxu0 0.0
    %3831 = vmatpush1.msra.mxu0 0.0
    %3832 = vmatprep.mubr.f32.mxu0 0.0
    %3833 = vmatmul.mubr.f32.gmra.mrb[0].mxu0 %v3615
    %v3834 = vpop.f32.mrb[0].mxu0
    %v3835 = vadd.f32 %v1020, %v3834
    %v3836 = vpop.f32.mrb[0].mxu0
    %3837 = vdwg.mxu0
    %3838 = vmatprep.subr.mxu0 0.0
    %3839 = vmatpush1.msra.mxu0 %v584
    %3840 = vmatprep.subr.mxu0 0.0
    %3841 = vmatpush1.msra.mxu0 %v585
    %3842 = vmatprep.subr.mxu0 0.0
    %3843 = vmatpush1.msra.mxu0 %v586
    %3844 = vmatprep.subr.mxu0 0.0
    %3845 = vmatpush1.msra.mxu0 %v587
    %3846 = vmatprep.subr.mxu0 0.0
    %3847 = vmatpush1.msra.mxu0 0.0
    %3848 = vmatprep.subr.mxu0 0.0
    %3849 = vmatpush1.msra.mxu0 0.0
    %3850 = vmatprep.subr.mxu0 0.0
    %3851 = vmatpush1.msra.mxu0 0.0
    %3852 = vmatprep.subr.mxu0 0.0
    %3853 = vmatpush1.msra.mxu0 0.0
    %3854 = vmatprep.subr.mxu0 0.0
    %3855 = vmatpush1.msra.mxu0 0.0
    %3856 = vmatprep.subr.mxu0 0.0
    %3857 = vmatpush1.msra.mxu0 0.0
    %3858 = vmatprep.subr.mxu0 0.0
    %3859 = vmatpush1.msra.mxu0 0.0
    %3860 = vmatprep.subr.mxu0 0.0
    %3861 = vmatpush1.msra.mxu0 0.0
    %3862 = vmatprep.subr.mxu0 0.0
    %3863 = vmatpush1.msra.mxu0 0.0
    %3864 = vmatprep.subr.mxu0 0.0
    %3865 = vmatpush1.msra.mxu0 0.0
    %3866 = vmatprep.subr.mxu0 0.0
    %3867 = vmatpush1.msra.mxu0 0.0
    %3868 = vmatprep.subr.mxu0 0.0
    %3869 = vmatpush1.msra.mxu0 0.0
    %3870 = vmatprep.subr.mxu0 0.0
    %3871 = vmatpush1.msra.mxu0 0.0
    %3872 = vmatprep.subr.mxu0 0.0
    %3873 = vmatpush1.msra.mxu0 0.0
    %3874 = vmatprep.subr.mxu0 0.0
    %3875 = vmatpush1.msra.mxu0 0.0
    %3876 = vmatprep.subr.mxu0 0.0
    %3877 = vmatpush1.msra.mxu0 0.0
    %3878 = vmatprep.subr.mxu0 0.0
    %3879 = vmatpush1.msra.mxu0 0.0
    %3880 = vmatprep.subr.mxu0 0.0
    %3881 = vmatpush1.msra.mxu0 0.0
    %3882 = vmatprep.subr.mxu0 0.0
    %3883 = vmatpush1.msra.mxu0 0.0
    %3884 = vmatprep.subr.mxu0 0.0
    %3885 = vmatpush1.msra.mxu0 0.0
    %3886 = vmatprep.subr.mxu0 0.0
    %3887 = vmatpush1.msra.mxu0 0.0
    %3888 = vmatprep.subr.mxu0 0.0
    %3889 = vmatpush1.msra.mxu0 0.0
    %3890 = vmatprep.subr.mxu0 0.0
    %3891 = vmatpush1.msra.mxu0 0.0
    %3892 = vmatprep.subr.mxu0 0.0
    %3893 = vmatpush1.msra.mxu0 0.0
    %3894 = vmatprep.subr.mxu0 0.0
    %3895 = vmatpush1.msra.mxu0 0.0
    %3896 = vmatprep.subr.mxu0 0.0
    %3897 = vmatpush1.msra.mxu0 0.0
    %3898 = vmatprep.subr.mxu0 0.0
    %3899 = vmatpush1.msra.mxu0 0.0
    %3900 = vmatprep.subr.mxu0 0.0
    %3901 = vmatpush1.msra.mxu0 0.0
    %3902 = vmatprep.mubr.f32.mxu0 0.0
    %3903 = vmatmul.mubr.f32.gmra.mrb[0].mxu0 %v3688
    %v3904 = vpop.f32.mrb[0].mxu0
    %v3905 = vadd.f32 0.0, %v3904
    %v3906 = vpop.f32.mrb[0].mxu0
    %3907 = vdwg.mxu0
    %v3908 = vadd.f32 %v3835, %v3905
    %v3909 = vadd.f32 %v3908, %v1167
    %v3910 = vxor.u32 %v3909, 2147483648
    %v3911 = vmul.f32 %v3910, 1.442695
    %v3912 = vpow.pop %v3911
    %v3913 = vadd.f32 %v3912, 1.0
    %v3914 = vrcp.pop %v3913
    %v3915 = vmul.f32 1.0, %v3914
    %3916 = vmatprep.subr.mxu0 0.0
    %3917 = vmatpush1.msra.mxu0 %v570
    %3918 = vmatprep.subr.mxu0 0.0
    %3919 = vmatpush1.msra.mxu0 %v571
    %3920 = vmatprep.subr.mxu0 0.0
    %3921 = vmatpush1.msra.mxu0 %v572
    %3922 = vmatprep.subr.mxu0 0.0
    %3923 = vmatpush1.msra.mxu0 %v573
    %3924 = vmatprep.subr.mxu0 0.0
    %3925 = vmatpush1.msra.mxu0 0.0
    %3926 = vmatprep.subr.mxu0 0.0
    %3927 = vmatpush1.msra.mxu0 0.0
    %3928 = vmatprep.subr.mxu0 0.0
    %3929 = vmatpush1.msra.mxu0 0.0
    %3930 = vmatprep.subr.mxu0 0.0
    %3931 = vmatpush1.msra.mxu0 0.0
    %3932 = vmatprep.subr.mxu0 0.0
    %3933 = vmatpush1.msra.mxu0 0.0
    %3934 = vmatprep.subr.mxu0 0.0
    %3935 = vmatpush1.msra.mxu0 0.0
    %3936 = vmatprep.subr.mxu0 0.0
    %3937 = vmatpush1.msra.mxu0 0.0
    %3938 = vmatprep.subr.mxu0 0.0
    %3939 = vmatpush1.msra.mxu0 0.0
    %3940 = vmatprep.subr.mxu0 0.0
    %3941 = vmatpush1.msra.mxu0 0.0
    %3942 = vmatprep.subr.mxu0 0.0
    %3943 = vmatpush1.msra.mxu0 0.0
    %3944 = vmatprep.subr.mxu0 0.0
    %3945 = vmatpush1.msra.mxu0 0.0
    %3946 = vmatprep.subr.mxu0 0.0
    %3947 = vmatpush1.msra.mxu0 0.0
    %3948 = vmatprep.subr.mxu0 0.0
    %3949 = vmatpush1.msra.mxu0 0.0
    %3950 = vmatprep.subr.mxu0 0.0
    %3951 = vmatpush1.msra.mxu0 0.0
    %3952 = vmatprep.subr.mxu0 0.0
    %3953 = vmatpush1.msra.mxu0 0.0
    %3954 = vmatprep.subr.mxu0 0.0
    %3955 = vmatpush1.msra.mxu0 0.0
    %3956 = vmatprep.subr.mxu0 0.0
    %3957 = vmatpush1.msra.mxu0 0.0
    %3958 = vmatprep.subr.mxu0 0.0
    %3959 = vmatpush1.msra.mxu0 0.0
    %3960 = vmatprep.subr.mxu0 0.0
    %3961 = vmatpush1.msra.mxu0 0.0
    %3962 = vmatprep.subr.mxu0 0.0
    %3963 = vmatpush1.msra.mxu0 0.0
    %3964 = vmatprep.subr.mxu0 0.0
    %3965 = vmatpush1.msra.mxu0 0.0
    %3966 = vmatprep.subr.mxu0 0.0
    %3967 = vmatpush1.msra.mxu0 0.0
    %3968 = vmatprep.subr.mxu0 0.0
    %3969 = vmatpush1.msra.mxu0 0.0
    %3970 = vmatprep.subr.mxu0 0.0
    %3971 = vmatpush1.msra.mxu0 0.0
    %3972 = vmatprep.subr.mxu0 0.0
    %3973 = vmatpush1.msra.mxu0 0.0
    %3974 = vmatprep.subr.mxu0 0.0
    %3975 = vmatpush1.msra.mxu0 0.0
    %3976 = vmatprep.subr.mxu0 0.0
    %3977 = vmatpush1.msra.mxu0 0.0
    %3978 = vmatprep.subr.mxu0 0.0
    %3979 = vmatpush1.msra.mxu0 0.0
    %3980 = vmatprep.mubr.f32.mxu0 0.0
    %3981 = vmatmul.mubr.f32.gmra.mrb[0].mxu0 %v3615
    %v3982 = vpop.f32.mrb[0].mxu0
    %v3983 = vadd.f32 %v1180, %v3982
    %v3984 = vpop.f32.mrb[0].mxu0
    %3985 = vdwg.mxu0
    %3986 = vmatprep.subr.mxu0 0.0
    %3987 = vmatpush1.msra.mxu0 %v589
    %3988 = vmatprep.subr.mxu0 0.0
    %3989 = vmatpush1.msra.mxu0 %v590
    %3990 = vmatprep.subr.mxu0 0.0
    %3991 = vmatpush1.msra.mxu0 %v591
    %3992 = vmatprep.subr.mxu0 0.0
    %3993 = vmatpush1.msra.mxu0 %v592
    %3994 = vmatprep.subr.mxu0 0.0
    %3995 = vmatpush1.msra.mxu0 0.0
    %3996 = vmatprep.subr.mxu0 0.0
    %3997 = vmatpush1.msra.mxu0 0.0
    %3998 = vmatprep.subr.mxu0 0.0
    %3999 = vmatpush1.msra.mxu0 0.0
    %4000 = vmatprep.subr.mxu0 0.0
    %4001 = vmatpush1.msra.mxu0 0.0
    %4002 = vmatprep.subr.mxu0 0.0
    %4003 = vmatpush1.msra.mxu0 0.0
    %4004 = vmatprep.subr.mxu0 0.0
    %4005 = vmatpush1.msra.mxu0 0.0
    %4006 = vmatprep.subr.mxu0 0.0
    %4007 = vmatpush1.msra.mxu0 0.0
    %4008 = vmatprep.subr.mxu0 0.0
    %4009 = vmatpush1.msra.mxu0 0.0
    %4010 = vmatprep.subr.mxu0 0.0
    %4011 = vmatpush1.msra.mxu0 0.0
    %4012 = vmatprep.subr.mxu0 0.0
    %4013 = vmatpush1.msra.mxu0 0.0
    %4014 = vmatprep.subr.mxu0 0.0
    %4015 = vmatpush1.msra.mxu0 0.0
    %4016 = vmatprep.subr.mxu0 0.0
    %4017 = vmatpush1.msra.mxu0 0.0
    %4018 = vmatprep.subr.mxu0 0.0
    %4019 = vmatpush1.msra.mxu0 0.0
    %4020 = vmatprep.subr.mxu0 0.0
    %4021 = vmatpush1.msra.mxu0 0.0
    %4022 = vmatprep.subr.mxu0 0.0
    %4023 = vmatpush1.msra.mxu0 0.0
    %4024 = vmatprep.subr.mxu0 0.0
    %4025 = vmatpush1.msra.mxu0 0.0
    %4026 = vmatprep.subr.mxu0 0.0
    %4027 = vmatpush1.msra.mxu0 0.0
    %4028 = vmatprep.subr.mxu0 0.0
    %4029 = vmatpush1.msra.mxu0 0.0
    %4030 = vmatprep.subr.mxu0 0.0
    %4031 = vmatpush1.msra.mxu0 0.0
    %4032 = vmatprep.subr.mxu0 0.0
    %4033 = vmatpush1.msra.mxu0 0.0
    %4034 = vmatprep.subr.mxu0 0.0
    %4035 = vmatpush1.msra.mxu0 0.0
    %4036 = vmatprep.subr.mxu0 0.0
    %4037 = vmatpush1.msra.mxu0 0.0
    %4038 = vmatprep.subr.mxu0 0.0
    %4039 = vmatpush1.msra.mxu0 0.0
    %4040 = vmatprep.subr.mxu0 0.0
    %4041 = vmatpush1.msra.mxu0 0.0
    %4042 = vmatprep.subr.mxu0 0.0
    %4043 = vmatpush1.msra.mxu0 0.0
    %4044 = vmatprep.subr.mxu0 0.0
    %4045 = vmatpush1.msra.mxu0 0.0
    %4046 = vmatprep.subr.mxu0 0.0
    %4047 = vmatpush1.msra.mxu0 0.0
    %4048 = vmatprep.subr.mxu0 0.0
    %4049 = vmatpush1.msra.mxu0 0.0
    %4050 = vmatprep.mubr.f32.mxu0 0.0
    %4051 = vmatmul.mubr.f32.gmra.mrb[0].mxu0 %v3688
    %v4052 = vpop.f32.mrb[0].mxu0
    %v4053 = vadd.f32 %v1256, %v4052
    %v4054 = vpop.f32.mrb[0].mxu0
    %4055 = vdwg.mxu0
    %v4056 = vmul.f32 %v3767, %v4053
    %v4057 = vadd.f32 %v3983, %v4056
    %v4058 = vtanh.pop %v4057
    %v4059 = vsub.f32 1.0, %v3915
    %v4060 = vmul.f32 %v4059, %v4058
    %v4061 = vmul.f32 %v3915, %v3380
    %v4062 = vadd.f32 %v4060, %v4061
    %4063 = vmatprep.subr.mxu0 0.0
    %4064 = vmatpush1.msra.mxu0 %v541
    %4065 = vmatprep.subr.mxu0 0.0
    %4066 = vmatpush1.msra.mxu0 %v542
    %4067 = vmatprep.subr.mxu0 0.0
    %4068 = vmatpush1.msra.mxu0 %v543
    %4069 = vmatprep.subr.mxu0 0.0
    %4070 = vmatpush1.msra.mxu0 %v544
    %4071 = vmatprep.subr.mxu0 0.0
    %4072 = vmatpush1.msra.mxu0 0.0
    %4073 = vmatprep.subr.mxu0 0.0
    %4074 = vmatpush1.msra.mxu0 0.0
    %4075 = vmatprep.subr.mxu0 0.0
    %4076 = vmatpush1.msra.mxu0 0.0
    %4077 = vmatprep.subr.mxu0 0.0
    %4078 = vmatpush1.msra.mxu0 0.0
    %4079 = vmatprep.subr.mxu0 0.0
    %4080 = vmatpush1.msra.mxu0 0.0
    %4081 = vmatprep.subr.mxu0 0.0
    %4082 = vmatpush1.msra.mxu0 0.0
    %4083 = vmatprep.subr.mxu0 0.0
    %4084 = vmatpush1.msra.mxu0 0.0
    %4085 = vmatprep.subr.mxu0 0.0
    %4086 = vmatpush1.msra.mxu0 0.0
    %4087 = vmatprep.subr.mxu0 0.0
    %4088 = vmatpush1.msra.mxu0 0.0
    %4089 = vmatprep.subr.mxu0 0.0
    %4090 = vmatpush1.msra.mxu0 0.0
    %4091 = vmatprep.subr.mxu0 0.0
    %4092 = vmatpush1.msra.mxu0 0.0
    %4093 = vmatprep.subr.mxu0 0.0
    %4094 = vmatpush1.msra.mxu0 0.0
    %4095 = vmatprep.subr.mxu0 0.0
    %4096 = vmatpush1.msra.mxu0 0.0
    %4097 = vmatprep.subr.mxu0 0.0
    %4098 = vmatpush1.msra.mxu0 0.0
    %4099 = vmatprep.subr.mxu0 0.0
    %4100 = vmatpush1.msra.mxu0 0.0
    %4101 = vmatprep.subr.mxu0 0.0
    %4102 = vmatpush1.msra.mxu0 0.0
    %4103 = vmatprep.subr.mxu0 0.0
    %4104 = vmatpush1.msra.mxu0 0.0
    %4105 = vmatprep.subr.mxu0 0.0
    %4106 = vmatpush1.msra.mxu0 0.0
    %4107 = vmatprep.subr.mxu0 0.0
    %4108 = vmatpush1.msra.mxu0 0.0
    %4109 = vmatprep.subr.mxu0 0.0
    %4110 = vmatpush1.msra.mxu0 0.0
    %4111 = vmatprep.subr.mxu0 0.0
    %4112 = vmatpush1.msra.mxu0 0.0
    %4113 = vmatprep.subr.mxu0 0.0
    %4114 = vmatpush1.msra.mxu0 0.0
    %4115 = vmatprep.subr.mxu0 0.0
    %4116 = vmatpush1.msra.mxu0 0.0
    %4117 = vmatprep.subr.mxu0 0.0
    %4118 = vmatpush1.msra.mxu0 0.0
    %4119 = vmatprep.subr.mxu0 0.0
    %4120 = vmatpush1.msra.mxu0 0.0
    %4121 = vmatprep.subr.mxu0 0.0
    %4122 = vmatpush1.msra.mxu0 0.0
    %4123 = vmatprep.subr.mxu0 0.0
    %4124 = vmatpush1.msra.mxu0 0.0
    %4125 = vmatprep.subr.mxu0 0.0
    %4126 = vmatpush1.msra.mxu0 0.0
    %4127 = vmatprep.mubr.f32.mxu0 0.0
    %4128 = vmatmul.mubr.f32.gmra.mrb[0].mxu0 %v3615
    %v4129 = vpop.f32.mrb[0].mxu0
    %v4130 = vadd.f32 0.0, %v4129
    %v4131 = vpop.f32.mrb[0].mxu0
    %4132 = vdwg.mxu0
    %v4133 = vadd.f32 %v292, %v4130
    %v4134 = vadd.f32 %v4133, %v677
    %v4135 = vxor.u32 %v4134, 2147483648
    %v4136 = vmul.f32 %v4135, 1.442695
    %v4137 = vpow.pop %v4136
    %v4138 = vadd.f32 %v4137, 1.0
    %v4139 = vrcp.pop %v4138
    %v4140 = vmul.f32 1.0, %v4139
    %4141 = vmatprep.subr.mxu0 0.0
    %4142 = vmatpush1.msra.mxu0 %v546
    %4143 = vmatprep.subr.mxu0 0.0
    %4144 = vmatpush1.msra.mxu0 %v547
    %4145 = vmatprep.subr.mxu0 0.0
    %4146 = vmatpush1.msra.mxu0 %v548
    %4147 = vmatprep.subr.mxu0 0.0
    %4148 = vmatpush1.msra.mxu0 %v549
    %4149 = vmatprep.subr.mxu0 0.0
    %4150 = vmatpush1.msra.mxu0 0.0
    %4151 = vmatprep.subr.mxu0 0.0
    %4152 = vmatpush1.msra.mxu0 0.0
    %4153 = vmatprep.subr.mxu0 0.0
    %4154 = vmatpush1.msra.mxu0 0.0
    %4155 = vmatprep.subr.mxu0 0.0
    %4156 = vmatpush1.msra.mxu0 0.0
    %4157 = vmatprep.subr.mxu0 0.0
    %4158 = vmatpush1.msra.mxu0 0.0
    %4159 = vmatprep.subr.mxu0 0.0
    %4160 = vmatpush1.msra.mxu0 0.0
    %4161 = vmatprep.subr.mxu0 0.0
    %4162 = vmatpush1.msra.mxu0 0.0
    %4163 = vmatprep.subr.mxu0 0.0
    %4164 = vmatpush1.msra.mxu0 0.0
    %4165 = vmatprep.subr.mxu0 0.0
    %4166 = vmatpush1.msra.mxu0 0.0
    %4167 = vmatprep.subr.mxu0 0.0
    %4168 = vmatpush1.msra.mxu0 0.0
    %4169 = vmatprep.subr.mxu0 0.0
    %4170 = vmatpush1.msra.mxu0 0.0
    %4171 = vmatprep.subr.mxu0 0.0
    %4172 = vmatpush1.msra.mxu0 0.0
    %4173 = vmatprep.subr.mxu0 0.0
    %4174 = vmatpush1.msra.mxu0 0.0
    %4175 = vmatprep.subr.mxu0 0.0
    %4176 = vmatpush1.msra.mxu0 0.0
    %4177 = vmatprep.subr.mxu0 0.0
    %4178 = vmatpush1.msra.mxu0 0.0
    %4179 = vmatprep.subr.mxu0 0.0
    %4180 = vmatpush1.msra.mxu0 0.0
    %4181 = vmatprep.subr.mxu0 0.0
    %4182 = vmatpush1.msra.mxu0 0.0
    %4183 = vmatprep.subr.mxu0 0.0
    %4184 = vmatpush1.msra.mxu0 0.0
    %4185 = vmatprep.subr.mxu0 0.0
    %4186 = vmatpush1.msra.mxu0 0.0
    %4187 = vmatprep.subr.mxu0 0.0
    %4188 = vmatpush1.msra.mxu0 0.0
    %4189 = vmatprep.subr.mxu0 0.0
    %4190 = vmatpush1.msra.mxu0 0.0
    %4191 = vmatprep.subr.mxu0 0.0
    %4192 = vmatpush1.msra.mxu0 0.0
    %4193 = vmatprep.subr.mxu0 0.0
    %4194 = vmatpush1.msra.mxu0 0.0
    %4195 = vmatprep.subr.mxu0 0.0
    %4196 = vmatpush1.msra.mxu0 0.0
    %4197 = vmatprep.subr.mxu0 0.0
    %4198 = vmatpush1.msra.mxu0 0.0
    %4199 = vmatprep.subr.mxu0 0.0
    %4200 = vmatpush1.msra.mxu0 0.0
    %4201 = vmatprep.subr.mxu0 0.0
    %4202 = vmatpush1.msra.mxu0 0.0
    %4203 = vmatprep.subr.mxu0 0.0
    %4204 = vmatpush1.msra.mxu0 0.0
    %4205 = vmatprep.mubr.f32.mxu0 0.0
    %4206 = vmatmul.mubr.f32.gmra.mrb[0].mxu0 %v3615
    %v4207 = vpop.f32.mrb[0].mxu0
    %v4208 = vadd.f32 0.0, %v4207
    %v4209 = vpop.f32.mrb[0].mxu0
    %4210 = vdwg.mxu0
    %v4211 = vadd.f32 %v410, %v4208
    %v4212 = vadd.f32 %v4211, %v761
    %v4213 = vxor.u32 %v4212, 2147483648
    %v4214 = vmul.f32 %v4213, 1.442695
    %v4215 = vpow.pop %v4214
    %v4216 = vadd.f32 %v4215, 1.0
    %v4217 = vrcp.pop %v4216
    %v4218 = vmul.f32 1.0, %v4217
    %4219 = vmatprep.subr.mxu0 0.0
    %4220 = vmatpush1.msra.mxu0 %v551
    %4221 = vmatprep.subr.mxu0 0.0
    %4222 = vmatpush1.msra.mxu0 %v552
    %4223 = vmatprep.subr.mxu0 0.0
    %4224 = vmatpush1.msra.mxu0 %v553
    %4225 = vmatprep.subr.mxu0 0.0
    %4226 = vmatpush1.msra.mxu0 %v554
    %4227 = vmatprep.subr.mxu0 0.0
    %4228 = vmatpush1.msra.mxu0 0.0
    %4229 = vmatprep.subr.mxu0 0.0
    %4230 = vmatpush1.msra.mxu0 0.0
    %4231 = vmatprep.subr.mxu0 0.0
    %4232 = vmatpush1.msra.mxu0 0.0
    %4233 = vmatprep.subr.mxu0 0.0
    %4234 = vmatpush1.msra.mxu0 0.0
    %4235 = vmatprep.subr.mxu0 0.0
    %4236 = vmatpush1.msra.mxu0 0.0
    %4237 = vmatprep.subr.mxu0 0.0
    %4238 = vmatpush1.msra.mxu0 0.0
    %4239 = vmatprep.subr.mxu0 0.0
    %4240 = vmatpush1.msra.mxu0 0.0
    %4241 = vmatprep.subr.mxu0 0.0
    %4242 = vmatpush1.msra.mxu0 0.0
    %4243 = vmatprep.subr.mxu0 0.0
    %4244 = vmatpush1.msra.mxu0 0.0
    %4245 = vmatprep.subr.mxu0 0.0
    %4246 = vmatpush1.msra.mxu0 0.0
    %4247 = vmatprep.subr.mxu0 0.0
    %4248 = vmatpush1.msra.mxu0 0.0
    %4249 = vmatprep.subr.mxu0 0.0
    %4250 = vmatpush1.msra.mxu0 0.0
    %4251 = vmatprep.subr.mxu0 0.0
    %4252 = vmatpush1.msra.mxu0 0.0
    %4253 = vmatprep.subr.mxu0 0.0
    %4254 = vmatpush1.msra.mxu0 0.0
    %4255 = vmatprep.subr.mxu0 0.0
    %4256 = vmatpush1.msra.mxu0 0.0
    %4257 = vmatprep.subr.mxu0 0.0
    %4258 = vmatpush1.msra.mxu0 0.0
    %4259 = vmatprep.subr.mxu0 0.0
    %4260 = vmatpush1.msra.mxu0 0.0
    %4261 = vmatprep.subr.mxu0 0.0
    %4262 = vmatpush1.msra.mxu0 0.0
    %4263 = vmatprep.subr.mxu0 0.0
    %4264 = vmatpush1.msra.mxu0 0.0
    %4265 = vmatprep.subr.mxu0 0.0
    %4266 = vmatpush1.msra.mxu0 0.0
    %4267 = vmatprep.subr.mxu0 0.0
    %4268 = vmatpush1.msra.mxu0 0.0
    %4269 = vmatprep.subr.mxu0 0.0
    %4270 = vmatpush1.msra.mxu0 0.0
    %4271 = vmatprep.subr.mxu0 0.0
    %4272 = vmatpush1.msra.mxu0 0.0
    %4273 = vmatprep.subr.mxu0 0.0
    %4274 = vmatpush1.msra.mxu0 0.0
    %4275 = vmatprep.subr.mxu0 0.0
    %4276 = vmatpush1.msra.mxu0 0.0
    %4277 = vmatprep.subr.mxu0 0.0
    %4278 = vmatpush1.msra.mxu0 0.0
    %4279 = vmatprep.subr.mxu0 0.0
    %4280 = vmatpush1.msra.mxu0 0.0
    %4281 = vmatprep.subr.mxu0 0.0
    %4282 = vmatpush1.msra.mxu0 0.0
    %4283 = vmatprep.mubr.f32.mxu0 0.0
    %4284 = vmatmul.mubr.f32.gmra.mrb[0].mxu0 %v3615
    %v4285 = vpop.f32.mrb[0].mxu0
    %v4286 = vadd.f32 %v774, %v4285
    %v4287 = vpop.f32.mrb[0].mxu0
    %4288 = vdwg.mxu0
    %v4289 = vmul.f32 %v4140, %v4286
    %v4290 = vadd.f32 %v528, %v4289
    %v4291 = vtanh.pop %v4290
    %v4292 = vsub.f32 1.0, %v4218
    %v4293 = vmul.f32 %v4292, %v4291
    %v4294 = vmul.f32 %v4218, %v3613
    %v4295 = vadd.f32 %v4293, %v4294
    %v4297 = vsel %vm598, %v4295, 0
    %4299 = vmatprep.subr.mxu0 0.0
    %4300 = vmatpush1.msra.mxu0 %v560
    %4301 = vmatprep.subr.mxu0 0.0
    %4302 = vmatpush1.msra.mxu0 %v561
    %4303 = vmatprep.subr.mxu0 0.0
    %4304 = vmatpush1.msra.mxu0 %v562
    %4305 = vmatprep.subr.mxu0 0.0
    %4306 = vmatpush1.msra.mxu0 %v563
    %4307 = vmatprep.subr.mxu0 0.0
    %4308 = vmatpush1.msra.mxu0 0.0
    %4309 = vmatprep.subr.mxu0 0.0
    %4310 = vmatpush1.msra.mxu0 0.0
    %4311 = vmatprep.subr.mxu0 0.0
    %4312 = vmatpush1.msra.mxu0 0.0
    %4313 = vmatprep.subr.mxu0 0.0
    %4314 = vmatpush1.msra.mxu0 0.0
    %4315 = vmatprep.subr.mxu0 0.0
    %4316 = vmatpush1.msra.mxu0 0.0
    %4317 = vmatprep.subr.mxu0 0.0
    %4318 = vmatpush1.msra.mxu0 0.0
    %4319 = vmatprep.subr.mxu0 0.0
    %4320 = vmatpush1.msra.mxu0 0.0
    %4321 = vmatprep.subr.mxu0 0.0
    %4322 = vmatpush1.msra.mxu0 0.0
    %4323 = vmatprep.subr.mxu0 0.0
    %4324 = vmatpush1.msra.mxu0 0.0
    %4325 = vmatprep.subr.mxu0 0.0
    %4326 = vmatpush1.msra.mxu0 0.0
    %4327 = vmatprep.subr.mxu0 0.0
    %4328 = vmatpush1.msra.mxu0 0.0
    %4329 = vmatprep.subr.mxu0 0.0
    %4330 = vmatpush1.msra.mxu0 0.0
    %4331 = vmatprep.subr.mxu0 0.0
    %4332 = vmatpush1.msra.mxu0 0.0
    %4333 = vmatprep.subr.mxu0 0.0
    %4334 = vmatpush1.msra.mxu0 0.0
    %4335 = vmatprep.subr.mxu0 0.0
    %4336 = vmatpush1.msra.mxu0 0.0
    %4337 = vmatprep.subr.mxu0 0.0
    %4338 = vmatpush1.msra.mxu0 0.0
    %4339 = vmatprep.subr.mxu0 0.0
    %4340 = vmatpush1.msra.mxu0 0.0
    %4341 = vmatprep.subr.mxu0 0.0
    %4342 = vmatpush1.msra.mxu0 0.0
    %4343 = vmatprep.subr.mxu0 0.0
    %4344 = vmatpush1.msra.mxu0 0.0
    %4345 = vmatprep.subr.mxu0 0.0
    %4346 = vmatpush1.msra.mxu0 0.0
    %4347 = vmatprep.subr.mxu0 0.0
    %4348 = vmatpush1.msra.mxu0 0.0
    %4349 = vmatprep.subr.mxu0 0.0
    %4350 = vmatpush1.msra.mxu0 0.0
    %4351 = vmatprep.subr.mxu0 0.0
    %4352 = vmatpush1.msra.mxu0 0.0
    %4353 = vmatprep.subr.mxu0 0.0
    %4354 = vmatpush1.msra.mxu0 0.0
    %4355 = vmatprep.subr.mxu0 0.0
    %4356 = vmatpush1.msra.mxu0 0.0
    %4357 = vmatprep.subr.mxu0 0.0
    %4358 = vmatpush1.msra.mxu0 0.0
    %4359 = vmatprep.subr.mxu0 0.0
    %4360 = vmatpush1.msra.mxu0 0.0
    %4361 = vmatprep.subr.mxu0 0.0
    %4362 = vmatpush1.msra.mxu0 0.0
    %4363 = vmatprep.mubr.f32.mxu0 0.0
    %4364 = vmatmul.mubr.f32.gmra.mrb[0].mxu0 %v4297
    %v4365 = vpop.f32.mrb[0].mxu0
    %v4366 = vadd.f32 %v857, %v4365
    %v4367 = vpop.f32.mrb[0].mxu0
    %4368 = vdwg.mxu0
    %v4370 = vsel %vm598, %v4062, 0
    %4372 = vmatprep.subr.mxu0 0.0
    %4373 = vmatpush1.msra.mxu0 %v579
    %4374 = vmatprep.subr.mxu0 0.0
    %4375 = vmatpush1.msra.mxu0 %v580
    %4376 = vmatprep.subr.mxu0 0.0
    %4377 = vmatpush1.msra.mxu0 %v581
    %4378 = vmatprep.subr.mxu0 0.0
    %4379 = vmatpush1.msra.mxu0 %v582
    %4380 = vmatprep.subr.mxu0 0.0
    %4381 = vmatpush1.msra.mxu0 0.0
    %4382 = vmatprep.subr.mxu0 0.0
    %4383 = vmatpush1.msra.mxu0 0.0
    %4384 = vmatprep.subr.mxu0 0.0
    %4385 = vmatpush1.msra.mxu0 0.0
    %4386 = vmatprep.subr.mxu0 0.0
    %4387 = vmatpush1.msra.mxu0 0.0
    %4388 = vmatprep.subr.mxu0 0.0
    %4389 = vmatpush1.msra.mxu0 0.0
    %4390 = vmatprep.subr.mxu0 0.0
    %4391 = vmatpush1.msra.mxu0 0.0
    %4392 = vmatprep.subr.mxu0 0.0
    %4393 = vmatpush1.msra.mxu0 0.0
    %4394 = vmatprep.subr.mxu0 0.0
    %4395 = vmatpush1.msra.mxu0 0.0
    %4396 = vmatprep.subr.mxu0 0.0
    %4397 = vmatpush1.msra.mxu0 0.0
    %4398 = vmatprep.subr.mxu0 0.0
    %4399 = vmatpush1.msra.mxu0 0.0
    %4400 = vmatprep.subr.mxu0 0.0
    %4401 = vmatpush1.msra.mxu0 0.0
    %4402 = vmatprep.subr.mxu0 0.0
    %4403 = vmatpush1.msra.mxu0 0.0
    %4404 = vmatprep.subr.mxu0 0.0
    %4405 = vmatpush1.msra.mxu0 0.0
    %4406 = vmatprep.subr.mxu0 0.0
    %4407 = vmatpush1.msra.mxu0 0.0
    %4408 = vmatprep.subr.mxu0 0.0
    %4409 = vmatpush1.msra.mxu0 0.0
    %4410 = vmatprep.subr.mxu0 0.0
    %4411 = vmatpush1.msra.mxu0 0.0
    %4412 = vmatprep.subr.mxu0 0.0
    %4413 = vmatpush1.msra.mxu0 0.0
    %4414 = vmatprep.subr.mxu0 0.0
    %4415 = vmatpush1.msra.mxu0 0.0
    %4416 = vmatprep.subr.mxu0 0.0
    %4417 = vmatpush1.msra.mxu0 0.0
    %4418 = vmatprep.subr.mxu0 0.0
    %4419 = vmatpush1.msra.mxu0 0.0
    %4420 = vmatprep.subr.mxu0 0.0
    %4421 = vmatpush1.msra.mxu0 0.0
    %4422 = vmatprep.subr.mxu0 0.0
    %4423 = vmatpush1.msra.mxu0 0.0
    %4424 = vmatprep.subr.mxu0 0.0
    %4425 = vmatpush1.msra.mxu0 0.0
    %4426 = vmatprep.subr.mxu0 0.0
    %4427 = vmatpush1.msra.mxu0 0.0
    %4428 = vmatprep.subr.mxu0 0.0
    %4429 = vmatpush1.msra.mxu0 0.0
    %4430 = vmatprep.subr.mxu0 0.0
    %4431 = vmatpush1.msra.mxu0 0.0
    %4432 = vmatprep.subr.mxu0 0.0
    %4433 = vmatpush1.msra.mxu0 0.0
    %4434 = vmatprep.subr.mxu0 0.0
    %4435 = vmatpush1.msra.mxu0 0.0
    %4436 = vmatprep.mubr.f32.mxu0 0.0
    %4437 = vmatmul.mubr.f32.gmra.mrb[0].mxu0 %v4370
    %v4438 = vpop.f32.mrb[0].mxu0
    %v4439 = vadd.f32 0.0, %v4438
    %v4440 = vpop.f32.mrb[0].mxu0
    %4441 = vdwg.mxu0
    %v4442 = vadd.f32 %v4366, %v4439
    %v4443 = vadd.f32 %v4442, %v1007
    %v4444 = vxor.u32 %v4443, 2147483648
    %v4445 = vmul.f32 %v4444, 1.442695
    %v4446 = vpow.pop %v4445
    %v4447 = vadd.f32 %v4446, 1.0
    %v4448 = vrcp.pop %v4447
    %v4449 = vmul.f32 1.0, %v4448
    %4450 = vmatprep.subr.mxu0 0.0
    %4451 = vmatpush1.msra.mxu0 %v565
    %4452 = vmatprep.subr.mxu0 0.0
    %4453 = vmatpush1.msra.mxu0 %v566
    %4454 = vmatprep.subr.mxu0 0.0
    %4455 = vmatpush1.msra.mxu0 %v567
    %4456 = vmatprep.subr.mxu0 0.0
    %4457 = vmatpush1.msra.mxu0 %v568
    %4458 = vmatprep.subr.mxu0 0.0
    %4459 = vmatpush1.msra.mxu0 0.0
    %4460 = vmatprep.subr.mxu0 0.0
    %4461 = vmatpush1.msra.mxu0 0.0
    %4462 = vmatprep.subr.mxu0 0.0
    %4463 = vmatpush1.msra.mxu0 0.0
    %4464 = vmatprep.subr.mxu0 0.0
    %4465 = vmatpush1.msra.mxu0 0.0
    %4466 = vmatprep.subr.mxu0 0.0
    %4467 = vmatpush1.msra.mxu0 0.0
    %4468 = vmatprep.subr.mxu0 0.0
    %4469 = vmatpush1.msra.mxu0 0.0
    %4470 = vmatprep.subr.mxu0 0.0
    %4471 = vmatpush1.msra.mxu0 0.0
    %4472 = vmatprep.subr.mxu0 0.0
    %4473 = vmatpush1.msra.mxu0 0.0
    %4474 = vmatprep.subr.mxu0 0.0
    %4475 = vmatpush1.msra.mxu0 0.0
    %4476 = vmatprep.subr.mxu0 0.0
    %4477 = vmatpush1.msra.mxu0 0.0
    %4478 = vmatprep.subr.mxu0 0.0
    %4479 = vmatpush1.msra.mxu0 0.0
    %4480 = vmatprep.subr.mxu0 0.0
    %4481 = vmatpush1.msra.mxu0 0.0
    %4482 = vmatprep.subr.mxu0 0.0
    %4483 = vmatpush1.msra.mxu0 0.0
    %4484 = vmatprep.subr.mxu0 0.0
    %4485 = vmatpush1.msra.mxu0 0.0
    %4486 = vmatprep.subr.mxu0 0.0
    %4487 = vmatpush1.msra.mxu0 0.0
    %4488 = vmatprep.subr.mxu0 0.0
    %4489 = vmatpush1.msra.mxu0 0.0
    %4490 = vmatprep.subr.mxu0 0.0
    %4491 = vmatpush1.msra.mxu0 0.0
    %4492 = vmatprep.subr.mxu0 0.0
    %4493 = vmatpush1.msra.mxu0 0.0
    %4494 = vmatprep.subr.mxu0 0.0
    %4495 = vmatpush1.msra.mxu0 0.0
    %4496 = vmatprep.subr.mxu0 0.0
    %4497 = vmatpush1.msra.mxu0 0.0
    %4498 = vmatprep.subr.mxu0 0.0
    %4499 = vmatpush1.msra.mxu0 0.0
    %4500 = vmatprep.subr.mxu0 0.0
    %4501 = vmatpush1.msra.mxu0 0.0
    %4502 = vmatprep.subr.mxu0 0.0
    %4503 = vmatpush1.msra.mxu0 0.0
    %4504 = vmatprep.subr.mxu0 0.0
    %4505 = vmatpush1.msra.mxu0 0.0
    %4506 = vmatprep.subr.mxu0 0.0
    %4507 = vmatpush1.msra.mxu0 0.0
    %4508 = vmatprep.subr.mxu0 0.0
    %4509 = vmatpush1.msra.mxu0 0.0
    %4510 = vmatprep.subr.mxu0 0.0
    %4511 = vmatpush1.msra.mxu0 0.0
    %4512 = vmatprep.subr.mxu0 0.0
    %4513 = vmatpush1.msra.mxu0 0.0
    %4514 = vmatprep.mubr.f32.mxu0 0.0
    %4515 = vmatmul.mubr.f32.gmra.mrb[0].mxu0 %v4297
    %v4516 = vpop.f32.mrb[0].mxu0
    %v4517 = vadd.f32 %v1020, %v4516
    %v4518 = vpop.f32.mrb[0].mxu0
    %4519 = vdwg.mxu0
    %4520 = vmatprep.subr.mxu0 0.0
    %4521 = vmatpush1.msra.mxu0 %v584
    %4522 = vmatprep.subr.mxu0 0.0
    %4523 = vmatpush1.msra.mxu0 %v585
    %4524 = vmatprep.subr.mxu0 0.0
    %4525 = vmatpush1.msra.mxu0 %v586
    %4526 = vmatprep.subr.mxu0 0.0
    %4527 = vmatpush1.msra.mxu0 %v587
    %4528 = vmatprep.subr.mxu0 0.0
    %4529 = vmatpush1.msra.mxu0 0.0
    %4530 = vmatprep.subr.mxu0 0.0
    %4531 = vmatpush1.msra.mxu0 0.0
    %4532 = vmatprep.subr.mxu0 0.0
    %4533 = vmatpush1.msra.mxu0 0.0
    %4534 = vmatprep.subr.mxu0 0.0
    %4535 = vmatpush1.msra.mxu0 0.0
    %4536 = vmatprep.subr.mxu0 0.0
    %4537 = vmatpush1.msra.mxu0 0.0
    %4538 = vmatprep.subr.mxu0 0.0
    %4539 = vmatpush1.msra.mxu0 0.0
    %4540 = vmatprep.subr.mxu0 0.0
    %4541 = vmatpush1.msra.mxu0 0.0
    %4542 = vmatprep.subr.mxu0 0.0
    %4543 = vmatpush1.msra.mxu0 0.0
    %4544 = vmatprep.subr.mxu0 0.0
    %4545 = vmatpush1.msra.mxu0 0.0
    %4546 = vmatprep.subr.mxu0 0.0
    %4547 = vmatpush1.msra.mxu0 0.0
    %4548 = vmatprep.subr.mxu0 0.0
    %4549 = vmatpush1.msra.mxu0 0.0
    %4550 = vmatprep.subr.mxu0 0.0
    %4551 = vmatpush1.msra.mxu0 0.0
    %4552 = vmatprep.subr.mxu0 0.0
    %4553 = vmatpush1.msra.mxu0 0.0
    %4554 = vmatprep.subr.mxu0 0.0
    %4555 = vmatpush1.msra.mxu0 0.0
    %4556 = vmatprep.subr.mxu0 0.0
    %4557 = vmatpush1.msra.mxu0 0.0
    %4558 = vmatprep.subr.mxu0 0.0
    %4559 = vmatpush1.msra.mxu0 0.0
    %4560 = vmatprep.subr.mxu0 0.0
    %4561 = vmatpush1.msra.mxu0 0.0
    %4562 = vmatprep.subr.mxu0 0.0
    %4563 = vmatpush1.msra.mxu0 0.0
    %4564 = vmatprep.subr.mxu0 0.0
    %4565 = vmatpush1.msra.mxu0 0.0
    %4566 = vmatprep.subr.mxu0 0.0
    %4567 = vmatpush1.msra.mxu0 0.0
    %4568 = vmatprep.subr.mxu0 0.0
    %4569 = vmatpush1.msra.mxu0 0.0
    %4570 = vmatprep.subr.mxu0 0.0
    %4571 = vmatpush1.msra.mxu0 0.0
    %4572 = vmatprep.subr.mxu0 0.0
    %4573 = vmatpush1.msra.mxu0 0.0
    %4574 = vmatprep.subr.mxu0 0.0
    %4575 = vmatpush1.msra.mxu0 0.0
    %4576 = vmatprep.subr.mxu0 0.0
    %4577 = vmatpush1.msra.mxu0 0.0
    %4578 = vmatprep.subr.mxu0 0.0
    %4579 = vmatpush1.msra.mxu0 0.0
    %4580 = vmatprep.subr.mxu0 0.0
    %4581 = vmatpush1.msra.mxu0 0.0
    %4582 = vmatprep.subr.mxu0 0.0
    %4583 = vmatpush1.msra.mxu0 0.0
    %4584 = vmatprep.mubr.f32.mxu0 0.0
    %4585 = vmatmul.mubr.f32.gmra.mrb[0].mxu0 %v4370
    %v4586 = vpop.f32.mrb[0].mxu0
    %v4587 = vadd.f32 0.0, %v4586
    %v4588 = vpop.f32.mrb[0].mxu0
    %4589 = vdwg.mxu0
    %v4590 = vadd.f32 %v4517, %v4587
    %v4591 = vadd.f32 %v4590, %v1167
    %v4592 = vxor.u32 %v4591, 2147483648
    %v4593 = vmul.f32 %v4592, 1.442695
    %v4594 = vpow.pop %v4593
    %v4595 = vadd.f32 %v4594, 1.0
    %v4596 = vrcp.pop %v4595
    %v4597 = vmul.f32 1.0, %v4596
    %4598 = vmatprep.subr.mxu0 0.0
    %4599 = vmatpush1.msra.mxu0 %v570
    %4600 = vmatprep.subr.mxu0 0.0
    %4601 = vmatpush1.msra.mxu0 %v571
    %4602 = vmatprep.subr.mxu0 0.0
    %4603 = vmatpush1.msra.mxu0 %v572
    %4604 = vmatprep.subr.mxu0 0.0
    %4605 = vmatpush1.msra.mxu0 %v573
    %4606 = vmatprep.subr.mxu0 0.0
    %4607 = vmatpush1.msra.mxu0 0.0
    %4608 = vmatprep.subr.mxu0 0.0
    %4609 = vmatpush1.msra.mxu0 0.0
    %4610 = vmatprep.subr.mxu0 0.0
    %4611 = vmatpush1.msra.mxu0 0.0
    %4612 = vmatprep.subr.mxu0 0.0
    %4613 = vmatpush1.msra.mxu0 0.0
    %4614 = vmatprep.subr.mxu0 0.0
    %4615 = vmatpush1.msra.mxu0 0.0
    %4616 = vmatprep.subr.mxu0 0.0
    %4617 = vmatpush1.msra.mxu0 0.0
    %4618 = vmatprep.subr.mxu0 0.0
    %4619 = vmatpush1.msra.mxu0 0.0
    %4620 = vmatprep.subr.mxu0 0.0
    %4621 = vmatpush1.msra.mxu0 0.0
    %4622 = vmatprep.subr.mxu0 0.0
    %4623 = vmatpush1.msra.mxu0 0.0
    %4624 = vmatprep.subr.mxu0 0.0
    %4625 = vmatpush1.msra.mxu0 0.0
    %4626 = vmatprep.subr.mxu0 0.0
    %4627 = vmatpush1.msra.mxu0 0.0
    %4628 = vmatprep.subr.mxu0 0.0
    %4629 = vmatpush1.msra.mxu0 0.0
    %4630 = vmatprep.subr.mxu0 0.0
    %4631 = vmatpush1.msra.mxu0 0.0
    %4632 = vmatprep.subr.mxu0 0.0
    %4633 = vmatpush1.msra.mxu0 0.0
    %4634 = vmatprep.subr.mxu0 0.0
    %4635 = vmatpush1.msra.mxu0 0.0
    %4636 = vmatprep.subr.mxu0 0.0
    %4637 = vmatpush1.msra.mxu0 0.0
    %4638 = vmatprep.subr.mxu0 0.0
    %4639 = vmatpush1.msra.mxu0 0.0
    %4640 = vmatprep.subr.mxu0 0.0
    %4641 = vmatpush1.msra.mxu0 0.0
    %4642 = vmatprep.subr.mxu0 0.0
    %4643 = vmatpush1.msra.mxu0 0.0
    %4644 = vmatprep.subr.mxu0 0.0
    %4645 = vmatpush1.msra.mxu0 0.0
    %4646 = vmatprep.subr.mxu0 0.0
    %4647 = vmatpush1.msra.mxu0 0.0
    %4648 = vmatprep.subr.mxu0 0.0
    %4649 = vmatpush1.msra.mxu0 0.0
    %4650 = vmatprep.subr.mxu0 0.0
    %4651 = vmatpush1.msra.mxu0 0.0
    %4652 = vmatprep.subr.mxu0 0.0
    %4653 = vmatpush1.msra.mxu0 0.0
    %4654 = vmatprep.subr.mxu0 0.0
    %4655 = vmatpush1.msra.mxu0 0.0
    %4656 = vmatprep.subr.mxu0 0.0
    %4657 = vmatpush1.msra.mxu0 0.0
    %4658 = vmatprep.subr.mxu0 0.0
    %4659 = vmatpush1.msra.mxu0 0.0
    %4660 = vmatprep.subr.mxu0 0.0
    %4661 = vmatpush1.msra.mxu0 0.0
    %4662 = vmatprep.mubr.f32.mxu0 0.0
    %4663 = vmatmul.mubr.f32.gmra.mrb[0].mxu0 %v4297
    %v4664 = vpop.f32.mrb[0].mxu0
    %v4665 = vadd.f32 %v1180, %v4664
    %v4666 = vpop.f32.mrb[0].mxu0
    %4667 = vdwg.mxu0
    %4668 = vmatprep.subr.mxu0 0.0
    %4669 = vmatpush1.msra.mxu0 %v589
    %4670 = vmatprep.subr.mxu0 0.0
    %4671 = vmatpush1.msra.mxu0 %v590
    %4672 = vmatprep.subr.mxu0 0.0
    %4673 = vmatpush1.msra.mxu0 %v591
    %4674 = vmatprep.subr.mxu0 0.0
    %4675 = vmatpush1.msra.mxu0 %v592
    %4676 = vmatprep.subr.mxu0 0.0
    %4677 = vmatpush1.msra.mxu0 0.0
    %4678 = vmatprep.subr.mxu0 0.0
    %4679 = vmatpush1.msra.mxu0 0.0
    %4680 = vmatprep.subr.mxu0 0.0
    %4681 = vmatpush1.msra.mxu0 0.0
    %4682 = vmatprep.subr.mxu0 0.0
    %4683 = vmatpush1.msra.mxu0 0.0
    %4684 = vmatprep.subr.mxu0 0.0
    %4685 = vmatpush1.msra.mxu0 0.0
    %4686 = vmatprep.subr.mxu0 0.0
    %4687 = vmatpush1.msra.mxu0 0.0
    %4688 = vmatprep.subr.mxu0 0.0
    %4689 = vmatpush1.msra.mxu0 0.0
    %4690 = vmatprep.subr.mxu0 0.0
    %4691 = vmatpush1.msra.mxu0 0.0
    %4692 = vmatprep.subr.mxu0 0.0
    %4693 = vmatpush1.msra.mxu0 0.0
    %4694 = vmatprep.subr.mxu0 0.0
    %4695 = vmatpush1.msra.mxu0 0.0
    %4696 = vmatprep.subr.mxu0 0.0
    %4697 = vmatpush1.msra.mxu0 0.0
    %4698 = vmatprep.subr.mxu0 0.0
    %4699 = vmatpush1.msra.mxu0 0.0
    %4700 = vmatprep.subr.mxu0 0.0
    %4701 = vmatpush1.msra.mxu0 0.0
    %4702 = vmatprep.subr.mxu0 0.0
    %4703 = vmatpush1.msra.mxu0 0.0
    %4704 = vmatprep.subr.mxu0 0.0
    %4705 = vmatpush1.msra.mxu0 0.0
    %4706 = vmatprep.subr.mxu0 0.0
    %4707 = vmatpush1.msra.mxu0 0.0
    %4708 = vmatprep.subr.mxu0 0.0
    %4709 = vmatpush1.msra.mxu0 0.0
    %4710 = vmatprep.subr.mxu0 0.0
    %4711 = vmatpush1.msra.mxu0 0.0
    %4712 = vmatprep.subr.mxu0 0.0
    %4713 = vmatpush1.msra.mxu0 0.0
    %4714 = vmatprep.subr.mxu0 0.0
    %4715 = vmatpush1.msra.mxu0 0.0
    %4716 = vmatprep.subr.mxu0 0.0
    %4717 = vmatpush1.msra.mxu0 0.0
    %4718 = vmatprep.subr.mxu0 0.0
    %4719 = vmatpush1.msra.mxu0 0.0
    %4720 = vmatprep.subr.mxu0 0.0
    %4721 = vmatpush1.msra.mxu0 0.0
    %4722 = vmatprep.subr.mxu0 0.0
    %4723 = vmatpush1.msra.mxu0 0.0
    %4724 = vmatprep.subr.mxu0 0.0
    %4725 = vmatpush1.msra.mxu0 0.0
    %4726 = vmatprep.subr.mxu0 0.0
    %4727 = vmatpush1.msra.mxu0 0.0
    %4728 = vmatprep.subr.mxu0 0.0
    %4729 = vmatpush1.msra.mxu0 0.0
    %4730 = vmatprep.subr.mxu0 0.0
    %4731 = vmatpush1.msra.mxu0 0.0
    %4732 = vmatprep.mubr.f32.mxu0 0.0
    %4733 = vmatmul.mubr.f32.gmra.mrb[0].mxu0 %v4370
    %v4734 = vpop.f32.mrb[0].mxu0
    %v4735 = vadd.f32 %v1256, %v4734
    %v4736 = vpop.f32.mrb[0].mxu0
    %4737 = vdwg.mxu0
    %v4738 = vmul.f32 %v4449, %v4735
    %v4739 = vadd.f32 %v4665, %v4738
    %v4740 = vtanh.pop %v4739
    %v4741 = vsub.f32 1.0, %v4597
    %v4742 = vmul.f32 %v4741, %v4740
    %v4743 = vmul.f32 %v4597, %v4062
    %v4744 = vadd.f32 %v4742, %v4743
    %4745 = vmatprep.subr.mxu0 0.0
    %4746 = vmatpush1.msra.mxu0 %v541
    %4747 = vmatprep.subr.mxu0 0.0
    %4748 = vmatpush1.msra.mxu0 %v542
    %4749 = vmatprep.subr.mxu0 0.0
    %4750 = vmatpush1.msra.mxu0 %v543
    %4751 = vmatprep.subr.mxu0 0.0
    %4752 = vmatpush1.msra.mxu0 %v544
    %4753 = vmatprep.subr.mxu0 0.0
    %4754 = vmatpush1.msra.mxu0 0.0
    %4755 = vmatprep.subr.mxu0 0.0
    %4756 = vmatpush1.msra.mxu0 0.0
    %4757 = vmatprep.subr.mxu0 0.0
    %4758 = vmatpush1.msra.mxu0 0.0
    %4759 = vmatprep.subr.mxu0 0.0
    %4760 = vmatpush1.msra.mxu0 0.0
    %4761 = vmatprep.subr.mxu0 0.0
    %4762 = vmatpush1.msra.mxu0 0.0
    %4763 = vmatprep.subr.mxu0 0.0
    %4764 = vmatpush1.msra.mxu0 0.0
    %4765 = vmatprep.subr.mxu0 0.0
    %4766 = vmatpush1.msra.mxu0 0.0
    %4767 = vmatprep.subr.mxu0 0.0
    %4768 = vmatpush1.msra.mxu0 0.0
    %4769 = vmatprep.subr.mxu0 0.0
    %4770 = vmatpush1.msra.mxu0 0.0
    %4771 = vmatprep.subr.mxu0 0.0
    %4772 = vmatpush1.msra.mxu0 0.0
    %4773 = vmatprep.subr.mxu0 0.0
    %4774 = vmatpush1.msra.mxu0 0.0
    %4775 = vmatprep.subr.mxu0 0.0
    %4776 = vmatpush1.msra.mxu0 0.0
    %4777 = vmatprep.subr.mxu0 0.0
    %4778 = vmatpush1.msra.mxu0 0.0
    %4779 = vmatprep.subr.mxu0 0.0
    %4780 = vmatpush1.msra.mxu0 0.0
    %4781 = vmatprep.subr.mxu0 0.0
    %4782 = vmatpush1.msra.mxu0 0.0
    %4783 = vmatprep.subr.mxu0 0.0
    %4784 = vmatpush1.msra.mxu0 0.0
    %4785 = vmatprep.subr.mxu0 0.0
    %4786 = vmatpush1.msra.mxu0 0.0
    %4787 = vmatprep.subr.mxu0 0.0
    %4788 = vmatpush1.msra.mxu0 0.0
    %4789 = vmatprep.subr.mxu0 0.0
    %4790 = vmatpush1.msra.mxu0 0.0
    %4791 = vmatprep.subr.mxu0 0.0
    %4792 = vmatpush1.msra.mxu0 0.0
    %4793 = vmatprep.subr.mxu0 0.0
    %4794 = vmatpush1.msra.mxu0 0.0
    %4795 = vmatprep.subr.mxu0 0.0
    %4796 = vmatpush1.msra.mxu0 0.0
    %4797 = vmatprep.subr.mxu0 0.0
    %4798 = vmatpush1.msra.mxu0 0.0
    %4799 = vmatprep.subr.mxu0 0.0
    %4800 = vmatpush1.msra.mxu0 0.0
    %4801 = vmatprep.subr.mxu0 0.0
    %4802 = vmatpush1.msra.mxu0 0.0
    %4803 = vmatprep.subr.mxu0 0.0
    %4804 = vmatpush1.msra.mxu0 0.0
    %4805 = vmatprep.subr.mxu0 0.0
    %4806 = vmatpush1.msra.mxu0 0.0
    %4807 = vmatprep.subr.mxu0 0.0
    %4808 = vmatpush1.msra.mxu0 0.0
    %4809 = vmatprep.mubr.f32.mxu0 0.0
    %4810 = vmatmul.mubr.f32.gmra.mrb[0].mxu0 %v4297
    %v4811 = vpop.f32.mrb[0].mxu0
    %v4812 = vadd.f32 0.0, %v4811
    %v4813 = vpop.f32.mrb[0].mxu0
    %4814 = vdwg.mxu0
    %v4815 = vadd.f32 %v297, %v4812
    %v4816 = vadd.f32 %v4815, %v677
    %v4817 = vxor.u32 %v4816, 2147483648
    %v4818 = vmul.f32 %v4817, 1.442695
    %v4819 = vpow.pop %v4818
    %v4820 = vadd.f32 %v4819, 1.0
    %v4821 = vrcp.pop %v4820
    %v4822 = vmul.f32 1.0, %v4821
    %4823 = vmatprep.subr.mxu0 0.0
    %4824 = vmatpush1.msra.mxu0 %v546
    %4825 = vmatprep.subr.mxu0 0.0
    %4826 = vmatpush1.msra.mxu0 %v547
    %4827 = vmatprep.subr.mxu0 0.0
    %4828 = vmatpush1.msra.mxu0 %v548
    %4829 = vmatprep.subr.mxu0 0.0
    %4830 = vmatpush1.msra.mxu0 %v549
    %4831 = vmatprep.subr.mxu0 0.0
    %4832 = vmatpush1.msra.mxu0 0.0
    %4833 = vmatprep.subr.mxu0 0.0
    %4834 = vmatpush1.msra.mxu0 0.0
    %4835 = vmatprep.subr.mxu0 0.0
    %4836 = vmatpush1.msra.mxu0 0.0
    %4837 = vmatprep.subr.mxu0 0.0
    %4838 = vmatpush1.msra.mxu0 0.0
    %4839 = vmatprep.subr.mxu0 0.0
    %4840 = vmatpush1.msra.mxu0 0.0
    %4841 = vmatprep.subr.mxu0 0.0
    %4842 = vmatpush1.msra.mxu0 0.0
    %4843 = vmatprep.subr.mxu0 0.0
    %4844 = vmatpush1.msra.mxu0 0.0
    %4845 = vmatprep.subr.mxu0 0.0
    %4846 = vmatpush1.msra.mxu0 0.0
    %4847 = vmatprep.subr.mxu0 0.0
    %4848 = vmatpush1.msra.mxu0 0.0
    %4849 = vmatprep.subr.mxu0 0.0
    %4850 = vmatpush1.msra.mxu0 0.0
    %4851 = vmatprep.subr.mxu0 0.0
    %4852 = vmatpush1.msra.mxu0 0.0
    %4853 = vmatprep.subr.mxu0 0.0
    %4854 = vmatpush1.msra.mxu0 0.0
    %4855 = vmatprep.subr.mxu0 0.0
    %4856 = vmatpush1.msra.mxu0 0.0
    %4857 = vmatprep.subr.mxu0 0.0
    %4858 = vmatpush1.msra.mxu0 0.0
    %4859 = vmatprep.subr.mxu0 0.0
    %4860 = vmatpush1.msra.mxu0 0.0
    %4861 = vmatprep.subr.mxu0 0.0
    %4862 = vmatpush1.msra.mxu0 0.0
    %4863 = vmatprep.subr.mxu0 0.0
    %4864 = vmatpush1.msra.mxu0 0.0
    %4865 = vmatprep.subr.mxu0 0.0
    %4866 = vmatpush1.msra.mxu0 0.0
    %4867 = vmatprep.subr.mxu0 0.0
    %4868 = vmatpush1.msra.mxu0 0.0
    %4869 = vmatprep.subr.mxu0 0.0
    %4870 = vmatpush1.msra.mxu0 0.0
    %4871 = vmatprep.subr.mxu0 0.0
    %4872 = vmatpush1.msra.mxu0 0.0
    %4873 = vmatprep.subr.mxu0 0.0
    %4874 = vmatpush1.msra.mxu0 0.0
    %4875 = vmatprep.subr.mxu0 0.0
    %4876 = vmatpush1.msra.mxu0 0.0
    %4877 = vmatprep.subr.mxu0 0.0
    %4878 = vmatpush1.msra.mxu0 0.0
    %4879 = vmatprep.subr.mxu0 0.0
    %4880 = vmatpush1.msra.mxu0 0.0
    %4881 = vmatprep.subr.mxu0 0.0
    %4882 = vmatpush1.msra.mxu0 0.0
    %4883 = vmatprep.subr.mxu0 0.0
    %4884 = vmatpush1.msra.mxu0 0.0
    %4885 = vmatprep.subr.mxu0 0.0
    %4886 = vmatpush1.msra.mxu0 0.0
    %4887 = vmatprep.mubr.f32.mxu0 0.0
    %4888 = vmatmul.mubr.f32.gmra.mrb[0].mxu0 %v4297
    %v4889 = vpop.f32.mrb[0].mxu0
    %v4890 = vadd.f32 0.0, %v4889
    %v4891 = vpop.f32.mrb[0].mxu0
    %4892 = vdwg.mxu0
    %v4893 = vadd.f32 %v415, %v4890
    %v4894 = vadd.f32 %v4893, %v761
    %v4895 = vxor.u32 %v4894, 2147483648
    %v4896 = vmul.f32 %v4895, 1.442695
    %v4897 = vpow.pop %v4896
    %v4898 = vadd.f32 %v4897, 1.0
    %v4899 = vrcp.pop %v4898
    %v4900 = vmul.f32 1.0, %v4899
    %4901 = vmatprep.subr.mxu0 0.0
    %4902 = vmatpush1.msra.mxu0 %v551
    %4903 = vmatprep.subr.mxu0 0.0
    %4904 = vmatpush1.msra.mxu0 %v552
    %4905 = vmatprep.subr.mxu0 0.0
    %4906 = vmatpush1.msra.mxu0 %v553
    %4907 = vmatprep.subr.mxu0 0.0
    %4908 = vmatpush1.msra.mxu0 %v554
    %4909 = vmatprep.subr.mxu0 0.0
    %4910 = vmatpush1.msra.mxu0 0.0
    %4911 = vmatprep.subr.mxu0 0.0
    %4912 = vmatpush1.msra.mxu0 0.0
    %4913 = vmatprep.subr.mxu0 0.0
    %4914 = vmatpush1.msra.mxu0 0.0
    %4915 = vmatprep.subr.mxu0 0.0
    %4916 = vmatpush1.msra.mxu0 0.0
    %4917 = vmatprep.subr.mxu0 0.0
    %4918 = vmatpush1.msra.mxu0 0.0
    %4919 = vmatprep.subr.mxu0 0.0
    %4920 = vmatpush1.msra.mxu0 0.0
    %4921 = vmatprep.subr.mxu0 0.0
    %4922 = vmatpush1.msra.mxu0 0.0
    %4923 = vmatprep.subr.mxu0 0.0
    %4924 = vmatpush1.msra.mxu0 0.0
    %4925 = vmatprep.subr.mxu0 0.0
    %4926 = vmatpush1.msra.mxu0 0.0
    %4927 = vmatprep.subr.mxu0 0.0
    %4928 = vmatpush1.msra.mxu0 0.0
    %4929 = vmatprep.subr.mxu0 0.0
    %4930 = vmatpush1.msra.mxu0 0.0
    %4931 = vmatprep.subr.mxu0 0.0
    %4932 = vmatpush1.msra.mxu0 0.0
    %4933 = vmatprep.subr.mxu0 0.0
    %4934 = vmatpush1.msra.mxu0 0.0
    %4935 = vmatprep.subr.mxu0 0.0
    %4936 = vmatpush1.msra.mxu0 0.0
    %4937 = vmatprep.subr.mxu0 0.0
    %4938 = vmatpush1.msra.mxu0 0.0
    %4939 = vmatprep.subr.mxu0 0.0
    %4940 = vmatpush1.msra.mxu0 0.0
    %4941 = vmatprep.subr.mxu0 0.0
    %4942 = vmatpush1.msra.mxu0 0.0
    %4943 = vmatprep.subr.mxu0 0.0
    %4944 = vmatpush1.msra.mxu0 0.0
    %4945 = vmatprep.subr.mxu0 0.0
    %4946 = vmatpush1.msra.mxu0 0.0
    %4947 = vmatprep.subr.mxu0 0.0
    %4948 = vmatpush1.msra.mxu0 0.0
    %4949 = vmatprep.subr.mxu0 0.0
    %4950 = vmatpush1.msra.mxu0 0.0
    %4951 = vmatprep.subr.mxu0 0.0
    %4952 = vmatpush1.msra.mxu0 0.0
    %4953 = vmatprep.subr.mxu0 0.0
    %4954 = vmatpush1.msra.mxu0 0.0
    %4955 = vmatprep.subr.mxu0 0.0
    %4956 = vmatpush1.msra.mxu0 0.0
    %4957 = vmatprep.subr.mxu0 0.0
    %4958 = vmatpush1.msra.mxu0 0.0
    %4959 = vmatprep.subr.mxu0 0.0
    %4960 = vmatpush1.msra.mxu0 0.0
    %4961 = vmatprep.subr.mxu0 0.0
    %4962 = vmatpush1.msra.mxu0 0.0
    %4963 = vmatprep.subr.mxu0 0.0
    %4964 = vmatpush1.msra.mxu0 0.0
    %4965 = vmatprep.mubr.f32.mxu0 0.0
    %4966 = vmatmul.mubr.f32.gmra.mrb[0].mxu0 %v4297
    %v4967 = vpop.f32.mrb[0].mxu0
    %v4968 = vadd.f32 %v774, %v4967
    %v4969 = vpop.f32.mrb[0].mxu0
    %4970 = vdwg.mxu0
    %v4971 = vmul.f32 %v4822, %v4968
    %v4972 = vadd.f32 %v533, %v4971
    %v4973 = vtanh.pop %v4972
    %v4974 = vsub.f32 1.0, %v4900
    %v4975 = vmul.f32 %v4974, %v4973
    %v4976 = vmul.f32 %v4900, %v4295
    %v4977 = vadd.f32 %v4975, %v4976
    %v4979 = vsel %vm598, %v4977, 0
    %4981 = vmatprep.subr.mxu0 0.0
    %4982 = vmatpush1.msra.mxu0 %v560
    %4983 = vmatprep.subr.mxu0 0.0
    %4984 = vmatpush1.msra.mxu0 %v561
    %4985 = vmatprep.subr.mxu0 0.0
    %4986 = vmatpush1.msra.mxu0 %v562
    %4987 = vmatprep.subr.mxu0 0.0
    %4988 = vmatpush1.msra.mxu0 %v563
    %4989 = vmatprep.subr.mxu0 0.0
    %4990 = vmatpush1.msra.mxu0 0.0
    %4991 = vmatprep.subr.mxu0 0.0
    %4992 = vmatpush1.msra.mxu0 0.0
    %4993 = vmatprep.subr.mxu0 0.0
    %4994 = vmatpush1.msra.mxu0 0.0
    %4995 = vmatprep.subr.mxu0 0.0
    %4996 = vmatpush1.msra.mxu0 0.0
    %4997 = vmatprep.subr.mxu0 0.0
    %4998 = vmatpush1.msra.mxu0 0.0
    %4999 = vmatprep.subr.mxu0 0.0
    %5000 = vmatpush1.msra.mxu0 0.0
    %5001 = vmatprep.subr.mxu0 0.0
    %5002 = vmatpush1.msra.mxu0 0.0
    %5003 = vmatprep.subr.mxu0 0.0
    %5004 = vmatpush1.msra.mxu0 0.0
    %5005 = vmatprep.subr.mxu0 0.0
    %5006 = vmatpush1.msra.mxu0 0.0
    %5007 = vmatprep.subr.mxu0 0.0
    %5008 = vmatpush1.msra.mxu0 0.0
    %5009 = vmatprep.subr.mxu0 0.0
    %5010 = vmatpush1.msra.mxu0 0.0
    %5011 = vmatprep.subr.mxu0 0.0
    %5012 = vmatpush1.msra.mxu0 0.0
    %5013 = vmatprep.subr.mxu0 0.0
    %5014 = vmatpush1.msra.mxu0 0.0
    %5015 = vmatprep.subr.mxu0 0.0
    %5016 = vmatpush1.msra.mxu0 0.0
    %5017 = vmatprep.subr.mxu0 0.0
    %5018 = vmatpush1.msra.mxu0 0.0
    %5019 = vmatprep.subr.mxu0 0.0
    %5020 = vmatpush1.msra.mxu0 0.0
    %5021 = vmatprep.subr.mxu0 0.0
    %5022 = vmatpush1.msra.mxu0 0.0
    %5023 = vmatprep.subr.mxu0 0.0
    %5024 = vmatpush1.msra.mxu0 0.0
    %5025 = vmatprep.subr.mxu0 0.0
    %5026 = vmatpush1.msra.mxu0 0.0
    %5027 = vmatprep.subr.mxu0 0.0
    %5028 = vmatpush1.msra.mxu0 0.0
    %5029 = vmatprep.subr.mxu0 0.0
    %5030 = vmatpush1.msra.mxu0 0.0
    %5031 = vmatprep.subr.mxu0 0.0
    %5032 = vmatpush1.msra.mxu0 0.0
    %5033 = vmatprep.subr.mxu0 0.0
    %5034 = vmatpush1.msra.mxu0 0.0
    %5035 = vmatprep.subr.mxu0 0.0
    %5036 = vmatpush1.msra.mxu0 0.0
    %5037 = vmatprep.subr.mxu0 0.0
    %5038 = vmatpush1.msra.mxu0 0.0
    %5039 = vmatprep.subr.mxu0 0.0
    %5040 = vmatpush1.msra.mxu0 0.0
    %5041 = vmatprep.subr.mxu0 0.0
    %5042 = vmatpush1.msra.mxu0 0.0
    %5043 = vmatprep.subr.mxu0 0.0
    %5044 = vmatpush1.msra.mxu0 0.0
    %5045 = vmatprep.mubr.f32.mxu0 0.0
    %5046 = vmatmul.mubr.f32.gmra.mrb[0].mxu0 %v4979
    %v5047 = vpop.f32.mrb[0].mxu0
    %v5048 = vadd.f32 %v857, %v5047
    %v5049 = vpop.f32.mrb[0].mxu0
    %5050 = vdwg.mxu0
    %v5052 = vsel %vm598, %v4744, 0
    %5054 = vmatprep.subr.mxu0 0.0
    %5055 = vmatpush1.msra.mxu0 %v579
    %5056 = vmatprep.subr.mxu0 0.0
    %5057 = vmatpush1.msra.mxu0 %v580
    %5058 = vmatprep.subr.mxu0 0.0
    %5059 = vmatpush1.msra.mxu0 %v581
    %5060 = vmatprep.subr.mxu0 0.0
    %5061 = vmatpush1.msra.mxu0 %v582
    %5062 = vmatprep.subr.mxu0 0.0
    %5063 = vmatpush1.msra.mxu0 0.0
    %5064 = vmatprep.subr.mxu0 0.0
    %5065 = vmatpush1.msra.mxu0 0.0
    %5066 = vmatprep.subr.mxu0 0.0
    %5067 = vmatpush1.msra.mxu0 0.0
    %5068 = vmatprep.subr.mxu0 0.0
    %5069 = vmatpush1.msra.mxu0 0.0
    %5070 = vmatprep.subr.mxu0 0.0
    %5071 = vmatpush1.msra.mxu0 0.0
    %5072 = vmatprep.subr.mxu0 0.0
    %5073 = vmatpush1.msra.mxu0 0.0
    %5074 = vmatprep.subr.mxu0 0.0
    %5075 = vmatpush1.msra.mxu0 0.0
    %5076 = vmatprep.subr.mxu0 0.0
    %5077 = vmatpush1.msra.mxu0 0.0
    %5078 = vmatprep.subr.mxu0 0.0
    %5079 = vmatpush1.msra.mxu0 0.0
    %5080 = vmatprep.subr.mxu0 0.0
    %5081 = vmatpush1.msra.mxu0 0.0
    %5082 = vmatprep.subr.mxu0 0.0
    %5083 = vmatpush1.msra.mxu0 0.0
    %5084 = vmatprep.subr.mxu0 0.0
    %5085 = vmatpush1.msra.mxu0 0.0
    %5086 = vmatprep.subr.mxu0 0.0
    %5087 = vmatpush1.msra.mxu0 0.0
    %5088 = vmatprep.subr.mxu0 0.0
    %5089 = vmatpush1.msra.mxu0 0.0
    %5090 = vmatprep.subr.mxu0 0.0
    %5091 = vmatpush1.msra.mxu0 0.0
    %5092 = vmatprep.subr.mxu0 0.0
    %5093 = vmatpush1.msra.mxu0 0.0
    %5094 = vmatprep.subr.mxu0 0.0
    %5095 = vmatpush1.msra.mxu0 0.0
    %5096 = vmatprep.subr.mxu0 0.0
    %5097 = vmatpush1.msra.mxu0 0.0
    %5098 = vmatprep.subr.mxu0 0.0
    %5099 = vmatpush1.msra.mxu0 0.0
    %5100 = vmatprep.subr.mxu0 0.0
    %5101 = vmatpush1.msra.mxu0 0.0
    %5102 = vmatprep.subr.mxu0 0.0
    %5103 = vmatpush1.msra.mxu0 0.0
    %5104 = vmatprep.subr.mxu0 0.0
    %5105 = vmatpush1.msra.mxu0 0.0
    %5106 = vmatprep.subr.mxu0 0.0
    %5107 = vmatpush1.msra.mxu0 0.0
    %5108 = vmatprep.subr.mxu0 0.0
    %5109 = vmatpush1.msra.mxu0 0.0
    %5110 = vmatprep.subr.mxu0 0.0
    %5111 = vmatpush1.msra.mxu0 0.0
    %5112 = vmatprep.subr.mxu0 0.0
    %5113 = vmatpush1.msra.mxu0 0.0
    %5114 = vmatprep.subr.mxu0 0.0
    %5115 = vmatpush1.msra.mxu0 0.0
    %5116 = vmatprep.subr.mxu0 0.0
    %5117 = vmatpush1.msra.mxu0 0.0
    %5118 = vmatprep.mubr.f32.mxu0 0.0
    %5119 = vmatmul.mubr.f32.gmra.mrb[0].mxu0 %v5052
    %v5120 = vpop.f32.mrb[0].mxu0
    %v5121 = vadd.f32 0.0, %v5120
    %v5122 = vpop.f32.mrb[0].mxu0
    %5123 = vdwg.mxu0
    %v5124 = vadd.f32 %v5048, %v5121
    %v5125 = vadd.f32 %v5124, %v1007
    %v5126 = vxor.u32 %v5125, 2147483648
    %v5127 = vmul.f32 %v5126, 1.442695
    %v5128 = vpow.pop %v5127
    %v5129 = vadd.f32 %v5128, 1.0
    %v5130 = vrcp.pop %v5129
    %v5131 = vmul.f32 1.0, %v5130
    %5132 = vmatprep.subr.mxu0 0.0
    %5133 = vmatpush1.msra.mxu0 %v565
    %5134 = vmatprep.subr.mxu0 0.0
    %5135 = vmatpush1.msra.mxu0 %v566
    %5136 = vmatprep.subr.mxu0 0.0
    %5137 = vmatpush1.msra.mxu0 %v567
    %5138 = vmatprep.subr.mxu0 0.0
    %5139 = vmatpush1.msra.mxu0 %v568
    %5140 = vmatprep.subr.mxu0 0.0
    %5141 = vmatpush1.msra.mxu0 0.0
    %5142 = vmatprep.subr.mxu0 0.0
    %5143 = vmatpush1.msra.mxu0 0.0
    %5144 = vmatprep.subr.mxu0 0.0
    %5145 = vmatpush1.msra.mxu0 0.0
    %5146 = vmatprep.subr.mxu0 0.0
    %5147 = vmatpush1.msra.mxu0 0.0
    %5148 = vmatprep.subr.mxu0 0.0
    %5149 = vmatpush1.msra.mxu0 0.0
    %5150 = vmatprep.subr.mxu0 0.0
    %5151 = vmatpush1.msra.mxu0 0.0
    %5152 = vmatprep.subr.mxu0 0.0
    %5153 = vmatpush1.msra.mxu0 0.0
    %5154 = vmatprep.subr.mxu0 0.0
    %5155 = vmatpush1.msra.mxu0 0.0
    %5156 = vmatprep.subr.mxu0 0.0
    %5157 = vmatpush1.msra.mxu0 0.0
    %5158 = vmatprep.subr.mxu0 0.0
    %5159 = vmatpush1.msra.mxu0 0.0
    %5160 = vmatprep.subr.mxu0 0.0
    %5161 = vmatpush1.msra.mxu0 0.0
    %5162 = vmatprep.subr.mxu0 0.0
    %5163 = vmatpush1.msra.mxu0 0.0
    %5164 = vmatprep.subr.mxu0 0.0
    %5165 = vmatpush1.msra.mxu0 0.0
    %5166 = vmatprep.subr.mxu0 0.0
    %5167 = vmatpush1.msra.mxu0 0.0
    %5168 = vmatprep.subr.mxu0 0.0
    %5169 = vmatpush1.msra.mxu0 0.0
    %5170 = vmatprep.subr.mxu0 0.0
    %5171 = vmatpush1.msra.mxu0 0.0
    %5172 = vmatprep.subr.mxu0 0.0
    %5173 = vmatpush1.msra.mxu0 0.0
    %5174 = vmatprep.subr.mxu0 0.0
    %5175 = vmatpush1.msra.mxu0 0.0
    %5176 = vmatprep.subr.mxu0 0.0
    %5177 = vmatpush1.msra.mxu0 0.0
    %5178 = vmatprep.subr.mxu0 0.0
    %5179 = vmatpush1.msra.mxu0 0.0
    %5180 = vmatprep.subr.mxu0 0.0
    %5181 = vmatpush1.msra.mxu0 0.0
    %5182 = vmatprep.subr.mxu0 0.0
    %5183 = vmatpush1.msra.mxu0 0.0
    %5184 = vmatprep.subr.mxu0 0.0
    %5185 = vmatpush1.msra.mxu0 0.0
    %5186 = vmatprep.subr.mxu0 0.0
    %5187 = vmatpush1.msra.mxu0 0.0
    %5188 = vmatprep.subr.mxu0 0.0
    %5189 = vmatpush1.msra.mxu0 0.0
    %5190 = vmatprep.subr.mxu0 0.0
    %5191 = vmatpush1.msra.mxu0 0.0
    %5192 = vmatprep.subr.mxu0 0.0
    %5193 = vmatpush1.msra.mxu0 0.0
    %5194 = vmatprep.subr.mxu0 0.0
    %5195 = vmatpush1.msra.mxu0 0.0
    %5196 = vmatprep.mubr.f32.mxu0 0.0
    %5197 = vmatmul.mubr.f32.gmra.mrb[0].mxu0 %v4979
    %v5198 = vpop.f32.mrb[0].mxu0
    %v5199 = vadd.f32 %v1020, %v5198
    %v5200 = vpop.f32.mrb[0].mxu0
    %5201 = vdwg.mxu0
    %5202 = vmatprep.subr.mxu0 0.0
    %5203 = vmatpush1.msra.mxu0 %v584
    %5204 = vmatprep.subr.mxu0 0.0
    %5205 = vmatpush1.msra.mxu0 %v585
    %5206 = vmatprep.subr.mxu0 0.0
    %5207 = vmatpush1.msra.mxu0 %v586
    %5208 = vmatprep.subr.mxu0 0.0
    %5209 = vmatpush1.msra.mxu0 %v587
    %5210 = vmatprep.subr.mxu0 0.0
    %5211 = vmatpush1.msra.mxu0 0.0
    %5212 = vmatprep.subr.mxu0 0.0
    %5213 = vmatpush1.msra.mxu0 0.0
    %5214 = vmatprep.subr.mxu0 0.0
    %5215 = vmatpush1.msra.mxu0 0.0
    %5216 = vmatprep.subr.mxu0 0.0
    %5217 = vmatpush1.msra.mxu0 0.0
    %5218 = vmatprep.subr.mxu0 0.0
    %5219 = vmatpush1.msra.mxu0 0.0
    %5220 = vmatprep.subr.mxu0 0.0
    %5221 = vmatpush1.msra.mxu0 0.0
    %5222 = vmatprep.subr.mxu0 0.0
    %5223 = vmatpush1.msra.mxu0 0.0
    %5224 = vmatprep.subr.mxu0 0.0
    %5225 = vmatpush1.msra.mxu0 0.0
    %5226 = vmatprep.subr.mxu0 0.0
    %5227 = vmatpush1.msra.mxu0 0.0
    %5228 = vmatprep.subr.mxu0 0.0
    %5229 = vmatpush1.msra.mxu0 0.0
    %5230 = vmatprep.subr.mxu0 0.0
    %5231 = vmatpush1.msra.mxu0 0.0
    %5232 = vmatprep.subr.mxu0 0.0
    %5233 = vmatpush1.msra.mxu0 0.0
    %5234 = vmatprep.subr.mxu0 0.0
    %5235 = vmatpush1.msra.mxu0 0.0
    %5236 = vmatprep.subr.mxu0 0.0
    %5237 = vmatpush1.msra.mxu0 0.0
    %5238 = vmatprep.subr.mxu0 0.0
    %5239 = vmatpush1.msra.mxu0 0.0
    %5240 = vmatprep.subr.mxu0 0.0
    %5241 = vmatpush1.msra.mxu0 0.0
    %5242 = vmatprep.subr.mxu0 0.0
    %5243 = vmatpush1.msra.mxu0 0.0
    %5244 = vmatprep.subr.mxu0 0.0
    %5245 = vmatpush1.msra.mxu0 0.0
    %5246 = vmatprep.subr.mxu0 0.0
    %5247 = vmatpush1.msra.mxu0 0.0
    %5248 = vmatprep.subr.mxu0 0.0
    %5249 = vmatpush1.msra.mxu0 0.0
    %5250 = vmatprep.subr.mxu0 0.0
    %5251 = vmatpush1.msra.mxu0 0.0
    %5252 = vmatprep.subr.mxu0 0.0
    %5253 = vmatpush1.msra.mxu0 0.0
    %5254 = vmatprep.subr.mxu0 0.0
    %5255 = vmatpush1.msra.mxu0 0.0
    %5256 = vmatprep.subr.mxu0 0.0
    %5257 = vmatpush1.msra.mxu0 0.0
    %5258 = vmatprep.subr.mxu0 0.0
    %5259 = vmatpush1.msra.mxu0 0.0
    %5260 = vmatprep.subr.mxu0 0.0
    %5261 = vmatpush1.msra.mxu0 0.0
    %5262 = vmatprep.subr.mxu0 0.0
    %5263 = vmatpush1.msra.mxu0 0.0
    %5264 = vmatprep.subr.mxu0 0.0
    %5265 = vmatpush1.msra.mxu0 0.0
    %5266 = vmatprep.mubr.f32.mxu0 0.0
    %5267 = vmatmul.mubr.f32.gmra.mrb[0].mxu0 %v5052
    %v5268 = vpop.f32.mrb[0].mxu0
    %v5269 = vadd.f32 0.0, %v5268
    %v5270 = vpop.f32.mrb[0].mxu0
    %5271 = vdwg.mxu0
    %v5272 = vadd.f32 %v5199, %v5269
    %v5273 = vadd.f32 %v5272, %v1167
    %v5274 = vxor.u32 %v5273, 2147483648
    %v5275 = vmul.f32 %v5274, 1.442695
    %v5276 = vpow.pop %v5275
    %v5277 = vadd.f32 %v5276, 1.0
    %v5278 = vrcp.pop %v5277
    %v5279 = vmul.f32 1.0, %v5278
    %5280 = vmatprep.subr.mxu0 0.0
    %5281 = vmatpush1.msra.mxu0 %v570
    %5282 = vmatprep.subr.mxu0 0.0
    %5283 = vmatpush1.msra.mxu0 %v571
    %5284 = vmatprep.subr.mxu0 0.0
    %5285 = vmatpush1.msra.mxu0 %v572
    %5286 = vmatprep.subr.mxu0 0.0
    %5287 = vmatpush1.msra.mxu0 %v573
    %5288 = vmatprep.subr.mxu0 0.0
    %5289 = vmatpush1.msra.mxu0 0.0
    %5290 = vmatprep.subr.mxu0 0.0
    %5291 = vmatpush1.msra.mxu0 0.0
    %5292 = vmatprep.subr.mxu0 0.0
    %5293 = vmatpush1.msra.mxu0 0.0
    %5294 = vmatprep.subr.mxu0 0.0
    %5295 = vmatpush1.msra.mxu0 0.0
    %5296 = vmatprep.subr.mxu0 0.0
    %5297 = vmatpush1.msra.mxu0 0.0
    %5298 = vmatprep.subr.mxu0 0.0
    %5299 = vmatpush1.msra.mxu0 0.0
    %5300 = vmatprep.subr.mxu0 0.0
    %5301 = vmatpush1.msra.mxu0 0.0
    %5302 = vmatprep.subr.mxu0 0.0
    %5303 = vmatpush1.msra.mxu0 0.0
    %5304 = vmatprep.subr.mxu0 0.0
    %5305 = vmatpush1.msra.mxu0 0.0
    %5306 = vmatprep.subr.mxu0 0.0
    %5307 = vmatpush1.msra.mxu0 0.0
    %5308 = vmatprep.subr.mxu0 0.0
    %5309 = vmatpush1.msra.mxu0 0.0
    %5310 = vmatprep.subr.mxu0 0.0
    %5311 = vmatpush1.msra.mxu0 0.0
    %5312 = vmatprep.subr.mxu0 0.0
    %5313 = vmatpush1.msra.mxu0 0.0
    %5314 = vmatprep.subr.mxu0 0.0
    %5315 = vmatpush1.msra.mxu0 0.0
    %5316 = vmatprep.subr.mxu0 0.0
    %5317 = vmatpush1.msra.mxu0 0.0
    %5318 = vmatprep.subr.mxu0 0.0
    %5319 = vmatpush1.msra.mxu0 0.0
    %5320 = vmatprep.subr.mxu0 0.0
    %5321 = vmatpush1.msra.mxu0 0.0
    %5322 = vmatprep.subr.mxu0 0.0
    %5323 = vmatpush1.msra.mxu0 0.0
    %5324 = vmatprep.subr.mxu0 0.0
    %5325 = vmatpush1.msra.mxu0 0.0
    %5326 = vmatprep.subr.mxu0 0.0
    %5327 = vmatpush1.msra.mxu0 0.0
    %5328 = vmatprep.subr.mxu0 0.0
    %5329 = vmatpush1.msra.mxu0 0.0
    %5330 = vmatprep.subr.mxu0 0.0
    %5331 = vmatpush1.msra.mxu0 0.0
    %5332 = vmatprep.subr.mxu0 0.0
    %5333 = vmatpush1.msra.mxu0 0.0
    %5334 = vmatprep.subr.mxu0 0.0
    %5335 = vmatpush1.msra.mxu0 0.0
    %5336 = vmatprep.subr.mxu0 0.0
    %5337 = vmatpush1.msra.mxu0 0.0
    %5338 = vmatprep.subr.mxu0 0.0
    %5339 = vmatpush1.msra.mxu0 0.0
    %5340 = vmatprep.subr.mxu0 0.0
    %5341 = vmatpush1.msra.mxu0 0.0
    %5342 = vmatprep.subr.mxu0 0.0
    %5343 = vmatpush1.msra.mxu0 0.0
    %5344 = vmatprep.mubr.f32.mxu0 0.0
    %5345 = vmatmul.mubr.f32.gmra.mrb[0].mxu0 %v4979
    %v5346 = vpop.f32.mrb[0].mxu0
    %v5347 = vadd.f32 %v1180, %v5346
    %v5348 = vpop.f32.mrb[0].mxu0
    %5349 = vdwg.mxu0
    %5350 = vmatprep.subr.mxu0 0.0
    %5351 = vmatpush1.msra.mxu0 %v589
    %5352 = vmatprep.subr.mxu0 0.0
    %5353 = vmatpush1.msra.mxu0 %v590
    %5354 = vmatprep.subr.mxu0 0.0
    %5355 = vmatpush1.msra.mxu0 %v591
    %5356 = vmatprep.subr.mxu0 0.0
    %5357 = vmatpush1.msra.mxu0 %v592
    %5358 = vmatprep.subr.mxu0 0.0
    %5359 = vmatpush1.msra.mxu0 0.0
    %5360 = vmatprep.subr.mxu0 0.0
    %5361 = vmatpush1.msra.mxu0 0.0
    %5362 = vmatprep.subr.mxu0 0.0
    %5363 = vmatpush1.msra.mxu0 0.0
    %5364 = vmatprep.subr.mxu0 0.0
    %5365 = vmatpush1.msra.mxu0 0.0
    %5366 = vmatprep.subr.mxu0 0.0
    %5367 = vmatpush1.msra.mxu0 0.0
    %5368 = vmatprep.subr.mxu0 0.0
    %5369 = vmatpush1.msra.mxu0 0.0
    %5370 = vmatprep.subr.mxu0 0.0
    %5371 = vmatpush1.msra.mxu0 0.0
    %5372 = vmatprep.subr.mxu0 0.0
    %5373 = vmatpush1.msra.mxu0 0.0
    %5374 = vmatprep.subr.mxu0 0.0
    %5375 = vmatpush1.msra.mxu0 0.0
    %5376 = vmatprep.subr.mxu0 0.0
    %5377 = vmatpush1.msra.mxu0 0.0
    %5378 = vmatprep.subr.mxu0 0.0
    %5379 = vmatpush1.msra.mxu0 0.0
    %5380 = vmatprep.subr.mxu0 0.0
    %5381 = vmatpush1.msra.mxu0 0.0
    %5382 = vmatprep.subr.mxu0 0.0
    %5383 = vmatpush1.msra.mxu0 0.0
    %5384 = vmatprep.subr.mxu0 0.0
    %5385 = vmatpush1.msra.mxu0 0.0
    %5386 = vmatprep.subr.mxu0 0.0
    %5387 = vmatpush1.msra.mxu0 0.0
    %5388 = vmatprep.subr.mxu0 0.0
    %5389 = vmatpush1.msra.mxu0 0.0
    %5390 = vmatprep.subr.mxu0 0.0
    %5391 = vmatpush1.msra.mxu0 0.0
    %5392 = vmatprep.subr.mxu0 0.0
    %5393 = vmatpush1.msra.mxu0 0.0
    %5394 = vmatprep.subr.mxu0 0.0
    %5395 = vmatpush1.msra.mxu0 0.0
    %5396 = vmatprep.subr.mxu0 0.0
    %5397 = vmatpush1.msra.mxu0 0.0
    %5398 = vmatprep.subr.mxu0 0.0
    %5399 = vmatpush1.msra.mxu0 0.0
    %5400 = vmatprep.subr.mxu0 0.0
    %5401 = vmatpush1.msra.mxu0 0.0
    %5402 = vmatprep.subr.mxu0 0.0
    %5403 = vmatpush1.msra.mxu0 0.0
    %5404 = vmatprep.subr.mxu0 0.0
    %5405 = vmatpush1.msra.mxu0 0.0
    %5406 = vmatprep.subr.mxu0 0.0
    %5407 = vmatpush1.msra.mxu0 0.0
    %5408 = vmatprep.subr.mxu0 0.0
    %5409 = vmatpush1.msra.mxu0 0.0
    %5410 = vmatprep.subr.mxu0 0.0
    %5411 = vmatpush1.msra.mxu0 0.0
    %5412 = vmatprep.subr.mxu0 0.0
    %5413 = vmatpush1.msra.mxu0 0.0
    %5414 = vmatprep.mubr.f32.mxu0 0.0
    %5415 = vmatmul.mubr.f32.gmra.mrb[0].mxu0 %v5052
    %v5416 = vpop.f32.mrb[0].mxu0
    %v5417 = vadd.f32 %v1256, %v5416
    %v5418 = vpop.f32.mrb[0].mxu0
    %5419 = vdwg.mxu0
    %v5420 = vmul.f32 %v5131, %v5417
    %v5421 = vadd.f32 %v5347, %v5420
    %v5422 = vtanh.pop %v5421
    %v5423 = vsub.f32 1.0, %v5279
    %v5424 = vmul.f32 %v5423, %v5422
    %v5425 = vmul.f32 %v5279, %v4744
    %v5426 = vadd.f32 %v5424, %v5425
    %5427 = vmatprep.subr.mxu0 0.0
    %5428 = vmatpush1.msra.mxu0 %v541
    %5429 = vmatprep.subr.mxu0 0.0
    %5430 = vmatpush1.msra.mxu0 %v542
    %5431 = vmatprep.subr.mxu0 0.0
    %5432 = vmatpush1.msra.mxu0 %v543
    %5433 = vmatprep.subr.mxu0 0.0
    %5434 = vmatpush1.msra.mxu0 %v544
    %5435 = vmatprep.subr.mxu0 0.0
    %5436 = vmatpush1.msra.mxu0 0.0
    %5437 = vmatprep.subr.mxu0 0.0
    %5438 = vmatpush1.msra.mxu0 0.0
    %5439 = vmatprep.subr.mxu0 0.0
    %5440 = vmatpush1.msra.mxu0 0.0
    %5441 = vmatprep.subr.mxu0 0.0
    %5442 = vmatpush1.msra.mxu0 0.0
    %5443 = vmatprep.subr.mxu0 0.0
    %5444 = vmatpush1.msra.mxu0 0.0
    %5445 = vmatprep.subr.mxu0 0.0
    %5446 = vmatpush1.msra.mxu0 0.0
    %5447 = vmatprep.subr.mxu0 0.0
    %5448 = vmatpush1.msra.mxu0 0.0
    %5449 = vmatprep.subr.mxu0 0.0
    %5450 = vmatpush1.msra.mxu0 0.0
    %5451 = vmatprep.subr.mxu0 0.0
    %5452 = vmatpush1.msra.mxu0 0.0
    %5453 = vmatprep.subr.mxu0 0.0
    %5454 = vmatpush1.msra.mxu0 0.0
    %5455 = vmatprep.subr.mxu0 0.0
    %5456 = vmatpush1.msra.mxu0 0.0
    %5457 = vmatprep.subr.mxu0 0.0
    %5458 = vmatpush1.msra.mxu0 0.0
    %5459 = vmatprep.subr.mxu0 0.0
    %5460 = vmatpush1.msra.mxu0 0.0
    %5461 = vmatprep.subr.mxu0 0.0
    %5462 = vmatpush1.msra.mxu0 0.0
    %5463 = vmatprep.subr.mxu0 0.0
    %5464 = vmatpush1.msra.mxu0 0.0
    %5465 = vmatprep.subr.mxu0 0.0
    %5466 = vmatpush1.msra.mxu0 0.0
    %5467 = vmatprep.subr.mxu0 0.0
    %5468 = vmatpush1.msra.mxu0 0.0
    %5469 = vmatprep.subr.mxu0 0.0
    %5470 = vmatpush1.msra.mxu0 0.0
    %5471 = vmatprep.subr.mxu0 0.0
    %5472 = vmatpush1.msra.mxu0 0.0
    %5473 = vmatprep.subr.mxu0 0.0
    %5474 = vmatpush1.msra.mxu0 0.0
    %5475 = vmatprep.subr.mxu0 0.0
    %5476 = vmatpush1.msra.mxu0 0.0
    %5477 = vmatprep.subr.mxu0 0.0
    %5478 = vmatpush1.msra.mxu0 0.0
    %5479 = vmatprep.subr.mxu0 0.0
    %5480 = vmatpush1.msra.mxu0 0.0
    %5481 = vmatprep.subr.mxu0 0.0
    %5482 = vmatpush1.msra.mxu0 0.0
    %5483 = vmatprep.subr.mxu0 0.0
    %5484 = vmatpush1.msra.mxu0 0.0
    %5485 = vmatprep.subr.mxu0 0.0
    %5486 = vmatpush1.msra.mxu0 0.0
    %5487 = vmatprep.subr.mxu0 0.0
    %5488 = vmatpush1.msra.mxu0 0.0
    %5489 = vmatprep.subr.mxu0 0.0
    %5490 = vmatpush1.msra.mxu0 0.0
    %5491 = vmatprep.mubr.f32.mxu0 0.0
    %5492 = vmatmul.mubr.f32.gmra.mrb[0].mxu0 %v4979
    %v5493 = vpop.f32.mrb[0].mxu0
    %v5494 = vadd.f32 0.0, %v5493
    %v5495 = vpop.f32.mrb[0].mxu0
    %5496 = vdwg.mxu0
    %v5497 = vadd.f32 %v302, %v5494
    %v5498 = vadd.f32 %v5497, %v677
    %v5499 = vxor.u32 %v5498, 2147483648
    %v5500 = vmul.f32 %v5499, 1.442695
    %v5501 = vpow.pop %v5500
    %v5502 = vadd.f32 %v5501, 1.0
    %v5503 = vrcp.pop %v5502
    %v5504 = vmul.f32 1.0, %v5503
    %5505 = vmatprep.subr.mxu0 0.0
    %5506 = vmatpush1.msra.mxu0 %v546
    %5507 = vmatprep.subr.mxu0 0.0
    %5508 = vmatpush1.msra.mxu0 %v547
    %5509 = vmatprep.subr.mxu0 0.0
    %5510 = vmatpush1.msra.mxu0 %v548
    %5511 = vmatprep.subr.mxu0 0.0
    %5512 = vmatpush1.msra.mxu0 %v549
    %5513 = vmatprep.subr.mxu0 0.0
    %5514 = vmatpush1.msra.mxu0 0.0
    %5515 = vmatprep.subr.mxu0 0.0
    %5516 = vmatpush1.msra.mxu0 0.0
    %5517 = vmatprep.subr.mxu0 0.0
    %5518 = vmatpush1.msra.mxu0 0.0
    %5519 = vmatprep.subr.mxu0 0.0
    %5520 = vmatpush1.msra.mxu0 0.0
    %5521 = vmatprep.subr.mxu0 0.0
    %5522 = vmatpush1.msra.mxu0 0.0
    %5523 = vmatprep.subr.mxu0 0.0
    %5524 = vmatpush1.msra.mxu0 0.0
    %5525 = vmatprep.subr.mxu0 0.0
    %5526 = vmatpush1.msra.mxu0 0.0
    %5527 = vmatprep.subr.mxu0 0.0
    %5528 = vmatpush1.msra.mxu0 0.0
    %5529 = vmatprep.subr.mxu0 0.0
    %5530 = vmatpush1.msra.mxu0 0.0
    %5531 = vmatprep.subr.mxu0 0.0
    %5532 = vmatpush1.msra.mxu0 0.0
    %5533 = vmatprep.subr.mxu0 0.0
    %5534 = vmatpush1.msra.mxu0 0.0
    %5535 = vmatprep.subr.mxu0 0.0
    %5536 = vmatpush1.msra.mxu0 0.0
    %5537 = vmatprep.subr.mxu0 0.0
    %5538 = vmatpush1.msra.mxu0 0.0
    %5539 = vmatprep.subr.mxu0 0.0
    %5540 = vmatpush1.msra.mxu0 0.0
    %5541 = vmatprep.subr.mxu0 0.0
    %5542 = vmatpush1.msra.mxu0 0.0
    %5543 = vmatprep.subr.mxu0 0.0
    %5544 = vmatpush1.msra.mxu0 0.0
    %5545 = vmatprep.subr.mxu0 0.0
    %5546 = vmatpush1.msra.mxu0 0.0
    %5547 = vmatprep.subr.mxu0 0.0
    %5548 = vmatpush1.msra.mxu0 0.0
    %5549 = vmatprep.subr.mxu0 0.0
    %5550 = vmatpush1.msra.mxu0 0.0
    %5551 = vmatprep.subr.mxu0 0.0
    %5552 = vmatpush1.msra.mxu0 0.0
    %5553 = vmatprep.subr.mxu0 0.0
    %5554 = vmatpush1.msra.mxu0 0.0
    %5555 = vmatprep.subr.mxu0 0.0
    %5556 = vmatpush1.msra.mxu0 0.0
    %5557 = vmatprep.subr.mxu0 0.0
    %5558 = vmatpush1.msra.mxu0 0.0
    %5559 = vmatprep.subr.mxu0 0.0
    %5560 = vmatpush1.msra.mxu0 0.0
    %5561 = vmatprep.subr.mxu0 0.0
    %5562 = vmatpush1.msra.mxu0 0.0
    %5563 = vmatprep.subr.mxu0 0.0
    %5564 = vmatpush1.msra.mxu0 0.0
    %5565 = vmatprep.subr.mxu0 0.0
    %5566 = vmatpush1.msra.mxu0 0.0
    %5567 = vmatprep.subr.mxu0 0.0
    %5568 = vmatpush1.msra.mxu0 0.0
    %5569 = vmatprep.mubr.f32.mxu0 0.0
    %5570 = vmatmul.mubr.f32.gmra.mrb[0].mxu0 %v4979
    %v5571 = vpop.f32.mrb[0].mxu0
    %v5572 = vadd.f32 0.0, %v5571
    %v5573 = vpop.f32.mrb[0].mxu0
    %5574 = vdwg.mxu0
    %v5575 = vadd.f32 %v420, %v5572
    %v5576 = vadd.f32 %v5575, %v761
    %v5577 = vxor.u32 %v5576, 2147483648
    %v5578 = vmul.f32 %v5577, 1.442695
    %v5579 = vpow.pop %v5578
    %v5580 = vadd.f32 %v5579, 1.0
    %v5581 = vrcp.pop %v5580
    %v5582 = vmul.f32 1.0, %v5581
    %5583 = vmatprep.subr.mxu0 0.0
    %5584 = vmatpush1.msra.mxu0 %v551
    %5585 = vmatprep.subr.mxu0 0.0
    %5586 = vmatpush1.msra.mxu0 %v552
    %5587 = vmatprep.subr.mxu0 0.0
    %5588 = vmatpush1.msra.mxu0 %v553
    %5589 = vmatprep.subr.mxu0 0.0
    %5590 = vmatpush1.msra.mxu0 %v554
    %5591 = vmatprep.subr.mxu0 0.0
    %5592 = vmatpush1.msra.mxu0 0.0
    %5593 = vmatprep.subr.mxu0 0.0
    %5594 = vmatpush1.msra.mxu0 0.0
    %5595 = vmatprep.subr.mxu0 0.0
    %5596 = vmatpush1.msra.mxu0 0.0
    %5597 = vmatprep.subr.mxu0 0.0
    %5598 = vmatpush1.msra.mxu0 0.0
    %5599 = vmatprep.subr.mxu0 0.0
    %5600 = vmatpush1.msra.mxu0 0.0
    %5601 = vmatprep.subr.mxu0 0.0
    %5602 = vmatpush1.msra.mxu0 0.0
    %5603 = vmatprep.subr.mxu0 0.0
    %5604 = vmatpush1.msra.mxu0 0.0
    %5605 = vmatprep.subr.mxu0 0.0
    %5606 = vmatpush1.msra.mxu0 0.0
    %5607 = vmatprep.subr.mxu0 0.0
    %5608 = vmatpush1.msra.mxu0 0.0
    %5609 = vmatprep.subr.mxu0 0.0
    %5610 = vmatpush1.msra.mxu0 0.0
    %5611 = vmatprep.subr.mxu0 0.0
    %5612 = vmatpush1.msra.mxu0 0.0
    %5613 = vmatprep.subr.mxu0 0.0
    %5614 = vmatpush1.msra.mxu0 0.0
    %5615 = vmatprep.subr.mxu0 0.0
    %5616 = vmatpush1.msra.mxu0 0.0
    %5617 = vmatprep.subr.mxu0 0.0
    %5618 = vmatpush1.msra.mxu0 0.0
    %5619 = vmatprep.subr.mxu0 0.0
    %5620 = vmatpush1.msra.mxu0 0.0
    %5621 = vmatprep.subr.mxu0 0.0
    %5622 = vmatpush1.msra.mxu0 0.0
    %5623 = vmatprep.subr.mxu0 0.0
    %5624 = vmatpush1.msra.mxu0 0.0
    %5625 = vmatprep.subr.mxu0 0.0
    %5626 = vmatpush1.msra.mxu0 0.0
    %5627 = vmatprep.subr.mxu0 0.0
    %5628 = vmatpush1.msra.mxu0 0.0
    %5629 = vmatprep.subr.mxu0 0.0
    %5630 = vmatpush1.msra.mxu0 0.0
    %5631 = vmatprep.subr.mxu0 0.0
    %5632 = vmatpush1.msra.mxu0 0.0
    %5633 = vmatprep.subr.mxu0 0.0
    %5634 = vmatpush1.msra.mxu0 0.0
    %5635 = vmatprep.subr.mxu0 0.0
    %5636 = vmatpush1.msra.mxu0 0.0
    %5637 = vmatprep.subr.mxu0 0.0
    %5638 = vmatpush1.msra.mxu0 0.0
    %5639 = vmatprep.subr.mxu0 0.0
    %5640 = vmatpush1.msra.mxu0 0.0
    %5641 = vmatprep.subr.mxu0 0.0
    %5642 = vmatpush1.msra.mxu0 0.0
    %5643 = vmatprep.subr.mxu0 0.0
    %5644 = vmatpush1.msra.mxu0 0.0
    %5645 = vmatprep.subr.mxu0 0.0
    %5646 = vmatpush1.msra.mxu0 0.0
    %5647 = vmatprep.mubr.f32.mxu0 0.0
    %5648 = vmatmul.mubr.f32.gmra.mrb[0].mxu0 %v4979
    %v5649 = vpop.f32.mrb[0].mxu0
    %v5650 = vadd.f32 %v774, %v5649
    %v5651 = vpop.f32.mrb[0].mxu0
    %5652 = vdwg.mxu0
    %v5653 = vmul.f32 %v5504, %v5650
    %v5654 = vadd.f32 %v538, %v5653
    %v5655 = vtanh.pop %v5654
    %v5656 = vsub.f32 1.0, %v5582
    %v5657 = vmul.f32 %v5656, %v5655
    %v5658 = vmul.f32 %v5582, %v4977
    %v5659 = vadd.f32 %v5657, %v5658
    %v5661 = vsel %vm598, %v5659, 0
    %5663 = vmatprep.subr.mxu0 0.0
    %5664 = vmatpush1.msra.mxu0 %v560
    %5665 = vmatprep.subr.mxu0 0.0
    %5666 = vmatpush1.msra.mxu0 %v561
    %5667 = vmatprep.subr.mxu0 0.0
    %5668 = vmatpush1.msra.mxu0 %v562
    %5669 = vmatprep.subr.mxu0 0.0
    %5670 = vmatpush1.msra.mxu0 %v563
    %5671 = vmatprep.subr.mxu0 0.0
    %5672 = vmatpush1.msra.mxu0 0.0
    %5673 = vmatprep.subr.mxu0 0.0
    %5674 = vmatpush1.msra.mxu0 0.0
    %5675 = vmatprep.subr.mxu0 0.0
    %5676 = vmatpush1.msra.mxu0 0.0
    %5677 = vmatprep.subr.mxu0 0.0
    %5678 = vmatpush1.msra.mxu0 0.0
    %5679 = vmatprep.subr.mxu0 0.0
    %5680 = vmatpush1.msra.mxu0 0.0
    %5681 = vmatprep.subr.mxu0 0.0
    %5682 = vmatpush1.msra.mxu0 0.0
    %5683 = vmatprep.subr.mxu0 0.0
    %5684 = vmatpush1.msra.mxu0 0.0
    %5685 = vmatprep.subr.mxu0 0.0
    %5686 = vmatpush1.msra.mxu0 0.0
    %5687 = vmatprep.subr.mxu0 0.0
    %5688 = vmatpush1.msra.mxu0 0.0
    %5689 = vmatprep.subr.mxu0 0.0
    %5690 = vmatpush1.msra.mxu0 0.0
    %5691 = vmatprep.subr.mxu0 0.0
    %5692 = vmatpush1.msra.mxu0 0.0
    %5693 = vmatprep.subr.mxu0 0.0
    %5694 = vmatpush1.msra.mxu0 0.0
    %5695 = vmatprep.subr.mxu0 0.0
    %5696 = vmatpush1.msra.mxu0 0.0
    %5697 = vmatprep.subr.mxu0 0.0
    %5698 = vmatpush1.msra.mxu0 0.0
    %5699 = vmatprep.subr.mxu0 0.0
    %5700 = vmatpush1.msra.mxu0 0.0
    %5701 = vmatprep.subr.mxu0 0.0
    %5702 = vmatpush1.msra.mxu0 0.0
    %5703 = vmatprep.subr.mxu0 0.0
    %5704 = vmatpush1.msra.mxu0 0.0
    %5705 = vmatprep.subr.mxu0 0.0
    %5706 = vmatpush1.msra.mxu0 0.0
    %5707 = vmatprep.subr.mxu0 0.0
    %5708 = vmatpush1.msra.mxu0 0.0
    %5709 = vmatprep.subr.mxu0 0.0
    %5710 = vmatpush1.msra.mxu0 0.0
    %5711 = vmatprep.subr.mxu0 0.0
    %5712 = vmatpush1.msra.mxu0 0.0
    %5713 = vmatprep.subr.mxu0 0.0
    %5714 = vmatpush1.msra.mxu0 0.0
    %5715 = vmatprep.subr.mxu0 0.0
    %5716 = vmatpush1.msra.mxu0 0.0
    %5717 = vmatprep.subr.mxu0 0.0
    %5718 = vmatpush1.msra.mxu0 0.0
    %5719 = vmatprep.subr.mxu0 0.0
    %5720 = vmatpush1.msra.mxu0 0.0
    %5721 = vmatprep.subr.mxu0 0.0
    %5722 = vmatpush1.msra.mxu0 0.0
    %5723 = vmatprep.subr.mxu0 0.0
    %5724 = vmatpush1.msra.mxu0 0.0
    %5725 = vmatprep.subr.mxu0 0.0
    %5726 = vmatpush1.msra.mxu0 0.0
    %5727 = vmatprep.mubr.f32.mxu0 0.0
    %5728 = vmatmul.mubr.f32.gmra.mrb[0].mxu0 %v5661
    %v5729 = vpop.f32.mrb[0].mxu0
    %v5730 = vadd.f32 %v857, %v5729
    %v5731 = vpop.f32.mrb[0].mxu0
    %5732 = vdwg.mxu0
    %v5734 = vsel %vm598, %v5426, 0
    %5736 = vmatprep.subr.mxu0 0.0
    %5737 = vmatpush1.msra.mxu0 %v579
    %5738 = vmatprep.subr.mxu0 0.0
    %5739 = vmatpush1.msra.mxu0 %v580
    %5740 = vmatprep.subr.mxu0 0.0
    %5741 = vmatpush1.msra.mxu0 %v581
    %5742 = vmatprep.subr.mxu0 0.0
    %5743 = vmatpush1.msra.mxu0 %v582
    %5744 = vmatprep.subr.mxu0 0.0
    %5745 = vmatpush1.msra.mxu0 0.0
    %5746 = vmatprep.subr.mxu0 0.0
    %5747 = vmatpush1.msra.mxu0 0.0
    %5748 = vmatprep.subr.mxu0 0.0
    %5749 = vmatpush1.msra.mxu0 0.0
    %5750 = vmatprep.subr.mxu0 0.0
    %5751 = vmatpush1.msra.mxu0 0.0
    %5752 = vmatprep.subr.mxu0 0.0
    %5753 = vmatpush1.msra.mxu0 0.0
    %5754 = vmatprep.subr.mxu0 0.0
    %5755 = vmatpush1.msra.mxu0 0.0
    %5756 = vmatprep.subr.mxu0 0.0
    %5757 = vmatpush1.msra.mxu0 0.0
    %5758 = vmatprep.subr.mxu0 0.0
    %5759 = vmatpush1.msra.mxu0 0.0
    %5760 = vmatprep.subr.mxu0 0.0
    %5761 = vmatpush1.msra.mxu0 0.0
    %5762 = vmatprep.subr.mxu0 0.0
    %5763 = vmatpush1.msra.mxu0 0.0
    %5764 = vmatprep.subr.mxu0 0.0
    %5765 = vmatpush1.msra.mxu0 0.0
    %5766 = vmatprep.subr.mxu0 0.0
    %5767 = vmatpush1.msra.mxu0 0.0
    %5768 = vmatprep.subr.mxu0 0.0
    %5769 = vmatpush1.msra.mxu0 0.0
    %5770 = vmatprep.subr.mxu0 0.0
    %5771 = vmatpush1.msra.mxu0 0.0
    %5772 = vmatprep.subr.mxu0 0.0
    %5773 = vmatpush1.msra.mxu0 0.0
    %5774 = vmatprep.subr.mxu0 0.0
    %5775 = vmatpush1.msra.mxu0 0.0
    %5776 = vmatprep.subr.mxu0 0.0
    %5777 = vmatpush1.msra.mxu0 0.0
    %5778 = vmatprep.subr.mxu0 0.0
    %5779 = vmatpush1.msra.mxu0 0.0
    %5780 = vmatprep.subr.mxu0 0.0
    %5781 = vmatpush1.msra.mxu0 0.0
    %5782 = vmatprep.subr.mxu0 0.0
    %5783 = vmatpush1.msra.mxu0 0.0
    %5784 = vmatprep.subr.mxu0 0.0
    %5785 = vmatpush1.msra.mxu0 0.0
    %5786 = vmatprep.subr.mxu0 0.0
    %5787 = vmatpush1.msra.mxu0 0.0
    %5788 = vmatprep.subr.mxu0 0.0
    %5789 = vmatpush1.msra.mxu0 0.0
    %5790 = vmatprep.subr.mxu0 0.0
    %5791 = vmatpush1.msra.mxu0 0.0
    %5792 = vmatprep.subr.mxu0 0.0
    %5793 = vmatpush1.msra.mxu0 0.0
    %5794 = vmatprep.subr.mxu0 0.0
    %5795 = vmatpush1.msra.mxu0 0.0
    %5796 = vmatprep.subr.mxu0 0.0
    %5797 = vmatpush1.msra.mxu0 0.0
    %5798 = vmatprep.subr.mxu0 0.0
    %5799 = vmatpush1.msra.mxu0 0.0
    %5800 = vmatprep.mubr.f32.mxu0 0.0
    %5801 = vmatmul.mubr.f32.gmra.mrb[0].mxu0 %v5734
    %v5802 = vpop.f32.mrb[0].mxu0
    %v5803 = vadd.f32 0.0, %v5802
    %v5804 = vpop.f32.mrb[0].mxu0
    %5805 = vdwg.mxu0
    %v5806 = vadd.f32 %v5730, %v5803
    %v5807 = vadd.f32 %v5806, %v1007
    %v5808 = vxor.u32 %v5807, 2147483648
    %v5809 = vmul.f32 %v5808, 1.442695
    %v5810 = vpow.pop %v5809
    %v5811 = vadd.f32 %v5810, 1.0
    %v5812 = vrcp.pop %v5811
    %v5813 = vmul.f32 1.0, %v5812
    %5814 = vmatprep.subr.mxu0 0.0
    %5815 = vmatpush1.msra.mxu0 %v565
    %5816 = vmatprep.subr.mxu0 0.0
    %5817 = vmatpush1.msra.mxu0 %v566
    %5818 = vmatprep.subr.mxu0 0.0
    %5819 = vmatpush1.msra.mxu0 %v567
    %5820 = vmatprep.subr.mxu0 0.0
    %5821 = vmatpush1.msra.mxu0 %v568
    %5822 = vmatprep.subr.mxu0 0.0
    %5823 = vmatpush1.msra.mxu0 0.0
    %5824 = vmatprep.subr.mxu0 0.0
    %5825 = vmatpush1.msra.mxu0 0.0
    %5826 = vmatprep.subr.mxu0 0.0
    %5827 = vmatpush1.msra.mxu0 0.0
    %5828 = vmatprep.subr.mxu0 0.0
    %5829 = vmatpush1.msra.mxu0 0.0
    %5830 = vmatprep.subr.mxu0 0.0
    %5831 = vmatpush1.msra.mxu0 0.0
    %5832 = vmatprep.subr.mxu0 0.0
    %5833 = vmatpush1.msra.mxu0 0.0
    %5834 = vmatprep.subr.mxu0 0.0
    %5835 = vmatpush1.msra.mxu0 0.0
    %5836 = vmatprep.subr.mxu0 0.0
    %5837 = vmatpush1.msra.mxu0 0.0
    %5838 = vmatprep.subr.mxu0 0.0
    %5839 = vmatpush1.msra.mxu0 0.0
    %5840 = vmatprep.subr.mxu0 0.0
    %5841 = vmatpush1.msra.mxu0 0.0
    %5842 = vmatprep.subr.mxu0 0.0
    %5843 = vmatpush1.msra.mxu0 0.0
    %5844 = vmatprep.subr.mxu0 0.0
    %5845 = vmatpush1.msra.mxu0 0.0
    %5846 = vmatprep.subr.mxu0 0.0
    %5847 = vmatpush1.msra.mxu0 0.0
    %5848 = vmatprep.subr.mxu0 0.0
    %5849 = vmatpush1.msra.mxu0 0.0
    %5850 = vmatprep.subr.mxu0 0.0
    %5851 = vmatpush1.msra.mxu0 0.0
    %5852 = vmatprep.subr.mxu0 0.0
    %5853 = vmatpush1.msra.mxu0 0.0
    %5854 = vmatprep.subr.mxu0 0.0
    %5855 = vmatpush1.msra.mxu0 0.0
    %5856 = vmatprep.subr.mxu0 0.0
    %5857 = vmatpush1.msra.mxu0 0.0
    %5858 = vmatprep.subr.mxu0 0.0
    %5859 = vmatpush1.msra.mxu0 0.0
    %5860 = vmatprep.subr.mxu0 0.0
    %5861 = vmatpush1.msra.mxu0 0.0
    %5862 = vmatprep.subr.mxu0 0.0
    %5863 = vmatpush1.msra.mxu0 0.0
    %5864 = vmatprep.subr.mxu0 0.0
    %5865 = vmatpush1.msra.mxu0 0.0
    %5866 = vmatprep.subr.mxu0 0.0
    %5867 = vmatpush1.msra.mxu0 0.0
    %5868 = vmatprep.subr.mxu0 0.0
    %5869 = vmatpush1.msra.mxu0 0.0
    %5870 = vmatprep.subr.mxu0 0.0
    %5871 = vmatpush1.msra.mxu0 0.0
    %5872 = vmatprep.subr.mxu0 0.0
    %5873 = vmatpush1.msra.mxu0 0.0
    %5874 = vmatprep.subr.mxu0 0.0
    %5875 = vmatpush1.msra.mxu0 0.0
    %5876 = vmatprep.subr.mxu0 0.0
    %5877 = vmatpush1.msra.mxu0 0.0
    %5878 = vmatprep.mubr.f32.mxu0 0.0
    %5879 = vmatmul.mubr.f32.gmra.mrb[0].mxu0 %v5661
    %v5880 = vpop.f32.mrb[0].mxu0
    %v5881 = vadd.f32 %v1020, %v5880
    %v5882 = vpop.f32.mrb[0].mxu0
    %5883 = vdwg.mxu0
    %5884 = vmatprep.subr.mxu0 0.0
    %5885 = vmatpush1.msra.mxu0 %v584
    %5886 = vmatprep.subr.mxu0 0.0
    %5887 = vmatpush1.msra.mxu0 %v585
    %5888 = vmatprep.subr.mxu0 0.0
    %5889 = vmatpush1.msra.mxu0 %v586
    %5890 = vmatprep.subr.mxu0 0.0
    %5891 = vmatpush1.msra.mxu0 %v587
    %5892 = vmatprep.subr.mxu0 0.0
    %5893 = vmatpush1.msra.mxu0 0.0
    %5894 = vmatprep.subr.mxu0 0.0
    %5895 = vmatpush1.msra.mxu0 0.0
    %5896 = vmatprep.subr.mxu0 0.0
    %5897 = vmatpush1.msra.mxu0 0.0
    %5898 = vmatprep.subr.mxu0 0.0
    %5899 = vmatpush1.msra.mxu0 0.0
    %5900 = vmatprep.subr.mxu0 0.0
    %5901 = vmatpush1.msra.mxu0 0.0
    %5902 = vmatprep.subr.mxu0 0.0
    %5903 = vmatpush1.msra.mxu0 0.0
    %5904 = vmatprep.subr.mxu0 0.0
    %5905 = vmatpush1.msra.mxu0 0.0
    %5906 = vmatprep.subr.mxu0 0.0
    %5907 = vmatpush1.msra.mxu0 0.0
    %5908 = vmatprep.subr.mxu0 0.0
    %5909 = vmatpush1.msra.mxu0 0.0
    %5910 = vmatprep.subr.mxu0 0.0
    %5911 = vmatpush1.msra.mxu0 0.0
    %5912 = vmatprep.subr.mxu0 0.0
    %5913 = vmatpush1.msra.mxu0 0.0
    %5914 = vmatprep.subr.mxu0 0.0
    %5915 = vmatpush1.msra.mxu0 0.0
    %5916 = vmatprep.subr.mxu0 0.0
    %5917 = vmatpush1.msra.mxu0 0.0
    %5918 = vmatprep.subr.mxu0 0.0
    %5919 = vmatpush1.msra.mxu0 0.0
    %5920 = vmatprep.subr.mxu0 0.0
    %5921 = vmatpush1.msra.mxu0 0.0
    %5922 = vmatprep.subr.mxu0 0.0
    %5923 = vmatpush1.msra.mxu0 0.0
    %5924 = vmatprep.subr.mxu0 0.0
    %5925 = vmatpush1.msra.mxu0 0.0
    %5926 = vmatprep.subr.mxu0 0.0
    %5927 = vmatpush1.msra.mxu0 0.0
    %5928 = vmatprep.subr.mxu0 0.0
    %5929 = vmatpush1.msra.mxu0 0.0
    %5930 = vmatprep.subr.mxu0 0.0
    %5931 = vmatpush1.msra.mxu0 0.0
    %5932 = vmatprep.subr.mxu0 0.0
    %5933 = vmatpush1.msra.mxu0 0.0
    %5934 = vmatprep.subr.mxu0 0.0
    %5935 = vmatpush1.msra.mxu0 0.0
    %5936 = vmatprep.subr.mxu0 0.0
    %5937 = vmatpush1.msra.mxu0 0.0
    %5938 = vmatprep.subr.mxu0 0.0
    %5939 = vmatpush1.msra.mxu0 0.0
    %5940 = vmatprep.subr.mxu0 0.0
    %5941 = vmatpush1.msra.mxu0 0.0
    %5942 = vmatprep.subr.mxu0 0.0
    %5943 = vmatpush1.msra.mxu0 0.0
    %5944 = vmatprep.subr.mxu0 0.0
    %5945 = vmatpush1.msra.mxu0 0.0
    %5946 = vmatprep.subr.mxu0 0.0
    %5947 = vmatpush1.msra.mxu0 0.0
    %5948 = vmatprep.mubr.f32.mxu0 0.0
    %5949 = vmatmul.mubr.f32.gmra.mrb[0].mxu0 %v5734
    %v5950 = vpop.f32.mrb[0].mxu0
    %v5951 = vadd.f32 0.0, %v5950
    %v5952 = vpop.f32.mrb[0].mxu0
    %5953 = vdwg.mxu0
    %v5954 = vadd.f32 %v5881, %v5951
    %v5955 = vadd.f32 %v5954, %v1167
    %v5956 = vxor.u32 %v5955, 2147483648
    %v5957 = vmul.f32 %v5956, 1.442695
    %v5958 = vpow.pop %v5957
    %v5959 = vadd.f32 %v5958, 1.0
    %v5960 = vrcp.pop %v5959
    %v5961 = vmul.f32 1.0, %v5960
    %5962 = vmatprep.subr.mxu0 0.0
    %5963 = vmatpush1.msra.mxu0 %v570
    %5964 = vmatprep.subr.mxu0 0.0
    %5965 = vmatpush1.msra.mxu0 %v571
    %5966 = vmatprep.subr.mxu0 0.0
    %5967 = vmatpush1.msra.mxu0 %v572
    %5968 = vmatprep.subr.mxu0 0.0
    %5969 = vmatpush1.msra.mxu0 %v573
    %5970 = vmatprep.subr.mxu0 0.0
    %5971 = vmatpush1.msra.mxu0 0.0
    %5972 = vmatprep.subr.mxu0 0.0
    %5973 = vmatpush1.msra.mxu0 0.0
    %5974 = vmatprep.subr.mxu0 0.0
    %5975 = vmatpush1.msra.mxu0 0.0
    %5976 = vmatprep.subr.mxu0 0.0
    %5977 = vmatpush1.msra.mxu0 0.0
    %5978 = vmatprep.subr.mxu0 0.0
    %5979 = vmatpush1.msra.mxu0 0.0
    %5980 = vmatprep.subr.mxu0 0.0
    %5981 = vmatpush1.msra.mxu0 0.0
    %5982 = vmatprep.subr.mxu0 0.0
    %5983 = vmatpush1.msra.mxu0 0.0
    %5984 = vmatprep.subr.mxu0 0.0
    %5985 = vmatpush1.msra.mxu0 0.0
    %5986 = vmatprep.subr.mxu0 0.0
    %5987 = vmatpush1.msra.mxu0 0.0
    %5988 = vmatprep.subr.mxu0 0.0
    %5989 = vmatpush1.msra.mxu0 0.0
    %5990 = vmatprep.subr.mxu0 0.0
    %5991 = vmatpush1.msra.mxu0 0.0
    %5992 = vmatprep.subr.mxu0 0.0
    %5993 = vmatpush1.msra.mxu0 0.0
    %5994 = vmatprep.subr.mxu0 0.0
    %5995 = vmatpush1.msra.mxu0 0.0
    %5996 = vmatprep.subr.mxu0 0.0
    %5997 = vmatpush1.msra.mxu0 0.0
    %5998 = vmatprep.subr.mxu0 0.0
    %5999 = vmatpush1.msra.mxu0 0.0
    %6000 = vmatprep.subr.mxu0 0.0
    %6001 = vmatpush1.msra.mxu0 0.0
    %6002 = vmatprep.subr.mxu0 0.0
    %6003 = vmatpush1.msra.mxu0 0.0
    %6004 = vmatprep.subr.mxu0 0.0
    %6005 = vmatpush1.msra.mxu0 0.0
    %6006 = vmatprep.subr.mxu0 0.0
    %6007 = vmatpush1.msra.mxu0 0.0
    %6008 = vmatprep.subr.mxu0 0.0
    %6009 = vmatpush1.msra.mxu0 0.0
    %6010 = vmatprep.subr.mxu0 0.0
    %6011 = vmatpush1.msra.mxu0 0.0
    %6012 = vmatprep.subr.mxu0 0.0
    %6013 = vmatpush1.msra.mxu0 0.0
    %6014 = vmatprep.subr.mxu0 0.0
    %6015 = vmatpush1.msra.mxu0 0.0
    %6016 = vmatprep.subr.mxu0 0.0
    %6017 = vmatpush1.msra.mxu0 0.0
    %6018 = vmatprep.subr.mxu0 0.0
    %6019 = vmatpush1.msra.mxu0 0.0
    %6020 = vmatprep.subr.mxu0 0.0
    %6021 = vmatpush1.msra.mxu0 0.0
    %6022 = vmatprep.subr.mxu0 0.0
    %6023 = vmatpush1.msra.mxu0 0.0
    %6024 = vmatprep.subr.mxu0 0.0
    %6025 = vmatpush1.msra.mxu0 0.0
    %6026 = vmatprep.mubr.f32.mxu0 0.0
    %6027 = vmatmul.mubr.f32.gmra.mrb[0].mxu0 %v5661
    %v6028 = vpop.f32.mrb[0].mxu0
    %v6029 = vadd.f32 %v1180, %v6028
    %v6030 = vpop.f32.mrb[0].mxu0
    %6031 = vdwg.mxu0
    %6032 = vmatprep.subr.mxu0 0.0
    %6033 = vmatpush1.msra.mxu0 %v589
    %6034 = vmatprep.subr.mxu0 0.0
    %6035 = vmatpush1.msra.mxu0 %v590
    %6036 = vmatprep.subr.mxu0 0.0
    %6037 = vmatpush1.msra.mxu0 %v591
    %6038 = vmatprep.subr.mxu0 0.0
    %6039 = vmatpush1.msra.mxu0 %v592
    %6040 = vmatprep.subr.mxu0 0.0
    %6041 = vmatpush1.msra.mxu0 0.0
    %6042 = vmatprep.subr.mxu0 0.0
    %6043 = vmatpush1.msra.mxu0 0.0
    %6044 = vmatprep.subr.mxu0 0.0
    %6045 = vmatpush1.msra.mxu0 0.0
    %6046 = vmatprep.subr.mxu0 0.0
    %6047 = vmatpush1.msra.mxu0 0.0
    %6048 = vmatprep.subr.mxu0 0.0
    %6049 = vmatpush1.msra.mxu0 0.0
    %6050 = vmatprep.subr.mxu0 0.0
    %6051 = vmatpush1.msra.mxu0 0.0
    %6052 = vmatprep.subr.mxu0 0.0
    %6053 = vmatpush1.msra.mxu0 0.0
    %6054 = vmatprep.subr.mxu0 0.0
    %6055 = vmatpush1.msra.mxu0 0.0
    %6056 = vmatprep.subr.mxu0 0.0
    %6057 = vmatpush1.msra.mxu0 0.0
    %6058 = vmatprep.subr.mxu0 0.0
    %6059 = vmatpush1.msra.mxu0 0.0
    %6060 = vmatprep.subr.mxu0 0.0
    %6061 = vmatpush1.msra.mxu0 0.0
    %6062 = vmatprep.subr.mxu0 0.0
    %6063 = vmatpush1.msra.mxu0 0.0
    %6064 = vmatprep.subr.mxu0 0.0
    %6065 = vmatpush1.msra.mxu0 0.0
    %6066 = vmatprep.subr.mxu0 0.0
    %6067 = vmatpush1.msra.mxu0 0.0
    %6068 = vmatprep.subr.mxu0 0.0
    %6069 = vmatpush1.msra.mxu0 0.0
    %6070 = vmatprep.subr.mxu0 0.0
    %6071 = vmatpush1.msra.mxu0 0.0
    %6072 = vmatprep.subr.mxu0 0.0
    %6073 = vmatpush1.msra.mxu0 0.0
    %6074 = vmatprep.subr.mxu0 0.0
    %6075 = vmatpush1.msra.mxu0 0.0
    %6076 = vmatprep.subr.mxu0 0.0
    %6077 = vmatpush1.msra.mxu0 0.0
    %6078 = vmatprep.subr.mxu0 0.0
    %6079 = vmatpush1.msra.mxu0 0.0
    %6080 = vmatprep.subr.mxu0 0.0
    %6081 = vmatpush1.msra.mxu0 0.0
    %6082 = vmatprep.subr.mxu0 0.0
    %6083 = vmatpush1.msra.mxu0 0.0
    %6084 = vmatprep.subr.mxu0 0.0
    %6085 = vmatpush1.msra.mxu0 0.0
    %6086 = vmatprep.subr.mxu0 0.0
    %6087 = vmatpush1.msra.mxu0 0.0
    %6088 = vmatprep.subr.mxu0 0.0
    %6089 = vmatpush1.msra.mxu0 0.0
    %6090 = vmatprep.subr.mxu0 0.0
    %6091 = vmatpush1.msra.mxu0 0.0
    %6092 = vmatprep.subr.mxu0 0.0
    %6093 = vmatpush1.msra.mxu0 0.0
    %6094 = vmatprep.subr.mxu0 0.0
    %6095 = vmatpush1.msra.mxu0 0.0
    %6096 = vmatprep.mubr.f32.mxu0 0.0
    %6097 = vmatmul.mubr.f32.gmra.mrb[0].mxu0 %v5734
    %v6098 = vpop.f32.mrb[0].mxu0
    %v6099 = vadd.f32 %v1256, %v6098
    %v6100 = vpop.f32.mrb[0].mxu0
    %6101 = vdwg.mxu0
    %v6102 = vmul.f32 %v5813, %v6099
    %v6103 = vadd.f32 %v6029, %v6102
    %v6104 = vtanh.pop %v6103
    %v6105 = vsub.f32 1.0, %v5961
    %v6106 = vmul.f32 %v6105, %v6104
    %v6107 = vmul.f32 %v5961, %v5426
    %v6108 = vadd.f32 %v6106, %v6107
    %v6109 = vlaneseq
    %v6110 = vshrl.u32 %v6109, 7
    %v6111 = vlaneseq
    %v6112 = vand.u32 %v6111, 127
    %vm6113 = vcmp.eq.s32.totalorder %v6110, %v6112
    %v6114 = vsel %vm6113, 1, 0
    %v6115 = vcvt.s32.f32 %v6114
    %v6116 = vcvt.s32.f32 %v6112
    %v6118 = vsel %vm598, %v6108, 0
    %6120 = vmatprep.subr.mxu0 0.0
    %6121 = vmatpush1.xpose.msra.mxu0 %v6118
    %6122 = vmatprep.subr.mxu0 0.0
    %6123 = vmatpush1.xpose.msra.mxu0 0.0
    %6124 = vmatprep.subr.mxu0 0.0
    %6125 = vmatpush1.xpose.msra.mxu0 0.0
    %6126 = vmatprep.subr.mxu0 0.0
    %6127 = vmatpush1.xpose.msra.mxu0 0.0
    %6128 = vmatprep.subr.mxu0 0.0
    %6129 = vmatpush1.xpose.msra.mxu0 0.0
    %6130 = vmatprep.subr.mxu0 0.0
    %6131 = vmatpush1.xpose.msra.mxu0 0.0
    %6132 = vmatprep.subr.mxu0 0.0
    %6133 = vmatpush1.xpose.msra.mxu0 0.0
    %6134 = vmatprep.subr.mxu0 0.0
    %6135 = vmatpush1.xpose.msra.mxu0 0.0
    %6136 = vmatprep.subr.mxu0 0.0
    %6137 = vmatpush1.xpose.msra.mxu0 0.0
    %6138 = vmatprep.subr.mxu0 0.0
    %6139 = vmatpush1.xpose.msra.mxu0 0.0
    %6140 = vmatprep.subr.mxu0 0.0
    %6141 = vmatpush1.xpose.msra.mxu0 0.0
    %6142 = vmatprep.subr.mxu0 0.0
    %6143 = vmatpush1.xpose.msra.mxu0 0.0
    %6144 = vmatprep.subr.mxu0 0.0
    %6145 = vmatpush1.xpose.msra.mxu0 0.0
    %6146 = vmatprep.subr.mxu0 0.0
    %6147 = vmatpush1.xpose.msra.mxu0 0.0
    %6148 = vmatprep.subr.mxu0 0.0
    %6149 = vmatpush1.xpose.msra.mxu0 0.0
    %6150 = vmatprep.subr.mxu0 0.0
    %6151 = vmatpush1.xpose.msra.mxu0 0.0
    %6152 = vmatprep.subr.mxu0 0.0
    %6153 = vmatpush1.xpose.msra.mxu0 0.0
    %6154 = vmatprep.subr.mxu0 0.0
    %6155 = vmatpush1.xpose.msra.mxu0 0.0
    %6156 = vmatprep.subr.mxu0 0.0
    %6157 = vmatpush1.xpose.msra.mxu0 0.0
    %6158 = vmatprep.subr.mxu0 0.0
    %6159 = vmatpush1.xpose.msra.mxu0 0.0
    %6160 = vmatprep.subr.mxu0 0.0
    %6161 = vmatpush1.xpose.msra.mxu0 0.0
    %6162 = vmatprep.subr.mxu0 0.0
    %6163 = vmatpush1.xpose.msra.mxu0 0.0
    %6164 = vmatprep.subr.mxu0 0.0
    %6165 = vmatpush1.xpose.msra.mxu0 0.0
    %6166 = vmatprep.subr.mxu0 0.0
    %6167 = vmatpush1.xpose.msra.mxu0 0.0
    %6168 = vmatprep.subr.mxu0 0.0
    %6169 = vmatpush1.xpose.msra.mxu0 0.0
    %6170 = vmatprep.subr.mxu0 0.0
    %6171 = vmatpush1.xpose.msra.mxu0 0.0
    %6172 = vmatprep.subr.mxu0 0.0
    %6173 = vmatpush1.xpose.msra.mxu0 0.0
    %6174 = vmatprep.subr.mxu0 0.0
    %6175 = vmatpush1.xpose.msra.mxu0 0.0
    %6176 = vmatprep.subr.mxu0 0.0
    %6177 = vmatpush1.xpose.msra.mxu0 0.0
    %6178 = vmatprep.subr.mxu0 0.0
    %6179 = vmatpush1.xpose.msra.mxu0 0.0
    %6180 = vmatprep.subr.mxu0 0.0
    %6181 = vmatpush1.xpose.msra.mxu0 0.0
    %6182 = vmatprep.subr.mxu0 0.0
    %6183 = vmatpush1.xpose.msra.mxu0 0.0
    %6184 = vmatprep.mubr.f32.mxu0 0.0
    %6185 = vmatmul.mubr.f32.gmra.mrb[0].mxu0 %v6118
    %v6186 = vpop.f32.mrb[0].mxu0
    %v6187 = vadd.f32 0.0, %v6186
    %v6188 = vpop.f32.mrb[0].mxu0
    %6189 = vdwg.mxu0
    %v6190 = vmul.f32 %v6108, %v6108
    %v6191 = vsel %vm598, %v6190, 0.0
    %6192 = vadd.xlane.f32.xlu0 %v6191
    %v6193 = vpop.xlane.xlu0 %6192
    %v6194 = vrsqrt.pop %v6193
    %v6195 = vmul.f32 %v6193, %v6194
    %vm6196 = vcmp.eq.f32.partialorder %v6193, inf
    %v6197 = vsel %vm6196, %v6193, %v6195
    %vm6198 = vcmp.eq.f32.partialorder %v6193, 0.0
    %v6199 = vand.u32 %v6193, 2147483648
    %v6200 = vsel %vm6198, %v6199, %v6197
    %vm6201 = vcmask 7168
    %v6203 = vsel %vm6201, %v6200, 0
    %6205 = vmatprep.subr.mxu0 0.0
    %6206 = vmatpush1.xpose.msra.mxu0 %v6203
    %6207 = vmatprep.subr.mxu0 0.0
    %6208 = vmatpush1.xpose.msra.mxu0 0.0
    %6209 = vmatprep.subr.mxu0 0.0
    %6210 = vmatpush1.xpose.msra.mxu0 0.0
    %6211 = vmatprep.subr.mxu0 0.0
    %6212 = vmatpush1.xpose.msra.mxu0 0.0
    %6213 = vmatprep.subr.mxu0 0.0
    %6214 = vmatpush1.xpose.msra.mxu0 0.0
    %6215 = vmatprep.subr.mxu0 0.0
    %6216 = vmatpush1.xpose.msra.mxu0 0.0
    %6217 = vmatprep.subr.mxu0 0.0
    %6218 = vmatpush1.xpose.msra.mxu0 0.0
    %6219 = vmatprep.subr.mxu0 0.0
    %6220 = vmatpush1.xpose.msra.mxu0 0.0
    %6221 = vmatprep.subr.mxu0 0.0
    %6222 = vmatpush1.xpose.msra.mxu0 0.0
    %6223 = vmatprep.subr.mxu0 0.0
    %6224 = vmatpush1.xpose.msra.mxu0 0.0
    %6225 = vmatprep.subr.mxu0 0.0
    %6226 = vmatpush1.xpose.msra.mxu0 0.0
    %6227 = vmatprep.subr.mxu0 0.0
    %6228 = vmatpush1.xpose.msra.mxu0 0.0
    %6229 = vmatprep.subr.mxu0 0.0
    %6230 = vmatpush1.xpose.msra.mxu0 0.0
    %6231 = vmatprep.subr.mxu0 0.0
    %6232 = vmatpush1.xpose.msra.mxu0 0.0
    %6233 = vmatprep.subr.mxu0 0.0
    %6234 = vmatpush1.xpose.msra.mxu0 0.0
    %6235 = vmatprep.subr.mxu0 0.0
    %6236 = vmatpush1.xpose.msra.mxu0 0.0
    %6237 = vmatprep.subr.mxu0 0.0
    %6238 = vmatpush1.xpose.msra.mxu0 0.0
    %6239 = vmatprep.subr.mxu0 0.0
    %6240 = vmatpush1.xpose.msra.mxu0 0.0
    %6241 = vmatprep.subr.mxu0 0.0
    %6242 = vmatpush1.xpose.msra.mxu0 0.0
    %6243 = vmatprep.subr.mxu0 0.0
    %6244 = vmatpush1.xpose.msra.mxu0 0.0
    %6245 = vmatprep.subr.mxu0 0.0
    %6246 = vmatpush1.xpose.msra.mxu0 0.0
    %6247 = vmatprep.subr.mxu0 0.0
    %6248 = vmatpush1.xpose.msra.mxu0 0.0
    %6249 = vmatprep.subr.mxu0 0.0
    %6250 = vmatpush1.xpose.msra.mxu0 0.0
    %6251 = vmatprep.subr.mxu0 0.0
    %6252 = vmatpush1.xpose.msra.mxu0 0.0
    %6253 = vmatprep.subr.mxu0 0.0
    %6254 = vmatpush1.xpose.msra.mxu0 0.0
    %6255 = vmatprep.subr.mxu0 0.0
    %6256 = vmatpush1.xpose.msra.mxu0 0.0
    %6257 = vmatprep.subr.mxu0 0.0
    %6258 = vmatpush1.xpose.msra.mxu0 0.0
    %6259 = vmatprep.subr.mxu0 0.0
    %6260 = vmatpush1.xpose.msra.mxu0 0.0
    %6261 = vmatprep.subr.mxu0 0.0
    %6262 = vmatpush1.xpose.msra.mxu0 0.0
    %6263 = vmatprep.subr.mxu0 0.0
    %6264 = vmatpush1.xpose.msra.mxu0 0.0
    %6265 = vmatprep.subr.mxu0 0.0
    %6266 = vmatpush1.xpose.msra.mxu0 0.0
    %6267 = vmatprep.subr.mxu0 0.0
    %6268 = vmatpush1.xpose.msra.mxu0 0.0
    %6269 = vmatprep.mubr.f32.mxu0 0.0
    %6270 = vmatmul.mubr.f32.gmra.mrb[0].mxu0 %v6203
    %v6271 = vpop.f32.mrb[0].mxu0
    %v6272 = vadd.f32 0.0, %v6271
    %v6273 = vpop.f32.mrb[0].mxu0
    %6274 = vdwg.mxu0
    %v6275 = vrcp.pop %v6272
    %v6276 = vmul.f32 %v6187, %v6275
    %vm6277 = vcmp.ne.f32.partialorder %v6276, %v6276
    %v6278 = vsel %vm6277, 0.0, %v6276
    %v6279 = vmul.f32 %v6278, %v6115
    %vm6280 = vcmask 64512
    %v6281 = vsel %vm6280, %v6279, 0.0
    %v6282 = vrot.slane %v6281, 4
    %v6283 = vadd.f32 %v6281, %v6282
    %v6284 = vrot.slane %v6283, 2
    %v6285 = vadd.f32 %v6283, %v6284
    %v6286 = vrot.slane %v6285, 1
    %v6287 = vadd.f32 %v6285, %v6286
    %v6288 = vsub.f32 1.0, %v6115
    %v6289 = vmul.f32 %v6278, %v6288
    %v6290 = vand.u32 2147483647, %v6289
    %v6291 = vsel %vm6280, %v6290, -inf
    %6292 = vmax.xlane.f32.xlu0 %v6291
    %v6293 = vpop.xlane.xlu0 %6292
    %vm6294 = vcmp.eq.f32.partialorder %v6290, %v6293
    %v6295 = vsel %vm6294, %v6116, 8.0
    %v6296 = vsel %vm6280, %v6295, inf
    %6297 = vmin.xlane.f32.xlu0 %v6296
    %v6298 = vpop.xlane.xlu0 %6297
    %vm6299 = vcmp.eq.f32.partialorder %v6116, %v6298
    %v6300 = vsel %vm6299, 1, 0
    %v6301 = vcvt.s32.f32 %v6300
    %v6302 = vmax.f32 %v6301, 0.0
    %vm6303 = vcmp.gt.f32.partialorder %v6301, 0.0
    %v6304 = vsel %vm6303, -1e+30, %v6290
    %v6305 = vsel %vm6280, %v6304, -inf
    %6306 = vmax.xlane.f32.xlu0 %v6305
    %v6307 = vpop.xlane.xlu0 %6306
    %vm6308 = vcmp.eq.f32.partialorder %v6304, %v6307
    %v6309 = vsel %vm6308, %v6116, 8.0
    %v6310 = vsel %vm6280, %v6309, inf
    %6311 = vmin.xlane.f32.xlu0 %v6310
    %v6312 = vpop.xlane.xlu0 %6311
    %vm6313 = vcmp.eq.f32.partialorder %v6116, %v6312
    %v6314 = vsel %vm6313, 1, 0
    %v6315 = vcvt.s32.f32 %v6314
    %v6316 = vmax.f32 %v6302, %v6315
    %vm6317 = vcmp.gt.f32.partialorder %v6315, 0.0
    %v6318 = vsel %vm6317, -1e+30, %v6304
    %v6319 = vsel %vm6280, %v6318, -inf
    %6320 = vmax.xlane.f32.xlu0 %v6319
    %v6321 = vpop.xlane.xlu0 %6320
    %vm6322 = vcmp.eq.f32.partialorder %v6318, %v6321
    %v6323 = vsel %vm6322, %v6116, 8.0
    %v6324 = vsel %vm6280, %v6323, inf
    %6325 = vmin.xlane.f32.xlu0 %v6324
    %v6326 = vpop.xlane.xlu0 %6325
    %vm6327 = vcmp.eq.f32.partialorder %v6116, %v6326
    %v6328 = vsel %vm6327, 1, 0
    %v6329 = vcvt.s32.f32 %v6328
    %v6330 = vmax.f32 %v6316, %v6329
    %v6331 = vmul.f32 %v6289, %v6330
    %v6332 = vsel %vm6280, %v6331, 0.0
    %v6333 = vrot.slane %v6332, 4
    %v6334 = vadd.f32 %v6332, %v6333
    %v6335 = vrot.slane %v6334, 2
    %v6336 = vadd.f32 %v6334, %v6335
    %v6337 = vrot.slane %v6336, 1
    %v6338 = vadd.f32 %v6336, %v6337
    %vm6339 = vcmp.ne.f32.partialorder %v6338, 0.0
    %v6340 = vsel %vm6339, 1, 0
    %v6341 = vcvt.s32.f32 %v6340
    %v6342 = vmul.f32 %v6341, %v6287
    %v6343 = vmul.f32 %v6115, %v6342
    %v6344 = vadd.f32 %v6331, %v6343
    %v6345 = vld [vmem:[%s9] sm:$0xff]
    %v6346 = vld [vmem:[%s9 + $0x8] sm:$0xff]
    %v6347 = vld [vmem:[%s9 + $0x10] sm:$0xff]
    %v6348 = vld [vmem:[%s9 + $0x18] sm:$0xff]
    %s6349 = scalar_lea.vmem %s9, 32
    %v6350 = vld [vmem:[%s6349] sm:$0xff]
    %v6351 = vld [vmem:[%s6349 + $0x8] sm:$0xff]
    %v6352 = vld [vmem:[%s6349 + $0x10] sm:$0xff]
    %v6353 = vld [vmem:[%s6349 + $0x18] sm:$0xff]
    %s6354 = scalar_lea.vmem %s9, 64
    %v6355 = vld [vmem:[%s6354] sm:$0xff]
    %v6356 = vld [vmem:[%s6354 + $0x8] sm:$0xff]
    %v6357 = vld [vmem:[%s6354 + $0x10] sm:$0xff]
    %v6358 = vld [vmem:[%s6354 + $0x18] sm:$0xff]
    %s6359 = scalar_lea.vmem %s9, 96
    %v6360 = vld [vmem:[%s6359] sm:$0xff]
    %v6361 = vld [vmem:[%s6359 + $0x8] sm:$0xff]
    %v6362 = vld [vmem:[%s6359 + $0x10] sm:$0xff]
    %v6363 = vld [vmem:[%s6359 + $0x18] sm:$0xff]
    %s6364 = scalar_lea.vmem %s9, 128
    %v6365 = vld [vmem:[%s6364] sm:$0xff]
    %v6366 = vld [vmem:[%s6364 + $0x8] sm:$0xff]
    %v6367 = vld [vmem:[%s6364 + $0x10] sm:$0xff]
    %v6368 = vld [vmem:[%s6364 + $0x18] sm:$0xff]
    %v6369 = vld [vmem:[#allocation14] sm:$0x1]
    %s6370 = scalar_lea.vmem [#allocation14], 1
    %v6371 = vld [vmem:[%s6370] sm:$0x1]
    %s6372 = scalar_lea.vmem [#allocation14], 2
    %v6373 = vld [vmem:[%s6372] sm:$0x1]
    %s6374 = scalar_lea.vmem [#allocation14], 3
    %v6375 = vld [vmem:[%s6374] sm:$0x1]
    %s6376 = scalar_lea.vmem [#allocation14], 4
    %v6377 = vld [vmem:[%s6376] sm:$0x1]
    %6378 = vxpose.xlu0.b32.start [1/16] %v6344, 128
    %6379 = vxpose.xlu0.b32.cont [2/16] 0.0, 128
    %6380 = vxpose.xlu0.b32.cont [3/16] 0.0, 128
    %6381 = vxpose.xlu0.b32.cont [4/16] 0.0, 128
    %6382 = vxpose.xlu0.b32.cont [5/16] 0.0, 128
    %6383 = vxpose.xlu0.b32.cont [6/16] 0.0, 128
    %6384 = vxpose.xlu0.b32.cont [7/16] 0.0, 128
    %6385 = vxpose.xlu0.b32.cont [8/16] 0.0, 128
    %6386 = vxpose.xlu0.b32.cont [9/16] 0.0, 128
    %6387 = vxpose.xlu0.b32.cont [10/16] 0.0, 128
    %6388 = vxpose.xlu0.b32.cont [11/16] 0.0, 128
    %6389 = vxpose.xlu0.b32.cont [12/16] 0.0, 128
    %6390 = vxpose.xlu0.b32.cont [13/16] 0.0, 128
    %6391 = vxpose.xlu0.b32.cont [14/16] 0.0, 128
    %6392 = vxpose.xlu0.b32.cont [15/16] 0.0, 128
    %6393 = vxpose.xlu0.b32.end [16/16] 0.0, 128
    %v6394 = vpop.trf.xlu0
    %v6395 = vpop.trf.xlu0
    %v6396 = vpop.trf.xlu0
    %v6397 = vpop.trf.xlu0
    %v6398 = vpop.trf.xlu0
    %v6399 = vpop.trf.xlu0
    %v6400 = vpop.trf.xlu0
    %v6401 = vpop.trf.xlu0
    %v6402 = vpop.trf.xlu0
    %v6403 = vpop.trf.xlu0
    %v6404 = vpop.trf.xlu0
    %v6405 = vpop.trf.xlu0
    %v6406 = vpop.trf.xlu0
    %v6407 = vpop.trf.xlu0
    %v6408 = vpop.trf.xlu0
    %v6409 = vpop.trf.xlu0
    %v6411 = vsel %vm6280, %v6394, 0
    %6413 = vmatprep.subr.mxu0 0.0
    %6414 = vmatpush1.msra.mxu0 %v6108
    %6415 = vmatprep.subr.mxu0 0.0
    %6416 = vmatpush1.msra.mxu0 0.0
    %6417 = vmatprep.subr.mxu0 0.0
    %6418 = vmatpush1.msra.mxu0 0.0
    %6419 = vmatprep.subr.mxu0 0.0
    %6420 = vmatpush1.msra.mxu0 0.0
    %6421 = vmatprep.subr.mxu0 0.0
    %6422 = vmatpush1.msra.mxu0 0.0
    %6423 = vmatprep.subr.mxu0 0.0
    %6424 = vmatpush1.msra.mxu0 0.0
    %6425 = vmatprep.subr.mxu0 0.0
    %6426 = vmatpush1.msra.mxu0 0.0
    %6427 = vmatprep.subr.mxu0 0.0
    %6428 = vmatpush1.msra.mxu0 0.0
    %6429 = vmatprep.subr.mxu0 0.0
    %6430 = vmatpush1.msra.mxu0 0.0
    %6431 = vmatprep.subr.mxu0 0.0
    %6432 = vmatpush1.msra.mxu0 0.0
    %6433 = vmatprep.subr.mxu0 0.0
    %6434 = vmatpush1.msra.mxu0 0.0
    %6435 = vmatprep.subr.mxu0 0.0
    %6436 = vmatpush1.msra.mxu0 0.0
    %6437 = vmatprep.subr.mxu0 0.0
    %6438 = vmatpush1.msra.mxu0 0.0
    %6439 = vmatprep.subr.mxu0 0.0
    %6440 = vmatpush1.msra.mxu0 0.0
    %6441 = vmatprep.subr.mxu0 0.0
    %6442 = vmatpush1.msra.mxu0 0.0
    %6443 = vmatprep.subr.mxu0 0.0
    %6444 = vmatpush1.msra.mxu0 0.0
    %6445 = vmatprep.subr.mxu0 0.0
    %6446 = vmatpush1.msra.mxu0 0.0
    %6447 = vmatprep.subr.mxu0 0.0
    %6448 = vmatpush1.msra.mxu0 0.0
    %6449 = vmatprep.subr.mxu0 0.0
    %6450 = vmatpush1.msra.mxu0 0.0
    %6451 = vmatprep.subr.mxu0 0.0
    %6452 = vmatpush1.msra.mxu0 0.0
    %6453 = vmatprep.subr.mxu0 0.0
    %6454 = vmatpush1.msra.mxu0 0.0
    %6455 = vmatprep.subr.mxu0 0.0
    %6456 = vmatpush1.msra.mxu0 0.0
    %6457 = vmatprep.subr.mxu0 0.0
    %6458 = vmatpush1.msra.mxu0 0.0
    %6459 = vmatprep.subr.mxu0 0.0
    %6460 = vmatpush1.msra.mxu0 0.0
    %6461 = vmatprep.subr.mxu0 0.0
    %6462 = vmatpush1.msra.mxu0 0.0
    %6463 = vmatprep.subr.mxu0 0.0
    %6464 = vmatpush1.msra.mxu0 0.0
    %6465 = vmatprep.subr.mxu0 0.0
    %6466 = vmatpush1.msra.mxu0 0.0
    %6467 = vmatprep.subr.mxu0 0.0
    %6468 = vmatpush1.msra.mxu0 0.0
    %6469 = vmatprep.subr.mxu0 0.0
    %6470 = vmatpush1.msra.mxu0 0.0
    %6471 = vmatprep.subr.mxu0 0.0
    %6472 = vmatpush1.msra.mxu0 0.0
    %6473 = vmatprep.subr.mxu0 0.0
    %6474 = vmatpush1.msra.mxu0 0.0
    %6475 = vmatprep.subr.mxu0 0.0
    %6476 = vmatpush1.msra.mxu0 0.0
    %6477 = vmatprep.mubr.f32.mxu0 0.0
    %6478 = vmatmul.mubr.f32.gmra.mrb[0].mxu0 %v6411
    %v6479 = vpop.f32.mrb[0].mxu0
    %v6480 = vadd.f32 0.0, %v6479
    %v6481 = vpop.f32.mrb[0].mxu0
    %6482 = vdwg.mxu0
    %v6483 = vsel %vm598, %v6480, 0.0
    %6484 = vadd.xlane.f32.xlu0 %v6483
    %v6485 = vpop.xlane.xlu0 %6484
    %vm6486 = vcmp.ne.f32.partialorder %v6485, 0.0
    %v6487 = vsel %vm6486, 1, 0
    %v6488 = vcvt.s32.f32 %v6487
    %v6490 = vlaneseq
    %v6491 = vshrl.u32 %v6490, 7
    %v6492 = vsub.s32 0, %v6491
    %v6493 = vrot.slane %v6369, %v6492
    %v6496 = vsel %vm598, %v6480, 0
    %6498 = vmatprep.subr.mxu0 0.0
    %6499 = vmatpush1.msra.mxu0 %v6345
    %6500 = vmatprep.subr.mxu0 0.0
    %6501 = vmatpush1.msra.mxu0 %v6346
    %6502 = vmatprep.subr.mxu0 0.0
    %6503 = vmatpush1.msra.mxu0 %v6347
    %6504 = vmatprep.subr.mxu0 0.0
    %6505 = vmatpush1.msra.mxu0 %v6348
    %6506 = vmatprep.subr.mxu0 0.0
    %6507 = vmatpush1.msra.mxu0 0.0
    %6508 = vmatprep.subr.mxu0 0.0
    %6509 = vmatpush1.msra.mxu0 0.0
    %6510 = vmatprep.subr.mxu0 0.0
    %6511 = vmatpush1.msra.mxu0 0.0
    %6512 = vmatprep.subr.mxu0 0.0
    %6513 = vmatpush1.msra.mxu0 0.0
    %6514 = vmatprep.subr.mxu0 0.0
    %6515 = vmatpush1.msra.mxu0 0.0
    %6516 = vmatprep.subr.mxu0 0.0
    %6517 = vmatpush1.msra.mxu0 0.0
    %6518 = vmatprep.subr.mxu0 0.0
    %6519 = vmatpush1.msra.mxu0 0.0
    %6520 = vmatprep.subr.mxu0 0.0
    %6521 = vmatpush1.msra.mxu0 0.0
    %6522 = vmatprep.subr.mxu0 0.0
    %6523 = vmatpush1.msra.mxu0 0.0
    %6524 = vmatprep.subr.mxu0 0.0
    %6525 = vmatpush1.msra.mxu0 0.0
    %6526 = vmatprep.subr.mxu0 0.0
    %6527 = vmatpush1.msra.mxu0 0.0
    %6528 = vmatprep.subr.mxu0 0.0
    %6529 = vmatpush1.msra.mxu0 0.0
    %6530 = vmatprep.subr.mxu0 0.0
    %6531 = vmatpush1.msra.mxu0 0.0
    %6532 = vmatprep.subr.mxu0 0.0
    %6533 = vmatpush1.msra.mxu0 0.0
    %6534 = vmatprep.subr.mxu0 0.0
    %6535 = vmatpush1.msra.mxu0 0.0
    %6536 = vmatprep.subr.mxu0 0.0
    %6537 = vmatpush1.msra.mxu0 0.0
    %6538 = vmatprep.subr.mxu0 0.0
    %6539 = vmatpush1.msra.mxu0 0.0
    %6540 = vmatprep.subr.mxu0 0.0
    %6541 = vmatpush1.msra.mxu0 0.0
    %6542 = vmatprep.subr.mxu0 0.0
    %6543 = vmatpush1.msra.mxu0 0.0
    %6544 = vmatprep.subr.mxu0 0.0
    %6545 = vmatpush1.msra.mxu0 0.0
    %6546 = vmatprep.subr.mxu0 0.0
    %6547 = vmatpush1.msra.mxu0 0.0
    %6548 = vmatprep.subr.mxu0 0.0
    %6549 = vmatpush1.msra.mxu0 0.0
    %6550 = vmatprep.subr.mxu0 0.0
    %6551 = vmatpush1.msra.mxu0 0.0
    %6552 = vmatprep.subr.mxu0 0.0
    %6553 = vmatpush1.msra.mxu0 0.0
    %6554 = vmatprep.subr.mxu0 0.0
    %6555 = vmatpush1.msra.mxu0 0.0
    %6556 = vmatprep.subr.mxu0 0.0
    %6557 = vmatpush1.msra.mxu0 0.0
    %6558 = vmatprep.subr.mxu0 0.0
    %6559 = vmatpush1.msra.mxu0 0.0
    %6560 = vmatprep.subr.mxu0 0.0
    %6561 = vmatpush1.msra.mxu0 0.0
    %6562 = vmatprep.mubr.f32.mxu0 0.0
    %6563 = vmatmul.mubr.f32.gmra.mrb[0].mxu0 %v6496
    %v6564 = vpop.f32.mrb[0].mxu0
    %v6565 = vadd.f32 %v6493, %v6564
    %v6566 = vpop.f32.mrb[0].mxu0
    %6567 = vdwg.mxu0
    %vm6568 = vcmp.ge.f32.partialorder %v6565, 0.0
    %v6569 = vmul.f32 %v6565, 0.2
    %v6570 = vsel %vm6568, %v6565, %v6569
    %v6572 = vsel %vm598, %v6570, 0
    %6574 = vmatprep.subr.mxu0 0.0
    %6575 = vmatpush1.xpose.msra.mxu0 %v6572
    %6576 = vmatprep.subr.mxu0 0.0
    %6577 = vmatpush1.xpose.msra.mxu0 0.0
    %6578 = vmatprep.subr.mxu0 0.0
    %6579 = vmatpush1.xpose.msra.mxu0 0.0
    %6580 = vmatprep.subr.mxu0 0.0
    %6581 = vmatpush1.xpose.msra.mxu0 0.0
    %6582 = vmatprep.subr.mxu0 0.0
    %6583 = vmatpush1.xpose.msra.mxu0 0.0
    %6584 = vmatprep.subr.mxu0 0.0
    %6585 = vmatpush1.xpose.msra.mxu0 0.0
    %6586 = vmatprep.subr.mxu0 0.0
    %6587 = vmatpush1.xpose.msra.mxu0 0.0
    %6588 = vmatprep.subr.mxu0 0.0
    %6589 = vmatpush1.xpose.msra.mxu0 0.0
    %6590 = vmatprep.subr.mxu0 0.0
    %6591 = vmatpush1.xpose.msra.mxu0 0.0
    %6592 = vmatprep.subr.mxu0 0.0
    %6593 = vmatpush1.xpose.msra.mxu0 0.0
    %6594 = vmatprep.subr.mxu0 0.0
    %6595 = vmatpush1.xpose.msra.mxu0 0.0
    %6596 = vmatprep.subr.mxu0 0.0
    %6597 = vmatpush1.xpose.msra.mxu0 0.0
    %6598 = vmatprep.subr.mxu0 0.0
    %6599 = vmatpush1.xpose.msra.mxu0 0.0
    %6600 = vmatprep.subr.mxu0 0.0
    %6601 = vmatpush1.xpose.msra.mxu0 0.0
    %6602 = vmatprep.subr.mxu0 0.0
    %6603 = vmatpush1.xpose.msra.mxu0 0.0
    %6604 = vmatprep.subr.mxu0 0.0
    %6605 = vmatpush1.xpose.msra.mxu0 0.0
    %6606 = vmatprep.subr.mxu0 0.0
    %6607 = vmatpush1.xpose.msra.mxu0 0.0
    %6608 = vmatprep.subr.mxu0 0.0
    %6609 = vmatpush1.xpose.msra.mxu0 0.0
    %6610 = vmatprep.subr.mxu0 0.0
    %6611 = vmatpush1.xpose.msra.mxu0 0.0
    %6612 = vmatprep.subr.mxu0 0.0
    %6613 = vmatpush1.xpose.msra.mxu0 0.0
    %6614 = vmatprep.subr.mxu0 0.0
    %6615 = vmatpush1.xpose.msra.mxu0 0.0
    %6616 = vmatprep.subr.mxu0 0.0
    %6617 = vmatpush1.xpose.msra.mxu0 0.0
    %6618 = vmatprep.subr.mxu0 0.0
    %6619 = vmatpush1.xpose.msra.mxu0 0.0
    %6620 = vmatprep.subr.mxu0 0.0
    %6621 = vmatpush1.xpose.msra.mxu0 0.0
    %6622 = vmatprep.subr.mxu0 0.0
    %6623 = vmatpush1.xpose.msra.mxu0 0.0
    %6624 = vmatprep.subr.mxu0 0.0
    %6625 = vmatpush1.xpose.msra.mxu0 0.0
    %6626 = vmatprep.subr.mxu0 0.0
    %6627 = vmatpush1.xpose.msra.mxu0 0.0
    %6628 = vmatprep.subr.mxu0 0.0
    %6629 = vmatpush1.xpose.msra.mxu0 0.0
    %6630 = vmatprep.subr.mxu0 0.0
    %6631 = vmatpush1.xpose.msra.mxu0 0.0
    %6632 = vmatprep.subr.mxu0 0.0
    %6633 = vmatpush1.xpose.msra.mxu0 0.0
    %6634 = vmatprep.subr.mxu0 0.0
    %6635 = vmatpush1.xpose.msra.mxu0 0.0
    %6636 = vmatprep.subr.mxu0 0.0
    %6637 = vmatpush1.xpose.msra.mxu0 0.0
    %6638 = vmatprep.mubr.f32.mxu0 0.0
    %6639 = vmatmul.mubr.f32.gmra.mrb[0].mxu0 %v6118
    %v6640 = vpop.f32.mrb[0].mxu0
    %v6641 = vadd.f32 0.0, %v6640
    %v6642 = vpop.f32.mrb[0].mxu0
    %6643 = vdwg.mxu0
    %v6644 = vmul.f32 %v6570, %v6570
    %v6645 = vsel %vm598, %v6644, 0.0
    %6646 = vadd.xlane.f32.xlu0 %v6645
    %v6647 = vpop.xlane.xlu0 %6646
    %v6648 = vrsqrt.pop %v6647
    %v6649 = vmul.f32 %v6647, %v6648
    %vm6650 = vcmp.eq.f32.partialorder %v6647, inf
    %v6651 = vsel %vm6650, %v6647, %v6649
    %vm6652 = vcmp.eq.f32.partialorder %v6647, 0.0
    %v6653 = vand.u32 %v6647, 2147483648
    %v6654 = vsel %vm6652, %v6653, %v6651
    %v6656 = vsel %vm6201, %v6654, 0
    %6658 = vmatprep.subr.mxu0 0.0
    %6659 = vmatpush1.xpose.msra.mxu0 %v6656
    %6660 = vmatprep.subr.mxu0 0.0
    %6661 = vmatpush1.xpose.msra.mxu0 0.0
    %6662 = vmatprep.subr.mxu0 0.0
    %6663 = vmatpush1.xpose.msra.mxu0 0.0
    %6664 = vmatprep.subr.mxu0 0.0
    %6665 = vmatpush1.xpose.msra.mxu0 0.0
    %6666 = vmatprep.subr.mxu0 0.0
    %6667 = vmatpush1.xpose.msra.mxu0 0.0
    %6668 = vmatprep.subr.mxu0 0.0
    %6669 = vmatpush1.xpose.msra.mxu0 0.0
    %6670 = vmatprep.subr.mxu0 0.0
    %6671 = vmatpush1.xpose.msra.mxu0 0.0
    %6672 = vmatprep.subr.mxu0 0.0
    %6673 = vmatpush1.xpose.msra.mxu0 0.0
    %6674 = vmatprep.subr.mxu0 0.0
    %6675 = vmatpush1.xpose.msra.mxu0 0.0
    %6676 = vmatprep.subr.mxu0 0.0
    %6677 = vmatpush1.xpose.msra.mxu0 0.0
    %6678 = vmatprep.subr.mxu0 0.0
    %6679 = vmatpush1.xpose.msra.mxu0 0.0
    %6680 = vmatprep.subr.mxu0 0.0
    %6681 = vmatpush1.xpose.msra.mxu0 0.0
    %6682 = vmatprep.subr.mxu0 0.0
    %6683 = vmatpush1.xpose.msra.mxu0 0.0
    %6684 = vmatprep.subr.mxu0 0.0
    %6685 = vmatpush1.xpose.msra.mxu0 0.0
    %6686 = vmatprep.subr.mxu0 0.0
    %6687 = vmatpush1.xpose.msra.mxu0 0.0
    %6688 = vmatprep.subr.mxu0 0.0
    %6689 = vmatpush1.xpose.msra.mxu0 0.0
    %6690 = vmatprep.subr.mxu0 0.0
    %6691 = vmatpush1.xpose.msra.mxu0 0.0
    %6692 = vmatprep.subr.mxu0 0.0
    %6693 = vmatpush1.xpose.msra.mxu0 0.0
    %6694 = vmatprep.subr.mxu0 0.0
    %6695 = vmatpush1.xpose.msra.mxu0 0.0
    %6696 = vmatprep.subr.mxu0 0.0
    %6697 = vmatpush1.xpose.msra.mxu0 0.0
    %6698 = vmatprep.subr.mxu0 0.0
    %6699 = vmatpush1.xpose.msra.mxu0 0.0
    %6700 = vmatprep.subr.mxu0 0.0
    %6701 = vmatpush1.xpose.msra.mxu0 0.0
    %6702 = vmatprep.subr.mxu0 0.0
    %6703 = vmatpush1.xpose.msra.mxu0 0.0
    %6704 = vmatprep.subr.mxu0 0.0
    %6705 = vmatpush1.xpose.msra.mxu0 0.0
    %6706 = vmatprep.subr.mxu0 0.0
    %6707 = vmatpush1.xpose.msra.mxu0 0.0
    %6708 = vmatprep.subr.mxu0 0.0
    %6709 = vmatpush1.xpose.msra.mxu0 0.0
    %6710 = vmatprep.subr.mxu0 0.0
    %6711 = vmatpush1.xpose.msra.mxu0 0.0
    %6712 = vmatprep.subr.mxu0 0.0
    %6713 = vmatpush1.xpose.msra.mxu0 0.0
    %6714 = vmatprep.subr.mxu0 0.0
    %6715 = vmatpush1.xpose.msra.mxu0 0.0
    %6716 = vmatprep.subr.mxu0 0.0
    %6717 = vmatpush1.xpose.msra.mxu0 0.0
    %6718 = vmatprep.subr.mxu0 0.0
    %6719 = vmatpush1.xpose.msra.mxu0 0.0
    %6720 = vmatprep.subr.mxu0 0.0
    %6721 = vmatpush1.xpose.msra.mxu0 0.0
    %6722 = vmatprep.mubr.f32.mxu0 0.0
    %6723 = vmatmul.mubr.f32.gmra.mrb[0].mxu0 %v6203
    %v6724 = vpop.f32.mrb[0].mxu0
    %v6725 = vadd.f32 0.0, %v6724
    %v6726 = vpop.f32.mrb[0].mxu0
    %6727 = vdwg.mxu0
    %v6728 = vrcp.pop %v6725
    %v6729 = vmul.f32 %v6641, %v6728
    %vm6730 = vcmp.ne.f32.partialorder %v6729, %v6729
    %v6731 = vsel %vm6730, 0.0, %v6729
    %v6732 = vsel %vm6280, %v6731, -inf
    %v6733 = vrot.slane %v6732, 4
    %v6734 = vmax.f32 %v6732, %v6733
    %v6735 = vrot.slane %v6734, 2
    %v6736 = vmax.f32 %v6734, %v6735
    %v6737 = vrot.slane %v6736, 1
    %v6738 = vmax.f32 %v6736, %v6737
    %v6739 = vsub.f32 %v6731, %v6738
    %v6740 = vmul.f32 %v6739, 1.442695
    %v6741 = vpow.pop %v6740
    %v6742 = vsel %vm6280, %v6741, 0.0
    %v6743 = vrot.slane %v6742, 4
    %v6744 = vadd.f32 %v6742, %v6743
    %v6745 = vrot.slane %v6744, 2
    %v6746 = vadd.f32 %v6744, %v6745
    %v6747 = vrot.slane %v6746, 1
    %v6748 = vadd.f32 %v6746, %v6747
    %v6749 = vrcp.pop %v6748
    %v6750 = vmul.f32 %v6741, %v6749
    %v6751 = vmul.f32 %v6570, %v6488
    %v6753 = vsel %vm6280, %v6750, 0
    %6755 = vmatprep.subr.mxu0 0.0
    %6756 = vmatpush1.msra.mxu0 %v6751
    %6757 = vmatprep.subr.mxu0 0.0
    %6758 = vmatpush1.msra.mxu0 0.0
    %6759 = vmatprep.subr.mxu0 0.0
    %6760 = vmatpush1.msra.mxu0 0.0
    %6761 = vmatprep.subr.mxu0 0.0
    %6762 = vmatpush1.msra.mxu0 0.0
    %6763 = vmatprep.subr.mxu0 0.0
    %6764 = vmatpush1.msra.mxu0 0.0
    %6765 = vmatprep.subr.mxu0 0.0
    %6766 = vmatpush1.msra.mxu0 0.0
    %6767 = vmatprep.subr.mxu0 0.0
    %6768 = vmatpush1.msra.mxu0 0.0
    %6769 = vmatprep.subr.mxu0 0.0
    %6770 = vmatpush1.msra.mxu0 0.0
    %6771 = vmatprep.subr.mxu0 0.0
    %6772 = vmatpush1.msra.mxu0 0.0
    %6773 = vmatprep.subr.mxu0 0.0
    %6774 = vmatpush1.msra.mxu0 0.0
    %6775 = vmatprep.subr.mxu0 0.0
    %6776 = vmatpush1.msra.mxu0 0.0
    %6777 = vmatprep.subr.mxu0 0.0
    %6778 = vmatpush1.msra.mxu0 0.0
    %6779 = vmatprep.subr.mxu0 0.0
    %6780 = vmatpush1.msra.mxu0 0.0
    %6781 = vmatprep.subr.mxu0 0.0
    %6782 = vmatpush1.msra.mxu0 0.0
    %6783 = vmatprep.subr.mxu0 0.0
    %6784 = vmatpush1.msra.mxu0 0.0
    %6785 = vmatprep.subr.mxu0 0.0
    %6786 = vmatpush1.msra.mxu0 0.0
    %6787 = vmatprep.subr.mxu0 0.0
    %6788 = vmatpush1.msra.mxu0 0.0
    %6789 = vmatprep.subr.mxu0 0.0
    %6790 = vmatpush1.msra.mxu0 0.0
    %6791 = vmatprep.subr.mxu0 0.0
    %6792 = vmatpush1.msra.mxu0 0.0
    %6793 = vmatprep.subr.mxu0 0.0
    %6794 = vmatpush1.msra.mxu0 0.0
    %6795 = vmatprep.subr.mxu0 0.0
    %6796 = vmatpush1.msra.mxu0 0.0
    %6797 = vmatprep.subr.mxu0 0.0
    %6798 = vmatpush1.msra.mxu0 0.0
    %6799 = vmatprep.subr.mxu0 0.0
    %6800 = vmatpush1.msra.mxu0 0.0
    %6801 = vmatprep.subr.mxu0 0.0
    %6802 = vmatpush1.msra.mxu0 0.0
    %6803 = vmatprep.subr.mxu0 0.0
    %6804 = vmatpush1.msra.mxu0 0.0
    %6805 = vmatprep.subr.mxu0 0.0
    %6806 = vmatpush1.msra.mxu0 0.0
    %6807 = vmatprep.subr.mxu0 0.0
    %6808 = vmatpush1.msra.mxu0 0.0
    %6809 = vmatprep.subr.mxu0 0.0
    %6810 = vmatpush1.msra.mxu0 0.0
    %6811 = vmatprep.subr.mxu0 0.0
    %6812 = vmatpush1.msra.mxu0 0.0
    %6813 = vmatprep.subr.mxu0 0.0
    %6814 = vmatpush1.msra.mxu0 0.0
    %6815 = vmatprep.subr.mxu0 0.0
    %6816 = vmatpush1.msra.mxu0 0.0
    %6817 = vmatprep.subr.mxu0 0.0
    %6818 = vmatpush1.msra.mxu0 0.0
    %6819 = vmatprep.mubr.f32.mxu0 0.0
    %6820 = vmatmul.mubr.f32.gmra.mrb[0].mxu0 %v6753
    %v6821 = vpop.f32.mrb[0].mxu0
    %v6822 = vadd.f32 0.0, %v6821
    %v6823 = vpop.f32.mrb[0].mxu0
    %6824 = vdwg.mxu0
    %v6826 = vlaneseq
    %v6827 = vshrl.u32 %v6826, 7
    %v6828 = vsub.s32 0, %v6827
    %v6829 = vrot.slane %v6371, %v6828
    %v6832 = vsel %vm598, %v6822, 0
    %6834 = vmatprep.subr.mxu0 0.0
    %6835 = vmatpush1.msra.mxu0 %v6350
    %6836 = vmatprep.subr.mxu0 0.0
    %6837 = vmatpush1.msra.mxu0 %v6351
    %6838 = vmatprep.subr.mxu0 0.0
    %6839 = vmatpush1.msra.mxu0 %v6352
    %6840 = vmatprep.subr.mxu0 0.0
    %6841 = vmatpush1.msra.mxu0 %v6353
    %6842 = vmatprep.subr.mxu0 0.0
    %6843 = vmatpush1.msra.mxu0 0.0
    %6844 = vmatprep.subr.mxu0 0.0
    %6845 = vmatpush1.msra.mxu0 0.0
    %6846 = vmatprep.subr.mxu0 0.0
    %6847 = vmatpush1.msra.mxu0 0.0
    %6848 = vmatprep.subr.mxu0 0.0
    %6849 = vmatpush1.msra.mxu0 0.0
    %6850 = vmatprep.subr.mxu0 0.0
    %6851 = vmatpush1.msra.mxu0 0.0
    %6852 = vmatprep.subr.mxu0 0.0
    %6853 = vmatpush1.msra.mxu0 0.0
    %6854 = vmatprep.subr.mxu0 0.0
    %6855 = vmatpush1.msra.mxu0 0.0
    %6856 = vmatprep.subr.mxu0 0.0
    %6857 = vmatpush1.msra.mxu0 0.0
    %6858 = vmatprep.subr.mxu0 0.0
    %6859 = vmatpush1.msra.mxu0 0.0
    %6860 = vmatprep.subr.mxu0 0.0
    %6861 = vmatpush1.msra.mxu0 0.0
    %6862 = vmatprep.subr.mxu0 0.0
    %6863 = vmatpush1.msra.mxu0 0.0
    %6864 = vmatprep.subr.mxu0 0.0
    %6865 = vmatpush1.msra.mxu0 0.0
    %6866 = vmatprep.subr.mxu0 0.0
    %6867 = vmatpush1.msra.mxu0 0.0
    %6868 = vmatprep.subr.mxu0 0.0
    %6869 = vmatpush1.msra.mxu0 0.0
    %6870 = vmatprep.subr.mxu0 0.0
    %6871 = vmatpush1.msra.mxu0 0.0
    %6872 = vmatprep.subr.mxu0 0.0
    %6873 = vmatpush1.msra.mxu0 0.0
    %6874 = vmatprep.subr.mxu0 0.0
    %6875 = vmatpush1.msra.mxu0 0.0
    %6876 = vmatprep.subr.mxu0 0.0
    %6877 = vmatpush1.msra.mxu0 0.0
    %6878 = vmatprep.subr.mxu0 0.0
    %6879 = vmatpush1.msra.mxu0 0.0
    %6880 = vmatprep.subr.mxu0 0.0
    %6881 = vmatpush1.msra.mxu0 0.0
    %6882 = vmatprep.subr.mxu0 0.0
    %6883 = vmatpush1.msra.mxu0 0.0
    %6884 = vmatprep.subr.mxu0 0.0
    %6885 = vmatpush1.msra.mxu0 0.0
    %6886 = vmatprep.subr.mxu0 0.0
    %6887 = vmatpush1.msra.mxu0 0.0
    %6888 = vmatprep.subr.mxu0 0.0
    %6889 = vmatpush1.msra.mxu0 0.0
    %6890 = vmatprep.subr.mxu0 0.0
    %6891 = vmatpush1.msra.mxu0 0.0
    %6892 = vmatprep.subr.mxu0 0.0
    %6893 = vmatpush1.msra.mxu0 0.0
    %6894 = vmatprep.subr.mxu0 0.0
    %6895 = vmatpush1.msra.mxu0 0.0
    %6896 = vmatprep.subr.mxu0 0.0
    %6897 = vmatpush1.msra.mxu0 0.0
    %6898 = vmatprep.mubr.f32.mxu0 0.0
    %6899 = vmatmul.mubr.f32.gmra.mrb[0].mxu0 %v6832
    %v6900 = vpop.f32.mrb[0].mxu0
    %v6901 = vadd.f32 %v6829, %v6900
    %v6902 = vpop.f32.mrb[0].mxu0
    %6903 = vdwg.mxu0
    %vm6904 = vcmp.ge.f32.partialorder %v6901, 0.0
    %v6905 = vmul.f32 %v6901, 0.2
    %v6906 = vsel %vm6904, %v6901, %v6905
    %v6908 = vlaneseq
    %v6909 = vshrl.u32 %v6908, 7
    %v6910 = vsub.s32 0, %v6909
    %v6911 = vrot.slane %v6375, %v6910
    %v6914 = vsel %vm598, %v6906, 0
    %6916 = vmatprep.subr.mxu0 0.0
    %6917 = vmatpush1.msra.mxu0 %v6360
    %6918 = vmatprep.subr.mxu0 0.0
    %6919 = vmatpush1.msra.mxu0 %v6361
    %6920 = vmatprep.subr.mxu0 0.0
    %6921 = vmatpush1.msra.mxu0 %v6362
    %6922 = vmatprep.subr.mxu0 0.0
    %6923 = vmatpush1.msra.mxu0 %v6363
    %6924 = vmatprep.subr.mxu0 0.0
    %6925 = vmatpush1.msra.mxu0 0.0
    %6926 = vmatprep.subr.mxu0 0.0
    %6927 = vmatpush1.msra.mxu0 0.0
    %6928 = vmatprep.subr.mxu0 0.0
    %6929 = vmatpush1.msra.mxu0 0.0
    %6930 = vmatprep.subr.mxu0 0.0
    %6931 = vmatpush1.msra.mxu0 0.0
    %6932 = vmatprep.subr.mxu0 0.0
    %6933 = vmatpush1.msra.mxu0 0.0
    %6934 = vmatprep.subr.mxu0 0.0
    %6935 = vmatpush1.msra.mxu0 0.0
    %6936 = vmatprep.subr.mxu0 0.0
    %6937 = vmatpush1.msra.mxu0 0.0
    %6938 = vmatprep.subr.mxu0 0.0
    %6939 = vmatpush1.msra.mxu0 0.0
    %6940 = vmatprep.subr.mxu0 0.0
    %6941 = vmatpush1.msra.mxu0 0.0
    %6942 = vmatprep.subr.mxu0 0.0
    %6943 = vmatpush1.msra.mxu0 0.0
    %6944 = vmatprep.subr.mxu0 0.0
    %6945 = vmatpush1.msra.mxu0 0.0
    %6946 = vmatprep.subr.mxu0 0.0
    %6947 = vmatpush1.msra.mxu0 0.0
    %6948 = vmatprep.subr.mxu0 0.0
    %6949 = vmatpush1.msra.mxu0 0.0
    %6950 = vmatprep.subr.mxu0 0.0
    %6951 = vmatpush1.msra.mxu0 0.0
    %6952 = vmatprep.subr.mxu0 0.0
    %6953 = vmatpush1.msra.mxu0 0.0
    %6954 = vmatprep.subr.mxu0 0.0
    %6955 = vmatpush1.msra.mxu0 0.0
    %6956 = vmatprep.subr.mxu0 0.0
    %6957 = vmatpush1.msra.mxu0 0.0
    %6958 = vmatprep.subr.mxu0 0.0
    %6959 = vmatpush1.msra.mxu0 0.0
    %6960 = vmatprep.subr.mxu0 0.0
    %6961 = vmatpush1.msra.mxu0 0.0
    %6962 = vmatprep.subr.mxu0 0.0
    %6963 = vmatpush1.msra.mxu0 0.0
    %6964 = vmatprep.subr.mxu0 0.0
    %6965 = vmatpush1.msra.mxu0 0.0
    %6966 = vmatprep.subr.mxu0 0.0
    %6967 = vmatpush1.msra.mxu0 0.0
    %6968 = vmatprep.subr.mxu0 0.0
    %6969 = vmatpush1.msra.mxu0 0.0
    %6970 = vmatprep.subr.mxu0 0.0
    %6971 = vmatpush1.msra.mxu0 0.0
    %6972 = vmatprep.subr.mxu0 0.0
    %6973 = vmatpush1.msra.mxu0 0.0
    %6974 = vmatprep.subr.mxu0 0.0
    %6975 = vmatpush1.msra.mxu0 0.0
    %6976 = vmatprep.subr.mxu0 0.0
    %6977 = vmatpush1.msra.mxu0 0.0
    %6978 = vmatprep.subr.mxu0 0.0
    %6979 = vmatpush1.msra.mxu0 0.0
    %6980 = vmatprep.mubr.f32.mxu0 0.0
    %6981 = vmatmul.mubr.f32.gmra.mrb[0].mxu0 %v6914
    %v6982 = vpop.f32.mrb[0].mxu0
    %v6983 = vadd.f32 %v6911, %v6982
    %v6984 = vpop.f32.mrb[0].mxu0
    %6985 = vdwg.mxu0
    %vm6986 = vcmp.ge.f32.partialorder %v6983, 0.0
    %v6987 = vmul.f32 %v6983, 0.2
    %v6988 = vsel %vm6986, %v6983, %v6987
    %v6990 = vlaneseq
    %v6991 = vshrl.u32 %v6990, 7
    %v6992 = vsub.s32 0, %v6991
    %v6993 = vrot.slane %v6373, %v6992
    %6995 = vmatprep.subr.mxu0 0.0
    %6996 = vmatpush1.msra.mxu0 %v6355
    %6997 = vmatprep.subr.mxu0 0.0
    %6998 = vmatpush1.msra.mxu0 %v6356
    %6999 = vmatprep.subr.mxu0 0.0
    %7000 = vmatpush1.msra.mxu0 %v6357
    %7001 = vmatprep.subr.mxu0 0.0
    %7002 = vmatpush1.msra.mxu0 %v6358
    %7003 = vmatprep.subr.mxu0 0.0
    %7004 = vmatpush1.msra.mxu0 0.0
    %7005 = vmatprep.subr.mxu0 0.0
    %7006 = vmatpush1.msra.mxu0 0.0
    %7007 = vmatprep.subr.mxu0 0.0
    %7008 = vmatpush1.msra.mxu0 0.0
    %7009 = vmatprep.subr.mxu0 0.0
    %7010 = vmatpush1.msra.mxu0 0.0
    %7011 = vmatprep.subr.mxu0 0.0
    %7012 = vmatpush1.msra.mxu0 0.0
    %7013 = vmatprep.subr.mxu0 0.0
    %7014 = vmatpush1.msra.mxu0 0.0
    %7015 = vmatprep.subr.mxu0 0.0
    %7016 = vmatpush1.msra.mxu0 0.0
    %7017 = vmatprep.subr.mxu0 0.0
    %7018 = vmatpush1.msra.mxu0 0.0
    %7019 = vmatprep.subr.mxu0 0.0
    %7020 = vmatpush1.msra.mxu0 0.0
    %7021 = vmatprep.subr.mxu0 0.0
    %7022 = vmatpush1.msra.mxu0 0.0
    %7023 = vmatprep.subr.mxu0 0.0
    %7024 = vmatpush1.msra.mxu0 0.0
    %7025 = vmatprep.subr.mxu0 0.0
    %7026 = vmatpush1.msra.mxu0 0.0
    %7027 = vmatprep.subr.mxu0 0.0
    %7028 = vmatpush1.msra.mxu0 0.0
    %7029 = vmatprep.subr.mxu0 0.0
    %7030 = vmatpush1.msra.mxu0 0.0
    %7031 = vmatprep.subr.mxu0 0.0
    %7032 = vmatpush1.msra.mxu0 0.0
    %7033 = vmatprep.subr.mxu0 0.0
    %7034 = vmatpush1.msra.mxu0 0.0
    %7035 = vmatprep.subr.mxu0 0.0
    %7036 = vmatpush1.msra.mxu0 0.0
    %7037 = vmatprep.subr.mxu0 0.0
    %7038 = vmatpush1.msra.mxu0 0.0
    %7039 = vmatprep.subr.mxu0 0.0
    %7040 = vmatpush1.msra.mxu0 0.0
    %7041 = vmatprep.subr.mxu0 0.0
    %7042 = vmatpush1.msra.mxu0 0.0
    %7043 = vmatprep.subr.mxu0 0.0
    %7044 = vmatpush1.msra.mxu0 0.0
    %7045 = vmatprep.subr.mxu0 0.0
    %7046 = vmatpush1.msra.mxu0 0.0
    %7047 = vmatprep.subr.mxu0 0.0
    %7048 = vmatpush1.msra.mxu0 0.0
    %7049 = vmatprep.subr.mxu0 0.0
    %7050 = vmatpush1.msra.mxu0 0.0
    %7051 = vmatprep.subr.mxu0 0.0
    %7052 = vmatpush1.msra.mxu0 0.0
    %7053 = vmatprep.subr.mxu0 0.0
    %7054 = vmatpush1.msra.mxu0 0.0
    %7055 = vmatprep.subr.mxu0 0.0
    %7056 = vmatpush1.msra.mxu0 0.0
    %7057 = vmatprep.subr.mxu0 0.0
    %7058 = vmatpush1.msra.mxu0 0.0
    %7059 = vmatprep.mubr.f32.mxu0 0.0
    %7060 = vmatmul.mubr.f32.gmra.mrb[0].mxu0 %v6914
    %v7061 = vpop.f32.mrb[0].mxu0
    %v7062 = vadd.f32 %v6993, %v7061
    %v7063 = vpop.f32.mrb[0].mxu0
    %7064 = vdwg.mxu0
    %vm7065 = vcmp.ge.f32.partialorder %v7062, 0.0
    %v7066 = vmul.f32 %v7062, 0.2
    %v7067 = vsel %vm7065, %v7062, %v7066
    %v7068 = vsub.f32 %v6108, %v6988
    %v7070 = vlaneseq
    %v7071 = vshrl.u32 %v7070, 7
    %v7072 = vsub.s32 0, %v7071
    %v7073 = vrot.slane %v6377, %v7072
    %v7076 = vsel %vm598, %v7068, 0
    %7078 = vmatprep.subr.mxu0 0.0
    %7079 = vmatpush1.msra.mxu0 %v6365
    %7080 = vmatprep.subr.mxu0 0.0
    %7081 = vmatpush1.msra.mxu0 %v6366
    %7082 = vmatprep.subr.mxu0 0.0
    %7083 = vmatpush1.msra.mxu0 %v6367
    %7084 = vmatprep.subr.mxu0 0.0
    %7085 = vmatpush1.msra.mxu0 %v6368
    %7086 = vmatprep.subr.mxu0 0.0
    %7087 = vmatpush1.msra.mxu0 0.0
    %7088 = vmatprep.subr.mxu0 0.0
    %7089 = vmatpush1.msra.mxu0 0.0
    %7090 = vmatprep.subr.mxu0 0.0
    %7091 = vmatpush1.msra.mxu0 0.0
    %7092 = vmatprep.subr.mxu0 0.0
    %7093 = vmatpush1.msra.mxu0 0.0
    %7094 = vmatprep.subr.mxu0 0.0
    %7095 = vmatpush1.msra.mxu0 0.0
    %7096 = vmatprep.subr.mxu0 0.0
    %7097 = vmatpush1.msra.mxu0 0.0
    %7098 = vmatprep.subr.mxu0 0.0
    %7099 = vmatpush1.msra.mxu0 0.0
    %7100 = vmatprep.subr.mxu0 0.0
    %7101 = vmatpush1.msra.mxu0 0.0
    %7102 = vmatprep.subr.mxu0 0.0
    %7103 = vmatpush1.msra.mxu0 0.0
    %7104 = vmatprep.subr.mxu0 0.0
    %7105 = vmatpush1.msra.mxu0 0.0
    %7106 = vmatprep.subr.mxu0 0.0
    %7107 = vmatpush1.msra.mxu0 0.0
    %7108 = vmatprep.subr.mxu0 0.0
    %7109 = vmatpush1.msra.mxu0 0.0
    %7110 = vmatprep.subr.mxu0 0.0
    %7111 = vmatpush1.msra.mxu0 0.0
    %7112 = vmatprep.subr.mxu0 0.0
    %7113 = vmatpush1.msra.mxu0 0.0
    %7114 = vmatprep.subr.mxu0 0.0
    %7115 = vmatpush1.msra.mxu0 0.0
    %7116 = vmatprep.subr.mxu0 0.0
    %7117 = vmatpush1.msra.mxu0 0.0
    %7118 = vmatprep.subr.mxu0 0.0
    %7119 = vmatpush1.msra.mxu0 0.0
    %7120 = vmatprep.subr.mxu0 0.0
    %7121 = vmatpush1.msra.mxu0 0.0
    %7122 = vmatprep.subr.mxu0 0.0
    %7123 = vmatpush1.msra.mxu0 0.0
    %7124 = vmatprep.subr.mxu0 0.0
    %7125 = vmatpush1.msra.mxu0 0.0
    %7126 = vmatprep.subr.mxu0 0.0
    %7127 = vmatpush1.msra.mxu0 0.0
    %7128 = vmatprep.subr.mxu0 0.0
    %7129 = vmatpush1.msra.mxu0 0.0
    %7130 = vmatprep.subr.mxu0 0.0
    %7131 = vmatpush1.msra.mxu0 0.0
    %7132 = vmatprep.subr.mxu0 0.0
    %7133 = vmatpush1.msra.mxu0 0.0
    %7134 = vmatprep.subr.mxu0 0.0
    %7135 = vmatpush1.msra.mxu0 0.0
    %7136 = vmatprep.subr.mxu0 0.0
    %7137 = vmatpush1.msra.mxu0 0.0
    %7138 = vmatprep.subr.mxu0 0.0
    %7139 = vmatpush1.msra.mxu0 0.0
    %7140 = vmatprep.subr.mxu0 0.0
    %7141 = vmatpush1.msra.mxu0 0.0
    %7142 = vmatprep.mubr.f32.mxu0 0.0
    %7143 = vmatmul.mubr.f32.gmra.mrb[0].mxu0 %v7076
    %v7144 = vpop.f32.mrb[0].mxu0
    %v7145 = vadd.f32 %v7073, %v7144
    %v7146 = vpop.f32.mrb[0].mxu0
    %7147 = vdwg.mxu0
    %vm7148 = vcmp.ge.f32.partialorder %v7145, 0.0
    %v7149 = vmul.f32 %v7145, 0.2
    %v7150 = vsel %vm7148, %v7145, %v7149
    %v7151 = vadd.f32 %v7067, %v7150
    %v7152 = vld [vmem:[%s11] sm:$0xff]
    %v7153 = vld [vmem:[%s11 + $0x8] sm:$0xff]
    %v7154 = vld [vmem:[%s11 + $0x10] sm:$0xff]
    %v7155 = vld [vmem:[%s11 + $0x18] sm:$0xff]
    %v7156 = vld [vmem:[#allocation2] sm:$0x1]
    %v7158 = vlaneseq
    %v7159 = vshrl.u32 %v7158, 7
    %v7160 = vsub.s32 0, %v7159
    %v7161 = vrot.slane %v7156, %v7160
    %v7164 = vsel %vm598, %v7151, 0
    %7166 = vmatprep.subr.mxu0 0.0
    %7167 = vmatpush1.msra.mxu0 %v7152
    %7168 = vmatprep.subr.mxu0 0.0
    %7169 = vmatpush1.msra.mxu0 %v7153
    %7170 = vmatprep.subr.mxu0 0.0
    %7171 = vmatpush1.msra.mxu0 %v7154
    %7172 = vmatprep.subr.mxu0 0.0
    %7173 = vmatpush1.msra.mxu0 %v7155
    %7174 = vmatprep.subr.mxu0 0.0
    %7175 = vmatpush1.msra.mxu0 0.0
    %7176 = vmatprep.subr.mxu0 0.0
    %7177 = vmatpush1.msra.mxu0 0.0
    %7178 = vmatprep.subr.mxu0 0.0
    %7179 = vmatpush1.msra.mxu0 0.0
    %7180 = vmatprep.subr.mxu0 0.0
    %7181 = vmatpush1.msra.mxu0 0.0
    %7182 = vmatprep.subr.mxu0 0.0
    %7183 = vmatpush1.msra.mxu0 0.0
    %7184 = vmatprep.subr.mxu0 0.0
    %7185 = vmatpush1.msra.mxu0 0.0
    %7186 = vmatprep.subr.mxu0 0.0
    %7187 = vmatpush1.msra.mxu0 0.0
    %7188 = vmatprep.subr.mxu0 0.0
    %7189 = vmatpush1.msra.mxu0 0.0
    %7190 = vmatprep.subr.mxu0 0.0
    %7191 = vmatpush1.msra.mxu0 0.0
    %7192 = vmatprep.subr.mxu0 0.0
    %7193 = vmatpush1.msra.mxu0 0.0
    %7194 = vmatprep.subr.mxu0 0.0
    %7195 = vmatpush1.msra.mxu0 0.0
    %7196 = vmatprep.subr.mxu0 0.0
    %7197 = vmatpush1.msra.mxu0 0.0
    %7198 = vmatprep.subr.mxu0 0.0
    %7199 = vmatpush1.msra.mxu0 0.0
    %7200 = vmatprep.subr.mxu0 0.0
    %7201 = vmatpush1.msra.mxu0 0.0
    %7202 = vmatprep.subr.mxu0 0.0
    %7203 = vmatpush1.msra.mxu0 0.0
    %7204 = vmatprep.subr.mxu0 0.0
    %7205 = vmatpush1.msra.mxu0 0.0
    %7206 = vmatprep.subr.mxu0 0.0
    %7207 = vmatpush1.msra.mxu0 0.0
    %7208 = vmatprep.subr.mxu0 0.0
    %7209 = vmatpush1.msra.mxu0 0.0
    %7210 = vmatprep.subr.mxu0 0.0
    %7211 = vmatpush1.msra.mxu0 0.0
    %7212 = vmatprep.subr.mxu0 0.0
    %7213 = vmatpush1.msra.mxu0 0.0
    %7214 = vmatprep.subr.mxu0 0.0
    %7215 = vmatpush1.msra.mxu0 0.0
    %7216 = vmatprep.subr.mxu0 0.0
    %7217 = vmatpush1.msra.mxu0 0.0
    %7218 = vmatprep.subr.mxu0 0.0
    %7219 = vmatpush1.msra.mxu0 0.0
    %7220 = vmatprep.subr.mxu0 0.0
    %7221 = vmatpush1.msra.mxu0 0.0
    %7222 = vmatprep.subr.mxu0 0.0
    %7223 = vmatpush1.msra.mxu0 0.0
    %7224 = vmatprep.subr.mxu0 0.0
    %7225 = vmatpush1.msra.mxu0 0.0
    %7226 = vmatprep.subr.mxu0 0.0
    %7227 = vmatpush1.msra.mxu0 0.0
    %7228 = vmatprep.subr.mxu0 0.0
    %7229 = vmatpush1.msra.mxu0 0.0
    %7230 = vmatprep.mubr.f32.mxu0 0.0
    %7231 = vmatmul.mubr.f32.gmra.mrb[0].mxu0 %v7164
    %v7232 = vpop.f32.mrb[0].mxu0
    %v7233 = vadd.f32 %v7161, %v7232
    %v7234 = vpop.f32.mrb[0].mxu0
    %7235 = vdwg.mxu0
    %7236 = vst.msk [vmem:[%s13] sm:$0xff] %vm6201, %v7233
    // Predicated region
    $region86: #{sga_forward.1} parent=1 // pred_check
      _
    $region87: #{sga_forward.1} parent=1 // pred_check_branch
      %7238 = sbr.rel (0) target = $region89
    $region88: #{sga_forward.1} parent=1 // pred_region
      _
    $region89: #{sga_forward.1} parent=1 // pred_fallthru
      _
    // Predicated region
    $region90: #{sga_forward.1} parent=1 // pred_check
      _
    $region91: #{sga_forward.1} parent=1 // pred_check_branch
      %7240 = sbr.rel (0) target = $region93
    $region92: #{sga_forward.1} parent=1 // pred_region
      _
    $region93: #{sga_forward.1} parent=1 // pred_fallthru
      _
    %7241 = vsyncpa [#allocation4], 1
    %7242 = vsyncpa [#allocation6], 1
    %7243 = vsyncpa [#allocation9], 1
    %7244 = vsyncpa [#allocation12], 1
    %7245 = vsyncpa [#allocation15], 1

</llo_original>
